<compile_context>
chip_gen: v7x
topology: tpu7x:2x2x1
jax: 0.10.0
libtpu: 0.0.40
codegen_flags: <defaults>
</compile_context>

<pallas_src>
import jax
import jax.numpy as jnp
from jax.experimental import pallas as pl
from jax.experimental.pallas import tpu as pltpu

TK_MAX = 2048     # K-chunk of the fMRI feature dim (w1 chunk = 4 MiB bf16)
BM_MAX = 512      # max batch tile (acc scratch = 2 MiB f32)
HID1 = 1024
HID2 = 64


def _round_up(x, m):
    return (x + m - 1) // m * m


def decoder_kernel(x_ref, w1_ref, b1_ref, w2_ref, b2_ref, w3_ref, b3_ref,
                   out_ref, acc_ref):
    """One (batch-tile, K-chunk) grid step.

    x_ref  : [bm, tk]    bf16   K-chunk of the flattened fMRI batch tile
    w1_ref : [tk, 1024]  bf16   matching K-chunk of layer-1 weights
    b1_ref : [1, 1024]   f32
    w2_ref : [1024, 64]  bf16
    b2_ref : [1, 64]     f32
    w3_ref : [64, 64]    f32    classifier weights zero-padded from [64, 2]
    b3_ref : [1, 64]     f32    zero-padded from [1, 2]
    out_ref: [bm, 128]   f32    lane-dense slab: sem -> lanes 0..63, cls -> 64..65
    acc_ref: [bm, 1024]  f32    layer-1 accumulator, resident across the K axis
    """
    k = pl.program_id(1)

    @pl.when(k == 0)
    def _init():
        acc_ref[...] = jnp.zeros_like(acc_ref)

    # Layer-1 partial product on the MXU (bf16 in, f32 accumulate).
    acc_ref[...] += jnp.dot(x_ref[...], w1_ref[...],
                            preferred_element_type=jnp.float32)

    @pl.when(k == pl.num_programs(1) - 1)
    def _finish():
        # Bias + tanh in f32, then layers 2 and 3 (tiny, MXU/VPU/EUP).
        h1 = jnp.tanh(acc_ref[...] + b1_ref[...])
        sem = jnp.tanh(
            jnp.dot(h1.astype(w2_ref.dtype), w2_ref[...],
                    preferred_element_type=jnp.float32) + b2_ref[...])
        cls = jax.nn.sigmoid(
            jnp.dot(sem, w3_ref[...],
                    preferred_element_type=jnp.float32) + b3_ref[...])
        # One full-width unmasked 128-lane store (sem | cls-padded).
        out_ref[...] = jnp.concatenate([sem, cls], axis=-1).astype(out_ref.dtype)


def prepare_decoder_params(w1, b1, w2, b2, w3, b3):
    """One-time (model-load) cast/pad of the Decoder weights for the kernel.

    w1: [F, 1024], b1: [1024] or [1,1024], w2: [1024, 64], b2: [64],
    w3: [64, 2],   b3: [2].
    Returns a tuple of device arrays consumed by decoder_forward.
    """
    F = w1.shape[0]
    F_pad = _round_up(F, 128)
    if F_pad > TK_MAX:
        F_pad = _round_up(F, TK_MAX)

    w1b = jnp.zeros((F_pad, HID1), jnp.bfloat16)
    w1b = w1b.at[:F, :].set(w1.astype(jnp.bfloat16))
    b1f = b1.astype(jnp.float32).reshape(1, HID1)
    w2b = w2.astype(jnp.bfloat16)
    b2f = b2.astype(jnp.float32).reshape(1, HID2)
    # Pad the tiny classifier head to 64 output lanes; padding lanes are
    # discarded by the wrapper slice (they hold sigmoid(0) = 0.5).
    w3p = jnp.zeros((HID2, 64), jnp.float32).at[:, :2].set(w3.astype(jnp.float32))
    b3p = jnp.zeros((1, 64), jnp.float32).at[:, :2].set(
        b3.astype(jnp.float32).reshape(1, -1))
    return (w1b, b1f, w2b, b2f, w3p, b3p)


@jax.jit
def decoder_forward(fmri, w1b, b1f, w2b, b2f, w3p, b3p):
    """Pallas Decoder forward with pre-prepared params.

    Returns (classification [B, 2], semantics [B, 64])."""
    # Replicate `fmri.view(fmri.shape[0], -1)`.
    fmri_flat = fmri.reshape(fmri.shape[0], -1)
    B, F = fmri_flat.shape
    F_pad = w1b.shape[0]
    assert F <= F_pad, "fmri feature dim larger than prepared w1"

    # --- reduction (K) tiling over the fMRI feature dim --------------------
    tk = TK_MAX if F_pad >= TK_MAX else F_pad

    # --- batch (M) tiling (bf16 rows pack in 16s) ---------------------------
    B_pad = _round_up(max(B, 16), 16)
    if B_pad > BM_MAX:
        B_pad = _round_up(B, BM_MAX)
        bm = BM_MAX
    else:
        bm = B_pad

    # --- per-call activation cast / zero-pad (x only; weights are prepped) --
    xb = fmri_flat.astype(jnp.bfloat16)
    if B_pad != B or F_pad != F:
        xb = jnp.zeros((B_pad, F_pad), jnp.bfloat16).at[:B, :F].set(xb)

    grid = (B_pad // bm, F_pad // tk)

    out = pl.pallas_call(
        decoder_kernel,
        out_shape=jax.ShapeDtypeStruct((B_pad, 128), jnp.float32),
        grid=grid,
        in_specs=[
            pl.BlockSpec((bm, tk), lambda i, k: (i, k)),       # x  (K-chunked)
            pl.BlockSpec((tk, HID1), lambda i, k: (k, 0)),     # w1 (K-chunked)
            pl.BlockSpec((1, HID1), lambda i, k: (0, 0)),      # b1
            pl.BlockSpec((HID1, HID2), lambda i, k: (0, 0)),   # w2
            pl.BlockSpec((1, HID2), lambda i, k: (0, 0)),      # b2
            pl.BlockSpec((HID2, 64), lambda i, k: (0, 0)),     # w3 (padded)
            pl.BlockSpec((1, 64), lambda i, k: (0, 0)),        # b3 (padded)
        ],
        out_specs=pl.BlockSpec((bm, 128), lambda i, k: (i, 0)),
        scratch_shapes=[pltpu.VMEM((bm, HID1), jnp.float32)],
        compiler_params=pltpu.CompilerParams(
            dimension_semantics=("parallel", "arbitrary"),
            vmem_limit_bytes=48 * 1024 * 1024),
    )(xb, w1b, b1f, w2b, b2f, w3p, b3p)

    sem = out[:B, 0:HID2]
    cls = out[:B, HID2:HID2 + 2]
    return cls, sem


def init_linear(key, fan_in, fan_out):
    """Matches nn.Linear's uniform(-1/sqrt(fan_in), 1/sqrt(fan_in)) init.
    Returns W [fan_in, fan_out] (transposed vs PyTorch) and b [1, fan_out]."""
    kw, kb = jax.random.split(key)
    bound = 1.0 / jnp.sqrt(jnp.float32(fan_in))
    w = jax.random.uniform(kw, (fan_in, fan_out), jnp.float32, -bound, bound)
    b = jax.random.uniform(kb, (1, fan_out), jnp.float32, -bound, bound)
    return w, b


def reference_forward_f32(x, w1, b1, w2, b2, w3, b3):
    sem = jnp.tanh(jnp.tanh(x @ w1 + b1) @ w2 + b2)
    cls = jax.nn.sigmoid(sem @ w3 + b3)
    return cls, sem


def reference_forward_bf16(x, w1, b1, w2, b2, w3, b3):
    """Same bf16-weight/activation, f32-accumulate recipe as the kernel."""
    h1 = jnp.tanh(jnp.dot(x.astype(jnp.bfloat16), w1.astype(jnp.bfloat16),
                          preferred_element_type=jnp.float32) + b1)
    sem = jnp.tanh(jnp.dot(h1.astype(jnp.bfloat16), w2.astype(jnp.bfloat16),
                           preferred_element_type=jnp.float32) + b2)
    cls = jax.nn.sigmoid(sem @ w3 + b3)
    return cls, sem


if __name__ == "__main__":
    key = jax.random.PRNGKey(0)
    k_x, k1, k2, k3 = jax.random.split(key, 4)

    batch = 8
    fmri_size = 4096  # flattened fMRI feature dim -> 2 pipelined K steps of 2048

    fmri = jax.random.normal(k_x, (batch, fmri_size), jnp.float32)

    w1, b1 = init_linear(k1, fmri_size, HID1)
    w2, b2 = init_linear(k2, HID1, HID2)
    w3, b3 = init_linear(k3, HID2, 2)

    # One-time weight prep (hoisted out of the per-call path).
    params = prepare_decoder_params(w1, b1, w2, b2, w3, b3)
    params = jax.block_until_ready(params)

    cls_out, sem_out = decoder_forward(fmri, *params)
    jax.block_until_ready((cls_out, sem_out))

    assert cls_out.shape == (batch, 2) and sem_out.shape == (batch, HID2)

    x_flat = fmri.reshape(batch, -1)
    # Tight check against an identically-quantized (bf16 weight/act) reference.
    cls_q, sem_q = reference_forward_bf16(x_flat, w1, b1, w2, b2, w3, b3)
    assert jnp.allclose(cls_out, cls_q, atol=2e-3, rtol=2e-3)
    assert jnp.allclose(sem_out, sem_q, atol=2e-3, rtol=2e-3)
    # Looser sanity check against the full-f32 reference (module semantics).
    cls_f, sem_f = reference_forward_f32(x_flat, w1, b1, w2, b2, w3, b3)
    assert jnp.allclose(cls_out, cls_f, atol=3e-2)
    assert jnp.allclose(sem_out, sem_f, atol=3e-2)

    print("KERNEL_OK")
</pallas_src>

<mosaic_0001>
module attributes {stable_mosaic.version = 11 : i64} {
  func.func @decoder_kernel(%arg0: i32, %arg1: i32, %arg2: memref<16x2048xbf16, #tpu.memory_space<vmem>>, %arg3: memref<2048x1024xbf16, #tpu.memory_space<vmem>>, %arg4: memref<1x1024xf32, #tpu.memory_space<vmem>>, %arg5: memref<1024x64xbf16, #tpu.memory_space<vmem>>, %arg6: memref<1x64xf32, #tpu.memory_space<vmem>>, %arg7: memref<64x64xf32, #tpu.memory_space<vmem>>, %arg8: memref<1x64xf32, #tpu.memory_space<vmem>>, %arg9: memref<16x128xf32, #tpu.memory_space<vmem>>, %arg10: memref<16x1024xf32, #tpu.memory_space<vmem>>) attributes {dimension_semantics = [#tpu.dimension_semantics<parallel>, #tpu.dimension_semantics<arbitrary>], iteration_bounds = array<i64: 1, 2>, scalar_prefetch = 0 : i64, scratch_operands = 1 : i64, tpu.core_type = #tpu.core_type<tc>, window_params = [{transform_indices = @transform_0, window_bounds = array<i64: 16, 2048>}, {transform_indices = @transform_1, window_bounds = array<i64: 2048, 1024>}, {pipeline_mode = #tpu.pipeline_mode<synchronous>, transform_indices = @transform_2, window_bounds = array<i64: 1, 1024>}, {pipeline_mode = #tpu.pipeline_mode<synchronous>, transform_indices = @transform_3, window_bounds = array<i64: 1024, 64>}, {pipeline_mode = #tpu.pipeline_mode<synchronous>, transform_indices = @transform_4, window_bounds = array<i64: 1, 64>}, {pipeline_mode = #tpu.pipeline_mode<synchronous>, transform_indices = @transform_5, window_bounds = array<i64: 64, 64>}, {pipeline_mode = #tpu.pipeline_mode<synchronous>, transform_indices = @transform_6, window_bounds = array<i64: 1, 64>}, {transform_indices = @transform_7, window_bounds = array<i64: 16, 128>}]} {
    %c0_i32 = arith.constant 0 : i32
    %0 = arith.cmpi eq, %arg1, %c0_i32 : i32
    %1 = arith.extui %0 : i1 to i32
    %c0_i32_0 = arith.constant 0 : i32
    %2 = arith.cmpi ne, %1, %c0_i32_0 : i32
    scf.if %2 {
      %cst_9 = arith.constant 0.000000e+00 : f32
      %12 = vector.broadcast %cst_9 : f32 to vector<16x1024xf32>
      %c0_10 = arith.constant 0 : index
      %c0_11 = arith.constant 0 : index
      %13 = vector.load %arg10[%c0_10, %c0_11] : memref<16x1024xf32, #tpu.memory_space<vmem>>, vector<16x1024xf32>
      tpu.vector_store %arg10[%c0_10, %c0_11], %12 {strides = array<i32>} : memref<16x1024xf32, #tpu.memory_space<vmem>>, vector<16x1024xf32>,
    } else {
    }
    %c0 = arith.constant 0 : index
    %c0_1 = arith.constant 0 : index
    %3 = vector.load %arg10[%c0, %c0_1] : memref<16x1024xf32, #tpu.memory_space<vmem>>, vector<16x1024xf32>
    %c0_2 = arith.constant 0 : index
    %c0_3 = arith.constant 0 : index
    %4 = vector.load %arg2[%c0_2, %c0_3] : memref<16x2048xbf16, #tpu.memory_space<vmem>>, vector<16x2048xbf16>
    %c0_4 = arith.constant 0 : index
    %c0_5 = arith.constant 0 : index
    %5 = vector.load %arg3[%c0_4, %c0_5] : memref<2048x1024xbf16, #tpu.memory_space<vmem>>, vector<2048x1024xbf16>
    %cst = arith.constant dense<0.000000e+00> : vector<16x1024xf32>
    %6 = tpu.matmul %4, %5, %cst {dimension_numbers = #tpu.dot_dimension_numbers<[1], [0], [0], [1], [0, 0, 1, 1], [], []>} : vector<16x2048xbf16>, vector<2048x1024xbf16>, vector<16x1024xf32> -> vector<16x1024xf32>
    %7 = arith.addf %3, %6 : vector<16x1024xf32>
    %c0_6 = arith.constant 0 : index
    %c0_7 = arith.constant 0 : index
    %8 = vector.load %arg10[%c0_6, %c0_7] : memref<16x1024xf32, #tpu.memory_space<vmem>>, vector<16x1024xf32>
    tpu.vector_store %arg10[%c0_6, %c0_7], %7 {strides = array<i32>} : memref<16x1024xf32, #tpu.memory_space<vmem>>, vector<16x1024xf32>,
    %c1_i32 = arith.constant 1 : i32
    %9 = arith.cmpi eq, %arg1, %c1_i32 : i32
    %10 = arith.extui %9 : i1 to i32
    %c0_i32_8 = arith.constant 0 : i32
    %11 = arith.cmpi ne, %10, %c0_i32_8 : i32
    scf.if %11 {
      %c0_9 = arith.constant 0 : index
      %c0_10 = arith.constant 0 : index
      %12 = vector.load %arg10[%c0_9, %c0_10] : memref<16x1024xf32, #tpu.memory_space<vmem>>, vector<16x1024xf32>
      %c0_11 = arith.constant 0 : index
      %c0_12 = arith.constant 0 : index
      %13 = vector.load %arg4[%c0_11, %c0_12] : memref<1x1024xf32, #tpu.memory_space<vmem>>, vector<1x1024xf32>
      %14 = vector.broadcast %13 : vector<1x1024xf32> to vector<16x1024xf32>
      %15 = arith.addf %12, %14 : vector<16x1024xf32>
      %16 = math.tanh %15 : vector<16x1024xf32>
      %17 = arith.truncf %16 : vector<16x1024xf32> to vector<16x1024xbf16>
      %c0_13 = arith.constant 0 : index
      %c0_14 = arith.constant 0 : index
      %18 = vector.load %arg5[%c0_13, %c0_14] : memref<1024x64xbf16, #tpu.memory_space<vmem>>, vector<1024x64xbf16>
      %cst_15 = arith.constant dense<0.000000e+00> : vector<16x64xf32>
      %19 = tpu.matmul %17, %18, %cst_15 {dimension_numbers = #tpu.dot_dimension_numbers<[1], [0], [0], [1], [0, 0, 1, 1], [], []>} : vector<16x1024xbf16>, vector<1024x64xbf16>, vector<16x64xf32> -> vector<16x64xf32>
      %c0_16 = arith.constant 0 : index
      %c0_17 = arith.constant 0 : index
      %20 = vector.load %arg6[%c0_16, %c0_17] : memref<1x64xf32, #tpu.memory_space<vmem>>, vector<1x64xf32>
      %21 = vector.broadcast %20 : vector<1x64xf32> to vector<16x64xf32>
      %22 = arith.addf %19, %21 : vector<16x64xf32>
      %23 = math.tanh %22 : vector<16x64xf32>
      %c0_18 = arith.constant 0 : index
      %c0_19 = arith.constant 0 : index
      %24 = vector.load %arg7[%c0_18, %c0_19] : memref<64x64xf32, #tpu.memory_space<vmem>>, vector<64x64xf32>
      %cst_20 = arith.constant dense<0.000000e+00> : vector<16x64xf32>
      %25 = tpu.matmul %23, %24, %cst_20 {dimension_numbers = #tpu.dot_dimension_numbers<[1], [0], [0], [1], [0, 0, 1, 1], [], []>} : vector<16x64xf32>, vector<64x64xf32>, vector<16x64xf32> -> vector<16x64xf32>
      %c0_21 = arith.constant 0 : index
      %c0_22 = arith.constant 0 : index
      %26 = vector.load %arg8[%c0_21, %c0_22] : memref<1x64xf32, #tpu.memory_space<vmem>>, vector<1x64xf32>
      %27 = vector.broadcast %26 : vector<1x64xf32> to vector<16x64xf32>
      %28 = arith.addf %25, %27 : vector<16x64xf32>
      %29 = arith.negf %28 : vector<16x64xf32>
      %30 = math.exp %29 : vector<16x64xf32>
      %cst_23 = arith.constant 1.000000e+00 : f32
      %31 = vector.broadcast %cst_23 : f32 to vector<16x64xf32>
      %32 = arith.addf %31, %30 : vector<16x64xf32>
      %33 = arith.divf %31, %32 : vector<16x64xf32>
      %34 = tpu.concatenate %23, %33 in 1 : vector<16x64xf32>, vector<16x64xf32> -> vector<16x128xf32>
      %c0_24 = arith.constant 0 : index
      %c0_25 = arith.constant 0 : index
      %35 = vector.load %arg9[%c0_24, %c0_25] : memref<16x128xf32, #tpu.memory_space<vmem>>, vector<16x128xf32>
      tpu.vector_store %arg9[%c0_24, %c0_25], %34 {strides = array<i32>} : memref<16x128xf32, #tpu.memory_space<vmem>>, vector<16x128xf32>,
    } else {
    }
    return
  }
  func.func @transform_0(%arg0: i32, %arg1: i32) -> (i32, i32) {
    %c0_i32 = arith.constant 0 : i32
    return %arg0, %arg1 : i32, i32
  }
  func.func @transform_1(%arg0: i32, %arg1: i32) -> (i32, i32) {
    %c0_i32 = arith.constant 0 : i32
    %c0_i32_0 = arith.constant 0 : i32
    return %arg1, %c0_i32 : i32, i32
  }
  func.func @transform_2(%arg0: i32, %arg1: i32) -> (i32, i32) {
    %c0_i32 = arith.constant 0 : i32
    %c0_i32_0 = arith.constant 0 : i32
    %c0_i32_1 = arith.constant 0 : i32
    return %c0_i32, %c0_i32_0 : i32, i32
  }
  func.func @transform_3(%arg0: i32, %arg1: i32) -> (i32, i32) {
    %c0_i32 = arith.constant 0 : i32
    %c0_i32_0 = arith.constant 0 : i32
    %c0_i32_1 = arith.constant 0 : i32
    return %c0_i32, %c0_i32_0 : i32, i32
  }
  func.func @transform_4(%arg0: i32, %arg1: i32) -> (i32, i32) {
    %c0_i32 = arith.constant 0 : i32
    %c0_i32_0 = arith.constant 0 : i32
    %c0_i32_1 = arith.constant 0 : i32
    return %c0_i32, %c0_i32_0 : i32, i32
  }
  func.func @transform_5(%arg0: i32, %arg1: i32) -> (i32, i32) {
    %c0_i32 = arith.constant 0 : i32
    %c0_i32_0 = arith.constant 0 : i32
    %c0_i32_1 = arith.constant 0 : i32
    return %c0_i32, %c0_i32_0 : i32, i32
  }
  func.func @transform_6(%arg0: i32, %arg1: i32) -> (i32, i32) {
    %c0_i32 = arith.constant 0 : i32
    %c0_i32_0 = arith.constant 0 : i32
    %c0_i32_1 = arith.constant 0 : i32
    return %c0_i32, %c0_i32_0 : i32, i32
  }
  func.func @transform_7(%arg0: i32, %arg1: i32) -> (i32, i32) {
    %c0_i32 = arith.constant 0 : i32
    %c0_i32_0 = arith.constant 0 : i32
    return %arg0, %c0_i32 : i32, i32
  }
}

</mosaic_0001>

<llo_original>
// kernel: decoder_forward.1
$region0: #{decoder_forward.1}
  #allocation0 [shape = 'u32[]', space=smem, size = 0x4, offset = 0x4, fixed_abs, tag = 'smem constant byte address 0x4 - core index']
  #allocation1 [shape = 'u32[144,128]{1,0:T(1,128)}', space=vmem, size = 0x12000, scoped, tag = 'internal scratch']
  #allocation2 [shape = 'f32[16,1024]{1,0:T(8,128)}', space=vmem, size = 0x10000, scoped, tag = 'scratch operand']
  %s0 = inlined_call_operand.vmem [shape: bf16[16,4096], index: 0, kind: input, shape index: {}]
  %s1 = inlined_call_operand.hbm [shape: bf16[4096,1024], index: 1, kind: input, shape index: {}]
  %s2 = inlined_call_operand.hbm [shape: f32[1,1024], index: 2, kind: input, shape index: {}]
  %s3 = inlined_call_operand.vmem [shape: bf16[1024,64], index: 3, kind: input, shape index: {}]
  %s4 = inlined_call_operand.hbm [shape: f32[1,64], index: 4, kind: input, shape index: {}]
  %s5 = inlined_call_operand.hbm [shape: f32[64,64], index: 5, kind: input, shape index: {}]
  %s6 = inlined_call_operand.hbm [shape: f32[1,64], index: 6, kind: input, shape index: {}]
  %s7 = inlined_call_operand.vmem [shape: f32[16,128], index: 7, kind: output, shape index: {}]
  %s8 = sld [smem:[#allocation0]]
  $region112: #{decoder_forward.1} parent=0
    _
  %s10 = ssub.s32 1, %s8
  %s11 = scalar_select 0, %s10, %s8
  $region1: #{decoder_forward.1} parent=0
    #allocation3 [shape = 'u8[131072]{0}', space=vmem, size = 0x20000, scoped, tag = 'input window, operand 0']
    #allocation4 [shape = 'u8[8388608]{0}', space=vmem, size = 0x800000, scoped, tag = 'input window, operand 1']
    #allocation5 [shape = 's32[2]{0}', space=sflag, size = 0x8, scoped, tag = 'scoped memory for decoder_forward.1']
    #allocation6 [shape = 'u8[4096]{0}', space=vmem, size = 0x1000, scoped, tag = 'input window, operand 2, single buffered']
    #allocation7 [shape = 's32[1]{0}', space=sflag, size = 0x4, scoped, tag = 'scoped memory for decoder_forward.1']
    #allocation8 [shape = 'u8[512]{0}', space=vmem, size = 0x400, scoped, tag = 'input window, operand 4, single buffered']
    #allocation9 [shape = 'u8[32768]{0}', space=vmem, size = 0x8000, scoped, tag = 'input window, operand 5, single buffered']
    #allocation10 [shape = 's32[1]{0}', space=sflag, size = 0x4, scoped, tag = 'scoped memory for decoder_forward.1']
    #allocation11 [shape = 'u8[512]{0}', space=vmem, size = 0x400, scoped, tag = 'input window, operand 6, single buffered']
    %12 = vsyncpa [#allocation5], 0
    %s13 = scalar_lea.sflag [#allocation5], 1
    %14 = vsyncpa %s13, 0
    %15 = vsyncpa [#allocation7], 0
    %16 = vsyncpa [#allocation10], 0
    loop: start=0, step=1, limit=4
    $region2: #{decoder_forward.1} parent=1 // loop_pre_header
      _
    $region3: #{decoder_forward.1} parent=1 // loop_header
      %s18 = sphi 0, %s22
      %p19 = scmp.ge.s32.totalorder %s18, 4
      %s25 = sphi 0, %s37
      %s26 = sphi 0, %s33
      %s27 = sphi 0, %s25
      %s28 = sphi 0, %s26
      %s29 = sphi 0, %s27
      %s30 = sphi 0, %s28
      %s42 = sphi 0, %s44
      %s45 = sphi 0, %s42
      %s46 = sphi 0, %s45
      %s62 = sphi 0, %s46
      %s68 = sphi 0, %s70
      %s71 = sphi 0, %s68
      %s72 = sphi 0, %s71
      %s88 = sphi 0, %s72
      %s92 = sphi 0, %s92
      %s94 = sphi 0, %s92
      %s95 = sphi 0, %s94
      %s109 = sphi 0, %s95
      %s113 = sphi 0, %s113
      %s115 = sphi 0, %s113
      %s116 = sphi 0, %s115
      %s130 = sphi 0, %s116
      %s134 = sphi 0, %s134
      %s136 = sphi 0, %s134
      %s137 = sphi 0, %s136
      %s151 = sphi 0, %s137
      %s155 = sphi 0, %s155
      %s157 = sphi 0, %s155
      %s158 = sphi 0, %s157
      %s172 = sphi 0, %s158
      %s176 = sphi 0, %s176
      %s178 = sphi 0, %s176
      %s179 = sphi 0, %s178
      %s193 = sphi 0, %s179
      %s199 = sphi 0, %s201
      %s202 = sphi 0, %s199
      %s203 = sphi 0, %s202
      %s219 = sphi 0, %s203
    $region4: #{decoder_forward.1} parent=1 // loop_header_branch
      %21 = sbr.rel (%p19) target = $region8
    $region5: #{decoder_forward.1} parent=1 // loop_body
      %s23 = ssub.s32 %s18, 1
      %s24 = ssub.s32 %s18, 2
      %s31 = sadd.s32 1, %s26
      %p32 = scmp.ge.s32.totalorder %s31, 2
      %s33 = scalar_select %p32, 0, %s31
      %s34 = sadd.s32 1, %s25
      %s35 = scalar_select %p32, %s34, %s25
      %p36 = scmp.ge.s32.totalorder %s35, 1
      %s37 = scalar_select %p36, 0, %s35
      %s38 = ssub.s32 %s25, %s37
      %s39 = ssub.s32 %s26, %s33
      %s40 = sor.u32 %s38, %s39
      %p41 = scmp.eq.s32.totalorder %s40, 0
      %s43 = sadd.s32 %s42, 1
      %s44 = scalar_select %p41, %s42, %s43
      %p47 = pneg %p41
      %p48 = scmp.eq.s32.totalorder %s18, 1
      %p49 = por %p47, %p48
      %p50 = scmp.ne.s32.totalorder %s42, %s45
      %p51 = scmp.eq.s32.totalorder %s18, 0
      %p52 = por %p50, %p51
      %p53 = scmp.ne.s32.totalorder %s42, %s45
      %p54 = scmp.eq.s32.totalorder %s23, 1
      %p55 = por %p53, %p54
      %p56 = scmp.ne.s32.totalorder %s45, %s46
      %p57 = scmp.eq.s32.totalorder %s23, 0
      %p58 = por %p56, %p57
      %p59 = scmp.ne.s32.totalorder %s45, %s46
      %p60 = scmp.eq.s32.totalorder %s24, 1
      %p61 = por %p59, %p60
      %p63 = scmp.ne.s32.totalorder %s46, %s62
      %p64 = scmp.eq.s32.totalorder %s24, 0
      %p65 = por %p63, %p64
      %s66 = ssub.s32 %s26, %s33
      %p67 = scmp.eq.s32.totalorder %s66, 0
      %s69 = sadd.s32 %s68, 1
      %s70 = scalar_select %p67, %s68, %s69
      %p73 = pneg %p67
      %p74 = scmp.eq.s32.totalorder %s18, 1
      %p75 = por %p73, %p74
      %p76 = scmp.ne.s32.totalorder %s68, %s71
      %p77 = scmp.eq.s32.totalorder %s18, 0
      %p78 = por %p76, %p77
      %p79 = scmp.ne.s32.totalorder %s68, %s71
      %p80 = scmp.eq.s32.totalorder %s23, 1
      %p81 = por %p79, %p80
      %p82 = scmp.ne.s32.totalorder %s71, %s72
      %p83 = scmp.eq.s32.totalorder %s23, 0
      %p84 = por %p82, %p83
      %p85 = scmp.ne.s32.totalorder %s71, %s72
      %p86 = scmp.eq.s32.totalorder %s24, 1
      %p87 = por %p85, %p86
      %p89 = scmp.ne.s32.totalorder %s72, %s88
      %p90 = scmp.eq.s32.totalorder %s24, 0
      %p91 = por %p89, %p90
      %s93 = sadd.s32 %s92, 1
      %p96 = scmp.eq.s32.totalorder %s18, 1
      %p97 = scmp.ne.s32.totalorder %s92, %s94
      %p98 = scmp.eq.s32.totalorder %s18, 0
      %p99 = por %p97, %p98
      %p100 = scmp.ne.s32.totalorder %s92, %s94
      %p101 = scmp.eq.s32.totalorder %s23, 1
      %p102 = por %p100, %p101
      %p103 = scmp.ne.s32.totalorder %s94, %s95
      %p104 = scmp.eq.s32.totalorder %s23, 0
      %p105 = por %p103, %p104
      %p106 = scmp.ne.s32.totalorder %s94, %s95
      %p107 = scmp.eq.s32.totalorder %s24, 1
      %p108 = por %p106, %p107
      %p110 = scmp.ne.s32.totalorder %s95, %s109
      %p111 = scmp.eq.s32.totalorder %s24, 0
      %p112 = por %p110, %p111
      %s114 = sadd.s32 %s113, 1
      %p117 = scmp.eq.s32.totalorder %s18, 1
      %p118 = scmp.ne.s32.totalorder %s113, %s115
      %p119 = scmp.eq.s32.totalorder %s18, 0
      %p120 = por %p118, %p119
      %p121 = scmp.ne.s32.totalorder %s113, %s115
      %p122 = scmp.eq.s32.totalorder %s23, 1
      %p123 = por %p121, %p122
      %p124 = scmp.ne.s32.totalorder %s115, %s116
      %p125 = scmp.eq.s32.totalorder %s23, 0
      %p126 = por %p124, %p125
      %p127 = scmp.ne.s32.totalorder %s115, %s116
      %p128 = scmp.eq.s32.totalorder %s24, 1
      %p129 = por %p127, %p128
      %p131 = scmp.ne.s32.totalorder %s116, %s130
      %p132 = scmp.eq.s32.totalorder %s24, 0
      %p133 = por %p131, %p132
      %s135 = sadd.s32 %s134, 1
      %p138 = scmp.eq.s32.totalorder %s18, 1
      %p139 = scmp.ne.s32.totalorder %s134, %s136
      %p140 = scmp.eq.s32.totalorder %s18, 0
      %p141 = por %p139, %p140
      %p142 = scmp.ne.s32.totalorder %s134, %s136
      %p143 = scmp.eq.s32.totalorder %s23, 1
      %p144 = por %p142, %p143
      %p145 = scmp.ne.s32.totalorder %s136, %s137
      %p146 = scmp.eq.s32.totalorder %s23, 0
      %p147 = por %p145, %p146
      %p148 = scmp.ne.s32.totalorder %s136, %s137
      %p149 = scmp.eq.s32.totalorder %s24, 1
      %p150 = por %p148, %p149
      %p152 = scmp.ne.s32.totalorder %s137, %s151
      %p153 = scmp.eq.s32.totalorder %s24, 0
      %p154 = por %p152, %p153
      %s156 = sadd.s32 %s155, 1
      %p159 = scmp.eq.s32.totalorder %s18, 1
      %p160 = scmp.ne.s32.totalorder %s155, %s157
      %p161 = scmp.eq.s32.totalorder %s18, 0
      %p162 = por %p160, %p161
      %p163 = scmp.ne.s32.totalorder %s155, %s157
      %p164 = scmp.eq.s32.totalorder %s23, 1
      %p165 = por %p163, %p164
      %p166 = scmp.ne.s32.totalorder %s157, %s158
      %p167 = scmp.eq.s32.totalorder %s23, 0
      %p168 = por %p166, %p167
      %p169 = scmp.ne.s32.totalorder %s157, %s158
      %p170 = scmp.eq.s32.totalorder %s24, 1
      %p171 = por %p169, %p170
      %p173 = scmp.ne.s32.totalorder %s158, %s172
      %p174 = scmp.eq.s32.totalorder %s24, 0
      %p175 = por %p173, %p174
      %s177 = sadd.s32 %s176, 1
      %p180 = scmp.eq.s32.totalorder %s18, 1
      %p181 = scmp.ne.s32.totalorder %s176, %s178
      %p182 = scmp.eq.s32.totalorder %s18, 0
      %p183 = por %p181, %p182
      %p184 = scmp.ne.s32.totalorder %s176, %s178
      %p185 = scmp.eq.s32.totalorder %s23, 1
      %p186 = por %p184, %p185
      %p187 = scmp.ne.s32.totalorder %s178, %s179
      %p188 = scmp.eq.s32.totalorder %s23, 0
      %p189 = por %p187, %p188
      %p190 = scmp.ne.s32.totalorder %s178, %s179
      %p191 = scmp.eq.s32.totalorder %s24, 1
      %p192 = por %p190, %p191
      %p194 = scmp.ne.s32.totalorder %s179, %s193
      %p195 = scmp.eq.s32.totalorder %s24, 0
      %p196 = por %p194, %p195
      %s197 = ssub.s32 %s25, %s37
      %p198 = scmp.eq.s32.totalorder %s197, 0
      %s200 = sadd.s32 %s199, 1
      %s201 = scalar_select %p198, %s199, %s200
      %p204 = pneg %p198
      %p205 = scmp.eq.s32.totalorder %s18, 1
      %p206 = por %p204, %p205
      %p207 = scmp.ne.s32.totalorder %s199, %s202
      %p208 = scmp.eq.s32.totalorder %s18, 0
      %p209 = por %p207, %p208
      %p210 = scmp.ne.s32.totalorder %s199, %s202
      %p211 = scmp.eq.s32.totalorder %s23, 1
      %p212 = por %p210, %p211
      %p213 = scmp.ne.s32.totalorder %s202, %s203
      %p214 = scmp.eq.s32.totalorder %s23, 0
      %p215 = por %p213, %p214
      %p216 = scmp.ne.s32.totalorder %s202, %s203
      %p217 = scmp.eq.s32.totalorder %s24, 1
      %p218 = por %p216, %p217
      %p220 = scmp.ne.s32.totalorder %s203, %s219
      %p221 = scmp.eq.s32.totalorder %s24, 0
      %p222 = por %p220, %p221
      %p223 = scmp.le.s32.totalorder 1, %s18
      %p224 = scmp.lt.s32.totalorder %s18, 3
      %p225 = pnand %p223, %p224
      %p226 = pneg %p225
      // Predicated region
      $region9: #{decoder_forward.1} parent=5 // pred_check
        _
      $region10: #{decoder_forward.1} parent=5 // pred_check_branch
        %228 = sbr.rel (%p225) target = $region12
      $region11: #{decoder_forward.1} parent=5 // pred_region
        %s229 = ssub.s32 %s18, 1
        // Predicated region
        $region13: #{decoder_forward.1} parent=11 // pred_check
          %p230 = pneg %p105
        $region14: #{decoder_forward.1} parent=11 // pred_check_branch
          %232 = sbr.rel (%p230) target = $region16
        $region15: #{decoder_forward.1} parent=11 // pred_region
          %s234 = ssub.s32 128, 128
          %235 = vsyncadd [#allocation7], %s234
          %s237 = sshll.u32 [#allocation6], 4
          %s238 = int_to_ptr.vmem [resolvable:$true] %s237
          %240 = dma.hbm_to_vmem [thread:$0]  %s2, 128, %s238, [#allocation7]
        $region16: #{decoder_forward.1} parent=11 // pred_fallthru
          _
        // Predicated region
        $region17: #{decoder_forward.1} parent=11 // pred_check
          %p241 = pneg %p126
        $region18: #{decoder_forward.1} parent=11 // pred_check_branch
          %243 = sbr.rel (%p241) target = $region20
        $region19: #{decoder_forward.1} parent=11 // pred_region
          _
        $region20: #{decoder_forward.1} parent=11 // pred_fallthru
          _
        // Predicated region
        $region21: #{decoder_forward.1} parent=11 // pred_check
          %p244 = pneg %p147
        $region22: #{decoder_forward.1} parent=11 // pred_check_branch
          %246 = sbr.rel (%p244) target = $region24
        $region23: #{decoder_forward.1} parent=11 // pred_region
          %s248 = ssub.s32 16, 16
          %249 = vsyncadd [#allocation7], %s248
          %s251 = sshll.u32 [#allocation8], 4
          %s252 = int_to_ptr.vmem [resolvable:$true] %s251
          %254 = dma.hbm_to_vmem [thread:$0]  %s4, 16, %s252, [#allocation7]
        $region24: #{decoder_forward.1} parent=11 // pred_fallthru
          _
        // Predicated region
        $region25: #{decoder_forward.1} parent=11 // pred_check
          %p255 = pneg %p168
        $region26: #{decoder_forward.1} parent=11 // pred_check_branch
          %257 = sbr.rel (%p255) target = $region28
        $region27: #{decoder_forward.1} parent=11 // pred_region
          %s259 = ssub.s32 1024, 1024
          %260 = vsyncadd [#allocation10], %s259
          %s261 = sshll.u32 [#allocation9], 4
          %s262 = int_to_ptr.vmem [resolvable:$true] %s261
          %267 = dma.hbm_to_vmem [thread:$0]  %s5, 1024, %s262, [#allocation10], 128, 128, 8
        $region28: #{decoder_forward.1} parent=11 // pred_fallthru
          _
        // Predicated region
        $region29: #{decoder_forward.1} parent=11 // pred_check
          %p268 = pneg %p189
        $region30: #{decoder_forward.1} parent=11 // pred_check_branch
          %270 = sbr.rel (%p268) target = $region32
        $region31: #{decoder_forward.1} parent=11 // pred_region
          %s272 = ssub.s32 16, 16
          %273 = vsyncadd [#allocation10], %s272
          %s275 = sshll.u32 [#allocation11], 4
          %s276 = int_to_ptr.vmem [resolvable:$true] %s275
          %278 = dma.hbm_to_vmem [thread:$0]  %s6, 16, %s276, [#allocation10]
        $region32: #{decoder_forward.1} parent=11 // pred_fallthru
          _
      $region12: #{decoder_forward.1} parent=5 // pred_fallthru
        _
      %p279 = scmp.lt.s32.totalorder %s18, 2
      // Predicated region
      $region33: #{decoder_forward.1} parent=5 // pred_check
        %p280 = pneg %p279
      $region34: #{decoder_forward.1} parent=5 // pred_check_branch
        %282 = sbr.rel (%p280) target = $region36
      $region35: #{decoder_forward.1} parent=5 // pred_region
        // Predicated region
        $region37: #{decoder_forward.1} parent=35 // pred_check
          %p283 = pneg %p52
        $region38: #{decoder_forward.1} parent=35 // pred_check_branch
          %285 = sbr.rel (%p283) target = $region40
        $region39: #{decoder_forward.1} parent=35 // pred_region
          %s286 = sand.u32 %s42, 1
          %s287 = sand.u32 %s42, 1
          %s288 = smul.addr %s287, 128
          %s289 = scalar_lea.vmem [#allocation3], %s288
          %s290 = smul.u32 2, %s25
          %s291 = smul.u32 16, %s26
          %s292 = smul.addr %s290, 32
          %s293 = sadd.s32 %s291, %s292
          %s294 = smul.addr %s293, 4
          %s295 = scalar_lea.vmem %s0, %s294
          // Predicated region
          $region41: #{decoder_forward.1} parent=39 // pred_check
            _
          $region42: #{decoder_forward.1} parent=39 // pred_check_branch
            %297 = sbr.rel (0) target = $region44
          $region43: #{decoder_forward.1} parent=39 // pred_region
            // Predicated region
            $region45: #{decoder_forward.1} parent=43 // pred_check
              _
            $region46: #{decoder_forward.1} parent=43 // pred_check_branch
              %299 = sbr.rel (0) target = $region48
            $region47: #{decoder_forward.1} parent=43 // pred_region
              loop: start=0, step=1, limit=1
              $region49: #{decoder_forward.1} parent=47 // loop_pre_header
                _
              $region50: #{decoder_forward.1} parent=47 // loop_header
                %s301 = sphi 0, %s305
                %p302 = scmp.ge.s32.totalorder %s301, 1
                %s306 = sphi %s295, %s295
                %s307 = sphi %s289, %s289
              $region51: #{decoder_forward.1} parent=47 // loop_header_branch
                %304 = sbr.rel (%p302) target = $region55
              $region52: #{decoder_forward.1} parent=47 // loop_body
                %v308 = vld [vmem:[%s306] sm:$0xff]
                %309 = vst [vmem:[%s307] sm:$0xff] %v308
                %v310 = vld [vmem:[%s306 + $0x8] sm:$0xff]
                %311 = vst [vmem:[%s307 + $0x8] sm:$0xff] %v310
                %v312 = vld [vmem:[%s306 + $0x10] sm:$0xff]
                %313 = vst [vmem:[%s307 + $0x10] sm:$0xff] %v312
                %v314 = vld [vmem:[%s306 + $0x18] sm:$0xff]
                %315 = vst [vmem:[%s307 + $0x18] sm:$0xff] %v314
                %v316 = vld [vmem:[%s306 + $0x20] sm:$0xff]
                %317 = vst [vmem:[%s307 + $0x20] sm:$0xff] %v316
                %v318 = vld [vmem:[%s306 + $0x28] sm:$0xff]
                %319 = vst [vmem:[%s307 + $0x28] sm:$0xff] %v318
                %v320 = vld [vmem:[%s306 + $0x30] sm:$0xff]
                %321 = vst [vmem:[%s307 + $0x30] sm:$0xff] %v320
                %v322 = vld [vmem:[%s306 + $0x38] sm:$0xff]
                %323 = vst [vmem:[%s307 + $0x38] sm:$0xff] %v322
                %v324 = vld [vmem:[%s306 + $0x80] sm:$0xff]
                %325 = vst [vmem:[%s307 + $0x40] sm:$0xff] %v324
                %v326 = vld [vmem:[%s306 + $0x88] sm:$0xff]
                %327 = vst [vmem:[%s307 + $0x48] sm:$0xff] %v326
                %v328 = vld [vmem:[%s306 + $0x90] sm:$0xff]
                %329 = vst [vmem:[%s307 + $0x50] sm:$0xff] %v328
                %v330 = vld [vmem:[%s306 + $0x98] sm:$0xff]
                %331 = vst [vmem:[%s307 + $0x58] sm:$0xff] %v330
                %v332 = vld [vmem:[%s306 + $0xa0] sm:$0xff]
                %333 = vst [vmem:[%s307 + $0x60] sm:$0xff] %v332
                %v334 = vld [vmem:[%s306 + $0xa8] sm:$0xff]
                %335 = vst [vmem:[%s307 + $0x68] sm:$0xff] %v334
                %v336 = vld [vmem:[%s306 + $0xb0] sm:$0xff]
                %337 = vst [vmem:[%s307 + $0x70] sm:$0xff] %v336
                %v338 = vld [vmem:[%s306 + $0xb8] sm:$0xff]
                %339 = vst [vmem:[%s307 + $0x78] sm:$0xff] %v338
              $region53: #{decoder_forward.1} parent=47 // loop_footer
                %s305 = sadd.s32 1, %s301
              $region54: #{decoder_forward.1} parent=47 // loop_footer_branch
                %300 = sbr.rel target = $region50
              $region55: #{decoder_forward.1} parent=47 // loop_exit
                _
            $region48: #{decoder_forward.1} parent=43 // pred_fallthru
              _
            // Predicated region
            $region56: #{decoder_forward.1} parent=43 // pred_check
              _
            $region57: #{decoder_forward.1} parent=43 // pred_check_branch
              %341 = sbr.rel target = $region59
            $region58: #{decoder_forward.1} parent=43 // pred_region
              _
            $region59: #{decoder_forward.1} parent=43 // pred_fallthru
              _
          $region44: #{decoder_forward.1} parent=39 // pred_fallthru
            _
          %342 = vnop
        $region40: #{decoder_forward.1} parent=35 // pred_fallthru
          _
        // Predicated region
        $region60: #{decoder_forward.1} parent=35 // pred_check
          %p343 = pneg %p78
        $region61: #{decoder_forward.1} parent=35 // pred_check_branch
          %345 = sbr.rel (%p343) target = $region63
        $region62: #{decoder_forward.1} parent=35 // pred_region
          %s346 = sand.u32 %s68, 1
          %s347 = scalar_lea.sflag [#allocation5], %s346
          %s348 = sand.u32 %s68, 1
          %s349 = smul.addr %s348, 8192
          %s350 = scalar_lea.vmem [#allocation4], %s349
          %s351 = smul.u32 256, %s26
          %s353 = ssub.s32 131072, 131072
          %354 = vsyncadd %s347, %s353
          %s355 = smul.addr %s351, 8
          %s356 = smul.addr %s355, 64
          %s357 = scalar_lea.hbm %s1, %s356
          %s358 = sshll.u32 %s350, 4
          %s359 = int_to_ptr.vmem [resolvable:$true] %s358
          %364 = dma.hbm_to_vmem [thread:$0]  %s357, 131072, %s359, %s347, 512, 512, 32
        $region63: #{decoder_forward.1} parent=35 // pred_fallthru
          _
      $region36: #{decoder_forward.1} parent=5 // pred_fallthru
        _
      %p365 = scmp.le.s32.totalorder 1, %s18
      %p366 = scmp.lt.s32.totalorder %s18, 3
      %p367 = pnand %p365, %p366
      %p368 = pneg %p367
      // Predicated region
      $region64: #{decoder_forward.1} parent=5 // pred_check
        _
      $region65: #{decoder_forward.1} parent=5 // pred_check_branch
        %370 = sbr.rel (%p367) target = $region67
      $region66: #{decoder_forward.1} parent=5 // pred_region
        %s371 = ssub.s32 %s18, 1
        %s372 = sand.u32 %s45, 1
        %s373 = sand.u32 %s45, 1
        %s374 = smul.addr %s373, 128
        %s375 = scalar_lea.vmem [#allocation3], %s374
        // Predicated region
        $region68: #{decoder_forward.1} parent=66 // pred_check
          %p376 = pneg %p58
        $region69: #{decoder_forward.1} parent=66 // pred_check_branch
          %378 = sbr.rel (%p376) target = $region71
        $region70: #{decoder_forward.1} parent=66 // pred_region
          _
        $region71: #{decoder_forward.1} parent=66 // pred_fallthru
          _
        %s379 = sand.u32 %s71, 1
        %s380 = scalar_lea.sflag [#allocation5], %s379
        %s381 = sand.u32 %s71, 1
        %s382 = smul.addr %s381, 8192
        %s383 = scalar_lea.vmem [#allocation4], %s382
        // Predicated region
        $region72: #{decoder_forward.1} parent=66 // pred_check
          %p384 = pneg %p84
        $region73: #{decoder_forward.1} parent=66 // pred_check_branch
          %386 = sbr.rel (%p384) target = $region75
        $region74: #{decoder_forward.1} parent=66 // pred_region
          %387 = dma.done %s380, 131072
        $region75: #{decoder_forward.1} parent=66 // pred_fallthru
          _
        // Predicated region
        $region76: #{decoder_forward.1} parent=66 // pred_check
          %p388 = pneg %p105
        $region77: #{decoder_forward.1} parent=66 // pred_check_branch
          %390 = sbr.rel (%p388) target = $region79
        $region78: #{decoder_forward.1} parent=66 // pred_region
          %391 = dma.done [#allocation7], 128
        $region79: #{decoder_forward.1} parent=66 // pred_fallthru
          _
        // Predicated region
        $region80: #{decoder_forward.1} parent=66 // pred_check
          %p392 = pneg %p147
        $region81: #{decoder_forward.1} parent=66 // pred_check_branch
          %394 = sbr.rel (%p392) target = $region83
        $region82: #{decoder_forward.1} parent=66 // pred_region
          %395 = dma.done [#allocation7], 16
        $region83: #{decoder_forward.1} parent=66 // pred_fallthru
          _
        // Predicated region
        $region84: #{decoder_forward.1} parent=66 // pred_check
          %p396 = pneg %p168
        $region85: #{decoder_forward.1} parent=66 // pred_check_branch
          %398 = sbr.rel (%p396) target = $region87
        $region86: #{decoder_forward.1} parent=66 // pred_region
          %399 = dma.done [#allocation10], 1024
        $region87: #{decoder_forward.1} parent=66 // pred_fallthru
          _
        // Predicated region
        $region88: #{decoder_forward.1} parent=66 // pred_check
          %p400 = pneg %p189
        $region89: #{decoder_forward.1} parent=66 // pred_check_branch
          %402 = sbr.rel (%p400) target = $region91
        $region90: #{decoder_forward.1} parent=66 // pred_region
          %403 = dma.done [#allocation10], 16
        $region91: #{decoder_forward.1} parent=66 // pred_fallthru
          _
        %s404 = sand.u32 %s45, 1
        %s405 = sand.u32 %s45, 1
        %s406 = smul.addr %s405, 128
        %s407 = scalar_lea.vmem [#allocation3], %s406
        %p408 = pneg %p58
        %p409 = pneg %p55
        %s410 = sand.u32 %s71, 1
        %s411 = scalar_lea.sflag [#allocation5], %s410
        %s412 = sand.u32 %s71, 1
        %s413 = smul.addr %s412, 8192
        %s414 = scalar_lea.vmem [#allocation4], %s413
        %p415 = pneg %p84
        %p416 = pneg %p81
        %p417 = pneg %p105
        %p418 = pneg %p102
        %p419 = pneg %p126
        %p420 = pneg %p123
        %p421 = pneg %p147
        %p422 = pneg %p144
        %p423 = pneg %p168
        %p424 = pneg %p165
        %p425 = pneg %p189
        %p426 = pneg %p186
        %p427 = pneg %p215
        %p428 = pneg %p212
        %s429 = smul.u32 2, %s27
        %p430 = scmp.lt.s32.totalorder %s429, 1
        %s431 = scalar_select %p430, %s429, 1
        %s432 = smul.addr %s431, 8
        %s433 = scalar_lea.vmem %s7, %s432
        %s434 = smul.u32 2, %s27
        %s435 = smul.u32 16, %s28
        %s436 = smul.u32 256, %s28
        %s437 = smul.u32 2, %s27
        %p438 = scmp.lt.s32.totalorder %s437, 1
        %s439 = scalar_select %p438, %s437, 1
        %s440 = smul.addr %s439, 8
        %s441 = scalar_lea.vmem %s7, %s440
        %s442 = smul.u32 2, %s27
        %p444 = scmp.eq.s32.totalorder %s28, 0
        // Predicated region
        $region92: #{decoder_forward.1} parent=66 // pred_check
          %p445 = pneg %p444
        $region93: #{decoder_forward.1} parent=66 // pred_check_branch
          %447 = sbr.rel (%p445) target = $region95
        $region94: #{decoder_forward.1} parent=66 // pred_region
          %448 = vst [vmem:[#allocation2] sm:$0xff] 0.0
          %449 = vst [vmem:[#allocation2 + $0x8] sm:$0xff] 0.0
          %450 = vst [vmem:[#allocation2 + $0x10] sm:$0xff] 0.0
          %451 = vst [vmem:[#allocation2 + $0x18] sm:$0xff] 0.0
          %452 = vst [vmem:[#allocation2 + $0x20] sm:$0xff] 0.0
          %453 = vst [vmem:[#allocation2 + $0x28] sm:$0xff] 0.0
          %454 = vst [vmem:[#allocation2 + $0x30] sm:$0xff] 0.0
          %455 = vst [vmem:[#allocation2 + $0x38] sm:$0xff] 0.0
          %456 = vst [vmem:[#allocation2 + $0x40] sm:$0xff] 0.0
          %457 = vst [vmem:[#allocation2 + $0x48] sm:$0xff] 0.0
          %458 = vst [vmem:[#allocation2 + $0x50] sm:$0xff] 0.0
          %459 = vst [vmem:[#allocation2 + $0x58] sm:$0xff] 0.0
          %460 = vst [vmem:[#allocation2 + $0x60] sm:$0xff] 0.0
          %461 = vst [vmem:[#allocation2 + $0x68] sm:$0xff] 0.0
          %462 = vst [vmem:[#allocation2 + $0x70] sm:$0xff] 0.0
          %463 = vst [vmem:[#allocation2 + $0x78] sm:$0xff] 0.0
        $region95: #{decoder_forward.1} parent=66 // pred_fallthru
          _
        %v464 = vld [vmem:[#allocation2] sm:$0xff]
        %v465 = vld [vmem:[#allocation2 + $0x8] sm:$0xff]
        %v466 = vld [vmem:[#allocation2 + $0x10] sm:$0xff]
        %v467 = vld [vmem:[#allocation2 + $0x18] sm:$0xff]
        %v468 = vld [vmem:[#allocation2 + $0x20] sm:$0xff]
        %v469 = vld [vmem:[#allocation2 + $0x28] sm:$0xff]
        %v470 = vld [vmem:[#allocation2 + $0x30] sm:$0xff]
        %v471 = vld [vmem:[#allocation2 + $0x38] sm:$0xff]
        %v472 = vld [vmem:[#allocation2 + $0x40] sm:$0xff]
        %v473 = vld [vmem:[#allocation2 + $0x48] sm:$0xff]
        %v474 = vld [vmem:[#allocation2 + $0x50] sm:$0xff]
        %v475 = vld [vmem:[#allocation2 + $0x58] sm:$0xff]
        %v476 = vld [vmem:[#allocation2 + $0x60] sm:$0xff]
        %v477 = vld [vmem:[#allocation2 + $0x68] sm:$0xff]
        %v478 = vld [vmem:[#allocation2 + $0x70] sm:$0xff]
        %v479 = vld [vmem:[#allocation2 + $0x78] sm:$0xff]
        %v480 = vld [vmem:[%s375] sm:$0xff]
        %v481 = vld [vmem:[%s375 + $0x8] sm:$0xff]
        %v482 = vld [vmem:[%s375 + $0x10] sm:$0xff]
        %v483 = vld [vmem:[%s375 + $0x18] sm:$0xff]
        %v484 = vld [vmem:[%s375 + $0x20] sm:$0xff]
        %v485 = vld [vmem:[%s375 + $0x28] sm:$0xff]
        %v486 = vld [vmem:[%s375 + $0x30] sm:$0xff]
        %v487 = vld [vmem:[%s375 + $0x38] sm:$0xff]
        %v488 = vld [vmem:[%s375 + $0x40] sm:$0xff]
        %v489 = vld [vmem:[%s375 + $0x48] sm:$0xff]
        %v490 = vld [vmem:[%s375 + $0x50] sm:$0xff]
        %v491 = vld [vmem:[%s375 + $0x58] sm:$0xff]
        %v492 = vld [vmem:[%s375 + $0x60] sm:$0xff]
        %v493 = vld [vmem:[%s375 + $0x68] sm:$0xff]
        %v494 = vld [vmem:[%s375 + $0x70] sm:$0xff]
        %v495 = vld [vmem:[%s375 + $0x78] sm:$0xff]
        %v496 = vld [vmem:[%s383] sm:$0xff]
        %v497 = vld [vmem:[%s383 + $0x8] sm:$0xff]
        %v498 = vld [vmem:[%s383 + $0x10] sm:$0xff]
        %v499 = vld [vmem:[%s383 + $0x18] sm:$0xff]
        %v500 = vld [vmem:[%s383 + $0x20] sm:$0xff]
        %v501 = vld [vmem:[%s383 + $0x28] sm:$0xff]
        %v502 = vld [vmem:[%s383 + $0x30] sm:$0xff]
        %v503 = vld [vmem:[%s383 + $0x38] sm:$0xff]
        %v504 = vld [vmem:[%s383 + $0x40] sm:$0xff]
        %v505 = vld [vmem:[%s383 + $0x48] sm:$0xff]
        %v506 = vld [vmem:[%s383 + $0x50] sm:$0xff]
        %v507 = vld [vmem:[%s383 + $0x58] sm:$0xff]
        %v508 = vld [vmem:[%s383 + $0x60] sm:$0xff]
        %v509 = vld [vmem:[%s383 + $0x68] sm:$0xff]
        %v510 = vld [vmem:[%s383 + $0x70] sm:$0xff]
        %v511 = vld [vmem:[%s383 + $0x78] sm:$0xff]
        %v512 = vld [vmem:[%s383 + $0x80] sm:$0xff]
        %v513 = vld [vmem:[%s383 + $0x88] sm:$0xff]
        %v514 = vld [vmem:[%s383 + $0x90] sm:$0xff]
        %v515 = vld [vmem:[%s383 + $0x98] sm:$0xff]
        %v516 = vld [vmem:[%s383 + $0xa0] sm:$0xff]
        %v517 = vld [vmem:[%s383 + $0xa8] sm:$0xff]
        %v518 = vld [vmem:[%s383 + $0xb0] sm:$0xff]
        %v519 = vld [vmem:[%s383 + $0xb8] sm:$0xff]
        %v520 = vld [vmem:[%s383 + $0xc0] sm:$0xff]
        %v521 = vld [vmem:[%s383 + $0xc8] sm:$0xff]
        %v522 = vld [vmem:[%s383 + $0xd0] sm:$0xff]
        %v523 = vld [vmem:[%s383 + $0xd8] sm:$0xff]
        %v524 = vld [vmem:[%s383 + $0xe0] sm:$0xff]
        %v525 = vld [vmem:[%s383 + $0xe8] sm:$0xff]
        %v526 = vld [vmem:[%s383 + $0xf0] sm:$0xff]
        %v527 = vld [vmem:[%s383 + $0xf8] sm:$0xff]
        %v528 = vld [vmem:[%s383 + $0x100] sm:$0xff]
        %v529 = vld [vmem:[%s383 + $0x108] sm:$0xff]
        %v530 = vld [vmem:[%s383 + $0x110] sm:$0xff]
        %v531 = vld [vmem:[%s383 + $0x118] sm:$0xff]
        %v532 = vld [vmem:[%s383 + $0x120] sm:$0xff]
        %v533 = vld [vmem:[%s383 + $0x128] sm:$0xff]
        %v534 = vld [vmem:[%s383 + $0x130] sm:$0xff]
        %v535 = vld [vmem:[%s383 + $0x138] sm:$0xff]
        %v536 = vld [vmem:[%s383 + $0x140] sm:$0xff]
        %v537 = vld [vmem:[%s383 + $0x148] sm:$0xff]
        %v538 = vld [vmem:[%s383 + $0x150] sm:$0xff]
        %v539 = vld [vmem:[%s383 + $0x158] sm:$0xff]
        %v540 = vld [vmem:[%s383 + $0x160] sm:$0xff]
        %v541 = vld [vmem:[%s383 + $0x168] sm:$0xff]
        %v542 = vld [vmem:[%s383 + $0x170] sm:$0xff]
        %v543 = vld [vmem:[%s383 + $0x178] sm:$0xff]
        %v544 = vld [vmem:[%s383 + $0x180] sm:$0xff]
        %v545 = vld [vmem:[%s383 + $0x188] sm:$0xff]
        %v546 = vld [vmem:[%s383 + $0x190] sm:$0xff]
        %v547 = vld [vmem:[%s383 + $0x198] sm:$0xff]
        %v548 = vld [vmem:[%s383 + $0x1a0] sm:$0xff]
        %v549 = vld [vmem:[%s383 + $0x1a8] sm:$0xff]
        %v550 = vld [vmem:[%s383 + $0x1b0] sm:$0xff]
        %v551 = vld [vmem:[%s383 + $0x1b8] sm:$0xff]
        %v552 = vld [vmem:[%s383 + $0x1c0] sm:$0xff]
        %v553 = vld [vmem:[%s383 + $0x1c8] sm:$0xff]
        %v554 = vld [vmem:[%s383 + $0x1d0] sm:$0xff]
        %v555 = vld [vmem:[%s383 + $0x1d8] sm:$0xff]
        %v556 = vld [vmem:[%s383 + $0x1e0] sm:$0xff]
        %v557 = vld [vmem:[%s383 + $0x1e8] sm:$0xff]
        %v558 = vld [vmem:[%s383 + $0x1f0] sm:$0xff]
        %v559 = vld [vmem:[%s383 + $0x1f8] sm:$0xff]
        %v560 = vld [vmem:[%s383 + $0x200] sm:$0xff]
        %v561 = vld [vmem:[%s383 + $0x208] sm:$0xff]
        %v562 = vld [vmem:[%s383 + $0x210] sm:$0xff]
        %v563 = vld [vmem:[%s383 + $0x218] sm:$0xff]
        %v564 = vld [vmem:[%s383 + $0x220] sm:$0xff]
        %v565 = vld [vmem:[%s383 + $0x228] sm:$0xff]
        %v566 = vld [vmem:[%s383 + $0x230] sm:$0xff]
        %v567 = vld [vmem:[%s383 + $0x238] sm:$0xff]
        %v568 = vld [vmem:[%s383 + $0x240] sm:$0xff]
        %v569 = vld [vmem:[%s383 + $0x248] sm:$0xff]
        %v570 = vld [vmem:[%s383 + $0x250] sm:$0xff]
        %v571 = vld [vmem:[%s383 + $0x258] sm:$0xff]
        %v572 = vld [vmem:[%s383 + $0x260] sm:$0xff]
        %v573 = vld [vmem:[%s383 + $0x268] sm:$0xff]
        %v574 = vld [vmem:[%s383 + $0x270] sm:$0xff]
        %v575 = vld [vmem:[%s383 + $0x278] sm:$0xff]
        %v576 = vld [vmem:[%s383 + $0x280] sm:$0xff]
        %v577 = vld [vmem:[%s383 + $0x288] sm:$0xff]
        %v578 = vld [vmem:[%s383 + $0x290] sm:$0xff]
        %v579 = vld [vmem:[%s383 + $0x298] sm:$0xff]
        %v580 = vld [vmem:[%s383 + $0x2a0] sm:$0xff]
        %v581 = vld [vmem:[%s383 + $0x2a8] sm:$0xff]
        %v582 = vld [vmem:[%s383 + $0x2b0] sm:$0xff]
        %v583 = vld [vmem:[%s383 + $0x2b8] sm:$0xff]
        %v584 = vld [vmem:[%s383 + $0x2c0] sm:$0xff]
        %v585 = vld [vmem:[%s383 + $0x2c8] sm:$0xff]
        %v586 = vld [vmem:[%s383 + $0x2d0] sm:$0xff]
        %v587 = vld [vmem:[%s383 + $0x2d8] sm:$0xff]
        %v588 = vld [vmem:[%s383 + $0x2e0] sm:$0xff]
        %v589 = vld [vmem:[%s383 + $0x2e8] sm:$0xff]
        %v590 = vld [vmem:[%s383 + $0x2f0] sm:$0xff]
        %v591 = vld [vmem:[%s383 + $0x2f8] sm:$0xff]
        %v592 = vld [vmem:[%s383 + $0x300] sm:$0xff]
        %v593 = vld [vmem:[%s383 + $0x308] sm:$0xff]
        %v594 = vld [vmem:[%s383 + $0x310] sm:$0xff]
        %v595 = vld [vmem:[%s383 + $0x318] sm:$0xff]
        %v596 = vld [vmem:[%s383 + $0x320] sm:$0xff]
        %v597 = vld [vmem:[%s383 + $0x328] sm:$0xff]
        %v598 = vld [vmem:[%s383 + $0x330] sm:$0xff]
        %v599 = vld [vmem:[%s383 + $0x338] sm:$0xff]
        %v600 = vld [vmem:[%s383 + $0x340] sm:$0xff]
        %v601 = vld [vmem:[%s383 + $0x348] sm:$0xff]
        %v602 = vld [vmem:[%s383 + $0x350] sm:$0xff]
        %v603 = vld [vmem:[%s383 + $0x358] sm:$0xff]
        %v604 = vld [vmem:[%s383 + $0x360] sm:$0xff]
        %v605 = vld [vmem:[%s383 + $0x368] sm:$0xff]
        %v606 = vld [vmem:[%s383 + $0x370] sm:$0xff]
        %v607 = vld [vmem:[%s383 + $0x378] sm:$0xff]
        %v608 = vld [vmem:[%s383 + $0x380] sm:$0xff]
        %v609 = vld [vmem:[%s383 + $0x388] sm:$0xff]
        %v610 = vld [vmem:[%s383 + $0x390] sm:$0xff]
        %v611 = vld [vmem:[%s383 + $0x398] sm:$0xff]
        %v612 = vld [vmem:[%s383 + $0x3a0] sm:$0xff]
        %v613 = vld [vmem:[%s383 + $0x3a8] sm:$0xff]
        %v614 = vld [vmem:[%s383 + $0x3b0] sm:$0xff]
        %v615 = vld [vmem:[%s383 + $0x3b8] sm:$0xff]
        %v616 = vld [vmem:[%s383 + $0x3c0] sm:$0xff]
        %v617 = vld [vmem:[%s383 + $0x3c8] sm:$0xff]
        %v618 = vld [vmem:[%s383 + $0x3d0] sm:$0xff]
        %v619 = vld [vmem:[%s383 + $0x3d8] sm:$0xff]
        %v620 = vld [vmem:[%s383 + $0x3e0] sm:$0xff]
        %v621 = vld [vmem:[%s383 + $0x3e8] sm:$0xff]
        %v622 = vld [vmem:[%s383 + $0x3f0] sm:$0xff]
        %v623 = vld [vmem:[%s383 + $0x3f8] sm:$0xff]
        %v624 = vld [vmem:[%s383 + $0x400] sm:$0xff]
        %v625 = vld [vmem:[%s383 + $0x408] sm:$0xff]
        %v626 = vld [vmem:[%s383 + $0x410] sm:$0xff]
        %v627 = vld [vmem:[%s383 + $0x418] sm:$0xff]
        %v628 = vld [vmem:[%s383 + $0x420] sm:$0xff]
        %v629 = vld [vmem:[%s383 + $0x428] sm:$0xff]
        %v630 = vld [vmem:[%s383 + $0x430] sm:$0xff]
        %v631 = vld [vmem:[%s383 + $0x438] sm:$0xff]
        %v632 = vld [vmem:[%s383 + $0x440] sm:$0xff]
        %v633 = vld [vmem:[%s383 + $0x448] sm:$0xff]
        %v634 = vld [vmem:[%s383 + $0x450] sm:$0xff]
        %v635 = vld [vmem:[%s383 + $0x458] sm:$0xff]
        %v636 = vld [vmem:[%s383 + $0x460] sm:$0xff]
        %v637 = vld [vmem:[%s383 + $0x468] sm:$0xff]
        %v638 = vld [vmem:[%s383 + $0x470] sm:$0xff]
        %v639 = vld [vmem:[%s383 + $0x478] sm:$0xff]
        %v640 = vld [vmem:[%s383 + $0x480] sm:$0xff]
        %v641 = vld [vmem:[%s383 + $0x488] sm:$0xff]
        %v642 = vld [vmem:[%s383 + $0x490] sm:$0xff]
        %v643 = vld [vmem:[%s383 + $0x498] sm:$0xff]
        %v644 = vld [vmem:[%s383 + $0x4a0] sm:$0xff]
        %v645 = vld [vmem:[%s383 + $0x4a8] sm:$0xff]
        %v646 = vld [vmem:[%s383 + $0x4b0] sm:$0xff]
        %v647 = vld [vmem:[%s383 + $0x4b8] sm:$0xff]
        %v648 = vld [vmem:[%s383 + $0x4c0] sm:$0xff]
        %v649 = vld [vmem:[%s383 + $0x4c8] sm:$0xff]
        %v650 = vld [vmem:[%s383 + $0x4d0] sm:$0xff]
        %v651 = vld [vmem:[%s383 + $0x4d8] sm:$0xff]
        %v652 = vld [vmem:[%s383 + $0x4e0] sm:$0xff]
        %v653 = vld [vmem:[%s383 + $0x4e8] sm:$0xff]
        %v654 = vld [vmem:[%s383 + $0x4f0] sm:$0xff]
        %v655 = vld [vmem:[%s383 + $0x4f8] sm:$0xff]
        %v656 = vld [vmem:[%s383 + $0x500] sm:$0xff]
        %v657 = vld [vmem:[%s383 + $0x508] sm:$0xff]
        %v658 = vld [vmem:[%s383 + $0x510] sm:$0xff]
        %v659 = vld [vmem:[%s383 + $0x518] sm:$0xff]
        %v660 = vld [vmem:[%s383 + $0x520] sm:$0xff]
        %v661 = vld [vmem:[%s383 + $0x528] sm:$0xff]
        %v662 = vld [vmem:[%s383 + $0x530] sm:$0xff]
        %v663 = vld [vmem:[%s383 + $0x538] sm:$0xff]
        %v664 = vld [vmem:[%s383 + $0x540] sm:$0xff]
        %v665 = vld [vmem:[%s383 + $0x548] sm:$0xff]
        %v666 = vld [vmem:[%s383 + $0x550] sm:$0xff]
        %v667 = vld [vmem:[%s383 + $0x558] sm:$0xff]
        %v668 = vld [vmem:[%s383 + $0x560] sm:$0xff]
        %v669 = vld [vmem:[%s383 + $0x568] sm:$0xff]
        %v670 = vld [vmem:[%s383 + $0x570] sm:$0xff]
        %v671 = vld [vmem:[%s383 + $0x578] sm:$0xff]
        %v672 = vld [vmem:[%s383 + $0x580] sm:$0xff]
        %v673 = vld [vmem:[%s383 + $0x588] sm:$0xff]
        %v674 = vld [vmem:[%s383 + $0x590] sm:$0xff]
        %v675 = vld [vmem:[%s383 + $0x598] sm:$0xff]
        %v676 = vld [vmem:[%s383 + $0x5a0] sm:$0xff]
        %v677 = vld [vmem:[%s383 + $0x5a8] sm:$0xff]
        %v678 = vld [vmem:[%s383 + $0x5b0] sm:$0xff]
        %v679 = vld [vmem:[%s383 + $0x5b8] sm:$0xff]
        %v680 = vld [vmem:[%s383 + $0x5c0] sm:$0xff]
        %v681 = vld [vmem:[%s383 + $0x5c8] sm:$0xff]
        %v682 = vld [vmem:[%s383 + $0x5d0] sm:$0xff]
        %v683 = vld [vmem:[%s383 + $0x5d8] sm:$0xff]
        %v684 = vld [vmem:[%s383 + $0x5e0] sm:$0xff]
        %v685 = vld [vmem:[%s383 + $0x5e8] sm:$0xff]
        %v686 = vld [vmem:[%s383 + $0x5f0] sm:$0xff]
        %v687 = vld [vmem:[%s383 + $0x5f8] sm:$0xff]
        %v688 = vld [vmem:[%s383 + $0x600] sm:$0xff]
        %v689 = vld [vmem:[%s383 + $0x608] sm:$0xff]
        %v690 = vld [vmem:[%s383 + $0x610] sm:$0xff]
        %v691 = vld [vmem:[%s383 + $0x618] sm:$0xff]
        %v692 = vld [vmem:[%s383 + $0x620] sm:$0xff]
        %v693 = vld [vmem:[%s383 + $0x628] sm:$0xff]
        %v694 = vld [vmem:[%s383 + $0x630] sm:$0xff]
        %v695 = vld [vmem:[%s383 + $0x638] sm:$0xff]
        %v696 = vld [vmem:[%s383 + $0x640] sm:$0xff]
        %v697 = vld [vmem:[%s383 + $0x648] sm:$0xff]
        %v698 = vld [vmem:[%s383 + $0x650] sm:$0xff]
        %v699 = vld [vmem:[%s383 + $0x658] sm:$0xff]
        %v700 = vld [vmem:[%s383 + $0x660] sm:$0xff]
        %v701 = vld [vmem:[%s383 + $0x668] sm:$0xff]
        %v702 = vld [vmem:[%s383 + $0x670] sm:$0xff]
        %v703 = vld [vmem:[%s383 + $0x678] sm:$0xff]
        %v704 = vld [vmem:[%s383 + $0x680] sm:$0xff]
        %v705 = vld [vmem:[%s383 + $0x688] sm:$0xff]
        %v706 = vld [vmem:[%s383 + $0x690] sm:$0xff]
        %v707 = vld [vmem:[%s383 + $0x698] sm:$0xff]
        %v708 = vld [vmem:[%s383 + $0x6a0] sm:$0xff]
        %v709 = vld [vmem:[%s383 + $0x6a8] sm:$0xff]
        %v710 = vld [vmem:[%s383 + $0x6b0] sm:$0xff]
        %v711 = vld [vmem:[%s383 + $0x6b8] sm:$0xff]
        %v712 = vld [vmem:[%s383 + $0x6c0] sm:$0xff]
        %v713 = vld [vmem:[%s383 + $0x6c8] sm:$0xff]
        %v714 = vld [vmem:[%s383 + $0x6d0] sm:$0xff]
        %v715 = vld [vmem:[%s383 + $0x6d8] sm:$0xff]
        %v716 = vld [vmem:[%s383 + $0x6e0] sm:$0xff]
        %v717 = vld [vmem:[%s383 + $0x6e8] sm:$0xff]
        %v718 = vld [vmem:[%s383 + $0x6f0] sm:$0xff]
        %v719 = vld [vmem:[%s383 + $0x6f8] sm:$0xff]
        %v720 = vld [vmem:[%s383 + $0x700] sm:$0xff]
        %v721 = vld [vmem:[%s383 + $0x708] sm:$0xff]
        %v722 = vld [vmem:[%s383 + $0x710] sm:$0xff]
        %v723 = vld [vmem:[%s383 + $0x718] sm:$0xff]
        %v724 = vld [vmem:[%s383 + $0x720] sm:$0xff]
        %v725 = vld [vmem:[%s383 + $0x728] sm:$0xff]
        %v726 = vld [vmem:[%s383 + $0x730] sm:$0xff]
        %v727 = vld [vmem:[%s383 + $0x738] sm:$0xff]
        %v728 = vld [vmem:[%s383 + $0x740] sm:$0xff]
        %v729 = vld [vmem:[%s383 + $0x748] sm:$0xff]
        %v730 = vld [vmem:[%s383 + $0x750] sm:$0xff]
        %v731 = vld [vmem:[%s383 + $0x758] sm:$0xff]
        %v732 = vld [vmem:[%s383 + $0x760] sm:$0xff]
        %v733 = vld [vmem:[%s383 + $0x768] sm:$0xff]
        %v734 = vld [vmem:[%s383 + $0x770] sm:$0xff]
        %v735 = vld [vmem:[%s383 + $0x778] sm:$0xff]
        %v736 = vld [vmem:[%s383 + $0x780] sm:$0xff]
        %v737 = vld [vmem:[%s383 + $0x788] sm:$0xff]
        %v738 = vld [vmem:[%s383 + $0x790] sm:$0xff]
        %v739 = vld [vmem:[%s383 + $0x798] sm:$0xff]
        %v740 = vld [vmem:[%s383 + $0x7a0] sm:$0xff]
        %v741 = vld [vmem:[%s383 + $0x7a8] sm:$0xff]
        %v742 = vld [vmem:[%s383 + $0x7b0] sm:$0xff]
        %v743 = vld [vmem:[%s383 + $0x7b8] sm:$0xff]
        %v744 = vld [vmem:[%s383 + $0x7c0] sm:$0xff]
        %v745 = vld [vmem:[%s383 + $0x7c8] sm:$0xff]
        %v746 = vld [vmem:[%s383 + $0x7d0] sm:$0xff]
        %v747 = vld [vmem:[%s383 + $0x7d8] sm:$0xff]
        %v748 = vld [vmem:[%s383 + $0x7e0] sm:$0xff]
        %v749 = vld [vmem:[%s383 + $0x7e8] sm:$0xff]
        %v750 = vld [vmem:[%s383 + $0x7f0] sm:$0xff]
        %v751 = vld [vmem:[%s383 + $0x7f8] sm:$0xff]
        %v752 = vld [vmem:[%s383 + $0x800] sm:$0xff]
        %v753 = vld [vmem:[%s383 + $0x808] sm:$0xff]
        %v754 = vld [vmem:[%s383 + $0x810] sm:$0xff]
        %v755 = vld [vmem:[%s383 + $0x818] sm:$0xff]
        %v756 = vld [vmem:[%s383 + $0x820] sm:$0xff]
        %v757 = vld [vmem:[%s383 + $0x828] sm:$0xff]
        %v758 = vld [vmem:[%s383 + $0x830] sm:$0xff]
        %v759 = vld [vmem:[%s383 + $0x838] sm:$0xff]
        %v760 = vld [vmem:[%s383 + $0x840] sm:$0xff]
        %v761 = vld [vmem:[%s383 + $0x848] sm:$0xff]
        %v762 = vld [vmem:[%s383 + $0x850] sm:$0xff]
        %v763 = vld [vmem:[%s383 + $0x858] sm:$0xff]
        %v764 = vld [vmem:[%s383 + $0x860] sm:$0xff]
        %v765 = vld [vmem:[%s383 + $0x868] sm:$0xff]
        %v766 = vld [vmem:[%s383 + $0x870] sm:$0xff]
        %v767 = vld [vmem:[%s383 + $0x878] sm:$0xff]
        %v768 = vld [vmem:[%s383 + $0x880] sm:$0xff]
        %v769 = vld [vmem:[%s383 + $0x888] sm:$0xff]
        %v770 = vld [vmem:[%s383 + $0x890] sm:$0xff]
        %v771 = vld [vmem:[%s383 + $0x898] sm:$0xff]
        %v772 = vld [vmem:[%s383 + $0x8a0] sm:$0xff]
        %v773 = vld [vmem:[%s383 + $0x8a8] sm:$0xff]
        %v774 = vld [vmem:[%s383 + $0x8b0] sm:$0xff]
        %v775 = vld [vmem:[%s383 + $0x8b8] sm:$0xff]
        %v776 = vld [vmem:[%s383 + $0x8c0] sm:$0xff]
        %v777 = vld [vmem:[%s383 + $0x8c8] sm:$0xff]
        %v778 = vld [vmem:[%s383 + $0x8d0] sm:$0xff]
        %v779 = vld [vmem:[%s383 + $0x8d8] sm:$0xff]
        %v780 = vld [vmem:[%s383 + $0x8e0] sm:$0xff]
        %v781 = vld [vmem:[%s383 + $0x8e8] sm:$0xff]
        %v782 = vld [vmem:[%s383 + $0x8f0] sm:$0xff]
        %v783 = vld [vmem:[%s383 + $0x8f8] sm:$0xff]
        %v784 = vld [vmem:[%s383 + $0x900] sm:$0xff]
        %v785 = vld [vmem:[%s383 + $0x908] sm:$0xff]
        %v786 = vld [vmem:[%s383 + $0x910] sm:$0xff]
        %v787 = vld [vmem:[%s383 + $0x918] sm:$0xff]
        %v788 = vld [vmem:[%s383 + $0x920] sm:$0xff]
        %v789 = vld [vmem:[%s383 + $0x928] sm:$0xff]
        %v790 = vld [vmem:[%s383 + $0x930] sm:$0xff]
        %v791 = vld [vmem:[%s383 + $0x938] sm:$0xff]
        %v792 = vld [vmem:[%s383 + $0x940] sm:$0xff]
        %v793 = vld [vmem:[%s383 + $0x948] sm:$0xff]
        %v794 = vld [vmem:[%s383 + $0x950] sm:$0xff]
        %v795 = vld [vmem:[%s383 + $0x958] sm:$0xff]
        %v796 = vld [vmem:[%s383 + $0x960] sm:$0xff]
        %v797 = vld [vmem:[%s383 + $0x968] sm:$0xff]
        %v798 = vld [vmem:[%s383 + $0x970] sm:$0xff]
        %v799 = vld [vmem:[%s383 + $0x978] sm:$0xff]
        %v800 = vld [vmem:[%s383 + $0x980] sm:$0xff]
        %v801 = vld [vmem:[%s383 + $0x988] sm:$0xff]
        %v802 = vld [vmem:[%s383 + $0x990] sm:$0xff]
        %v803 = vld [vmem:[%s383 + $0x998] sm:$0xff]
        %v804 = vld [vmem:[%s383 + $0x9a0] sm:$0xff]
        %v805 = vld [vmem:[%s383 + $0x9a8] sm:$0xff]
        %v806 = vld [vmem:[%s383 + $0x9b0] sm:$0xff]
        %v807 = vld [vmem:[%s383 + $0x9b8] sm:$0xff]
        %v808 = vld [vmem:[%s383 + $0x9c0] sm:$0xff]
        %v809 = vld [vmem:[%s383 + $0x9c8] sm:$0xff]
        %v810 = vld [vmem:[%s383 + $0x9d0] sm:$0xff]
        %v811 = vld [vmem:[%s383 + $0x9d8] sm:$0xff]
        %v812 = vld [vmem:[%s383 + $0x9e0] sm:$0xff]
        %v813 = vld [vmem:[%s383 + $0x9e8] sm:$0xff]
        %v814 = vld [vmem:[%s383 + $0x9f0] sm:$0xff]
        %v815 = vld [vmem:[%s383 + $0x9f8] sm:$0xff]
        %v816 = vld [vmem:[%s383 + $0xa00] sm:$0xff]
        %v817 = vld [vmem:[%s383 + $0xa08] sm:$0xff]
        %v818 = vld [vmem:[%s383 + $0xa10] sm:$0xff]
        %v819 = vld [vmem:[%s383 + $0xa18] sm:$0xff]
        %v820 = vld [vmem:[%s383 + $0xa20] sm:$0xff]
        %v821 = vld [vmem:[%s383 + $0xa28] sm:$0xff]
        %v822 = vld [vmem:[%s383 + $0xa30] sm:$0xff]
        %v823 = vld [vmem:[%s383 + $0xa38] sm:$0xff]
        %v824 = vld [vmem:[%s383 + $0xa40] sm:$0xff]
        %v825 = vld [vmem:[%s383 + $0xa48] sm:$0xff]
        %v826 = vld [vmem:[%s383 + $0xa50] sm:$0xff]
        %v827 = vld [vmem:[%s383 + $0xa58] sm:$0xff]
        %v828 = vld [vmem:[%s383 + $0xa60] sm:$0xff]
        %v829 = vld [vmem:[%s383 + $0xa68] sm:$0xff]
        %v830 = vld [vmem:[%s383 + $0xa70] sm:$0xff]
        %v831 = vld [vmem:[%s383 + $0xa78] sm:$0xff]
        %v832 = vld [vmem:[%s383 + $0xa80] sm:$0xff]
        %v833 = vld [vmem:[%s383 + $0xa88] sm:$0xff]
        %v834 = vld [vmem:[%s383 + $0xa90] sm:$0xff]
        %v835 = vld [vmem:[%s383 + $0xa98] sm:$0xff]
        %v836 = vld [vmem:[%s383 + $0xaa0] sm:$0xff]
        %v837 = vld [vmem:[%s383 + $0xaa8] sm:$0xff]
        %v838 = vld [vmem:[%s383 + $0xab0] sm:$0xff]
        %v839 = vld [vmem:[%s383 + $0xab8] sm:$0xff]
        %v840 = vld [vmem:[%s383 + $0xac0] sm:$0xff]
        %v841 = vld [vmem:[%s383 + $0xac8] sm:$0xff]
        %v842 = vld [vmem:[%s383 + $0xad0] sm:$0xff]
        %v843 = vld [vmem:[%s383 + $0xad8] sm:$0xff]
        %v844 = vld [vmem:[%s383 + $0xae0] sm:$0xff]
        %v845 = vld [vmem:[%s383 + $0xae8] sm:$0xff]
        %v846 = vld [vmem:[%s383 + $0xaf0] sm:$0xff]
        %v847 = vld [vmem:[%s383 + $0xaf8] sm:$0xff]
        %v848 = vld [vmem:[%s383 + $0xb00] sm:$0xff]
        %v849 = vld [vmem:[%s383 + $0xb08] sm:$0xff]
        %v850 = vld [vmem:[%s383 + $0xb10] sm:$0xff]
        %v851 = vld [vmem:[%s383 + $0xb18] sm:$0xff]
        %v852 = vld [vmem:[%s383 + $0xb20] sm:$0xff]
        %v853 = vld [vmem:[%s383 + $0xb28] sm:$0xff]
        %v854 = vld [vmem:[%s383 + $0xb30] sm:$0xff]
        %v855 = vld [vmem:[%s383 + $0xb38] sm:$0xff]
        %v856 = vld [vmem:[%s383 + $0xb40] sm:$0xff]
        %v857 = vld [vmem:[%s383 + $0xb48] sm:$0xff]
        %v858 = vld [vmem:[%s383 + $0xb50] sm:$0xff]
        %v859 = vld [vmem:[%s383 + $0xb58] sm:$0xff]
        %v860 = vld [vmem:[%s383 + $0xb60] sm:$0xff]
        %v861 = vld [vmem:[%s383 + $0xb68] sm:$0xff]
        %v862 = vld [vmem:[%s383 + $0xb70] sm:$0xff]
        %v863 = vld [vmem:[%s383 + $0xb78] sm:$0xff]
        %v864 = vld [vmem:[%s383 + $0xb80] sm:$0xff]
        %v865 = vld [vmem:[%s383 + $0xb88] sm:$0xff]
        %v866 = vld [vmem:[%s383 + $0xb90] sm:$0xff]
        %v867 = vld [vmem:[%s383 + $0xb98] sm:$0xff]
        %v868 = vld [vmem:[%s383 + $0xba0] sm:$0xff]
        %v869 = vld [vmem:[%s383 + $0xba8] sm:$0xff]
        %v870 = vld [vmem:[%s383 + $0xbb0] sm:$0xff]
        %v871 = vld [vmem:[%s383 + $0xbb8] sm:$0xff]
        %v872 = vld [vmem:[%s383 + $0xbc0] sm:$0xff]
        %v873 = vld [vmem:[%s383 + $0xbc8] sm:$0xff]
        %v874 = vld [vmem:[%s383 + $0xbd0] sm:$0xff]
        %v875 = vld [vmem:[%s383 + $0xbd8] sm:$0xff]
        %v876 = vld [vmem:[%s383 + $0xbe0] sm:$0xff]
        %v877 = vld [vmem:[%s383 + $0xbe8] sm:$0xff]
        %v878 = vld [vmem:[%s383 + $0xbf0] sm:$0xff]
        %v879 = vld [vmem:[%s383 + $0xbf8] sm:$0xff]
        %v880 = vld [vmem:[%s383 + $0xc00] sm:$0xff]
        %v881 = vld [vmem:[%s383 + $0xc08] sm:$0xff]
        %v882 = vld [vmem:[%s383 + $0xc10] sm:$0xff]
        %v883 = vld [vmem:[%s383 + $0xc18] sm:$0xff]
        %v884 = vld [vmem:[%s383 + $0xc20] sm:$0xff]
        %v885 = vld [vmem:[%s383 + $0xc28] sm:$0xff]
        %v886 = vld [vmem:[%s383 + $0xc30] sm:$0xff]
        %v887 = vld [vmem:[%s383 + $0xc38] sm:$0xff]
        %v888 = vld [vmem:[%s383 + $0xc40] sm:$0xff]
        %v889 = vld [vmem:[%s383 + $0xc48] sm:$0xff]
        %v890 = vld [vmem:[%s383 + $0xc50] sm:$0xff]
        %v891 = vld [vmem:[%s383 + $0xc58] sm:$0xff]
        %v892 = vld [vmem:[%s383 + $0xc60] sm:$0xff]
        %v893 = vld [vmem:[%s383 + $0xc68] sm:$0xff]
        %v894 = vld [vmem:[%s383 + $0xc70] sm:$0xff]
        %v895 = vld [vmem:[%s383 + $0xc78] sm:$0xff]
        %v896 = vld [vmem:[%s383 + $0xc80] sm:$0xff]
        %v897 = vld [vmem:[%s383 + $0xc88] sm:$0xff]
        %v898 = vld [vmem:[%s383 + $0xc90] sm:$0xff]
        %v899 = vld [vmem:[%s383 + $0xc98] sm:$0xff]
        %v900 = vld [vmem:[%s383 + $0xca0] sm:$0xff]
        %v901 = vld [vmem:[%s383 + $0xca8] sm:$0xff]
        %v902 = vld [vmem:[%s383 + $0xcb0] sm:$0xff]
        %v903 = vld [vmem:[%s383 + $0xcb8] sm:$0xff]
        %v904 = vld [vmem:[%s383 + $0xcc0] sm:$0xff]
        %v905 = vld [vmem:[%s383 + $0xcc8] sm:$0xff]
        %v906 = vld [vmem:[%s383 + $0xcd0] sm:$0xff]
        %v907 = vld [vmem:[%s383 + $0xcd8] sm:$0xff]
        %v908 = vld [vmem:[%s383 + $0xce0] sm:$0xff]
        %v909 = vld [vmem:[%s383 + $0xce8] sm:$0xff]
        %v910 = vld [vmem:[%s383 + $0xcf0] sm:$0xff]
        %v911 = vld [vmem:[%s383 + $0xcf8] sm:$0xff]
        %v912 = vld [vmem:[%s383 + $0xd00] sm:$0xff]
        %v913 = vld [vmem:[%s383 + $0xd08] sm:$0xff]
        %v914 = vld [vmem:[%s383 + $0xd10] sm:$0xff]
        %v915 = vld [vmem:[%s383 + $0xd18] sm:$0xff]
        %v916 = vld [vmem:[%s383 + $0xd20] sm:$0xff]
        %v917 = vld [vmem:[%s383 + $0xd28] sm:$0xff]
        %v918 = vld [vmem:[%s383 + $0xd30] sm:$0xff]
        %v919 = vld [vmem:[%s383 + $0xd38] sm:$0xff]
        %v920 = vld [vmem:[%s383 + $0xd40] sm:$0xff]
        %v921 = vld [vmem:[%s383 + $0xd48] sm:$0xff]
        %v922 = vld [vmem:[%s383 + $0xd50] sm:$0xff]
        %v923 = vld [vmem:[%s383 + $0xd58] sm:$0xff]
        %v924 = vld [vmem:[%s383 + $0xd60] sm:$0xff]
        %v925 = vld [vmem:[%s383 + $0xd68] sm:$0xff]
        %v926 = vld [vmem:[%s383 + $0xd70] sm:$0xff]
        %v927 = vld [vmem:[%s383 + $0xd78] sm:$0xff]
        %v928 = vld [vmem:[%s383 + $0xd80] sm:$0xff]
        %v929 = vld [vmem:[%s383 + $0xd88] sm:$0xff]
        %v930 = vld [vmem:[%s383 + $0xd90] sm:$0xff]
        %v931 = vld [vmem:[%s383 + $0xd98] sm:$0xff]
        %v932 = vld [vmem:[%s383 + $0xda0] sm:$0xff]
        %v933 = vld [vmem:[%s383 + $0xda8] sm:$0xff]
        %v934 = vld [vmem:[%s383 + $0xdb0] sm:$0xff]
        %v935 = vld [vmem:[%s383 + $0xdb8] sm:$0xff]
        %v936 = vld [vmem:[%s383 + $0xdc0] sm:$0xff]
        %v937 = vld [vmem:[%s383 + $0xdc8] sm:$0xff]
        %v938 = vld [vmem:[%s383 + $0xdd0] sm:$0xff]
        %v939 = vld [vmem:[%s383 + $0xdd8] sm:$0xff]
        %v940 = vld [vmem:[%s383 + $0xde0] sm:$0xff]
        %v941 = vld [vmem:[%s383 + $0xde8] sm:$0xff]
        %v942 = vld [vmem:[%s383 + $0xdf0] sm:$0xff]
        %v943 = vld [vmem:[%s383 + $0xdf8] sm:$0xff]
        %v944 = vld [vmem:[%s383 + $0xe00] sm:$0xff]
        %v945 = vld [vmem:[%s383 + $0xe08] sm:$0xff]
        %v946 = vld [vmem:[%s383 + $0xe10] sm:$0xff]
        %v947 = vld [vmem:[%s383 + $0xe18] sm:$0xff]
        %v948 = vld [vmem:[%s383 + $0xe20] sm:$0xff]
        %v949 = vld [vmem:[%s383 + $0xe28] sm:$0xff]
        %v950 = vld [vmem:[%s383 + $0xe30] sm:$0xff]
        %v951 = vld [vmem:[%s383 + $0xe38] sm:$0xff]
        %v952 = vld [vmem:[%s383 + $0xe40] sm:$0xff]
        %v953 = vld [vmem:[%s383 + $0xe48] sm:$0xff]
        %v954 = vld [vmem:[%s383 + $0xe50] sm:$0xff]
        %v955 = vld [vmem:[%s383 + $0xe58] sm:$0xff]
        %v956 = vld [vmem:[%s383 + $0xe60] sm:$0xff]
        %v957 = vld [vmem:[%s383 + $0xe68] sm:$0xff]
        %v958 = vld [vmem:[%s383 + $0xe70] sm:$0xff]
        %v959 = vld [vmem:[%s383 + $0xe78] sm:$0xff]
        %v960 = vld [vmem:[%s383 + $0xe80] sm:$0xff]
        %v961 = vld [vmem:[%s383 + $0xe88] sm:$0xff]
        %v962 = vld [vmem:[%s383 + $0xe90] sm:$0xff]
        %v963 = vld [vmem:[%s383 + $0xe98] sm:$0xff]
        %v964 = vld [vmem:[%s383 + $0xea0] sm:$0xff]
        %v965 = vld [vmem:[%s383 + $0xea8] sm:$0xff]
        %v966 = vld [vmem:[%s383 + $0xeb0] sm:$0xff]
        %v967 = vld [vmem:[%s383 + $0xeb8] sm:$0xff]
        %v968 = vld [vmem:[%s383 + $0xec0] sm:$0xff]
        %v969 = vld [vmem:[%s383 + $0xec8] sm:$0xff]
        %v970 = vld [vmem:[%s383 + $0xed0] sm:$0xff]
        %v971 = vld [vmem:[%s383 + $0xed8] sm:$0xff]
        %v972 = vld [vmem:[%s383 + $0xee0] sm:$0xff]
        %v973 = vld [vmem:[%s383 + $0xee8] sm:$0xff]
        %v974 = vld [vmem:[%s383 + $0xef0] sm:$0xff]
        %v975 = vld [vmem:[%s383 + $0xef8] sm:$0xff]
        %v976 = vld [vmem:[%s383 + $0xf00] sm:$0xff]
        %v977 = vld [vmem:[%s383 + $0xf08] sm:$0xff]
        %v978 = vld [vmem:[%s383 + $0xf10] sm:$0xff]
        %v979 = vld [vmem:[%s383 + $0xf18] sm:$0xff]
        %v980 = vld [vmem:[%s383 + $0xf20] sm:$0xff]
        %v981 = vld [vmem:[%s383 + $0xf28] sm:$0xff]
        %v982 = vld [vmem:[%s383 + $0xf30] sm:$0xff]
        %v983 = vld [vmem:[%s383 + $0xf38] sm:$0xff]
        %v984 = vld [vmem:[%s383 + $0xf40] sm:$0xff]
        %v985 = vld [vmem:[%s383 + $0xf48] sm:$0xff]
        %v986 = vld [vmem:[%s383 + $0xf50] sm:$0xff]
        %v987 = vld [vmem:[%s383 + $0xf58] sm:$0xff]
        %v988 = vld [vmem:[%s383 + $0xf60] sm:$0xff]
        %v989 = vld [vmem:[%s383 + $0xf68] sm:$0xff]
        %v990 = vld [vmem:[%s383 + $0xf70] sm:$0xff]
        %v991 = vld [vmem:[%s383 + $0xf78] sm:$0xff]
        %v992 = vld [vmem:[%s383 + $0xf80] sm:$0xff]
        %v993 = vld [vmem:[%s383 + $0xf88] sm:$0xff]
        %v994 = vld [vmem:[%s383 + $0xf90] sm:$0xff]
        %v995 = vld [vmem:[%s383 + $0xf98] sm:$0xff]
        %v996 = vld [vmem:[%s383 + $0xfa0] sm:$0xff]
        %v997 = vld [vmem:[%s383 + $0xfa8] sm:$0xff]
        %v998 = vld [vmem:[%s383 + $0xfb0] sm:$0xff]
        %v999 = vld [vmem:[%s383 + $0xfb8] sm:$0xff]
        %v1000 = vld [vmem:[%s383 + $0xfc0] sm:$0xff]
        %v1001 = vld [vmem:[%s383 + $0xfc8] sm:$0xff]
        %v1002 = vld [vmem:[%s383 + $0xfd0] sm:$0xff]
        %v1003 = vld [vmem:[%s383 + $0xfd8] sm:$0xff]
        %v1004 = vld [vmem:[%s383 + $0xfe0] sm:$0xff]
        %v1005 = vld [vmem:[%s383 + $0xfe8] sm:$0xff]
        %v1006 = vld [vmem:[%s383 + $0xff0] sm:$0xff]
        %v1007 = vld [vmem:[%s383 + $0xff8] sm:$0xff]
        %v1008 = vld [vmem:[%s383 + $0x1000] sm:$0xff]
        %v1009 = vld [vmem:[%s383 + $0x1008] sm:$0xff]
        %v1010 = vld [vmem:[%s383 + $0x1010] sm:$0xff]
        %v1011 = vld [vmem:[%s383 + $0x1018] sm:$0xff]
        %v1012 = vld [vmem:[%s383 + $0x1020] sm:$0xff]
        %v1013 = vld [vmem:[%s383 + $0x1028] sm:$0xff]
        %v1014 = vld [vmem:[%s383 + $0x1030] sm:$0xff]
        %v1015 = vld [vmem:[%s383 + $0x1038] sm:$0xff]
        %v1016 = vld [vmem:[%s383 + $0x1040] sm:$0xff]
        %v1017 = vld [vmem:[%s383 + $0x1048] sm:$0xff]
        %v1018 = vld [vmem:[%s383 + $0x1050] sm:$0xff]
        %v1019 = vld [vmem:[%s383 + $0x1058] sm:$0xff]
        %v1020 = vld [vmem:[%s383 + $0x1060] sm:$0xff]
        %v1021 = vld [vmem:[%s383 + $0x1068] sm:$0xff]
        %v1022 = vld [vmem:[%s383 + $0x1070] sm:$0xff]
        %v1023 = vld [vmem:[%s383 + $0x1078] sm:$0xff]
        %v1024 = vld [vmem:[%s383 + $0x1080] sm:$0xff]
        %v1025 = vld [vmem:[%s383 + $0x1088] sm:$0xff]
        %v1026 = vld [vmem:[%s383 + $0x1090] sm:$0xff]
        %v1027 = vld [vmem:[%s383 + $0x1098] sm:$0xff]
        %v1028 = vld [vmem:[%s383 + $0x10a0] sm:$0xff]
        %v1029 = vld [vmem:[%s383 + $0x10a8] sm:$0xff]
        %v1030 = vld [vmem:[%s383 + $0x10b0] sm:$0xff]
        %v1031 = vld [vmem:[%s383 + $0x10b8] sm:$0xff]
        %v1032 = vld [vmem:[%s383 + $0x10c0] sm:$0xff]
        %v1033 = vld [vmem:[%s383 + $0x10c8] sm:$0xff]
        %v1034 = vld [vmem:[%s383 + $0x10d0] sm:$0xff]
        %v1035 = vld [vmem:[%s383 + $0x10d8] sm:$0xff]
        %v1036 = vld [vmem:[%s383 + $0x10e0] sm:$0xff]
        %v1037 = vld [vmem:[%s383 + $0x10e8] sm:$0xff]
        %v1038 = vld [vmem:[%s383 + $0x10f0] sm:$0xff]
        %v1039 = vld [vmem:[%s383 + $0x10f8] sm:$0xff]
        %v1040 = vld [vmem:[%s383 + $0x1100] sm:$0xff]
        %v1041 = vld [vmem:[%s383 + $0x1108] sm:$0xff]
        %v1042 = vld [vmem:[%s383 + $0x1110] sm:$0xff]
        %v1043 = vld [vmem:[%s383 + $0x1118] sm:$0xff]
        %v1044 = vld [vmem:[%s383 + $0x1120] sm:$0xff]
        %v1045 = vld [vmem:[%s383 + $0x1128] sm:$0xff]
        %v1046 = vld [vmem:[%s383 + $0x1130] sm:$0xff]
        %v1047 = vld [vmem:[%s383 + $0x1138] sm:$0xff]
        %v1048 = vld [vmem:[%s383 + $0x1140] sm:$0xff]
        %v1049 = vld [vmem:[%s383 + $0x1148] sm:$0xff]
        %v1050 = vld [vmem:[%s383 + $0x1150] sm:$0xff]
        %v1051 = vld [vmem:[%s383 + $0x1158] sm:$0xff]
        %v1052 = vld [vmem:[%s383 + $0x1160] sm:$0xff]
        %v1053 = vld [vmem:[%s383 + $0x1168] sm:$0xff]
        %v1054 = vld [vmem:[%s383 + $0x1170] sm:$0xff]
        %v1055 = vld [vmem:[%s383 + $0x1178] sm:$0xff]
        %v1056 = vld [vmem:[%s383 + $0x1180] sm:$0xff]
        %v1057 = vld [vmem:[%s383 + $0x1188] sm:$0xff]
        %v1058 = vld [vmem:[%s383 + $0x1190] sm:$0xff]
        %v1059 = vld [vmem:[%s383 + $0x1198] sm:$0xff]
        %v1060 = vld [vmem:[%s383 + $0x11a0] sm:$0xff]
        %v1061 = vld [vmem:[%s383 + $0x11a8] sm:$0xff]
        %v1062 = vld [vmem:[%s383 + $0x11b0] sm:$0xff]
        %v1063 = vld [vmem:[%s383 + $0x11b8] sm:$0xff]
        %v1064 = vld [vmem:[%s383 + $0x11c0] sm:$0xff]
        %v1065 = vld [vmem:[%s383 + $0x11c8] sm:$0xff]
        %v1066 = vld [vmem:[%s383 + $0x11d0] sm:$0xff]
        %v1067 = vld [vmem:[%s383 + $0x11d8] sm:$0xff]
        %v1068 = vld [vmem:[%s383 + $0x11e0] sm:$0xff]
        %v1069 = vld [vmem:[%s383 + $0x11e8] sm:$0xff]
        %v1070 = vld [vmem:[%s383 + $0x11f0] sm:$0xff]
        %v1071 = vld [vmem:[%s383 + $0x11f8] sm:$0xff]
        %v1072 = vld [vmem:[%s383 + $0x1200] sm:$0xff]
        %v1073 = vld [vmem:[%s383 + $0x1208] sm:$0xff]
        %v1074 = vld [vmem:[%s383 + $0x1210] sm:$0xff]
        %v1075 = vld [vmem:[%s383 + $0x1218] sm:$0xff]
        %v1076 = vld [vmem:[%s383 + $0x1220] sm:$0xff]
        %v1077 = vld [vmem:[%s383 + $0x1228] sm:$0xff]
        %v1078 = vld [vmem:[%s383 + $0x1230] sm:$0xff]
        %v1079 = vld [vmem:[%s383 + $0x1238] sm:$0xff]
        %v1080 = vld [vmem:[%s383 + $0x1240] sm:$0xff]
        %v1081 = vld [vmem:[%s383 + $0x1248] sm:$0xff]
        %v1082 = vld [vmem:[%s383 + $0x1250] sm:$0xff]
        %v1083 = vld [vmem:[%s383 + $0x1258] sm:$0xff]
        %v1084 = vld [vmem:[%s383 + $0x1260] sm:$0xff]
        %v1085 = vld [vmem:[%s383 + $0x1268] sm:$0xff]
        %v1086 = vld [vmem:[%s383 + $0x1270] sm:$0xff]
        %v1087 = vld [vmem:[%s383 + $0x1278] sm:$0xff]
        %v1088 = vld [vmem:[%s383 + $0x1280] sm:$0xff]
        %v1089 = vld [vmem:[%s383 + $0x1288] sm:$0xff]
        %v1090 = vld [vmem:[%s383 + $0x1290] sm:$0xff]
        %v1091 = vld [vmem:[%s383 + $0x1298] sm:$0xff]
        %v1092 = vld [vmem:[%s383 + $0x12a0] sm:$0xff]
        %v1093 = vld [vmem:[%s383 + $0x12a8] sm:$0xff]
        %v1094 = vld [vmem:[%s383 + $0x12b0] sm:$0xff]
        %v1095 = vld [vmem:[%s383 + $0x12b8] sm:$0xff]
        %v1096 = vld [vmem:[%s383 + $0x12c0] sm:$0xff]
        %v1097 = vld [vmem:[%s383 + $0x12c8] sm:$0xff]
        %v1098 = vld [vmem:[%s383 + $0x12d0] sm:$0xff]
        %v1099 = vld [vmem:[%s383 + $0x12d8] sm:$0xff]
        %v1100 = vld [vmem:[%s383 + $0x12e0] sm:$0xff]
        %v1101 = vld [vmem:[%s383 + $0x12e8] sm:$0xff]
        %v1102 = vld [vmem:[%s383 + $0x12f0] sm:$0xff]
        %v1103 = vld [vmem:[%s383 + $0x12f8] sm:$0xff]
        %v1104 = vld [vmem:[%s383 + $0x1300] sm:$0xff]
        %v1105 = vld [vmem:[%s383 + $0x1308] sm:$0xff]
        %v1106 = vld [vmem:[%s383 + $0x1310] sm:$0xff]
        %v1107 = vld [vmem:[%s383 + $0x1318] sm:$0xff]
        %v1108 = vld [vmem:[%s383 + $0x1320] sm:$0xff]
        %v1109 = vld [vmem:[%s383 + $0x1328] sm:$0xff]
        %v1110 = vld [vmem:[%s383 + $0x1330] sm:$0xff]
        %v1111 = vld [vmem:[%s383 + $0x1338] sm:$0xff]
        %v1112 = vld [vmem:[%s383 + $0x1340] sm:$0xff]
        %v1113 = vld [vmem:[%s383 + $0x1348] sm:$0xff]
        %v1114 = vld [vmem:[%s383 + $0x1350] sm:$0xff]
        %v1115 = vld [vmem:[%s383 + $0x1358] sm:$0xff]
        %v1116 = vld [vmem:[%s383 + $0x1360] sm:$0xff]
        %v1117 = vld [vmem:[%s383 + $0x1368] sm:$0xff]
        %v1118 = vld [vmem:[%s383 + $0x1370] sm:$0xff]
        %v1119 = vld [vmem:[%s383 + $0x1378] sm:$0xff]
        %v1120 = vld [vmem:[%s383 + $0x1380] sm:$0xff]
        %v1121 = vld [vmem:[%s383 + $0x1388] sm:$0xff]
        %v1122 = vld [vmem:[%s383 + $0x1390] sm:$0xff]
        %v1123 = vld [vmem:[%s383 + $0x1398] sm:$0xff]
        %v1124 = vld [vmem:[%s383 + $0x13a0] sm:$0xff]
        %v1125 = vld [vmem:[%s383 + $0x13a8] sm:$0xff]
        %v1126 = vld [vmem:[%s383 + $0x13b0] sm:$0xff]
        %v1127 = vld [vmem:[%s383 + $0x13b8] sm:$0xff]
        %v1128 = vld [vmem:[%s383 + $0x13c0] sm:$0xff]
        %v1129 = vld [vmem:[%s383 + $0x13c8] sm:$0xff]
        %v1130 = vld [vmem:[%s383 + $0x13d0] sm:$0xff]
        %v1131 = vld [vmem:[%s383 + $0x13d8] sm:$0xff]
        %v1132 = vld [vmem:[%s383 + $0x13e0] sm:$0xff]
        %v1133 = vld [vmem:[%s383 + $0x13e8] sm:$0xff]
        %v1134 = vld [vmem:[%s383 + $0x13f0] sm:$0xff]
        %v1135 = vld [vmem:[%s383 + $0x13f8] sm:$0xff]
        %v1136 = vld [vmem:[%s383 + $0x1400] sm:$0xff]
        %v1137 = vld [vmem:[%s383 + $0x1408] sm:$0xff]
        %v1138 = vld [vmem:[%s383 + $0x1410] sm:$0xff]
        %v1139 = vld [vmem:[%s383 + $0x1418] sm:$0xff]
        %v1140 = vld [vmem:[%s383 + $0x1420] sm:$0xff]
        %v1141 = vld [vmem:[%s383 + $0x1428] sm:$0xff]
        %v1142 = vld [vmem:[%s383 + $0x1430] sm:$0xff]
        %v1143 = vld [vmem:[%s383 + $0x1438] sm:$0xff]
        %v1144 = vld [vmem:[%s383 + $0x1440] sm:$0xff]
        %v1145 = vld [vmem:[%s383 + $0x1448] sm:$0xff]
        %v1146 = vld [vmem:[%s383 + $0x1450] sm:$0xff]
        %v1147 = vld [vmem:[%s383 + $0x1458] sm:$0xff]
        %v1148 = vld [vmem:[%s383 + $0x1460] sm:$0xff]
        %v1149 = vld [vmem:[%s383 + $0x1468] sm:$0xff]
        %v1150 = vld [vmem:[%s383 + $0x1470] sm:$0xff]
        %v1151 = vld [vmem:[%s383 + $0x1478] sm:$0xff]
        %v1152 = vld [vmem:[%s383 + $0x1480] sm:$0xff]
        %v1153 = vld [vmem:[%s383 + $0x1488] sm:$0xff]
        %v1154 = vld [vmem:[%s383 + $0x1490] sm:$0xff]
        %v1155 = vld [vmem:[%s383 + $0x1498] sm:$0xff]
        %v1156 = vld [vmem:[%s383 + $0x14a0] sm:$0xff]
        %v1157 = vld [vmem:[%s383 + $0x14a8] sm:$0xff]
        %v1158 = vld [vmem:[%s383 + $0x14b0] sm:$0xff]
        %v1159 = vld [vmem:[%s383 + $0x14b8] sm:$0xff]
        %v1160 = vld [vmem:[%s383 + $0x14c0] sm:$0xff]
        %v1161 = vld [vmem:[%s383 + $0x14c8] sm:$0xff]
        %v1162 = vld [vmem:[%s383 + $0x14d0] sm:$0xff]
        %v1163 = vld [vmem:[%s383 + $0x14d8] sm:$0xff]
        %v1164 = vld [vmem:[%s383 + $0x14e0] sm:$0xff]
        %v1165 = vld [vmem:[%s383 + $0x14e8] sm:$0xff]
        %v1166 = vld [vmem:[%s383 + $0x14f0] sm:$0xff]
        %v1167 = vld [vmem:[%s383 + $0x14f8] sm:$0xff]
        %v1168 = vld [vmem:[%s383 + $0x1500] sm:$0xff]
        %v1169 = vld [vmem:[%s383 + $0x1508] sm:$0xff]
        %v1170 = vld [vmem:[%s383 + $0x1510] sm:$0xff]
        %v1171 = vld [vmem:[%s383 + $0x1518] sm:$0xff]
        %v1172 = vld [vmem:[%s383 + $0x1520] sm:$0xff]
        %v1173 = vld [vmem:[%s383 + $0x1528] sm:$0xff]
        %v1174 = vld [vmem:[%s383 + $0x1530] sm:$0xff]
        %v1175 = vld [vmem:[%s383 + $0x1538] sm:$0xff]
        %v1176 = vld [vmem:[%s383 + $0x1540] sm:$0xff]
        %v1177 = vld [vmem:[%s383 + $0x1548] sm:$0xff]
        %v1178 = vld [vmem:[%s383 + $0x1550] sm:$0xff]
        %v1179 = vld [vmem:[%s383 + $0x1558] sm:$0xff]
        %v1180 = vld [vmem:[%s383 + $0x1560] sm:$0xff]
        %v1181 = vld [vmem:[%s383 + $0x1568] sm:$0xff]
        %v1182 = vld [vmem:[%s383 + $0x1570] sm:$0xff]
        %v1183 = vld [vmem:[%s383 + $0x1578] sm:$0xff]
        %v1184 = vld [vmem:[%s383 + $0x1580] sm:$0xff]
        %v1185 = vld [vmem:[%s383 + $0x1588] sm:$0xff]
        %v1186 = vld [vmem:[%s383 + $0x1590] sm:$0xff]
        %v1187 = vld [vmem:[%s383 + $0x1598] sm:$0xff]
        %v1188 = vld [vmem:[%s383 + $0x15a0] sm:$0xff]
        %v1189 = vld [vmem:[%s383 + $0x15a8] sm:$0xff]
        %v1190 = vld [vmem:[%s383 + $0x15b0] sm:$0xff]
        %v1191 = vld [vmem:[%s383 + $0x15b8] sm:$0xff]
        %v1192 = vld [vmem:[%s383 + $0x15c0] sm:$0xff]
        %v1193 = vld [vmem:[%s383 + $0x15c8] sm:$0xff]
        %v1194 = vld [vmem:[%s383 + $0x15d0] sm:$0xff]
        %v1195 = vld [vmem:[%s383 + $0x15d8] sm:$0xff]
        %v1196 = vld [vmem:[%s383 + $0x15e0] sm:$0xff]
        %v1197 = vld [vmem:[%s383 + $0x15e8] sm:$0xff]
        %v1198 = vld [vmem:[%s383 + $0x15f0] sm:$0xff]
        %v1199 = vld [vmem:[%s383 + $0x15f8] sm:$0xff]
        %v1200 = vld [vmem:[%s383 + $0x1600] sm:$0xff]
        %v1201 = vld [vmem:[%s383 + $0x1608] sm:$0xff]
        %v1202 = vld [vmem:[%s383 + $0x1610] sm:$0xff]
        %v1203 = vld [vmem:[%s383 + $0x1618] sm:$0xff]
        %v1204 = vld [vmem:[%s383 + $0x1620] sm:$0xff]
        %v1205 = vld [vmem:[%s383 + $0x1628] sm:$0xff]
        %v1206 = vld [vmem:[%s383 + $0x1630] sm:$0xff]
        %v1207 = vld [vmem:[%s383 + $0x1638] sm:$0xff]
        %v1208 = vld [vmem:[%s383 + $0x1640] sm:$0xff]
        %v1209 = vld [vmem:[%s383 + $0x1648] sm:$0xff]
        %v1210 = vld [vmem:[%s383 + $0x1650] sm:$0xff]
        %v1211 = vld [vmem:[%s383 + $0x1658] sm:$0xff]
        %v1212 = vld [vmem:[%s383 + $0x1660] sm:$0xff]
        %v1213 = vld [vmem:[%s383 + $0x1668] sm:$0xff]
        %v1214 = vld [vmem:[%s383 + $0x1670] sm:$0xff]
        %v1215 = vld [vmem:[%s383 + $0x1678] sm:$0xff]
        %v1216 = vld [vmem:[%s383 + $0x1680] sm:$0xff]
        %v1217 = vld [vmem:[%s383 + $0x1688] sm:$0xff]
        %v1218 = vld [vmem:[%s383 + $0x1690] sm:$0xff]
        %v1219 = vld [vmem:[%s383 + $0x1698] sm:$0xff]
        %v1220 = vld [vmem:[%s383 + $0x16a0] sm:$0xff]
        %v1221 = vld [vmem:[%s383 + $0x16a8] sm:$0xff]
        %v1222 = vld [vmem:[%s383 + $0x16b0] sm:$0xff]
        %v1223 = vld [vmem:[%s383 + $0x16b8] sm:$0xff]
        %v1224 = vld [vmem:[%s383 + $0x16c0] sm:$0xff]
        %v1225 = vld [vmem:[%s383 + $0x16c8] sm:$0xff]
        %v1226 = vld [vmem:[%s383 + $0x16d0] sm:$0xff]
        %v1227 = vld [vmem:[%s383 + $0x16d8] sm:$0xff]
        %v1228 = vld [vmem:[%s383 + $0x16e0] sm:$0xff]
        %v1229 = vld [vmem:[%s383 + $0x16e8] sm:$0xff]
        %v1230 = vld [vmem:[%s383 + $0x16f0] sm:$0xff]
        %v1231 = vld [vmem:[%s383 + $0x16f8] sm:$0xff]
        %v1232 = vld [vmem:[%s383 + $0x1700] sm:$0xff]
        %v1233 = vld [vmem:[%s383 + $0x1708] sm:$0xff]
        %v1234 = vld [vmem:[%s383 + $0x1710] sm:$0xff]
        %v1235 = vld [vmem:[%s383 + $0x1718] sm:$0xff]
        %v1236 = vld [vmem:[%s383 + $0x1720] sm:$0xff]
        %v1237 = vld [vmem:[%s383 + $0x1728] sm:$0xff]
        %v1238 = vld [vmem:[%s383 + $0x1730] sm:$0xff]
        %v1239 = vld [vmem:[%s383 + $0x1738] sm:$0xff]
        %v1240 = vld [vmem:[%s383 + $0x1740] sm:$0xff]
        %v1241 = vld [vmem:[%s383 + $0x1748] sm:$0xff]
        %v1242 = vld [vmem:[%s383 + $0x1750] sm:$0xff]
        %v1243 = vld [vmem:[%s383 + $0x1758] sm:$0xff]
        %v1244 = vld [vmem:[%s383 + $0x1760] sm:$0xff]
        %v1245 = vld [vmem:[%s383 + $0x1768] sm:$0xff]
        %v1246 = vld [vmem:[%s383 + $0x1770] sm:$0xff]
        %v1247 = vld [vmem:[%s383 + $0x1778] sm:$0xff]
        %v1248 = vld [vmem:[%s383 + $0x1780] sm:$0xff]
        %v1249 = vld [vmem:[%s383 + $0x1788] sm:$0xff]
        %v1250 = vld [vmem:[%s383 + $0x1790] sm:$0xff]
        %v1251 = vld [vmem:[%s383 + $0x1798] sm:$0xff]
        %v1252 = vld [vmem:[%s383 + $0x17a0] sm:$0xff]
        %v1253 = vld [vmem:[%s383 + $0x17a8] sm:$0xff]
        %v1254 = vld [vmem:[%s383 + $0x17b0] sm:$0xff]
        %v1255 = vld [vmem:[%s383 + $0x17b8] sm:$0xff]
        %v1256 = vld [vmem:[%s383 + $0x17c0] sm:$0xff]
        %v1257 = vld [vmem:[%s383 + $0x17c8] sm:$0xff]
        %v1258 = vld [vmem:[%s383 + $0x17d0] sm:$0xff]
        %v1259 = vld [vmem:[%s383 + $0x17d8] sm:$0xff]
        %v1260 = vld [vmem:[%s383 + $0x17e0] sm:$0xff]
        %v1261 = vld [vmem:[%s383 + $0x17e8] sm:$0xff]
        %v1262 = vld [vmem:[%s383 + $0x17f0] sm:$0xff]
        %v1263 = vld [vmem:[%s383 + $0x17f8] sm:$0xff]
        %v1264 = vld [vmem:[%s383 + $0x1800] sm:$0xff]
        %v1265 = vld [vmem:[%s383 + $0x1808] sm:$0xff]
        %v1266 = vld [vmem:[%s383 + $0x1810] sm:$0xff]
        %v1267 = vld [vmem:[%s383 + $0x1818] sm:$0xff]
        %v1268 = vld [vmem:[%s383 + $0x1820] sm:$0xff]
        %v1269 = vld [vmem:[%s383 + $0x1828] sm:$0xff]
        %v1270 = vld [vmem:[%s383 + $0x1830] sm:$0xff]
        %v1271 = vld [vmem:[%s383 + $0x1838] sm:$0xff]
        %v1272 = vld [vmem:[%s383 + $0x1840] sm:$0xff]
        %v1273 = vld [vmem:[%s383 + $0x1848] sm:$0xff]
        %v1274 = vld [vmem:[%s383 + $0x1850] sm:$0xff]
        %v1275 = vld [vmem:[%s383 + $0x1858] sm:$0xff]
        %v1276 = vld [vmem:[%s383 + $0x1860] sm:$0xff]
        %v1277 = vld [vmem:[%s383 + $0x1868] sm:$0xff]
        %v1278 = vld [vmem:[%s383 + $0x1870] sm:$0xff]
        %v1279 = vld [vmem:[%s383 + $0x1878] sm:$0xff]
        %v1280 = vld [vmem:[%s383 + $0x1880] sm:$0xff]
        %v1281 = vld [vmem:[%s383 + $0x1888] sm:$0xff]
        %v1282 = vld [vmem:[%s383 + $0x1890] sm:$0xff]
        %v1283 = vld [vmem:[%s383 + $0x1898] sm:$0xff]
        %v1284 = vld [vmem:[%s383 + $0x18a0] sm:$0xff]
        %v1285 = vld [vmem:[%s383 + $0x18a8] sm:$0xff]
        %v1286 = vld [vmem:[%s383 + $0x18b0] sm:$0xff]
        %v1287 = vld [vmem:[%s383 + $0x18b8] sm:$0xff]
        %v1288 = vld [vmem:[%s383 + $0x18c0] sm:$0xff]
        %v1289 = vld [vmem:[%s383 + $0x18c8] sm:$0xff]
        %v1290 = vld [vmem:[%s383 + $0x18d0] sm:$0xff]
        %v1291 = vld [vmem:[%s383 + $0x18d8] sm:$0xff]
        %v1292 = vld [vmem:[%s383 + $0x18e0] sm:$0xff]
        %v1293 = vld [vmem:[%s383 + $0x18e8] sm:$0xff]
        %v1294 = vld [vmem:[%s383 + $0x18f0] sm:$0xff]
        %v1295 = vld [vmem:[%s383 + $0x18f8] sm:$0xff]
        %v1296 = vld [vmem:[%s383 + $0x1900] sm:$0xff]
        %v1297 = vld [vmem:[%s383 + $0x1908] sm:$0xff]
        %v1298 = vld [vmem:[%s383 + $0x1910] sm:$0xff]
        %v1299 = vld [vmem:[%s383 + $0x1918] sm:$0xff]
        %v1300 = vld [vmem:[%s383 + $0x1920] sm:$0xff]
        %v1301 = vld [vmem:[%s383 + $0x1928] sm:$0xff]
        %v1302 = vld [vmem:[%s383 + $0x1930] sm:$0xff]
        %v1303 = vld [vmem:[%s383 + $0x1938] sm:$0xff]
        %v1304 = vld [vmem:[%s383 + $0x1940] sm:$0xff]
        %v1305 = vld [vmem:[%s383 + $0x1948] sm:$0xff]
        %v1306 = vld [vmem:[%s383 + $0x1950] sm:$0xff]
        %v1307 = vld [vmem:[%s383 + $0x1958] sm:$0xff]
        %v1308 = vld [vmem:[%s383 + $0x1960] sm:$0xff]
        %v1309 = vld [vmem:[%s383 + $0x1968] sm:$0xff]
        %v1310 = vld [vmem:[%s383 + $0x1970] sm:$0xff]
        %v1311 = vld [vmem:[%s383 + $0x1978] sm:$0xff]
        %v1312 = vld [vmem:[%s383 + $0x1980] sm:$0xff]
        %v1313 = vld [vmem:[%s383 + $0x1988] sm:$0xff]
        %v1314 = vld [vmem:[%s383 + $0x1990] sm:$0xff]
        %v1315 = vld [vmem:[%s383 + $0x1998] sm:$0xff]
        %v1316 = vld [vmem:[%s383 + $0x19a0] sm:$0xff]
        %v1317 = vld [vmem:[%s383 + $0x19a8] sm:$0xff]
        %v1318 = vld [vmem:[%s383 + $0x19b0] sm:$0xff]
        %v1319 = vld [vmem:[%s383 + $0x19b8] sm:$0xff]
        %v1320 = vld [vmem:[%s383 + $0x19c0] sm:$0xff]
        %v1321 = vld [vmem:[%s383 + $0x19c8] sm:$0xff]
        %v1322 = vld [vmem:[%s383 + $0x19d0] sm:$0xff]
        %v1323 = vld [vmem:[%s383 + $0x19d8] sm:$0xff]
        %v1324 = vld [vmem:[%s383 + $0x19e0] sm:$0xff]
        %v1325 = vld [vmem:[%s383 + $0x19e8] sm:$0xff]
        %v1326 = vld [vmem:[%s383 + $0x19f0] sm:$0xff]
        %v1327 = vld [vmem:[%s383 + $0x19f8] sm:$0xff]
        %v1328 = vld [vmem:[%s383 + $0x1a00] sm:$0xff]
        %v1329 = vld [vmem:[%s383 + $0x1a08] sm:$0xff]
        %v1330 = vld [vmem:[%s383 + $0x1a10] sm:$0xff]
        %v1331 = vld [vmem:[%s383 + $0x1a18] sm:$0xff]
        %v1332 = vld [vmem:[%s383 + $0x1a20] sm:$0xff]
        %v1333 = vld [vmem:[%s383 + $0x1a28] sm:$0xff]
        %v1334 = vld [vmem:[%s383 + $0x1a30] sm:$0xff]
        %v1335 = vld [vmem:[%s383 + $0x1a38] sm:$0xff]
        %v1336 = vld [vmem:[%s383 + $0x1a40] sm:$0xff]
        %v1337 = vld [vmem:[%s383 + $0x1a48] sm:$0xff]
        %v1338 = vld [vmem:[%s383 + $0x1a50] sm:$0xff]
        %v1339 = vld [vmem:[%s383 + $0x1a58] sm:$0xff]
        %v1340 = vld [vmem:[%s383 + $0x1a60] sm:$0xff]
        %v1341 = vld [vmem:[%s383 + $0x1a68] sm:$0xff]
        %v1342 = vld [vmem:[%s383 + $0x1a70] sm:$0xff]
        %v1343 = vld [vmem:[%s383 + $0x1a78] sm:$0xff]
        %v1344 = vld [vmem:[%s383 + $0x1a80] sm:$0xff]
        %v1345 = vld [vmem:[%s383 + $0x1a88] sm:$0xff]
        %v1346 = vld [vmem:[%s383 + $0x1a90] sm:$0xff]
        %v1347 = vld [vmem:[%s383 + $0x1a98] sm:$0xff]
        %v1348 = vld [vmem:[%s383 + $0x1aa0] sm:$0xff]
        %v1349 = vld [vmem:[%s383 + $0x1aa8] sm:$0xff]
        %v1350 = vld [vmem:[%s383 + $0x1ab0] sm:$0xff]
        %v1351 = vld [vmem:[%s383 + $0x1ab8] sm:$0xff]
        %v1352 = vld [vmem:[%s383 + $0x1ac0] sm:$0xff]
        %v1353 = vld [vmem:[%s383 + $0x1ac8] sm:$0xff]
        %v1354 = vld [vmem:[%s383 + $0x1ad0] sm:$0xff]
        %v1355 = vld [vmem:[%s383 + $0x1ad8] sm:$0xff]
        %v1356 = vld [vmem:[%s383 + $0x1ae0] sm:$0xff]
        %v1357 = vld [vmem:[%s383 + $0x1ae8] sm:$0xff]
        %v1358 = vld [vmem:[%s383 + $0x1af0] sm:$0xff]
        %v1359 = vld [vmem:[%s383 + $0x1af8] sm:$0xff]
        %v1360 = vld [vmem:[%s383 + $0x1b00] sm:$0xff]
        %v1361 = vld [vmem:[%s383 + $0x1b08] sm:$0xff]
        %v1362 = vld [vmem:[%s383 + $0x1b10] sm:$0xff]
        %v1363 = vld [vmem:[%s383 + $0x1b18] sm:$0xff]
        %v1364 = vld [vmem:[%s383 + $0x1b20] sm:$0xff]
        %v1365 = vld [vmem:[%s383 + $0x1b28] sm:$0xff]
        %v1366 = vld [vmem:[%s383 + $0x1b30] sm:$0xff]
        %v1367 = vld [vmem:[%s383 + $0x1b38] sm:$0xff]
        %v1368 = vld [vmem:[%s383 + $0x1b40] sm:$0xff]
        %v1369 = vld [vmem:[%s383 + $0x1b48] sm:$0xff]
        %v1370 = vld [vmem:[%s383 + $0x1b50] sm:$0xff]
        %v1371 = vld [vmem:[%s383 + $0x1b58] sm:$0xff]
        %v1372 = vld [vmem:[%s383 + $0x1b60] sm:$0xff]
        %v1373 = vld [vmem:[%s383 + $0x1b68] sm:$0xff]
        %v1374 = vld [vmem:[%s383 + $0x1b70] sm:$0xff]
        %v1375 = vld [vmem:[%s383 + $0x1b78] sm:$0xff]
        %v1376 = vld [vmem:[%s383 + $0x1b80] sm:$0xff]
        %v1377 = vld [vmem:[%s383 + $0x1b88] sm:$0xff]
        %v1378 = vld [vmem:[%s383 + $0x1b90] sm:$0xff]
        %v1379 = vld [vmem:[%s383 + $0x1b98] sm:$0xff]
        %v1380 = vld [vmem:[%s383 + $0x1ba0] sm:$0xff]
        %v1381 = vld [vmem:[%s383 + $0x1ba8] sm:$0xff]
        %v1382 = vld [vmem:[%s383 + $0x1bb0] sm:$0xff]
        %v1383 = vld [vmem:[%s383 + $0x1bb8] sm:$0xff]
        %v1384 = vld [vmem:[%s383 + $0x1bc0] sm:$0xff]
        %v1385 = vld [vmem:[%s383 + $0x1bc8] sm:$0xff]
        %v1386 = vld [vmem:[%s383 + $0x1bd0] sm:$0xff]
        %v1387 = vld [vmem:[%s383 + $0x1bd8] sm:$0xff]
        %v1388 = vld [vmem:[%s383 + $0x1be0] sm:$0xff]
        %v1389 = vld [vmem:[%s383 + $0x1be8] sm:$0xff]
        %v1390 = vld [vmem:[%s383 + $0x1bf0] sm:$0xff]
        %v1391 = vld [vmem:[%s383 + $0x1bf8] sm:$0xff]
        %v1392 = vld [vmem:[%s383 + $0x1c00] sm:$0xff]
        %v1393 = vld [vmem:[%s383 + $0x1c08] sm:$0xff]
        %v1394 = vld [vmem:[%s383 + $0x1c10] sm:$0xff]
        %v1395 = vld [vmem:[%s383 + $0x1c18] sm:$0xff]
        %v1396 = vld [vmem:[%s383 + $0x1c20] sm:$0xff]
        %v1397 = vld [vmem:[%s383 + $0x1c28] sm:$0xff]
        %v1398 = vld [vmem:[%s383 + $0x1c30] sm:$0xff]
        %v1399 = vld [vmem:[%s383 + $0x1c38] sm:$0xff]
        %v1400 = vld [vmem:[%s383 + $0x1c40] sm:$0xff]
        %v1401 = vld [vmem:[%s383 + $0x1c48] sm:$0xff]
        %v1402 = vld [vmem:[%s383 + $0x1c50] sm:$0xff]
        %v1403 = vld [vmem:[%s383 + $0x1c58] sm:$0xff]
        %v1404 = vld [vmem:[%s383 + $0x1c60] sm:$0xff]
        %v1405 = vld [vmem:[%s383 + $0x1c68] sm:$0xff]
        %v1406 = vld [vmem:[%s383 + $0x1c70] sm:$0xff]
        %v1407 = vld [vmem:[%s383 + $0x1c78] sm:$0xff]
        %v1408 = vld [vmem:[%s383 + $0x1c80] sm:$0xff]
        %v1409 = vld [vmem:[%s383 + $0x1c88] sm:$0xff]
        %v1410 = vld [vmem:[%s383 + $0x1c90] sm:$0xff]
        %v1411 = vld [vmem:[%s383 + $0x1c98] sm:$0xff]
        %v1412 = vld [vmem:[%s383 + $0x1ca0] sm:$0xff]
        %v1413 = vld [vmem:[%s383 + $0x1ca8] sm:$0xff]
        %v1414 = vld [vmem:[%s383 + $0x1cb0] sm:$0xff]
        %v1415 = vld [vmem:[%s383 + $0x1cb8] sm:$0xff]
        %v1416 = vld [vmem:[%s383 + $0x1cc0] sm:$0xff]
        %v1417 = vld [vmem:[%s383 + $0x1cc8] sm:$0xff]
        %v1418 = vld [vmem:[%s383 + $0x1cd0] sm:$0xff]
        %v1419 = vld [vmem:[%s383 + $0x1cd8] sm:$0xff]
        %v1420 = vld [vmem:[%s383 + $0x1ce0] sm:$0xff]
        %v1421 = vld [vmem:[%s383 + $0x1ce8] sm:$0xff]
        %v1422 = vld [vmem:[%s383 + $0x1cf0] sm:$0xff]
        %v1423 = vld [vmem:[%s383 + $0x1cf8] sm:$0xff]
        %v1424 = vld [vmem:[%s383 + $0x1d00] sm:$0xff]
        %v1425 = vld [vmem:[%s383 + $0x1d08] sm:$0xff]
        %v1426 = vld [vmem:[%s383 + $0x1d10] sm:$0xff]
        %v1427 = vld [vmem:[%s383 + $0x1d18] sm:$0xff]
        %v1428 = vld [vmem:[%s383 + $0x1d20] sm:$0xff]
        %v1429 = vld [vmem:[%s383 + $0x1d28] sm:$0xff]
        %v1430 = vld [vmem:[%s383 + $0x1d30] sm:$0xff]
        %v1431 = vld [vmem:[%s383 + $0x1d38] sm:$0xff]
        %v1432 = vld [vmem:[%s383 + $0x1d40] sm:$0xff]
        %v1433 = vld [vmem:[%s383 + $0x1d48] sm:$0xff]
        %v1434 = vld [vmem:[%s383 + $0x1d50] sm:$0xff]
        %v1435 = vld [vmem:[%s383 + $0x1d58] sm:$0xff]
        %v1436 = vld [vmem:[%s383 + $0x1d60] sm:$0xff]
        %v1437 = vld [vmem:[%s383 + $0x1d68] sm:$0xff]
        %v1438 = vld [vmem:[%s383 + $0x1d70] sm:$0xff]
        %v1439 = vld [vmem:[%s383 + $0x1d78] sm:$0xff]
        %v1440 = vld [vmem:[%s383 + $0x1d80] sm:$0xff]
        %v1441 = vld [vmem:[%s383 + $0x1d88] sm:$0xff]
        %v1442 = vld [vmem:[%s383 + $0x1d90] sm:$0xff]
        %v1443 = vld [vmem:[%s383 + $0x1d98] sm:$0xff]
        %v1444 = vld [vmem:[%s383 + $0x1da0] sm:$0xff]
        %v1445 = vld [vmem:[%s383 + $0x1da8] sm:$0xff]
        %v1446 = vld [vmem:[%s383 + $0x1db0] sm:$0xff]
        %v1447 = vld [vmem:[%s383 + $0x1db8] sm:$0xff]
        %v1448 = vld [vmem:[%s383 + $0x1dc0] sm:$0xff]
        %v1449 = vld [vmem:[%s383 + $0x1dc8] sm:$0xff]
        %v1450 = vld [vmem:[%s383 + $0x1dd0] sm:$0xff]
        %v1451 = vld [vmem:[%s383 + $0x1dd8] sm:$0xff]
        %v1452 = vld [vmem:[%s383 + $0x1de0] sm:$0xff]
        %v1453 = vld [vmem:[%s383 + $0x1de8] sm:$0xff]
        %v1454 = vld [vmem:[%s383 + $0x1df0] sm:$0xff]
        %v1455 = vld [vmem:[%s383 + $0x1df8] sm:$0xff]
        %v1456 = vld [vmem:[%s383 + $0x1e00] sm:$0xff]
        %v1457 = vld [vmem:[%s383 + $0x1e08] sm:$0xff]
        %v1458 = vld [vmem:[%s383 + $0x1e10] sm:$0xff]
        %v1459 = vld [vmem:[%s383 + $0x1e18] sm:$0xff]
        %v1460 = vld [vmem:[%s383 + $0x1e20] sm:$0xff]
        %v1461 = vld [vmem:[%s383 + $0x1e28] sm:$0xff]
        %v1462 = vld [vmem:[%s383 + $0x1e30] sm:$0xff]
        %v1463 = vld [vmem:[%s383 + $0x1e38] sm:$0xff]
        %v1464 = vld [vmem:[%s383 + $0x1e40] sm:$0xff]
        %v1465 = vld [vmem:[%s383 + $0x1e48] sm:$0xff]
        %v1466 = vld [vmem:[%s383 + $0x1e50] sm:$0xff]
        %v1467 = vld [vmem:[%s383 + $0x1e58] sm:$0xff]
        %v1468 = vld [vmem:[%s383 + $0x1e60] sm:$0xff]
        %v1469 = vld [vmem:[%s383 + $0x1e68] sm:$0xff]
        %v1470 = vld [vmem:[%s383 + $0x1e70] sm:$0xff]
        %v1471 = vld [vmem:[%s383 + $0x1e78] sm:$0xff]
        %v1472 = vld [vmem:[%s383 + $0x1e80] sm:$0xff]
        %v1473 = vld [vmem:[%s383 + $0x1e88] sm:$0xff]
        %v1474 = vld [vmem:[%s383 + $0x1e90] sm:$0xff]
        %v1475 = vld [vmem:[%s383 + $0x1e98] sm:$0xff]
        %v1476 = vld [vmem:[%s383 + $0x1ea0] sm:$0xff]
        %v1477 = vld [vmem:[%s383 + $0x1ea8] sm:$0xff]
        %v1478 = vld [vmem:[%s383 + $0x1eb0] sm:$0xff]
        %v1479 = vld [vmem:[%s383 + $0x1eb8] sm:$0xff]
        %v1480 = vld [vmem:[%s383 + $0x1ec0] sm:$0xff]
        %v1481 = vld [vmem:[%s383 + $0x1ec8] sm:$0xff]
        %v1482 = vld [vmem:[%s383 + $0x1ed0] sm:$0xff]
        %v1483 = vld [vmem:[%s383 + $0x1ed8] sm:$0xff]
        %v1484 = vld [vmem:[%s383 + $0x1ee0] sm:$0xff]
        %v1485 = vld [vmem:[%s383 + $0x1ee8] sm:$0xff]
        %v1486 = vld [vmem:[%s383 + $0x1ef0] sm:$0xff]
        %v1487 = vld [vmem:[%s383 + $0x1ef8] sm:$0xff]
        %v1488 = vld [vmem:[%s383 + $0x1f00] sm:$0xff]
        %v1489 = vld [vmem:[%s383 + $0x1f08] sm:$0xff]
        %v1490 = vld [vmem:[%s383 + $0x1f10] sm:$0xff]
        %v1491 = vld [vmem:[%s383 + $0x1f18] sm:$0xff]
        %v1492 = vld [vmem:[%s383 + $0x1f20] sm:$0xff]
        %v1493 = vld [vmem:[%s383 + $0x1f28] sm:$0xff]
        %v1494 = vld [vmem:[%s383 + $0x1f30] sm:$0xff]
        %v1495 = vld [vmem:[%s383 + $0x1f38] sm:$0xff]
        %v1496 = vld [vmem:[%s383 + $0x1f40] sm:$0xff]
        %v1497 = vld [vmem:[%s383 + $0x1f48] sm:$0xff]
        %v1498 = vld [vmem:[%s383 + $0x1f50] sm:$0xff]
        %v1499 = vld [vmem:[%s383 + $0x1f58] sm:$0xff]
        %v1500 = vld [vmem:[%s383 + $0x1f60] sm:$0xff]
        %v1501 = vld [vmem:[%s383 + $0x1f68] sm:$0xff]
        %v1502 = vld [vmem:[%s383 + $0x1f70] sm:$0xff]
        %v1503 = vld [vmem:[%s383 + $0x1f78] sm:$0xff]
        %v1504 = vld [vmem:[%s383 + $0x1f80] sm:$0xff]
        %v1505 = vld [vmem:[%s383 + $0x1f88] sm:$0xff]
        %v1506 = vld [vmem:[%s383 + $0x1f90] sm:$0xff]
        %v1507 = vld [vmem:[%s383 + $0x1f98] sm:$0xff]
        %v1508 = vld [vmem:[%s383 + $0x1fa0] sm:$0xff]
        %v1509 = vld [vmem:[%s383 + $0x1fa8] sm:$0xff]
        %v1510 = vld [vmem:[%s383 + $0x1fb0] sm:$0xff]
        %v1511 = vld [vmem:[%s383 + $0x1fb8] sm:$0xff]
        %v1512 = vld [vmem:[%s383 + $0x1fc0] sm:$0xff]
        %v1513 = vld [vmem:[%s383 + $0x1fc8] sm:$0xff]
        %v1514 = vld [vmem:[%s383 + $0x1fd0] sm:$0xff]
        %v1515 = vld [vmem:[%s383 + $0x1fd8] sm:$0xff]
        %v1516 = vld [vmem:[%s383 + $0x1fe0] sm:$0xff]
        %v1517 = vld [vmem:[%s383 + $0x1fe8] sm:$0xff]
        %v1518 = vld [vmem:[%s383 + $0x1ff0] sm:$0xff]
        %v1519 = vld [vmem:[%s383 + $0x1ff8] sm:$0xff]
        %v1536 = vunpack.c.l.b16 %v480
        %v1537 = vunpack.c.h.b16 %v480
        %v1538 = vunpack.c.l.b16 %v481
        %v1539 = vunpack.c.h.b16 %v481
        %v1540 = vunpack.c.l.b16 %v482
        %v1541 = vunpack.c.h.b16 %v482
        %v1542 = vunpack.c.l.b16 %v483
        %v1543 = vunpack.c.h.b16 %v483
        %v1544 = vunpack.c.l.b16 %v484
        %v1545 = vunpack.c.h.b16 %v484
        %v1546 = vunpack.c.l.b16 %v485
        %v1547 = vunpack.c.h.b16 %v485
        %v1548 = vunpack.c.l.b16 %v486
        %v1549 = vunpack.c.h.b16 %v486
        %v1550 = vunpack.c.l.b16 %v487
        %v1551 = vunpack.c.h.b16 %v487
        %v1552 = vunpack.c.l.b16 %v488
        %v1553 = vunpack.c.h.b16 %v488
        %v1554 = vunpack.c.l.b16 %v489
        %v1555 = vunpack.c.h.b16 %v489
        %v1556 = vunpack.c.l.b16 %v490
        %v1557 = vunpack.c.h.b16 %v490
        %v1558 = vunpack.c.l.b16 %v491
        %v1559 = vunpack.c.h.b16 %v491
        %v1560 = vunpack.c.l.b16 %v492
        %v1561 = vunpack.c.h.b16 %v492
        %v1562 = vunpack.c.l.b16 %v493
        %v1563 = vunpack.c.h.b16 %v493
        %v1564 = vunpack.c.l.b16 %v494
        %v1565 = vunpack.c.h.b16 %v494
        %v1566 = vunpack.c.l.b16 %v495
        %v1567 = vunpack.c.h.b16 %v495
        %v1568 = vpack.c.b16 %v1552, %v1536
        %v1569 = vpack.c.b16 %v1553, %v1537
        %v1570 = vpack.c.b16 %v1554, %v1538
        %v1571 = vpack.c.b16 %v1555, %v1539
        %v1572 = vpack.c.b16 %v1556, %v1540
        %v1573 = vpack.c.b16 %v1557, %v1541
        %v1574 = vpack.c.b16 %v1558, %v1542
        %v1575 = vpack.c.b16 %v1559, %v1543
        %v1576 = vpack.c.b16 %v1560, %v1544
        %v1577 = vpack.c.b16 %v1561, %v1545
        %v1578 = vpack.c.b16 %v1562, %v1546
        %v1579 = vpack.c.b16 %v1563, %v1547
        %v1580 = vpack.c.b16 %v1564, %v1548
        %v1581 = vpack.c.b16 %v1565, %v1549
        %v1582 = vpack.c.b16 %v1566, %v1550
        %v1583 = vpack.c.b16 %v1567, %v1551
        %v2624 = vunpack.c.l.b16 %v496
        %v2625 = vunpack.c.h.b16 %v496
        %v2626 = vunpack.c.l.b16 %v497
        %v2627 = vunpack.c.h.b16 %v497
        %v2628 = vunpack.c.l.b16 %v498
        %v2629 = vunpack.c.h.b16 %v498
        %v2630 = vunpack.c.l.b16 %v499
        %v2631 = vunpack.c.h.b16 %v499
        %v2632 = vunpack.c.l.b16 %v500
        %v2633 = vunpack.c.h.b16 %v500
        %v2634 = vunpack.c.l.b16 %v501
        %v2635 = vunpack.c.h.b16 %v501
        %v2636 = vunpack.c.l.b16 %v502
        %v2637 = vunpack.c.h.b16 %v502
        %v2638 = vunpack.c.l.b16 %v503
        %v2639 = vunpack.c.h.b16 %v503
        %v2640 = vunpack.c.l.b16 %v504
        %v2641 = vunpack.c.h.b16 %v504
        %v2642 = vunpack.c.l.b16 %v505
        %v2643 = vunpack.c.h.b16 %v505
        %v2644 = vunpack.c.l.b16 %v506
        %v2645 = vunpack.c.h.b16 %v506
        %v2646 = vunpack.c.l.b16 %v507
        %v2647 = vunpack.c.h.b16 %v507
        %v2648 = vunpack.c.l.b16 %v508
        %v2649 = vunpack.c.h.b16 %v508
        %v2650 = vunpack.c.l.b16 %v509
        %v2651 = vunpack.c.h.b16 %v509
        %v2652 = vunpack.c.l.b16 %v510
        %v2653 = vunpack.c.h.b16 %v510
        %v2654 = vunpack.c.l.b16 %v511
        %v2655 = vunpack.c.h.b16 %v511
        %v2656 = vunpack.c.l.b16 %v512
        %v2657 = vunpack.c.h.b16 %v512
        %v2658 = vunpack.c.l.b16 %v513
        %v2659 = vunpack.c.h.b16 %v513
        %v2660 = vunpack.c.l.b16 %v514
        %v2661 = vunpack.c.h.b16 %v514
        %v2662 = vunpack.c.l.b16 %v515
        %v2663 = vunpack.c.h.b16 %v515
        %v2664 = vunpack.c.l.b16 %v516
        %v2665 = vunpack.c.h.b16 %v516
        %v2666 = vunpack.c.l.b16 %v517
        %v2667 = vunpack.c.h.b16 %v517
        %v2668 = vunpack.c.l.b16 %v518
        %v2669 = vunpack.c.h.b16 %v518
        %v2670 = vunpack.c.l.b16 %v519
        %v2671 = vunpack.c.h.b16 %v519
        %v2672 = vunpack.c.l.b16 %v520
        %v2673 = vunpack.c.h.b16 %v520
        %v2674 = vunpack.c.l.b16 %v521
        %v2675 = vunpack.c.h.b16 %v521
        %v2676 = vunpack.c.l.b16 %v522
        %v2677 = vunpack.c.h.b16 %v522
        %v2678 = vunpack.c.l.b16 %v523
        %v2679 = vunpack.c.h.b16 %v523
        %v2680 = vunpack.c.l.b16 %v524
        %v2681 = vunpack.c.h.b16 %v524
        %v2682 = vunpack.c.l.b16 %v525
        %v2683 = vunpack.c.h.b16 %v525
        %v2684 = vunpack.c.l.b16 %v526
        %v2685 = vunpack.c.h.b16 %v526
        %v2686 = vunpack.c.l.b16 %v527
        %v2687 = vunpack.c.h.b16 %v527
        %v2688 = vunpack.c.l.b16 %v528
        %v2689 = vunpack.c.h.b16 %v528
        %v2690 = vunpack.c.l.b16 %v529
        %v2691 = vunpack.c.h.b16 %v529
        %v2692 = vunpack.c.l.b16 %v530
        %v2693 = vunpack.c.h.b16 %v530
        %v2694 = vunpack.c.l.b16 %v531
        %v2695 = vunpack.c.h.b16 %v531
        %v2696 = vunpack.c.l.b16 %v532
        %v2697 = vunpack.c.h.b16 %v532
        %v2698 = vunpack.c.l.b16 %v533
        %v2699 = vunpack.c.h.b16 %v533
        %v2700 = vunpack.c.l.b16 %v534
        %v2701 = vunpack.c.h.b16 %v534
        %v2702 = vunpack.c.l.b16 %v535
        %v2703 = vunpack.c.h.b16 %v535
        %v2704 = vunpack.c.l.b16 %v536
        %v2705 = vunpack.c.h.b16 %v536
        %v2706 = vunpack.c.l.b16 %v537
        %v2707 = vunpack.c.h.b16 %v537
        %v2708 = vunpack.c.l.b16 %v538
        %v2709 = vunpack.c.h.b16 %v538
        %v2710 = vunpack.c.l.b16 %v539
        %v2711 = vunpack.c.h.b16 %v539
        %v2712 = vunpack.c.l.b16 %v540
        %v2713 = vunpack.c.h.b16 %v540
        %v2714 = vunpack.c.l.b16 %v541
        %v2715 = vunpack.c.h.b16 %v541
        %v2716 = vunpack.c.l.b16 %v542
        %v2717 = vunpack.c.h.b16 %v542
        %v2718 = vunpack.c.l.b16 %v543
        %v2719 = vunpack.c.h.b16 %v543
        %v2720 = vunpack.c.l.b16 %v544
        %v2721 = vunpack.c.h.b16 %v544
        %v2722 = vunpack.c.l.b16 %v545
        %v2723 = vunpack.c.h.b16 %v545
        %v2724 = vunpack.c.l.b16 %v546
        %v2725 = vunpack.c.h.b16 %v546
        %v2726 = vunpack.c.l.b16 %v547
        %v2727 = vunpack.c.h.b16 %v547
        %v2728 = vunpack.c.l.b16 %v548
        %v2729 = vunpack.c.h.b16 %v548
        %v2730 = vunpack.c.l.b16 %v549
        %v2731 = vunpack.c.h.b16 %v549
        %v2732 = vunpack.c.l.b16 %v550
        %v2733 = vunpack.c.h.b16 %v550
        %v2734 = vunpack.c.l.b16 %v551
        %v2735 = vunpack.c.h.b16 %v551
        %v2736 = vunpack.c.l.b16 %v552
        %v2737 = vunpack.c.h.b16 %v552
        %v2738 = vunpack.c.l.b16 %v553
        %v2739 = vunpack.c.h.b16 %v553
        %v2740 = vunpack.c.l.b16 %v554
        %v2741 = vunpack.c.h.b16 %v554
        %v2742 = vunpack.c.l.b16 %v555
        %v2743 = vunpack.c.h.b16 %v555
        %v2744 = vunpack.c.l.b16 %v556
        %v2745 = vunpack.c.h.b16 %v556
        %v2746 = vunpack.c.l.b16 %v557
        %v2747 = vunpack.c.h.b16 %v557
        %v2748 = vunpack.c.l.b16 %v558
        %v2749 = vunpack.c.h.b16 %v558
        %v2750 = vunpack.c.l.b16 %v559
        %v2751 = vunpack.c.h.b16 %v559
        %v2752 = vunpack.c.l.b16 %v560
        %v2753 = vunpack.c.h.b16 %v560
        %v2754 = vunpack.c.l.b16 %v561
        %v2755 = vunpack.c.h.b16 %v561
        %v2756 = vunpack.c.l.b16 %v562
        %v2757 = vunpack.c.h.b16 %v562
        %v2758 = vunpack.c.l.b16 %v563
        %v2759 = vunpack.c.h.b16 %v563
        %v2760 = vunpack.c.l.b16 %v564
        %v2761 = vunpack.c.h.b16 %v564
        %v2762 = vunpack.c.l.b16 %v565
        %v2763 = vunpack.c.h.b16 %v565
        %v2764 = vunpack.c.l.b16 %v566
        %v2765 = vunpack.c.h.b16 %v566
        %v2766 = vunpack.c.l.b16 %v567
        %v2767 = vunpack.c.h.b16 %v567
        %v2768 = vunpack.c.l.b16 %v568
        %v2769 = vunpack.c.h.b16 %v568
        %v2770 = vunpack.c.l.b16 %v569
        %v2771 = vunpack.c.h.b16 %v569
        %v2772 = vunpack.c.l.b16 %v570
        %v2773 = vunpack.c.h.b16 %v570
        %v2774 = vunpack.c.l.b16 %v571
        %v2775 = vunpack.c.h.b16 %v571
        %v2776 = vunpack.c.l.b16 %v572
        %v2777 = vunpack.c.h.b16 %v572
        %v2778 = vunpack.c.l.b16 %v573
        %v2779 = vunpack.c.h.b16 %v573
        %v2780 = vunpack.c.l.b16 %v574
        %v2781 = vunpack.c.h.b16 %v574
        %v2782 = vunpack.c.l.b16 %v575
        %v2783 = vunpack.c.h.b16 %v575
        %v2784 = vunpack.c.l.b16 %v576
        %v2785 = vunpack.c.h.b16 %v576
        %v2786 = vunpack.c.l.b16 %v577
        %v2787 = vunpack.c.h.b16 %v577
        %v2788 = vunpack.c.l.b16 %v578
        %v2789 = vunpack.c.h.b16 %v578
        %v2790 = vunpack.c.l.b16 %v579
        %v2791 = vunpack.c.h.b16 %v579
        %v2792 = vunpack.c.l.b16 %v580
        %v2793 = vunpack.c.h.b16 %v580
        %v2794 = vunpack.c.l.b16 %v581
        %v2795 = vunpack.c.h.b16 %v581
        %v2796 = vunpack.c.l.b16 %v582
        %v2797 = vunpack.c.h.b16 %v582
        %v2798 = vunpack.c.l.b16 %v583
        %v2799 = vunpack.c.h.b16 %v583
        %v2800 = vunpack.c.l.b16 %v584
        %v2801 = vunpack.c.h.b16 %v584
        %v2802 = vunpack.c.l.b16 %v585
        %v2803 = vunpack.c.h.b16 %v585
        %v2804 = vunpack.c.l.b16 %v586
        %v2805 = vunpack.c.h.b16 %v586
        %v2806 = vunpack.c.l.b16 %v587
        %v2807 = vunpack.c.h.b16 %v587
        %v2808 = vunpack.c.l.b16 %v588
        %v2809 = vunpack.c.h.b16 %v588
        %v2810 = vunpack.c.l.b16 %v589
        %v2811 = vunpack.c.h.b16 %v589
        %v2812 = vunpack.c.l.b16 %v590
        %v2813 = vunpack.c.h.b16 %v590
        %v2814 = vunpack.c.l.b16 %v591
        %v2815 = vunpack.c.h.b16 %v591
        %v2816 = vunpack.c.l.b16 %v592
        %v2817 = vunpack.c.h.b16 %v592
        %v2818 = vunpack.c.l.b16 %v593
        %v2819 = vunpack.c.h.b16 %v593
        %v2820 = vunpack.c.l.b16 %v594
        %v2821 = vunpack.c.h.b16 %v594
        %v2822 = vunpack.c.l.b16 %v595
        %v2823 = vunpack.c.h.b16 %v595
        %v2824 = vunpack.c.l.b16 %v596
        %v2825 = vunpack.c.h.b16 %v596
        %v2826 = vunpack.c.l.b16 %v597
        %v2827 = vunpack.c.h.b16 %v597
        %v2828 = vunpack.c.l.b16 %v598
        %v2829 = vunpack.c.h.b16 %v598
        %v2830 = vunpack.c.l.b16 %v599
        %v2831 = vunpack.c.h.b16 %v599
        %v2832 = vunpack.c.l.b16 %v600
        %v2833 = vunpack.c.h.b16 %v600
        %v2834 = vunpack.c.l.b16 %v601
        %v2835 = vunpack.c.h.b16 %v601
        %v2836 = vunpack.c.l.b16 %v602
        %v2837 = vunpack.c.h.b16 %v602
        %v2838 = vunpack.c.l.b16 %v603
        %v2839 = vunpack.c.h.b16 %v603
        %v2840 = vunpack.c.l.b16 %v604
        %v2841 = vunpack.c.h.b16 %v604
        %v2842 = vunpack.c.l.b16 %v605
        %v2843 = vunpack.c.h.b16 %v605
        %v2844 = vunpack.c.l.b16 %v606
        %v2845 = vunpack.c.h.b16 %v606
        %v2846 = vunpack.c.l.b16 %v607
        %v2847 = vunpack.c.h.b16 %v607
        %v2848 = vunpack.c.l.b16 %v608
        %v2849 = vunpack.c.h.b16 %v608
        %v2850 = vunpack.c.l.b16 %v609
        %v2851 = vunpack.c.h.b16 %v609
        %v2852 = vunpack.c.l.b16 %v610
        %v2853 = vunpack.c.h.b16 %v610
        %v2854 = vunpack.c.l.b16 %v611
        %v2855 = vunpack.c.h.b16 %v611
        %v2856 = vunpack.c.l.b16 %v612
        %v2857 = vunpack.c.h.b16 %v612
        %v2858 = vunpack.c.l.b16 %v613
        %v2859 = vunpack.c.h.b16 %v613
        %v2860 = vunpack.c.l.b16 %v614
        %v2861 = vunpack.c.h.b16 %v614
        %v2862 = vunpack.c.l.b16 %v615
        %v2863 = vunpack.c.h.b16 %v615
        %v2864 = vunpack.c.l.b16 %v616
        %v2865 = vunpack.c.h.b16 %v616
        %v2866 = vunpack.c.l.b16 %v617
        %v2867 = vunpack.c.h.b16 %v617
        %v2868 = vunpack.c.l.b16 %v618
        %v2869 = vunpack.c.h.b16 %v618
        %v2870 = vunpack.c.l.b16 %v619
        %v2871 = vunpack.c.h.b16 %v619
        %v2872 = vunpack.c.l.b16 %v620
        %v2873 = vunpack.c.h.b16 %v620
        %v2874 = vunpack.c.l.b16 %v621
        %v2875 = vunpack.c.h.b16 %v621
        %v2876 = vunpack.c.l.b16 %v622
        %v2877 = vunpack.c.h.b16 %v622
        %v2878 = vunpack.c.l.b16 %v623
        %v2879 = vunpack.c.h.b16 %v623
        %v2880 = vunpack.c.l.b16 %v624
        %v2881 = vunpack.c.h.b16 %v624
        %v2882 = vunpack.c.l.b16 %v625
        %v2883 = vunpack.c.h.b16 %v625
        %v2884 = vunpack.c.l.b16 %v626
        %v2885 = vunpack.c.h.b16 %v626
        %v2886 = vunpack.c.l.b16 %v627
        %v2887 = vunpack.c.h.b16 %v627
        %v2888 = vunpack.c.l.b16 %v628
        %v2889 = vunpack.c.h.b16 %v628
        %v2890 = vunpack.c.l.b16 %v629
        %v2891 = vunpack.c.h.b16 %v629
        %v2892 = vunpack.c.l.b16 %v630
        %v2893 = vunpack.c.h.b16 %v630
        %v2894 = vunpack.c.l.b16 %v631
        %v2895 = vunpack.c.h.b16 %v631
        %v2896 = vunpack.c.l.b16 %v632
        %v2897 = vunpack.c.h.b16 %v632
        %v2898 = vunpack.c.l.b16 %v633
        %v2899 = vunpack.c.h.b16 %v633
        %v2900 = vunpack.c.l.b16 %v634
        %v2901 = vunpack.c.h.b16 %v634
        %v2902 = vunpack.c.l.b16 %v635
        %v2903 = vunpack.c.h.b16 %v635
        %v2904 = vunpack.c.l.b16 %v636
        %v2905 = vunpack.c.h.b16 %v636
        %v2906 = vunpack.c.l.b16 %v637
        %v2907 = vunpack.c.h.b16 %v637
        %v2908 = vunpack.c.l.b16 %v638
        %v2909 = vunpack.c.h.b16 %v638
        %v2910 = vunpack.c.l.b16 %v639
        %v2911 = vunpack.c.h.b16 %v639
        %v2912 = vunpack.c.l.b16 %v640
        %v2913 = vunpack.c.h.b16 %v640
        %v2914 = vunpack.c.l.b16 %v641
        %v2915 = vunpack.c.h.b16 %v641
        %v2916 = vunpack.c.l.b16 %v642
        %v2917 = vunpack.c.h.b16 %v642
        %v2918 = vunpack.c.l.b16 %v643
        %v2919 = vunpack.c.h.b16 %v643
        %v2920 = vunpack.c.l.b16 %v644
        %v2921 = vunpack.c.h.b16 %v644
        %v2922 = vunpack.c.l.b16 %v645
        %v2923 = vunpack.c.h.b16 %v645
        %v2924 = vunpack.c.l.b16 %v646
        %v2925 = vunpack.c.h.b16 %v646
        %v2926 = vunpack.c.l.b16 %v647
        %v2927 = vunpack.c.h.b16 %v647
        %v2928 = vunpack.c.l.b16 %v648
        %v2929 = vunpack.c.h.b16 %v648
        %v2930 = vunpack.c.l.b16 %v649
        %v2931 = vunpack.c.h.b16 %v649
        %v2932 = vunpack.c.l.b16 %v650
        %v2933 = vunpack.c.h.b16 %v650
        %v2934 = vunpack.c.l.b16 %v651
        %v2935 = vunpack.c.h.b16 %v651
        %v2936 = vunpack.c.l.b16 %v652
        %v2937 = vunpack.c.h.b16 %v652
        %v2938 = vunpack.c.l.b16 %v653
        %v2939 = vunpack.c.h.b16 %v653
        %v2940 = vunpack.c.l.b16 %v654
        %v2941 = vunpack.c.h.b16 %v654
        %v2942 = vunpack.c.l.b16 %v655
        %v2943 = vunpack.c.h.b16 %v655
        %v2944 = vunpack.c.l.b16 %v656
        %v2945 = vunpack.c.h.b16 %v656
        %v2946 = vunpack.c.l.b16 %v657
        %v2947 = vunpack.c.h.b16 %v657
        %v2948 = vunpack.c.l.b16 %v658
        %v2949 = vunpack.c.h.b16 %v658
        %v2950 = vunpack.c.l.b16 %v659
        %v2951 = vunpack.c.h.b16 %v659
        %v2952 = vunpack.c.l.b16 %v660
        %v2953 = vunpack.c.h.b16 %v660
        %v2954 = vunpack.c.l.b16 %v661
        %v2955 = vunpack.c.h.b16 %v661
        %v2956 = vunpack.c.l.b16 %v662
        %v2957 = vunpack.c.h.b16 %v662
        %v2958 = vunpack.c.l.b16 %v663
        %v2959 = vunpack.c.h.b16 %v663
        %v2960 = vunpack.c.l.b16 %v664
        %v2961 = vunpack.c.h.b16 %v664
        %v2962 = vunpack.c.l.b16 %v665
        %v2963 = vunpack.c.h.b16 %v665
        %v2964 = vunpack.c.l.b16 %v666
        %v2965 = vunpack.c.h.b16 %v666
        %v2966 = vunpack.c.l.b16 %v667
        %v2967 = vunpack.c.h.b16 %v667
        %v2968 = vunpack.c.l.b16 %v668
        %v2969 = vunpack.c.h.b16 %v668
        %v2970 = vunpack.c.l.b16 %v669
        %v2971 = vunpack.c.h.b16 %v669
        %v2972 = vunpack.c.l.b16 %v670
        %v2973 = vunpack.c.h.b16 %v670
        %v2974 = vunpack.c.l.b16 %v671
        %v2975 = vunpack.c.h.b16 %v671
        %v2976 = vunpack.c.l.b16 %v672
        %v2977 = vunpack.c.h.b16 %v672
        %v2978 = vunpack.c.l.b16 %v673
        %v2979 = vunpack.c.h.b16 %v673
        %v2980 = vunpack.c.l.b16 %v674
        %v2981 = vunpack.c.h.b16 %v674
        %v2982 = vunpack.c.l.b16 %v675
        %v2983 = vunpack.c.h.b16 %v675
        %v2984 = vunpack.c.l.b16 %v676
        %v2985 = vunpack.c.h.b16 %v676
        %v2986 = vunpack.c.l.b16 %v677
        %v2987 = vunpack.c.h.b16 %v677
        %v2988 = vunpack.c.l.b16 %v678
        %v2989 = vunpack.c.h.b16 %v678
        %v2990 = vunpack.c.l.b16 %v679
        %v2991 = vunpack.c.h.b16 %v679
        %v2992 = vunpack.c.l.b16 %v680
        %v2993 = vunpack.c.h.b16 %v680
        %v2994 = vunpack.c.l.b16 %v681
        %v2995 = vunpack.c.h.b16 %v681
        %v2996 = vunpack.c.l.b16 %v682
        %v2997 = vunpack.c.h.b16 %v682
        %v2998 = vunpack.c.l.b16 %v683
        %v2999 = vunpack.c.h.b16 %v683
        %v3000 = vunpack.c.l.b16 %v684
        %v3001 = vunpack.c.h.b16 %v684
        %v3002 = vunpack.c.l.b16 %v685
        %v3003 = vunpack.c.h.b16 %v685
        %v3004 = vunpack.c.l.b16 %v686
        %v3005 = vunpack.c.h.b16 %v686
        %v3006 = vunpack.c.l.b16 %v687
        %v3007 = vunpack.c.h.b16 %v687
        %v3008 = vunpack.c.l.b16 %v688
        %v3009 = vunpack.c.h.b16 %v688
        %v3010 = vunpack.c.l.b16 %v689
        %v3011 = vunpack.c.h.b16 %v689
        %v3012 = vunpack.c.l.b16 %v690
        %v3013 = vunpack.c.h.b16 %v690
        %v3014 = vunpack.c.l.b16 %v691
        %v3015 = vunpack.c.h.b16 %v691
        %v3016 = vunpack.c.l.b16 %v692
        %v3017 = vunpack.c.h.b16 %v692
        %v3018 = vunpack.c.l.b16 %v693
        %v3019 = vunpack.c.h.b16 %v693
        %v3020 = vunpack.c.l.b16 %v694
        %v3021 = vunpack.c.h.b16 %v694
        %v3022 = vunpack.c.l.b16 %v695
        %v3023 = vunpack.c.h.b16 %v695
        %v3024 = vunpack.c.l.b16 %v696
        %v3025 = vunpack.c.h.b16 %v696
        %v3026 = vunpack.c.l.b16 %v697
        %v3027 = vunpack.c.h.b16 %v697
        %v3028 = vunpack.c.l.b16 %v698
        %v3029 = vunpack.c.h.b16 %v698
        %v3030 = vunpack.c.l.b16 %v699
        %v3031 = vunpack.c.h.b16 %v699
        %v3032 = vunpack.c.l.b16 %v700
        %v3033 = vunpack.c.h.b16 %v700
        %v3034 = vunpack.c.l.b16 %v701
        %v3035 = vunpack.c.h.b16 %v701
        %v3036 = vunpack.c.l.b16 %v702
        %v3037 = vunpack.c.h.b16 %v702
        %v3038 = vunpack.c.l.b16 %v703
        %v3039 = vunpack.c.h.b16 %v703
        %v3040 = vunpack.c.l.b16 %v704
        %v3041 = vunpack.c.h.b16 %v704
        %v3042 = vunpack.c.l.b16 %v705
        %v3043 = vunpack.c.h.b16 %v705
        %v3044 = vunpack.c.l.b16 %v706
        %v3045 = vunpack.c.h.b16 %v706
        %v3046 = vunpack.c.l.b16 %v707
        %v3047 = vunpack.c.h.b16 %v707
        %v3048 = vunpack.c.l.b16 %v708
        %v3049 = vunpack.c.h.b16 %v708
        %v3050 = vunpack.c.l.b16 %v709
        %v3051 = vunpack.c.h.b16 %v709
        %v3052 = vunpack.c.l.b16 %v710
        %v3053 = vunpack.c.h.b16 %v710
        %v3054 = vunpack.c.l.b16 %v711
        %v3055 = vunpack.c.h.b16 %v711
        %v3056 = vunpack.c.l.b16 %v712
        %v3057 = vunpack.c.h.b16 %v712
        %v3058 = vunpack.c.l.b16 %v713
        %v3059 = vunpack.c.h.b16 %v713
        %v3060 = vunpack.c.l.b16 %v714
        %v3061 = vunpack.c.h.b16 %v714
        %v3062 = vunpack.c.l.b16 %v715
        %v3063 = vunpack.c.h.b16 %v715
        %v3064 = vunpack.c.l.b16 %v716
        %v3065 = vunpack.c.h.b16 %v716
        %v3066 = vunpack.c.l.b16 %v717
        %v3067 = vunpack.c.h.b16 %v717
        %v3068 = vunpack.c.l.b16 %v718
        %v3069 = vunpack.c.h.b16 %v718
        %v3070 = vunpack.c.l.b16 %v719
        %v3071 = vunpack.c.h.b16 %v719
        %v3072 = vunpack.c.l.b16 %v720
        %v3073 = vunpack.c.h.b16 %v720
        %v3074 = vunpack.c.l.b16 %v721
        %v3075 = vunpack.c.h.b16 %v721
        %v3076 = vunpack.c.l.b16 %v722
        %v3077 = vunpack.c.h.b16 %v722
        %v3078 = vunpack.c.l.b16 %v723
        %v3079 = vunpack.c.h.b16 %v723
        %v3080 = vunpack.c.l.b16 %v724
        %v3081 = vunpack.c.h.b16 %v724
        %v3082 = vunpack.c.l.b16 %v725
        %v3083 = vunpack.c.h.b16 %v725
        %v3084 = vunpack.c.l.b16 %v726
        %v3085 = vunpack.c.h.b16 %v726
        %v3086 = vunpack.c.l.b16 %v727
        %v3087 = vunpack.c.h.b16 %v727
        %v3088 = vunpack.c.l.b16 %v728
        %v3089 = vunpack.c.h.b16 %v728
        %v3090 = vunpack.c.l.b16 %v729
        %v3091 = vunpack.c.h.b16 %v729
        %v3092 = vunpack.c.l.b16 %v730
        %v3093 = vunpack.c.h.b16 %v730
        %v3094 = vunpack.c.l.b16 %v731
        %v3095 = vunpack.c.h.b16 %v731
        %v3096 = vunpack.c.l.b16 %v732
        %v3097 = vunpack.c.h.b16 %v732
        %v3098 = vunpack.c.l.b16 %v733
        %v3099 = vunpack.c.h.b16 %v733
        %v3100 = vunpack.c.l.b16 %v734
        %v3101 = vunpack.c.h.b16 %v734
        %v3102 = vunpack.c.l.b16 %v735
        %v3103 = vunpack.c.h.b16 %v735
        %v3104 = vunpack.c.l.b16 %v736
        %v3105 = vunpack.c.h.b16 %v736
        %v3106 = vunpack.c.l.b16 %v737
        %v3107 = vunpack.c.h.b16 %v737
        %v3108 = vunpack.c.l.b16 %v738
        %v3109 = vunpack.c.h.b16 %v738
        %v3110 = vunpack.c.l.b16 %v739
        %v3111 = vunpack.c.h.b16 %v739
        %v3112 = vunpack.c.l.b16 %v740
        %v3113 = vunpack.c.h.b16 %v740
        %v3114 = vunpack.c.l.b16 %v741
        %v3115 = vunpack.c.h.b16 %v741
        %v3116 = vunpack.c.l.b16 %v742
        %v3117 = vunpack.c.h.b16 %v742
        %v3118 = vunpack.c.l.b16 %v743
        %v3119 = vunpack.c.h.b16 %v743
        %v3120 = vunpack.c.l.b16 %v744
        %v3121 = vunpack.c.h.b16 %v744
        %v3122 = vunpack.c.l.b16 %v745
        %v3123 = vunpack.c.h.b16 %v745
        %v3124 = vunpack.c.l.b16 %v746
        %v3125 = vunpack.c.h.b16 %v746
        %v3126 = vunpack.c.l.b16 %v747
        %v3127 = vunpack.c.h.b16 %v747
        %v3128 = vunpack.c.l.b16 %v748
        %v3129 = vunpack.c.h.b16 %v748
        %v3130 = vunpack.c.l.b16 %v749
        %v3131 = vunpack.c.h.b16 %v749
        %v3132 = vunpack.c.l.b16 %v750
        %v3133 = vunpack.c.h.b16 %v750
        %v3134 = vunpack.c.l.b16 %v751
        %v3135 = vunpack.c.h.b16 %v751
        %v3136 = vunpack.c.l.b16 %v752
        %v3137 = vunpack.c.h.b16 %v752
        %v3138 = vunpack.c.l.b16 %v753
        %v3139 = vunpack.c.h.b16 %v753
        %v3140 = vunpack.c.l.b16 %v754
        %v3141 = vunpack.c.h.b16 %v754
        %v3142 = vunpack.c.l.b16 %v755
        %v3143 = vunpack.c.h.b16 %v755
        %v3144 = vunpack.c.l.b16 %v756
        %v3145 = vunpack.c.h.b16 %v756
        %v3146 = vunpack.c.l.b16 %v757
        %v3147 = vunpack.c.h.b16 %v757
        %v3148 = vunpack.c.l.b16 %v758
        %v3149 = vunpack.c.h.b16 %v758
        %v3150 = vunpack.c.l.b16 %v759
        %v3151 = vunpack.c.h.b16 %v759
        %v3152 = vunpack.c.l.b16 %v760
        %v3153 = vunpack.c.h.b16 %v760
        %v3154 = vunpack.c.l.b16 %v761
        %v3155 = vunpack.c.h.b16 %v761
        %v3156 = vunpack.c.l.b16 %v762
        %v3157 = vunpack.c.h.b16 %v762
        %v3158 = vunpack.c.l.b16 %v763
        %v3159 = vunpack.c.h.b16 %v763
        %v3160 = vunpack.c.l.b16 %v764
        %v3161 = vunpack.c.h.b16 %v764
        %v3162 = vunpack.c.l.b16 %v765
        %v3163 = vunpack.c.h.b16 %v765
        %v3164 = vunpack.c.l.b16 %v766
        %v3165 = vunpack.c.h.b16 %v766
        %v3166 = vunpack.c.l.b16 %v767
        %v3167 = vunpack.c.h.b16 %v767
        %v3168 = vunpack.c.l.b16 %v768
        %v3169 = vunpack.c.h.b16 %v768
        %v3170 = vunpack.c.l.b16 %v769
        %v3171 = vunpack.c.h.b16 %v769
        %v3172 = vunpack.c.l.b16 %v770
        %v3173 = vunpack.c.h.b16 %v770
        %v3174 = vunpack.c.l.b16 %v771
        %v3175 = vunpack.c.h.b16 %v771
        %v3176 = vunpack.c.l.b16 %v772
        %v3177 = vunpack.c.h.b16 %v772
        %v3178 = vunpack.c.l.b16 %v773
        %v3179 = vunpack.c.h.b16 %v773
        %v3180 = vunpack.c.l.b16 %v774
        %v3181 = vunpack.c.h.b16 %v774
        %v3182 = vunpack.c.l.b16 %v775
        %v3183 = vunpack.c.h.b16 %v775
        %v3184 = vunpack.c.l.b16 %v776
        %v3185 = vunpack.c.h.b16 %v776
        %v3186 = vunpack.c.l.b16 %v777
        %v3187 = vunpack.c.h.b16 %v777
        %v3188 = vunpack.c.l.b16 %v778
        %v3189 = vunpack.c.h.b16 %v778
        %v3190 = vunpack.c.l.b16 %v779
        %v3191 = vunpack.c.h.b16 %v779
        %v3192 = vunpack.c.l.b16 %v780
        %v3193 = vunpack.c.h.b16 %v780
        %v3194 = vunpack.c.l.b16 %v781
        %v3195 = vunpack.c.h.b16 %v781
        %v3196 = vunpack.c.l.b16 %v782
        %v3197 = vunpack.c.h.b16 %v782
        %v3198 = vunpack.c.l.b16 %v783
        %v3199 = vunpack.c.h.b16 %v783
        %v3200 = vunpack.c.l.b16 %v784
        %v3201 = vunpack.c.h.b16 %v784
        %v3202 = vunpack.c.l.b16 %v785
        %v3203 = vunpack.c.h.b16 %v785
        %v3204 = vunpack.c.l.b16 %v786
        %v3205 = vunpack.c.h.b16 %v786
        %v3206 = vunpack.c.l.b16 %v787
        %v3207 = vunpack.c.h.b16 %v787
        %v3208 = vunpack.c.l.b16 %v788
        %v3209 = vunpack.c.h.b16 %v788
        %v3210 = vunpack.c.l.b16 %v789
        %v3211 = vunpack.c.h.b16 %v789
        %v3212 = vunpack.c.l.b16 %v790
        %v3213 = vunpack.c.h.b16 %v790
        %v3214 = vunpack.c.l.b16 %v791
        %v3215 = vunpack.c.h.b16 %v791
        %v3216 = vunpack.c.l.b16 %v792
        %v3217 = vunpack.c.h.b16 %v792
        %v3218 = vunpack.c.l.b16 %v793
        %v3219 = vunpack.c.h.b16 %v793
        %v3220 = vunpack.c.l.b16 %v794
        %v3221 = vunpack.c.h.b16 %v794
        %v3222 = vunpack.c.l.b16 %v795
        %v3223 = vunpack.c.h.b16 %v795
        %v3224 = vunpack.c.l.b16 %v796
        %v3225 = vunpack.c.h.b16 %v796
        %v3226 = vunpack.c.l.b16 %v797
        %v3227 = vunpack.c.h.b16 %v797
        %v3228 = vunpack.c.l.b16 %v798
        %v3229 = vunpack.c.h.b16 %v798
        %v3230 = vunpack.c.l.b16 %v799
        %v3231 = vunpack.c.h.b16 %v799
        %v3232 = vunpack.c.l.b16 %v800
        %v3233 = vunpack.c.h.b16 %v800
        %v3234 = vunpack.c.l.b16 %v801
        %v3235 = vunpack.c.h.b16 %v801
        %v3236 = vunpack.c.l.b16 %v802
        %v3237 = vunpack.c.h.b16 %v802
        %v3238 = vunpack.c.l.b16 %v803
        %v3239 = vunpack.c.h.b16 %v803
        %v3240 = vunpack.c.l.b16 %v804
        %v3241 = vunpack.c.h.b16 %v804
        %v3242 = vunpack.c.l.b16 %v805
        %v3243 = vunpack.c.h.b16 %v805
        %v3244 = vunpack.c.l.b16 %v806
        %v3245 = vunpack.c.h.b16 %v806
        %v3246 = vunpack.c.l.b16 %v807
        %v3247 = vunpack.c.h.b16 %v807
        %v3248 = vunpack.c.l.b16 %v808
        %v3249 = vunpack.c.h.b16 %v808
        %v3250 = vunpack.c.l.b16 %v809
        %v3251 = vunpack.c.h.b16 %v809
        %v3252 = vunpack.c.l.b16 %v810
        %v3253 = vunpack.c.h.b16 %v810
        %v3254 = vunpack.c.l.b16 %v811
        %v3255 = vunpack.c.h.b16 %v811
        %v3256 = vunpack.c.l.b16 %v812
        %v3257 = vunpack.c.h.b16 %v812
        %v3258 = vunpack.c.l.b16 %v813
        %v3259 = vunpack.c.h.b16 %v813
        %v3260 = vunpack.c.l.b16 %v814
        %v3261 = vunpack.c.h.b16 %v814
        %v3262 = vunpack.c.l.b16 %v815
        %v3263 = vunpack.c.h.b16 %v815
        %v3264 = vunpack.c.l.b16 %v816
        %v3265 = vunpack.c.h.b16 %v816
        %v3266 = vunpack.c.l.b16 %v817
        %v3267 = vunpack.c.h.b16 %v817
        %v3268 = vunpack.c.l.b16 %v818
        %v3269 = vunpack.c.h.b16 %v818
        %v3270 = vunpack.c.l.b16 %v819
        %v3271 = vunpack.c.h.b16 %v819
        %v3272 = vunpack.c.l.b16 %v820
        %v3273 = vunpack.c.h.b16 %v820
        %v3274 = vunpack.c.l.b16 %v821
        %v3275 = vunpack.c.h.b16 %v821
        %v3276 = vunpack.c.l.b16 %v822
        %v3277 = vunpack.c.h.b16 %v822
        %v3278 = vunpack.c.l.b16 %v823
        %v3279 = vunpack.c.h.b16 %v823
        %v3280 = vunpack.c.l.b16 %v824
        %v3281 = vunpack.c.h.b16 %v824
        %v3282 = vunpack.c.l.b16 %v825
        %v3283 = vunpack.c.h.b16 %v825
        %v3284 = vunpack.c.l.b16 %v826
        %v3285 = vunpack.c.h.b16 %v826
        %v3286 = vunpack.c.l.b16 %v827
        %v3287 = vunpack.c.h.b16 %v827
        %v3288 = vunpack.c.l.b16 %v828
        %v3289 = vunpack.c.h.b16 %v828
        %v3290 = vunpack.c.l.b16 %v829
        %v3291 = vunpack.c.h.b16 %v829
        %v3292 = vunpack.c.l.b16 %v830
        %v3293 = vunpack.c.h.b16 %v830
        %v3294 = vunpack.c.l.b16 %v831
        %v3295 = vunpack.c.h.b16 %v831
        %v3296 = vunpack.c.l.b16 %v832
        %v3297 = vunpack.c.h.b16 %v832
        %v3298 = vunpack.c.l.b16 %v833
        %v3299 = vunpack.c.h.b16 %v833
        %v3300 = vunpack.c.l.b16 %v834
        %v3301 = vunpack.c.h.b16 %v834
        %v3302 = vunpack.c.l.b16 %v835
        %v3303 = vunpack.c.h.b16 %v835
        %v3304 = vunpack.c.l.b16 %v836
        %v3305 = vunpack.c.h.b16 %v836
        %v3306 = vunpack.c.l.b16 %v837
        %v3307 = vunpack.c.h.b16 %v837
        %v3308 = vunpack.c.l.b16 %v838
        %v3309 = vunpack.c.h.b16 %v838
        %v3310 = vunpack.c.l.b16 %v839
        %v3311 = vunpack.c.h.b16 %v839
        %v3312 = vunpack.c.l.b16 %v840
        %v3313 = vunpack.c.h.b16 %v840
        %v3314 = vunpack.c.l.b16 %v841
        %v3315 = vunpack.c.h.b16 %v841
        %v3316 = vunpack.c.l.b16 %v842
        %v3317 = vunpack.c.h.b16 %v842
        %v3318 = vunpack.c.l.b16 %v843
        %v3319 = vunpack.c.h.b16 %v843
        %v3320 = vunpack.c.l.b16 %v844
        %v3321 = vunpack.c.h.b16 %v844
        %v3322 = vunpack.c.l.b16 %v845
        %v3323 = vunpack.c.h.b16 %v845
        %v3324 = vunpack.c.l.b16 %v846
        %v3325 = vunpack.c.h.b16 %v846
        %v3326 = vunpack.c.l.b16 %v847
        %v3327 = vunpack.c.h.b16 %v847
        %v3328 = vunpack.c.l.b16 %v848
        %v3329 = vunpack.c.h.b16 %v848
        %v3330 = vunpack.c.l.b16 %v849
        %v3331 = vunpack.c.h.b16 %v849
        %v3332 = vunpack.c.l.b16 %v850
        %v3333 = vunpack.c.h.b16 %v850
        %v3334 = vunpack.c.l.b16 %v851
        %v3335 = vunpack.c.h.b16 %v851
        %v3336 = vunpack.c.l.b16 %v852
        %v3337 = vunpack.c.h.b16 %v852
        %v3338 = vunpack.c.l.b16 %v853
        %v3339 = vunpack.c.h.b16 %v853
        %v3340 = vunpack.c.l.b16 %v854
        %v3341 = vunpack.c.h.b16 %v854
        %v3342 = vunpack.c.l.b16 %v855
        %v3343 = vunpack.c.h.b16 %v855
        %v3344 = vunpack.c.l.b16 %v856
        %v3345 = vunpack.c.h.b16 %v856
        %v3346 = vunpack.c.l.b16 %v857
        %v3347 = vunpack.c.h.b16 %v857
        %v3348 = vunpack.c.l.b16 %v858
        %v3349 = vunpack.c.h.b16 %v858
        %v3350 = vunpack.c.l.b16 %v859
        %v3351 = vunpack.c.h.b16 %v859
        %v3352 = vunpack.c.l.b16 %v860
        %v3353 = vunpack.c.h.b16 %v860
        %v3354 = vunpack.c.l.b16 %v861
        %v3355 = vunpack.c.h.b16 %v861
        %v3356 = vunpack.c.l.b16 %v862
        %v3357 = vunpack.c.h.b16 %v862
        %v3358 = vunpack.c.l.b16 %v863
        %v3359 = vunpack.c.h.b16 %v863
        %v3360 = vunpack.c.l.b16 %v864
        %v3361 = vunpack.c.h.b16 %v864
        %v3362 = vunpack.c.l.b16 %v865
        %v3363 = vunpack.c.h.b16 %v865
        %v3364 = vunpack.c.l.b16 %v866
        %v3365 = vunpack.c.h.b16 %v866
        %v3366 = vunpack.c.l.b16 %v867
        %v3367 = vunpack.c.h.b16 %v867
        %v3368 = vunpack.c.l.b16 %v868
        %v3369 = vunpack.c.h.b16 %v868
        %v3370 = vunpack.c.l.b16 %v869
        %v3371 = vunpack.c.h.b16 %v869
        %v3372 = vunpack.c.l.b16 %v870
        %v3373 = vunpack.c.h.b16 %v870
        %v3374 = vunpack.c.l.b16 %v871
        %v3375 = vunpack.c.h.b16 %v871
        %v3376 = vunpack.c.l.b16 %v872
        %v3377 = vunpack.c.h.b16 %v872
        %v3378 = vunpack.c.l.b16 %v873
        %v3379 = vunpack.c.h.b16 %v873
        %v3380 = vunpack.c.l.b16 %v874
        %v3381 = vunpack.c.h.b16 %v874
        %v3382 = vunpack.c.l.b16 %v875
        %v3383 = vunpack.c.h.b16 %v875
        %v3384 = vunpack.c.l.b16 %v876
        %v3385 = vunpack.c.h.b16 %v876
        %v3386 = vunpack.c.l.b16 %v877
        %v3387 = vunpack.c.h.b16 %v877
        %v3388 = vunpack.c.l.b16 %v878
        %v3389 = vunpack.c.h.b16 %v878
        %v3390 = vunpack.c.l.b16 %v879
        %v3391 = vunpack.c.h.b16 %v879
        %v3392 = vunpack.c.l.b16 %v880
        %v3393 = vunpack.c.h.b16 %v880
        %v3394 = vunpack.c.l.b16 %v881
        %v3395 = vunpack.c.h.b16 %v881
        %v3396 = vunpack.c.l.b16 %v882
        %v3397 = vunpack.c.h.b16 %v882
        %v3398 = vunpack.c.l.b16 %v883
        %v3399 = vunpack.c.h.b16 %v883
        %v3400 = vunpack.c.l.b16 %v884
        %v3401 = vunpack.c.h.b16 %v884
        %v3402 = vunpack.c.l.b16 %v885
        %v3403 = vunpack.c.h.b16 %v885
        %v3404 = vunpack.c.l.b16 %v886
        %v3405 = vunpack.c.h.b16 %v886
        %v3406 = vunpack.c.l.b16 %v887
        %v3407 = vunpack.c.h.b16 %v887
        %v3408 = vunpack.c.l.b16 %v888
        %v3409 = vunpack.c.h.b16 %v888
        %v3410 = vunpack.c.l.b16 %v889
        %v3411 = vunpack.c.h.b16 %v889
        %v3412 = vunpack.c.l.b16 %v890
        %v3413 = vunpack.c.h.b16 %v890
        %v3414 = vunpack.c.l.b16 %v891
        %v3415 = vunpack.c.h.b16 %v891
        %v3416 = vunpack.c.l.b16 %v892
        %v3417 = vunpack.c.h.b16 %v892
        %v3418 = vunpack.c.l.b16 %v893
        %v3419 = vunpack.c.h.b16 %v893
        %v3420 = vunpack.c.l.b16 %v894
        %v3421 = vunpack.c.h.b16 %v894
        %v3422 = vunpack.c.l.b16 %v895
        %v3423 = vunpack.c.h.b16 %v895
        %v3424 = vunpack.c.l.b16 %v896
        %v3425 = vunpack.c.h.b16 %v896
        %v3426 = vunpack.c.l.b16 %v897
        %v3427 = vunpack.c.h.b16 %v897
        %v3428 = vunpack.c.l.b16 %v898
        %v3429 = vunpack.c.h.b16 %v898
        %v3430 = vunpack.c.l.b16 %v899
        %v3431 = vunpack.c.h.b16 %v899
        %v3432 = vunpack.c.l.b16 %v900
        %v3433 = vunpack.c.h.b16 %v900
        %v3434 = vunpack.c.l.b16 %v901
        %v3435 = vunpack.c.h.b16 %v901
        %v3436 = vunpack.c.l.b16 %v902
        %v3437 = vunpack.c.h.b16 %v902
        %v3438 = vunpack.c.l.b16 %v903
        %v3439 = vunpack.c.h.b16 %v903
        %v3440 = vunpack.c.l.b16 %v904
        %v3441 = vunpack.c.h.b16 %v904
        %v3442 = vunpack.c.l.b16 %v905
        %v3443 = vunpack.c.h.b16 %v905
        %v3444 = vunpack.c.l.b16 %v906
        %v3445 = vunpack.c.h.b16 %v906
        %v3446 = vunpack.c.l.b16 %v907
        %v3447 = vunpack.c.h.b16 %v907
        %v3448 = vunpack.c.l.b16 %v908
        %v3449 = vunpack.c.h.b16 %v908
        %v3450 = vunpack.c.l.b16 %v909
        %v3451 = vunpack.c.h.b16 %v909
        %v3452 = vunpack.c.l.b16 %v910
        %v3453 = vunpack.c.h.b16 %v910
        %v3454 = vunpack.c.l.b16 %v911
        %v3455 = vunpack.c.h.b16 %v911
        %v3456 = vunpack.c.l.b16 %v912
        %v3457 = vunpack.c.h.b16 %v912
        %v3458 = vunpack.c.l.b16 %v913
        %v3459 = vunpack.c.h.b16 %v913
        %v3460 = vunpack.c.l.b16 %v914
        %v3461 = vunpack.c.h.b16 %v914
        %v3462 = vunpack.c.l.b16 %v915
        %v3463 = vunpack.c.h.b16 %v915
        %v3464 = vunpack.c.l.b16 %v916
        %v3465 = vunpack.c.h.b16 %v916
        %v3466 = vunpack.c.l.b16 %v917
        %v3467 = vunpack.c.h.b16 %v917
        %v3468 = vunpack.c.l.b16 %v918
        %v3469 = vunpack.c.h.b16 %v918
        %v3470 = vunpack.c.l.b16 %v919
        %v3471 = vunpack.c.h.b16 %v919
        %v3472 = vunpack.c.l.b16 %v920
        %v3473 = vunpack.c.h.b16 %v920
        %v3474 = vunpack.c.l.b16 %v921
        %v3475 = vunpack.c.h.b16 %v921
        %v3476 = vunpack.c.l.b16 %v922
        %v3477 = vunpack.c.h.b16 %v922
        %v3478 = vunpack.c.l.b16 %v923
        %v3479 = vunpack.c.h.b16 %v923
        %v3480 = vunpack.c.l.b16 %v924
        %v3481 = vunpack.c.h.b16 %v924
        %v3482 = vunpack.c.l.b16 %v925
        %v3483 = vunpack.c.h.b16 %v925
        %v3484 = vunpack.c.l.b16 %v926
        %v3485 = vunpack.c.h.b16 %v926
        %v3486 = vunpack.c.l.b16 %v927
        %v3487 = vunpack.c.h.b16 %v927
        %v3488 = vunpack.c.l.b16 %v928
        %v3489 = vunpack.c.h.b16 %v928
        %v3490 = vunpack.c.l.b16 %v929
        %v3491 = vunpack.c.h.b16 %v929
        %v3492 = vunpack.c.l.b16 %v930
        %v3493 = vunpack.c.h.b16 %v930
        %v3494 = vunpack.c.l.b16 %v931
        %v3495 = vunpack.c.h.b16 %v931
        %v3496 = vunpack.c.l.b16 %v932
        %v3497 = vunpack.c.h.b16 %v932
        %v3498 = vunpack.c.l.b16 %v933
        %v3499 = vunpack.c.h.b16 %v933
        %v3500 = vunpack.c.l.b16 %v934
        %v3501 = vunpack.c.h.b16 %v934
        %v3502 = vunpack.c.l.b16 %v935
        %v3503 = vunpack.c.h.b16 %v935
        %v3504 = vunpack.c.l.b16 %v936
        %v3505 = vunpack.c.h.b16 %v936
        %v3506 = vunpack.c.l.b16 %v937
        %v3507 = vunpack.c.h.b16 %v937
        %v3508 = vunpack.c.l.b16 %v938
        %v3509 = vunpack.c.h.b16 %v938
        %v3510 = vunpack.c.l.b16 %v939
        %v3511 = vunpack.c.h.b16 %v939
        %v3512 = vunpack.c.l.b16 %v940
        %v3513 = vunpack.c.h.b16 %v940
        %v3514 = vunpack.c.l.b16 %v941
        %v3515 = vunpack.c.h.b16 %v941
        %v3516 = vunpack.c.l.b16 %v942
        %v3517 = vunpack.c.h.b16 %v942
        %v3518 = vunpack.c.l.b16 %v943
        %v3519 = vunpack.c.h.b16 %v943
        %v3520 = vunpack.c.l.b16 %v944
        %v3521 = vunpack.c.h.b16 %v944
        %v3522 = vunpack.c.l.b16 %v945
        %v3523 = vunpack.c.h.b16 %v945
        %v3524 = vunpack.c.l.b16 %v946
        %v3525 = vunpack.c.h.b16 %v946
        %v3526 = vunpack.c.l.b16 %v947
        %v3527 = vunpack.c.h.b16 %v947
        %v3528 = vunpack.c.l.b16 %v948
        %v3529 = vunpack.c.h.b16 %v948
        %v3530 = vunpack.c.l.b16 %v949
        %v3531 = vunpack.c.h.b16 %v949
        %v3532 = vunpack.c.l.b16 %v950
        %v3533 = vunpack.c.h.b16 %v950
        %v3534 = vunpack.c.l.b16 %v951
        %v3535 = vunpack.c.h.b16 %v951
        %v3536 = vunpack.c.l.b16 %v952
        %v3537 = vunpack.c.h.b16 %v952
        %v3538 = vunpack.c.l.b16 %v953
        %v3539 = vunpack.c.h.b16 %v953
        %v3540 = vunpack.c.l.b16 %v954
        %v3541 = vunpack.c.h.b16 %v954
        %v3542 = vunpack.c.l.b16 %v955
        %v3543 = vunpack.c.h.b16 %v955
        %v3544 = vunpack.c.l.b16 %v956
        %v3545 = vunpack.c.h.b16 %v956
        %v3546 = vunpack.c.l.b16 %v957
        %v3547 = vunpack.c.h.b16 %v957
        %v3548 = vunpack.c.l.b16 %v958
        %v3549 = vunpack.c.h.b16 %v958
        %v3550 = vunpack.c.l.b16 %v959
        %v3551 = vunpack.c.h.b16 %v959
        %v3552 = vunpack.c.l.b16 %v960
        %v3553 = vunpack.c.h.b16 %v960
        %v3554 = vunpack.c.l.b16 %v961
        %v3555 = vunpack.c.h.b16 %v961
        %v3556 = vunpack.c.l.b16 %v962
        %v3557 = vunpack.c.h.b16 %v962
        %v3558 = vunpack.c.l.b16 %v963
        %v3559 = vunpack.c.h.b16 %v963
        %v3560 = vunpack.c.l.b16 %v964
        %v3561 = vunpack.c.h.b16 %v964
        %v3562 = vunpack.c.l.b16 %v965
        %v3563 = vunpack.c.h.b16 %v965
        %v3564 = vunpack.c.l.b16 %v966
        %v3565 = vunpack.c.h.b16 %v966
        %v3566 = vunpack.c.l.b16 %v967
        %v3567 = vunpack.c.h.b16 %v967
        %v3568 = vunpack.c.l.b16 %v968
        %v3569 = vunpack.c.h.b16 %v968
        %v3570 = vunpack.c.l.b16 %v969
        %v3571 = vunpack.c.h.b16 %v969
        %v3572 = vunpack.c.l.b16 %v970
        %v3573 = vunpack.c.h.b16 %v970
        %v3574 = vunpack.c.l.b16 %v971
        %v3575 = vunpack.c.h.b16 %v971
        %v3576 = vunpack.c.l.b16 %v972
        %v3577 = vunpack.c.h.b16 %v972
        %v3578 = vunpack.c.l.b16 %v973
        %v3579 = vunpack.c.h.b16 %v973
        %v3580 = vunpack.c.l.b16 %v974
        %v3581 = vunpack.c.h.b16 %v974
        %v3582 = vunpack.c.l.b16 %v975
        %v3583 = vunpack.c.h.b16 %v975
        %v3584 = vunpack.c.l.b16 %v976
        %v3585 = vunpack.c.h.b16 %v976
        %v3586 = vunpack.c.l.b16 %v977
        %v3587 = vunpack.c.h.b16 %v977
        %v3588 = vunpack.c.l.b16 %v978
        %v3589 = vunpack.c.h.b16 %v978
        %v3590 = vunpack.c.l.b16 %v979
        %v3591 = vunpack.c.h.b16 %v979
        %v3592 = vunpack.c.l.b16 %v980
        %v3593 = vunpack.c.h.b16 %v980
        %v3594 = vunpack.c.l.b16 %v981
        %v3595 = vunpack.c.h.b16 %v981
        %v3596 = vunpack.c.l.b16 %v982
        %v3597 = vunpack.c.h.b16 %v982
        %v3598 = vunpack.c.l.b16 %v983
        %v3599 = vunpack.c.h.b16 %v983
        %v3600 = vunpack.c.l.b16 %v984
        %v3601 = vunpack.c.h.b16 %v984
        %v3602 = vunpack.c.l.b16 %v985
        %v3603 = vunpack.c.h.b16 %v985
        %v3604 = vunpack.c.l.b16 %v986
        %v3605 = vunpack.c.h.b16 %v986
        %v3606 = vunpack.c.l.b16 %v987
        %v3607 = vunpack.c.h.b16 %v987
        %v3608 = vunpack.c.l.b16 %v988
        %v3609 = vunpack.c.h.b16 %v988
        %v3610 = vunpack.c.l.b16 %v989
        %v3611 = vunpack.c.h.b16 %v989
        %v3612 = vunpack.c.l.b16 %v990
        %v3613 = vunpack.c.h.b16 %v990
        %v3614 = vunpack.c.l.b16 %v991
        %v3615 = vunpack.c.h.b16 %v991
        %v3616 = vunpack.c.l.b16 %v992
        %v3617 = vunpack.c.h.b16 %v992
        %v3618 = vunpack.c.l.b16 %v993
        %v3619 = vunpack.c.h.b16 %v993
        %v3620 = vunpack.c.l.b16 %v994
        %v3621 = vunpack.c.h.b16 %v994
        %v3622 = vunpack.c.l.b16 %v995
        %v3623 = vunpack.c.h.b16 %v995
        %v3624 = vunpack.c.l.b16 %v996
        %v3625 = vunpack.c.h.b16 %v996
        %v3626 = vunpack.c.l.b16 %v997
        %v3627 = vunpack.c.h.b16 %v997
        %v3628 = vunpack.c.l.b16 %v998
        %v3629 = vunpack.c.h.b16 %v998
        %v3630 = vunpack.c.l.b16 %v999
        %v3631 = vunpack.c.h.b16 %v999
        %v3632 = vunpack.c.l.b16 %v1000
        %v3633 = vunpack.c.h.b16 %v1000
        %v3634 = vunpack.c.l.b16 %v1001
        %v3635 = vunpack.c.h.b16 %v1001
        %v3636 = vunpack.c.l.b16 %v1002
        %v3637 = vunpack.c.h.b16 %v1002
        %v3638 = vunpack.c.l.b16 %v1003
        %v3639 = vunpack.c.h.b16 %v1003
        %v3640 = vunpack.c.l.b16 %v1004
        %v3641 = vunpack.c.h.b16 %v1004
        %v3642 = vunpack.c.l.b16 %v1005
        %v3643 = vunpack.c.h.b16 %v1005
        %v3644 = vunpack.c.l.b16 %v1006
        %v3645 = vunpack.c.h.b16 %v1006
        %v3646 = vunpack.c.l.b16 %v1007
        %v3647 = vunpack.c.h.b16 %v1007
        %v3648 = vunpack.c.l.b16 %v1008
        %v3649 = vunpack.c.h.b16 %v1008
        %v3650 = vunpack.c.l.b16 %v1009
        %v3651 = vunpack.c.h.b16 %v1009
        %v3652 = vunpack.c.l.b16 %v1010
        %v3653 = vunpack.c.h.b16 %v1010
        %v3654 = vunpack.c.l.b16 %v1011
        %v3655 = vunpack.c.h.b16 %v1011
        %v3656 = vunpack.c.l.b16 %v1012
        %v3657 = vunpack.c.h.b16 %v1012
        %v3658 = vunpack.c.l.b16 %v1013
        %v3659 = vunpack.c.h.b16 %v1013
        %v3660 = vunpack.c.l.b16 %v1014
        %v3661 = vunpack.c.h.b16 %v1014
        %v3662 = vunpack.c.l.b16 %v1015
        %v3663 = vunpack.c.h.b16 %v1015
        %v3664 = vunpack.c.l.b16 %v1016
        %v3665 = vunpack.c.h.b16 %v1016
        %v3666 = vunpack.c.l.b16 %v1017
        %v3667 = vunpack.c.h.b16 %v1017
        %v3668 = vunpack.c.l.b16 %v1018
        %v3669 = vunpack.c.h.b16 %v1018
        %v3670 = vunpack.c.l.b16 %v1019
        %v3671 = vunpack.c.h.b16 %v1019
        %v3672 = vunpack.c.l.b16 %v1020
        %v3673 = vunpack.c.h.b16 %v1020
        %v3674 = vunpack.c.l.b16 %v1021
        %v3675 = vunpack.c.h.b16 %v1021
        %v3676 = vunpack.c.l.b16 %v1022
        %v3677 = vunpack.c.h.b16 %v1022
        %v3678 = vunpack.c.l.b16 %v1023
        %v3679 = vunpack.c.h.b16 %v1023
        %v3680 = vunpack.c.l.b16 %v1024
        %v3681 = vunpack.c.h.b16 %v1024
        %v3682 = vunpack.c.l.b16 %v1025
        %v3683 = vunpack.c.h.b16 %v1025
        %v3684 = vunpack.c.l.b16 %v1026
        %v3685 = vunpack.c.h.b16 %v1026
        %v3686 = vunpack.c.l.b16 %v1027
        %v3687 = vunpack.c.h.b16 %v1027
        %v3688 = vunpack.c.l.b16 %v1028
        %v3689 = vunpack.c.h.b16 %v1028
        %v3690 = vunpack.c.l.b16 %v1029
        %v3691 = vunpack.c.h.b16 %v1029
        %v3692 = vunpack.c.l.b16 %v1030
        %v3693 = vunpack.c.h.b16 %v1030
        %v3694 = vunpack.c.l.b16 %v1031
        %v3695 = vunpack.c.h.b16 %v1031
        %v3696 = vunpack.c.l.b16 %v1032
        %v3697 = vunpack.c.h.b16 %v1032
        %v3698 = vunpack.c.l.b16 %v1033
        %v3699 = vunpack.c.h.b16 %v1033
        %v3700 = vunpack.c.l.b16 %v1034
        %v3701 = vunpack.c.h.b16 %v1034
        %v3702 = vunpack.c.l.b16 %v1035
        %v3703 = vunpack.c.h.b16 %v1035
        %v3704 = vunpack.c.l.b16 %v1036
        %v3705 = vunpack.c.h.b16 %v1036
        %v3706 = vunpack.c.l.b16 %v1037
        %v3707 = vunpack.c.h.b16 %v1037
        %v3708 = vunpack.c.l.b16 %v1038
        %v3709 = vunpack.c.h.b16 %v1038
        %v3710 = vunpack.c.l.b16 %v1039
        %v3711 = vunpack.c.h.b16 %v1039
        %v3712 = vunpack.c.l.b16 %v1040
        %v3713 = vunpack.c.h.b16 %v1040
        %v3714 = vunpack.c.l.b16 %v1041
        %v3715 = vunpack.c.h.b16 %v1041
        %v3716 = vunpack.c.l.b16 %v1042
        %v3717 = vunpack.c.h.b16 %v1042
        %v3718 = vunpack.c.l.b16 %v1043
        %v3719 = vunpack.c.h.b16 %v1043
        %v3720 = vunpack.c.l.b16 %v1044
        %v3721 = vunpack.c.h.b16 %v1044
        %v3722 = vunpack.c.l.b16 %v1045
        %v3723 = vunpack.c.h.b16 %v1045
        %v3724 = vunpack.c.l.b16 %v1046
        %v3725 = vunpack.c.h.b16 %v1046
        %v3726 = vunpack.c.l.b16 %v1047
        %v3727 = vunpack.c.h.b16 %v1047
        %v3728 = vunpack.c.l.b16 %v1048
        %v3729 = vunpack.c.h.b16 %v1048
        %v3730 = vunpack.c.l.b16 %v1049
        %v3731 = vunpack.c.h.b16 %v1049
        %v3732 = vunpack.c.l.b16 %v1050
        %v3733 = vunpack.c.h.b16 %v1050
        %v3734 = vunpack.c.l.b16 %v1051
        %v3735 = vunpack.c.h.b16 %v1051
        %v3736 = vunpack.c.l.b16 %v1052
        %v3737 = vunpack.c.h.b16 %v1052
        %v3738 = vunpack.c.l.b16 %v1053
        %v3739 = vunpack.c.h.b16 %v1053
        %v3740 = vunpack.c.l.b16 %v1054
        %v3741 = vunpack.c.h.b16 %v1054
        %v3742 = vunpack.c.l.b16 %v1055
        %v3743 = vunpack.c.h.b16 %v1055
        %v3744 = vunpack.c.l.b16 %v1056
        %v3745 = vunpack.c.h.b16 %v1056
        %v3746 = vunpack.c.l.b16 %v1057
        %v3747 = vunpack.c.h.b16 %v1057
        %v3748 = vunpack.c.l.b16 %v1058
        %v3749 = vunpack.c.h.b16 %v1058
        %v3750 = vunpack.c.l.b16 %v1059
        %v3751 = vunpack.c.h.b16 %v1059
        %v3752 = vunpack.c.l.b16 %v1060
        %v3753 = vunpack.c.h.b16 %v1060
        %v3754 = vunpack.c.l.b16 %v1061
        %v3755 = vunpack.c.h.b16 %v1061
        %v3756 = vunpack.c.l.b16 %v1062
        %v3757 = vunpack.c.h.b16 %v1062
        %v3758 = vunpack.c.l.b16 %v1063
        %v3759 = vunpack.c.h.b16 %v1063
        %v3760 = vunpack.c.l.b16 %v1064
        %v3761 = vunpack.c.h.b16 %v1064
        %v3762 = vunpack.c.l.b16 %v1065
        %v3763 = vunpack.c.h.b16 %v1065
        %v3764 = vunpack.c.l.b16 %v1066
        %v3765 = vunpack.c.h.b16 %v1066
        %v3766 = vunpack.c.l.b16 %v1067
        %v3767 = vunpack.c.h.b16 %v1067
        %v3768 = vunpack.c.l.b16 %v1068
        %v3769 = vunpack.c.h.b16 %v1068
        %v3770 = vunpack.c.l.b16 %v1069
        %v3771 = vunpack.c.h.b16 %v1069
        %v3772 = vunpack.c.l.b16 %v1070
        %v3773 = vunpack.c.h.b16 %v1070
        %v3774 = vunpack.c.l.b16 %v1071
        %v3775 = vunpack.c.h.b16 %v1071
        %v3776 = vunpack.c.l.b16 %v1072
        %v3777 = vunpack.c.h.b16 %v1072
        %v3778 = vunpack.c.l.b16 %v1073
        %v3779 = vunpack.c.h.b16 %v1073
        %v3780 = vunpack.c.l.b16 %v1074
        %v3781 = vunpack.c.h.b16 %v1074
        %v3782 = vunpack.c.l.b16 %v1075
        %v3783 = vunpack.c.h.b16 %v1075
        %v3784 = vunpack.c.l.b16 %v1076
        %v3785 = vunpack.c.h.b16 %v1076
        %v3786 = vunpack.c.l.b16 %v1077
        %v3787 = vunpack.c.h.b16 %v1077
        %v3788 = vunpack.c.l.b16 %v1078
        %v3789 = vunpack.c.h.b16 %v1078
        %v3790 = vunpack.c.l.b16 %v1079
        %v3791 = vunpack.c.h.b16 %v1079
        %v3792 = vunpack.c.l.b16 %v1080
        %v3793 = vunpack.c.h.b16 %v1080
        %v3794 = vunpack.c.l.b16 %v1081
        %v3795 = vunpack.c.h.b16 %v1081
        %v3796 = vunpack.c.l.b16 %v1082
        %v3797 = vunpack.c.h.b16 %v1082
        %v3798 = vunpack.c.l.b16 %v1083
        %v3799 = vunpack.c.h.b16 %v1083
        %v3800 = vunpack.c.l.b16 %v1084
        %v3801 = vunpack.c.h.b16 %v1084
        %v3802 = vunpack.c.l.b16 %v1085
        %v3803 = vunpack.c.h.b16 %v1085
        %v3804 = vunpack.c.l.b16 %v1086
        %v3805 = vunpack.c.h.b16 %v1086
        %v3806 = vunpack.c.l.b16 %v1087
        %v3807 = vunpack.c.h.b16 %v1087
        %v3808 = vunpack.c.l.b16 %v1088
        %v3809 = vunpack.c.h.b16 %v1088
        %v3810 = vunpack.c.l.b16 %v1089
        %v3811 = vunpack.c.h.b16 %v1089
        %v3812 = vunpack.c.l.b16 %v1090
        %v3813 = vunpack.c.h.b16 %v1090
        %v3814 = vunpack.c.l.b16 %v1091
        %v3815 = vunpack.c.h.b16 %v1091
        %v3816 = vunpack.c.l.b16 %v1092
        %v3817 = vunpack.c.h.b16 %v1092
        %v3818 = vunpack.c.l.b16 %v1093
        %v3819 = vunpack.c.h.b16 %v1093
        %v3820 = vunpack.c.l.b16 %v1094
        %v3821 = vunpack.c.h.b16 %v1094
        %v3822 = vunpack.c.l.b16 %v1095
        %v3823 = vunpack.c.h.b16 %v1095
        %v3824 = vunpack.c.l.b16 %v1096
        %v3825 = vunpack.c.h.b16 %v1096
        %v3826 = vunpack.c.l.b16 %v1097
        %v3827 = vunpack.c.h.b16 %v1097
        %v3828 = vunpack.c.l.b16 %v1098
        %v3829 = vunpack.c.h.b16 %v1098
        %v3830 = vunpack.c.l.b16 %v1099
        %v3831 = vunpack.c.h.b16 %v1099
        %v3832 = vunpack.c.l.b16 %v1100
        %v3833 = vunpack.c.h.b16 %v1100
        %v3834 = vunpack.c.l.b16 %v1101
        %v3835 = vunpack.c.h.b16 %v1101
        %v3836 = vunpack.c.l.b16 %v1102
        %v3837 = vunpack.c.h.b16 %v1102
        %v3838 = vunpack.c.l.b16 %v1103
        %v3839 = vunpack.c.h.b16 %v1103
        %v3840 = vunpack.c.l.b16 %v1104
        %v3841 = vunpack.c.h.b16 %v1104
        %v3842 = vunpack.c.l.b16 %v1105
        %v3843 = vunpack.c.h.b16 %v1105
        %v3844 = vunpack.c.l.b16 %v1106
        %v3845 = vunpack.c.h.b16 %v1106
        %v3846 = vunpack.c.l.b16 %v1107
        %v3847 = vunpack.c.h.b16 %v1107
        %v3848 = vunpack.c.l.b16 %v1108
        %v3849 = vunpack.c.h.b16 %v1108
        %v3850 = vunpack.c.l.b16 %v1109
        %v3851 = vunpack.c.h.b16 %v1109
        %v3852 = vunpack.c.l.b16 %v1110
        %v3853 = vunpack.c.h.b16 %v1110
        %v3854 = vunpack.c.l.b16 %v1111
        %v3855 = vunpack.c.h.b16 %v1111
        %v3856 = vunpack.c.l.b16 %v1112
        %v3857 = vunpack.c.h.b16 %v1112
        %v3858 = vunpack.c.l.b16 %v1113
        %v3859 = vunpack.c.h.b16 %v1113
        %v3860 = vunpack.c.l.b16 %v1114
        %v3861 = vunpack.c.h.b16 %v1114
        %v3862 = vunpack.c.l.b16 %v1115
        %v3863 = vunpack.c.h.b16 %v1115
        %v3864 = vunpack.c.l.b16 %v1116
        %v3865 = vunpack.c.h.b16 %v1116
        %v3866 = vunpack.c.l.b16 %v1117
        %v3867 = vunpack.c.h.b16 %v1117
        %v3868 = vunpack.c.l.b16 %v1118
        %v3869 = vunpack.c.h.b16 %v1118
        %v3870 = vunpack.c.l.b16 %v1119
        %v3871 = vunpack.c.h.b16 %v1119
        %v3872 = vunpack.c.l.b16 %v1120
        %v3873 = vunpack.c.h.b16 %v1120
        %v3874 = vunpack.c.l.b16 %v1121
        %v3875 = vunpack.c.h.b16 %v1121
        %v3876 = vunpack.c.l.b16 %v1122
        %v3877 = vunpack.c.h.b16 %v1122
        %v3878 = vunpack.c.l.b16 %v1123
        %v3879 = vunpack.c.h.b16 %v1123
        %v3880 = vunpack.c.l.b16 %v1124
        %v3881 = vunpack.c.h.b16 %v1124
        %v3882 = vunpack.c.l.b16 %v1125
        %v3883 = vunpack.c.h.b16 %v1125
        %v3884 = vunpack.c.l.b16 %v1126
        %v3885 = vunpack.c.h.b16 %v1126
        %v3886 = vunpack.c.l.b16 %v1127
        %v3887 = vunpack.c.h.b16 %v1127
        %v3888 = vunpack.c.l.b16 %v1128
        %v3889 = vunpack.c.h.b16 %v1128
        %v3890 = vunpack.c.l.b16 %v1129
        %v3891 = vunpack.c.h.b16 %v1129
        %v3892 = vunpack.c.l.b16 %v1130
        %v3893 = vunpack.c.h.b16 %v1130
        %v3894 = vunpack.c.l.b16 %v1131
        %v3895 = vunpack.c.h.b16 %v1131
        %v3896 = vunpack.c.l.b16 %v1132
        %v3897 = vunpack.c.h.b16 %v1132
        %v3898 = vunpack.c.l.b16 %v1133
        %v3899 = vunpack.c.h.b16 %v1133
        %v3900 = vunpack.c.l.b16 %v1134
        %v3901 = vunpack.c.h.b16 %v1134
        %v3902 = vunpack.c.l.b16 %v1135
        %v3903 = vunpack.c.h.b16 %v1135
        %v3904 = vunpack.c.l.b16 %v1136
        %v3905 = vunpack.c.h.b16 %v1136
        %v3906 = vunpack.c.l.b16 %v1137
        %v3907 = vunpack.c.h.b16 %v1137
        %v3908 = vunpack.c.l.b16 %v1138
        %v3909 = vunpack.c.h.b16 %v1138
        %v3910 = vunpack.c.l.b16 %v1139
        %v3911 = vunpack.c.h.b16 %v1139
        %v3912 = vunpack.c.l.b16 %v1140
        %v3913 = vunpack.c.h.b16 %v1140
        %v3914 = vunpack.c.l.b16 %v1141
        %v3915 = vunpack.c.h.b16 %v1141
        %v3916 = vunpack.c.l.b16 %v1142
        %v3917 = vunpack.c.h.b16 %v1142
        %v3918 = vunpack.c.l.b16 %v1143
        %v3919 = vunpack.c.h.b16 %v1143
        %v3920 = vunpack.c.l.b16 %v1144
        %v3921 = vunpack.c.h.b16 %v1144
        %v3922 = vunpack.c.l.b16 %v1145
        %v3923 = vunpack.c.h.b16 %v1145
        %v3924 = vunpack.c.l.b16 %v1146
        %v3925 = vunpack.c.h.b16 %v1146
        %v3926 = vunpack.c.l.b16 %v1147
        %v3927 = vunpack.c.h.b16 %v1147
        %v3928 = vunpack.c.l.b16 %v1148
        %v3929 = vunpack.c.h.b16 %v1148
        %v3930 = vunpack.c.l.b16 %v1149
        %v3931 = vunpack.c.h.b16 %v1149
        %v3932 = vunpack.c.l.b16 %v1150
        %v3933 = vunpack.c.h.b16 %v1150
        %v3934 = vunpack.c.l.b16 %v1151
        %v3935 = vunpack.c.h.b16 %v1151
        %v3936 = vunpack.c.l.b16 %v1152
        %v3937 = vunpack.c.h.b16 %v1152
        %v3938 = vunpack.c.l.b16 %v1153
        %v3939 = vunpack.c.h.b16 %v1153
        %v3940 = vunpack.c.l.b16 %v1154
        %v3941 = vunpack.c.h.b16 %v1154
        %v3942 = vunpack.c.l.b16 %v1155
        %v3943 = vunpack.c.h.b16 %v1155
        %v3944 = vunpack.c.l.b16 %v1156
        %v3945 = vunpack.c.h.b16 %v1156
        %v3946 = vunpack.c.l.b16 %v1157
        %v3947 = vunpack.c.h.b16 %v1157
        %v3948 = vunpack.c.l.b16 %v1158
        %v3949 = vunpack.c.h.b16 %v1158
        %v3950 = vunpack.c.l.b16 %v1159
        %v3951 = vunpack.c.h.b16 %v1159
        %v3952 = vunpack.c.l.b16 %v1160
        %v3953 = vunpack.c.h.b16 %v1160
        %v3954 = vunpack.c.l.b16 %v1161
        %v3955 = vunpack.c.h.b16 %v1161
        %v3956 = vunpack.c.l.b16 %v1162
        %v3957 = vunpack.c.h.b16 %v1162
        %v3958 = vunpack.c.l.b16 %v1163
        %v3959 = vunpack.c.h.b16 %v1163
        %v3960 = vunpack.c.l.b16 %v1164
        %v3961 = vunpack.c.h.b16 %v1164
        %v3962 = vunpack.c.l.b16 %v1165
        %v3963 = vunpack.c.h.b16 %v1165
        %v3964 = vunpack.c.l.b16 %v1166
        %v3965 = vunpack.c.h.b16 %v1166
        %v3966 = vunpack.c.l.b16 %v1167
        %v3967 = vunpack.c.h.b16 %v1167
        %v3968 = vunpack.c.l.b16 %v1168
        %v3969 = vunpack.c.h.b16 %v1168
        %v3970 = vunpack.c.l.b16 %v1169
        %v3971 = vunpack.c.h.b16 %v1169
        %v3972 = vunpack.c.l.b16 %v1170
        %v3973 = vunpack.c.h.b16 %v1170
        %v3974 = vunpack.c.l.b16 %v1171
        %v3975 = vunpack.c.h.b16 %v1171
        %v3976 = vunpack.c.l.b16 %v1172
        %v3977 = vunpack.c.h.b16 %v1172
        %v3978 = vunpack.c.l.b16 %v1173
        %v3979 = vunpack.c.h.b16 %v1173
        %v3980 = vunpack.c.l.b16 %v1174
        %v3981 = vunpack.c.h.b16 %v1174
        %v3982 = vunpack.c.l.b16 %v1175
        %v3983 = vunpack.c.h.b16 %v1175
        %v3984 = vunpack.c.l.b16 %v1176
        %v3985 = vunpack.c.h.b16 %v1176
        %v3986 = vunpack.c.l.b16 %v1177
        %v3987 = vunpack.c.h.b16 %v1177
        %v3988 = vunpack.c.l.b16 %v1178
        %v3989 = vunpack.c.h.b16 %v1178
        %v3990 = vunpack.c.l.b16 %v1179
        %v3991 = vunpack.c.h.b16 %v1179
        %v3992 = vunpack.c.l.b16 %v1180
        %v3993 = vunpack.c.h.b16 %v1180
        %v3994 = vunpack.c.l.b16 %v1181
        %v3995 = vunpack.c.h.b16 %v1181
        %v3996 = vunpack.c.l.b16 %v1182
        %v3997 = vunpack.c.h.b16 %v1182
        %v3998 = vunpack.c.l.b16 %v1183
        %v3999 = vunpack.c.h.b16 %v1183
        %v4000 = vunpack.c.l.b16 %v1184
        %v4001 = vunpack.c.h.b16 %v1184
        %v4002 = vunpack.c.l.b16 %v1185
        %v4003 = vunpack.c.h.b16 %v1185
        %v4004 = vunpack.c.l.b16 %v1186
        %v4005 = vunpack.c.h.b16 %v1186
        %v4006 = vunpack.c.l.b16 %v1187
        %v4007 = vunpack.c.h.b16 %v1187
        %v4008 = vunpack.c.l.b16 %v1188
        %v4009 = vunpack.c.h.b16 %v1188
        %v4010 = vunpack.c.l.b16 %v1189
        %v4011 = vunpack.c.h.b16 %v1189
        %v4012 = vunpack.c.l.b16 %v1190
        %v4013 = vunpack.c.h.b16 %v1190
        %v4014 = vunpack.c.l.b16 %v1191
        %v4015 = vunpack.c.h.b16 %v1191
        %v4016 = vunpack.c.l.b16 %v1192
        %v4017 = vunpack.c.h.b16 %v1192
        %v4018 = vunpack.c.l.b16 %v1193
        %v4019 = vunpack.c.h.b16 %v1193
        %v4020 = vunpack.c.l.b16 %v1194
        %v4021 = vunpack.c.h.b16 %v1194
        %v4022 = vunpack.c.l.b16 %v1195
        %v4023 = vunpack.c.h.b16 %v1195
        %v4024 = vunpack.c.l.b16 %v1196
        %v4025 = vunpack.c.h.b16 %v1196
        %v4026 = vunpack.c.l.b16 %v1197
        %v4027 = vunpack.c.h.b16 %v1197
        %v4028 = vunpack.c.l.b16 %v1198
        %v4029 = vunpack.c.h.b16 %v1198
        %v4030 = vunpack.c.l.b16 %v1199
        %v4031 = vunpack.c.h.b16 %v1199
        %v4032 = vunpack.c.l.b16 %v1200
        %v4033 = vunpack.c.h.b16 %v1200
        %v4034 = vunpack.c.l.b16 %v1201
        %v4035 = vunpack.c.h.b16 %v1201
        %v4036 = vunpack.c.l.b16 %v1202
        %v4037 = vunpack.c.h.b16 %v1202
        %v4038 = vunpack.c.l.b16 %v1203
        %v4039 = vunpack.c.h.b16 %v1203
        %v4040 = vunpack.c.l.b16 %v1204
        %v4041 = vunpack.c.h.b16 %v1204
        %v4042 = vunpack.c.l.b16 %v1205
        %v4043 = vunpack.c.h.b16 %v1205
        %v4044 = vunpack.c.l.b16 %v1206
        %v4045 = vunpack.c.h.b16 %v1206
        %v4046 = vunpack.c.l.b16 %v1207
        %v4047 = vunpack.c.h.b16 %v1207
        %v4048 = vunpack.c.l.b16 %v1208
        %v4049 = vunpack.c.h.b16 %v1208
        %v4050 = vunpack.c.l.b16 %v1209
        %v4051 = vunpack.c.h.b16 %v1209
        %v4052 = vunpack.c.l.b16 %v1210
        %v4053 = vunpack.c.h.b16 %v1210
        %v4054 = vunpack.c.l.b16 %v1211
        %v4055 = vunpack.c.h.b16 %v1211
        %v4056 = vunpack.c.l.b16 %v1212
        %v4057 = vunpack.c.h.b16 %v1212
        %v4058 = vunpack.c.l.b16 %v1213
        %v4059 = vunpack.c.h.b16 %v1213
        %v4060 = vunpack.c.l.b16 %v1214
        %v4061 = vunpack.c.h.b16 %v1214
        %v4062 = vunpack.c.l.b16 %v1215
        %v4063 = vunpack.c.h.b16 %v1215
        %v4064 = vunpack.c.l.b16 %v1216
        %v4065 = vunpack.c.h.b16 %v1216
        %v4066 = vunpack.c.l.b16 %v1217
        %v4067 = vunpack.c.h.b16 %v1217
        %v4068 = vunpack.c.l.b16 %v1218
        %v4069 = vunpack.c.h.b16 %v1218
        %v4070 = vunpack.c.l.b16 %v1219
        %v4071 = vunpack.c.h.b16 %v1219
        %v4072 = vunpack.c.l.b16 %v1220
        %v4073 = vunpack.c.h.b16 %v1220
        %v4074 = vunpack.c.l.b16 %v1221
        %v4075 = vunpack.c.h.b16 %v1221
        %v4076 = vunpack.c.l.b16 %v1222
        %v4077 = vunpack.c.h.b16 %v1222
        %v4078 = vunpack.c.l.b16 %v1223
        %v4079 = vunpack.c.h.b16 %v1223
        %v4080 = vunpack.c.l.b16 %v1224
        %v4081 = vunpack.c.h.b16 %v1224
        %v4082 = vunpack.c.l.b16 %v1225
        %v4083 = vunpack.c.h.b16 %v1225
        %v4084 = vunpack.c.l.b16 %v1226
        %v4085 = vunpack.c.h.b16 %v1226
        %v4086 = vunpack.c.l.b16 %v1227
        %v4087 = vunpack.c.h.b16 %v1227
        %v4088 = vunpack.c.l.b16 %v1228
        %v4089 = vunpack.c.h.b16 %v1228
        %v4090 = vunpack.c.l.b16 %v1229
        %v4091 = vunpack.c.h.b16 %v1229
        %v4092 = vunpack.c.l.b16 %v1230
        %v4093 = vunpack.c.h.b16 %v1230
        %v4094 = vunpack.c.l.b16 %v1231
        %v4095 = vunpack.c.h.b16 %v1231
        %v4096 = vunpack.c.l.b16 %v1232
        %v4097 = vunpack.c.h.b16 %v1232
        %v4098 = vunpack.c.l.b16 %v1233
        %v4099 = vunpack.c.h.b16 %v1233
        %v4100 = vunpack.c.l.b16 %v1234
        %v4101 = vunpack.c.h.b16 %v1234
        %v4102 = vunpack.c.l.b16 %v1235
        %v4103 = vunpack.c.h.b16 %v1235
        %v4104 = vunpack.c.l.b16 %v1236
        %v4105 = vunpack.c.h.b16 %v1236
        %v4106 = vunpack.c.l.b16 %v1237
        %v4107 = vunpack.c.h.b16 %v1237
        %v4108 = vunpack.c.l.b16 %v1238
        %v4109 = vunpack.c.h.b16 %v1238
        %v4110 = vunpack.c.l.b16 %v1239
        %v4111 = vunpack.c.h.b16 %v1239
        %v4112 = vunpack.c.l.b16 %v1240
        %v4113 = vunpack.c.h.b16 %v1240
        %v4114 = vunpack.c.l.b16 %v1241
        %v4115 = vunpack.c.h.b16 %v1241
        %v4116 = vunpack.c.l.b16 %v1242
        %v4117 = vunpack.c.h.b16 %v1242
        %v4118 = vunpack.c.l.b16 %v1243
        %v4119 = vunpack.c.h.b16 %v1243
        %v4120 = vunpack.c.l.b16 %v1244
        %v4121 = vunpack.c.h.b16 %v1244
        %v4122 = vunpack.c.l.b16 %v1245
        %v4123 = vunpack.c.h.b16 %v1245
        %v4124 = vunpack.c.l.b16 %v1246
        %v4125 = vunpack.c.h.b16 %v1246
        %v4126 = vunpack.c.l.b16 %v1247
        %v4127 = vunpack.c.h.b16 %v1247
        %v4128 = vunpack.c.l.b16 %v1248
        %v4129 = vunpack.c.h.b16 %v1248
        %v4130 = vunpack.c.l.b16 %v1249
        %v4131 = vunpack.c.h.b16 %v1249
        %v4132 = vunpack.c.l.b16 %v1250
        %v4133 = vunpack.c.h.b16 %v1250
        %v4134 = vunpack.c.l.b16 %v1251
        %v4135 = vunpack.c.h.b16 %v1251
        %v4136 = vunpack.c.l.b16 %v1252
        %v4137 = vunpack.c.h.b16 %v1252
        %v4138 = vunpack.c.l.b16 %v1253
        %v4139 = vunpack.c.h.b16 %v1253
        %v4140 = vunpack.c.l.b16 %v1254
        %v4141 = vunpack.c.h.b16 %v1254
        %v4142 = vunpack.c.l.b16 %v1255
        %v4143 = vunpack.c.h.b16 %v1255
        %v4144 = vunpack.c.l.b16 %v1256
        %v4145 = vunpack.c.h.b16 %v1256
        %v4146 = vunpack.c.l.b16 %v1257
        %v4147 = vunpack.c.h.b16 %v1257
        %v4148 = vunpack.c.l.b16 %v1258
        %v4149 = vunpack.c.h.b16 %v1258
        %v4150 = vunpack.c.l.b16 %v1259
        %v4151 = vunpack.c.h.b16 %v1259
        %v4152 = vunpack.c.l.b16 %v1260
        %v4153 = vunpack.c.h.b16 %v1260
        %v4154 = vunpack.c.l.b16 %v1261
        %v4155 = vunpack.c.h.b16 %v1261
        %v4156 = vunpack.c.l.b16 %v1262
        %v4157 = vunpack.c.h.b16 %v1262
        %v4158 = vunpack.c.l.b16 %v1263
        %v4159 = vunpack.c.h.b16 %v1263
        %v4160 = vunpack.c.l.b16 %v1264
        %v4161 = vunpack.c.h.b16 %v1264
        %v4162 = vunpack.c.l.b16 %v1265
        %v4163 = vunpack.c.h.b16 %v1265
        %v4164 = vunpack.c.l.b16 %v1266
        %v4165 = vunpack.c.h.b16 %v1266
        %v4166 = vunpack.c.l.b16 %v1267
        %v4167 = vunpack.c.h.b16 %v1267
        %v4168 = vunpack.c.l.b16 %v1268
        %v4169 = vunpack.c.h.b16 %v1268
        %v4170 = vunpack.c.l.b16 %v1269
        %v4171 = vunpack.c.h.b16 %v1269
        %v4172 = vunpack.c.l.b16 %v1270
        %v4173 = vunpack.c.h.b16 %v1270
        %v4174 = vunpack.c.l.b16 %v1271
        %v4175 = vunpack.c.h.b16 %v1271
        %v4176 = vunpack.c.l.b16 %v1272
        %v4177 = vunpack.c.h.b16 %v1272
        %v4178 = vunpack.c.l.b16 %v1273
        %v4179 = vunpack.c.h.b16 %v1273
        %v4180 = vunpack.c.l.b16 %v1274
        %v4181 = vunpack.c.h.b16 %v1274
        %v4182 = vunpack.c.l.b16 %v1275
        %v4183 = vunpack.c.h.b16 %v1275
        %v4184 = vunpack.c.l.b16 %v1276
        %v4185 = vunpack.c.h.b16 %v1276
        %v4186 = vunpack.c.l.b16 %v1277
        %v4187 = vunpack.c.h.b16 %v1277
        %v4188 = vunpack.c.l.b16 %v1278
        %v4189 = vunpack.c.h.b16 %v1278
        %v4190 = vunpack.c.l.b16 %v1279
        %v4191 = vunpack.c.h.b16 %v1279
        %v4192 = vunpack.c.l.b16 %v1280
        %v4193 = vunpack.c.h.b16 %v1280
        %v4194 = vunpack.c.l.b16 %v1281
        %v4195 = vunpack.c.h.b16 %v1281
        %v4196 = vunpack.c.l.b16 %v1282
        %v4197 = vunpack.c.h.b16 %v1282
        %v4198 = vunpack.c.l.b16 %v1283
        %v4199 = vunpack.c.h.b16 %v1283
        %v4200 = vunpack.c.l.b16 %v1284
        %v4201 = vunpack.c.h.b16 %v1284
        %v4202 = vunpack.c.l.b16 %v1285
        %v4203 = vunpack.c.h.b16 %v1285
        %v4204 = vunpack.c.l.b16 %v1286
        %v4205 = vunpack.c.h.b16 %v1286
        %v4206 = vunpack.c.l.b16 %v1287
        %v4207 = vunpack.c.h.b16 %v1287
        %v4208 = vunpack.c.l.b16 %v1288
        %v4209 = vunpack.c.h.b16 %v1288
        %v4210 = vunpack.c.l.b16 %v1289
        %v4211 = vunpack.c.h.b16 %v1289
        %v4212 = vunpack.c.l.b16 %v1290
        %v4213 = vunpack.c.h.b16 %v1290
        %v4214 = vunpack.c.l.b16 %v1291
        %v4215 = vunpack.c.h.b16 %v1291
        %v4216 = vunpack.c.l.b16 %v1292
        %v4217 = vunpack.c.h.b16 %v1292
        %v4218 = vunpack.c.l.b16 %v1293
        %v4219 = vunpack.c.h.b16 %v1293
        %v4220 = vunpack.c.l.b16 %v1294
        %v4221 = vunpack.c.h.b16 %v1294
        %v4222 = vunpack.c.l.b16 %v1295
        %v4223 = vunpack.c.h.b16 %v1295
        %v4224 = vunpack.c.l.b16 %v1296
        %v4225 = vunpack.c.h.b16 %v1296
        %v4226 = vunpack.c.l.b16 %v1297
        %v4227 = vunpack.c.h.b16 %v1297
        %v4228 = vunpack.c.l.b16 %v1298
        %v4229 = vunpack.c.h.b16 %v1298
        %v4230 = vunpack.c.l.b16 %v1299
        %v4231 = vunpack.c.h.b16 %v1299
        %v4232 = vunpack.c.l.b16 %v1300
        %v4233 = vunpack.c.h.b16 %v1300
        %v4234 = vunpack.c.l.b16 %v1301
        %v4235 = vunpack.c.h.b16 %v1301
        %v4236 = vunpack.c.l.b16 %v1302
        %v4237 = vunpack.c.h.b16 %v1302
        %v4238 = vunpack.c.l.b16 %v1303
        %v4239 = vunpack.c.h.b16 %v1303
        %v4240 = vunpack.c.l.b16 %v1304
        %v4241 = vunpack.c.h.b16 %v1304
        %v4242 = vunpack.c.l.b16 %v1305
        %v4243 = vunpack.c.h.b16 %v1305
        %v4244 = vunpack.c.l.b16 %v1306
        %v4245 = vunpack.c.h.b16 %v1306
        %v4246 = vunpack.c.l.b16 %v1307
        %v4247 = vunpack.c.h.b16 %v1307
        %v4248 = vunpack.c.l.b16 %v1308
        %v4249 = vunpack.c.h.b16 %v1308
        %v4250 = vunpack.c.l.b16 %v1309
        %v4251 = vunpack.c.h.b16 %v1309
        %v4252 = vunpack.c.l.b16 %v1310
        %v4253 = vunpack.c.h.b16 %v1310
        %v4254 = vunpack.c.l.b16 %v1311
        %v4255 = vunpack.c.h.b16 %v1311
        %v4256 = vunpack.c.l.b16 %v1312
        %v4257 = vunpack.c.h.b16 %v1312
        %v4258 = vunpack.c.l.b16 %v1313
        %v4259 = vunpack.c.h.b16 %v1313
        %v4260 = vunpack.c.l.b16 %v1314
        %v4261 = vunpack.c.h.b16 %v1314
        %v4262 = vunpack.c.l.b16 %v1315
        %v4263 = vunpack.c.h.b16 %v1315
        %v4264 = vunpack.c.l.b16 %v1316
        %v4265 = vunpack.c.h.b16 %v1316
        %v4266 = vunpack.c.l.b16 %v1317
        %v4267 = vunpack.c.h.b16 %v1317
        %v4268 = vunpack.c.l.b16 %v1318
        %v4269 = vunpack.c.h.b16 %v1318
        %v4270 = vunpack.c.l.b16 %v1319
        %v4271 = vunpack.c.h.b16 %v1319
        %v4272 = vunpack.c.l.b16 %v1320
        %v4273 = vunpack.c.h.b16 %v1320
        %v4274 = vunpack.c.l.b16 %v1321
        %v4275 = vunpack.c.h.b16 %v1321
        %v4276 = vunpack.c.l.b16 %v1322
        %v4277 = vunpack.c.h.b16 %v1322
        %v4278 = vunpack.c.l.b16 %v1323
        %v4279 = vunpack.c.h.b16 %v1323
        %v4280 = vunpack.c.l.b16 %v1324
        %v4281 = vunpack.c.h.b16 %v1324
        %v4282 = vunpack.c.l.b16 %v1325
        %v4283 = vunpack.c.h.b16 %v1325
        %v4284 = vunpack.c.l.b16 %v1326
        %v4285 = vunpack.c.h.b16 %v1326
        %v4286 = vunpack.c.l.b16 %v1327
        %v4287 = vunpack.c.h.b16 %v1327
        %v4288 = vunpack.c.l.b16 %v1328
        %v4289 = vunpack.c.h.b16 %v1328
        %v4290 = vunpack.c.l.b16 %v1329
        %v4291 = vunpack.c.h.b16 %v1329
        %v4292 = vunpack.c.l.b16 %v1330
        %v4293 = vunpack.c.h.b16 %v1330
        %v4294 = vunpack.c.l.b16 %v1331
        %v4295 = vunpack.c.h.b16 %v1331
        %v4296 = vunpack.c.l.b16 %v1332
        %v4297 = vunpack.c.h.b16 %v1332
        %v4298 = vunpack.c.l.b16 %v1333
        %v4299 = vunpack.c.h.b16 %v1333
        %v4300 = vunpack.c.l.b16 %v1334
        %v4301 = vunpack.c.h.b16 %v1334
        %v4302 = vunpack.c.l.b16 %v1335
        %v4303 = vunpack.c.h.b16 %v1335
        %v4304 = vunpack.c.l.b16 %v1336
        %v4305 = vunpack.c.h.b16 %v1336
        %v4306 = vunpack.c.l.b16 %v1337
        %v4307 = vunpack.c.h.b16 %v1337
        %v4308 = vunpack.c.l.b16 %v1338
        %v4309 = vunpack.c.h.b16 %v1338
        %v4310 = vunpack.c.l.b16 %v1339
        %v4311 = vunpack.c.h.b16 %v1339
        %v4312 = vunpack.c.l.b16 %v1340
        %v4313 = vunpack.c.h.b16 %v1340
        %v4314 = vunpack.c.l.b16 %v1341
        %v4315 = vunpack.c.h.b16 %v1341
        %v4316 = vunpack.c.l.b16 %v1342
        %v4317 = vunpack.c.h.b16 %v1342
        %v4318 = vunpack.c.l.b16 %v1343
        %v4319 = vunpack.c.h.b16 %v1343
        %v4320 = vunpack.c.l.b16 %v1344
        %v4321 = vunpack.c.h.b16 %v1344
        %v4322 = vunpack.c.l.b16 %v1345
        %v4323 = vunpack.c.h.b16 %v1345
        %v4324 = vunpack.c.l.b16 %v1346
        %v4325 = vunpack.c.h.b16 %v1346
        %v4326 = vunpack.c.l.b16 %v1347
        %v4327 = vunpack.c.h.b16 %v1347
        %v4328 = vunpack.c.l.b16 %v1348
        %v4329 = vunpack.c.h.b16 %v1348
        %v4330 = vunpack.c.l.b16 %v1349
        %v4331 = vunpack.c.h.b16 %v1349
        %v4332 = vunpack.c.l.b16 %v1350
        %v4333 = vunpack.c.h.b16 %v1350
        %v4334 = vunpack.c.l.b16 %v1351
        %v4335 = vunpack.c.h.b16 %v1351
        %v4336 = vunpack.c.l.b16 %v1352
        %v4337 = vunpack.c.h.b16 %v1352
        %v4338 = vunpack.c.l.b16 %v1353
        %v4339 = vunpack.c.h.b16 %v1353
        %v4340 = vunpack.c.l.b16 %v1354
        %v4341 = vunpack.c.h.b16 %v1354
        %v4342 = vunpack.c.l.b16 %v1355
        %v4343 = vunpack.c.h.b16 %v1355
        %v4344 = vunpack.c.l.b16 %v1356
        %v4345 = vunpack.c.h.b16 %v1356
        %v4346 = vunpack.c.l.b16 %v1357
        %v4347 = vunpack.c.h.b16 %v1357
        %v4348 = vunpack.c.l.b16 %v1358
        %v4349 = vunpack.c.h.b16 %v1358
        %v4350 = vunpack.c.l.b16 %v1359
        %v4351 = vunpack.c.h.b16 %v1359
        %v4352 = vunpack.c.l.b16 %v1360
        %v4353 = vunpack.c.h.b16 %v1360
        %v4354 = vunpack.c.l.b16 %v1361
        %v4355 = vunpack.c.h.b16 %v1361
        %v4356 = vunpack.c.l.b16 %v1362
        %v4357 = vunpack.c.h.b16 %v1362
        %v4358 = vunpack.c.l.b16 %v1363
        %v4359 = vunpack.c.h.b16 %v1363
        %v4360 = vunpack.c.l.b16 %v1364
        %v4361 = vunpack.c.h.b16 %v1364
        %v4362 = vunpack.c.l.b16 %v1365
        %v4363 = vunpack.c.h.b16 %v1365
        %v4364 = vunpack.c.l.b16 %v1366
        %v4365 = vunpack.c.h.b16 %v1366
        %v4366 = vunpack.c.l.b16 %v1367
        %v4367 = vunpack.c.h.b16 %v1367
        %v4368 = vunpack.c.l.b16 %v1368
        %v4369 = vunpack.c.h.b16 %v1368
        %v4370 = vunpack.c.l.b16 %v1369
        %v4371 = vunpack.c.h.b16 %v1369
        %v4372 = vunpack.c.l.b16 %v1370
        %v4373 = vunpack.c.h.b16 %v1370
        %v4374 = vunpack.c.l.b16 %v1371
        %v4375 = vunpack.c.h.b16 %v1371
        %v4376 = vunpack.c.l.b16 %v1372
        %v4377 = vunpack.c.h.b16 %v1372
        %v4378 = vunpack.c.l.b16 %v1373
        %v4379 = vunpack.c.h.b16 %v1373
        %v4380 = vunpack.c.l.b16 %v1374
        %v4381 = vunpack.c.h.b16 %v1374
        %v4382 = vunpack.c.l.b16 %v1375
        %v4383 = vunpack.c.h.b16 %v1375
        %v4384 = vunpack.c.l.b16 %v1376
        %v4385 = vunpack.c.h.b16 %v1376
        %v4386 = vunpack.c.l.b16 %v1377
        %v4387 = vunpack.c.h.b16 %v1377
        %v4388 = vunpack.c.l.b16 %v1378
        %v4389 = vunpack.c.h.b16 %v1378
        %v4390 = vunpack.c.l.b16 %v1379
        %v4391 = vunpack.c.h.b16 %v1379
        %v4392 = vunpack.c.l.b16 %v1380
        %v4393 = vunpack.c.h.b16 %v1380
        %v4394 = vunpack.c.l.b16 %v1381
        %v4395 = vunpack.c.h.b16 %v1381
        %v4396 = vunpack.c.l.b16 %v1382
        %v4397 = vunpack.c.h.b16 %v1382
        %v4398 = vunpack.c.l.b16 %v1383
        %v4399 = vunpack.c.h.b16 %v1383
        %v4400 = vunpack.c.l.b16 %v1384
        %v4401 = vunpack.c.h.b16 %v1384
        %v4402 = vunpack.c.l.b16 %v1385
        %v4403 = vunpack.c.h.b16 %v1385
        %v4404 = vunpack.c.l.b16 %v1386
        %v4405 = vunpack.c.h.b16 %v1386
        %v4406 = vunpack.c.l.b16 %v1387
        %v4407 = vunpack.c.h.b16 %v1387
        %v4408 = vunpack.c.l.b16 %v1388
        %v4409 = vunpack.c.h.b16 %v1388
        %v4410 = vunpack.c.l.b16 %v1389
        %v4411 = vunpack.c.h.b16 %v1389
        %v4412 = vunpack.c.l.b16 %v1390
        %v4413 = vunpack.c.h.b16 %v1390
        %v4414 = vunpack.c.l.b16 %v1391
        %v4415 = vunpack.c.h.b16 %v1391
        %v4416 = vunpack.c.l.b16 %v1392
        %v4417 = vunpack.c.h.b16 %v1392
        %v4418 = vunpack.c.l.b16 %v1393
        %v4419 = vunpack.c.h.b16 %v1393
        %v4420 = vunpack.c.l.b16 %v1394
        %v4421 = vunpack.c.h.b16 %v1394
        %v4422 = vunpack.c.l.b16 %v1395
        %v4423 = vunpack.c.h.b16 %v1395
        %v4424 = vunpack.c.l.b16 %v1396
        %v4425 = vunpack.c.h.b16 %v1396
        %v4426 = vunpack.c.l.b16 %v1397
        %v4427 = vunpack.c.h.b16 %v1397
        %v4428 = vunpack.c.l.b16 %v1398
        %v4429 = vunpack.c.h.b16 %v1398
        %v4430 = vunpack.c.l.b16 %v1399
        %v4431 = vunpack.c.h.b16 %v1399
        %v4432 = vunpack.c.l.b16 %v1400
        %v4433 = vunpack.c.h.b16 %v1400
        %v4434 = vunpack.c.l.b16 %v1401
        %v4435 = vunpack.c.h.b16 %v1401
        %v4436 = vunpack.c.l.b16 %v1402
        %v4437 = vunpack.c.h.b16 %v1402
        %v4438 = vunpack.c.l.b16 %v1403
        %v4439 = vunpack.c.h.b16 %v1403
        %v4440 = vunpack.c.l.b16 %v1404
        %v4441 = vunpack.c.h.b16 %v1404
        %v4442 = vunpack.c.l.b16 %v1405
        %v4443 = vunpack.c.h.b16 %v1405
        %v4444 = vunpack.c.l.b16 %v1406
        %v4445 = vunpack.c.h.b16 %v1406
        %v4446 = vunpack.c.l.b16 %v1407
        %v4447 = vunpack.c.h.b16 %v1407
        %v4448 = vunpack.c.l.b16 %v1408
        %v4449 = vunpack.c.h.b16 %v1408
        %v4450 = vunpack.c.l.b16 %v1409
        %v4451 = vunpack.c.h.b16 %v1409
        %v4452 = vunpack.c.l.b16 %v1410
        %v4453 = vunpack.c.h.b16 %v1410
        %v4454 = vunpack.c.l.b16 %v1411
        %v4455 = vunpack.c.h.b16 %v1411
        %v4456 = vunpack.c.l.b16 %v1412
        %v4457 = vunpack.c.h.b16 %v1412
        %v4458 = vunpack.c.l.b16 %v1413
        %v4459 = vunpack.c.h.b16 %v1413
        %v4460 = vunpack.c.l.b16 %v1414
        %v4461 = vunpack.c.h.b16 %v1414
        %v4462 = vunpack.c.l.b16 %v1415
        %v4463 = vunpack.c.h.b16 %v1415
        %v4464 = vunpack.c.l.b16 %v1416
        %v4465 = vunpack.c.h.b16 %v1416
        %v4466 = vunpack.c.l.b16 %v1417
        %v4467 = vunpack.c.h.b16 %v1417
        %v4468 = vunpack.c.l.b16 %v1418
        %v4469 = vunpack.c.h.b16 %v1418
        %v4470 = vunpack.c.l.b16 %v1419
        %v4471 = vunpack.c.h.b16 %v1419
        %v4472 = vunpack.c.l.b16 %v1420
        %v4473 = vunpack.c.h.b16 %v1420
        %v4474 = vunpack.c.l.b16 %v1421
        %v4475 = vunpack.c.h.b16 %v1421
        %v4476 = vunpack.c.l.b16 %v1422
        %v4477 = vunpack.c.h.b16 %v1422
        %v4478 = vunpack.c.l.b16 %v1423
        %v4479 = vunpack.c.h.b16 %v1423
        %v4480 = vunpack.c.l.b16 %v1424
        %v4481 = vunpack.c.h.b16 %v1424
        %v4482 = vunpack.c.l.b16 %v1425
        %v4483 = vunpack.c.h.b16 %v1425
        %v4484 = vunpack.c.l.b16 %v1426
        %v4485 = vunpack.c.h.b16 %v1426
        %v4486 = vunpack.c.l.b16 %v1427
        %v4487 = vunpack.c.h.b16 %v1427
        %v4488 = vunpack.c.l.b16 %v1428
        %v4489 = vunpack.c.h.b16 %v1428
        %v4490 = vunpack.c.l.b16 %v1429
        %v4491 = vunpack.c.h.b16 %v1429
        %v4492 = vunpack.c.l.b16 %v1430
        %v4493 = vunpack.c.h.b16 %v1430
        %v4494 = vunpack.c.l.b16 %v1431
        %v4495 = vunpack.c.h.b16 %v1431
        %v4496 = vunpack.c.l.b16 %v1432
        %v4497 = vunpack.c.h.b16 %v1432
        %v4498 = vunpack.c.l.b16 %v1433
        %v4499 = vunpack.c.h.b16 %v1433
        %v4500 = vunpack.c.l.b16 %v1434
        %v4501 = vunpack.c.h.b16 %v1434
        %v4502 = vunpack.c.l.b16 %v1435
        %v4503 = vunpack.c.h.b16 %v1435
        %v4504 = vunpack.c.l.b16 %v1436
        %v4505 = vunpack.c.h.b16 %v1436
        %v4506 = vunpack.c.l.b16 %v1437
        %v4507 = vunpack.c.h.b16 %v1437
        %v4508 = vunpack.c.l.b16 %v1438
        %v4509 = vunpack.c.h.b16 %v1438
        %v4510 = vunpack.c.l.b16 %v1439
        %v4511 = vunpack.c.h.b16 %v1439
        %v4512 = vunpack.c.l.b16 %v1440
        %v4513 = vunpack.c.h.b16 %v1440
        %v4514 = vunpack.c.l.b16 %v1441
        %v4515 = vunpack.c.h.b16 %v1441
        %v4516 = vunpack.c.l.b16 %v1442
        %v4517 = vunpack.c.h.b16 %v1442
        %v4518 = vunpack.c.l.b16 %v1443
        %v4519 = vunpack.c.h.b16 %v1443
        %v4520 = vunpack.c.l.b16 %v1444
        %v4521 = vunpack.c.h.b16 %v1444
        %v4522 = vunpack.c.l.b16 %v1445
        %v4523 = vunpack.c.h.b16 %v1445
        %v4524 = vunpack.c.l.b16 %v1446
        %v4525 = vunpack.c.h.b16 %v1446
        %v4526 = vunpack.c.l.b16 %v1447
        %v4527 = vunpack.c.h.b16 %v1447
        %v4528 = vunpack.c.l.b16 %v1448
        %v4529 = vunpack.c.h.b16 %v1448
        %v4530 = vunpack.c.l.b16 %v1449
        %v4531 = vunpack.c.h.b16 %v1449
        %v4532 = vunpack.c.l.b16 %v1450
        %v4533 = vunpack.c.h.b16 %v1450
        %v4534 = vunpack.c.l.b16 %v1451
        %v4535 = vunpack.c.h.b16 %v1451
        %v4536 = vunpack.c.l.b16 %v1452
        %v4537 = vunpack.c.h.b16 %v1452
        %v4538 = vunpack.c.l.b16 %v1453
        %v4539 = vunpack.c.h.b16 %v1453
        %v4540 = vunpack.c.l.b16 %v1454
        %v4541 = vunpack.c.h.b16 %v1454
        %v4542 = vunpack.c.l.b16 %v1455
        %v4543 = vunpack.c.h.b16 %v1455
        %v4544 = vunpack.c.l.b16 %v1456
        %v4545 = vunpack.c.h.b16 %v1456
        %v4546 = vunpack.c.l.b16 %v1457
        %v4547 = vunpack.c.h.b16 %v1457
        %v4548 = vunpack.c.l.b16 %v1458
        %v4549 = vunpack.c.h.b16 %v1458
        %v4550 = vunpack.c.l.b16 %v1459
        %v4551 = vunpack.c.h.b16 %v1459
        %v4552 = vunpack.c.l.b16 %v1460
        %v4553 = vunpack.c.h.b16 %v1460
        %v4554 = vunpack.c.l.b16 %v1461
        %v4555 = vunpack.c.h.b16 %v1461
        %v4556 = vunpack.c.l.b16 %v1462
        %v4557 = vunpack.c.h.b16 %v1462
        %v4558 = vunpack.c.l.b16 %v1463
        %v4559 = vunpack.c.h.b16 %v1463
        %v4560 = vunpack.c.l.b16 %v1464
        %v4561 = vunpack.c.h.b16 %v1464
        %v4562 = vunpack.c.l.b16 %v1465
        %v4563 = vunpack.c.h.b16 %v1465
        %v4564 = vunpack.c.l.b16 %v1466
        %v4565 = vunpack.c.h.b16 %v1466
        %v4566 = vunpack.c.l.b16 %v1467
        %v4567 = vunpack.c.h.b16 %v1467
        %v4568 = vunpack.c.l.b16 %v1468
        %v4569 = vunpack.c.h.b16 %v1468
        %v4570 = vunpack.c.l.b16 %v1469
        %v4571 = vunpack.c.h.b16 %v1469
        %v4572 = vunpack.c.l.b16 %v1470
        %v4573 = vunpack.c.h.b16 %v1470
        %v4574 = vunpack.c.l.b16 %v1471
        %v4575 = vunpack.c.h.b16 %v1471
        %v4576 = vunpack.c.l.b16 %v1472
        %v4577 = vunpack.c.h.b16 %v1472
        %v4578 = vunpack.c.l.b16 %v1473
        %v4579 = vunpack.c.h.b16 %v1473
        %v4580 = vunpack.c.l.b16 %v1474
        %v4581 = vunpack.c.h.b16 %v1474
        %v4582 = vunpack.c.l.b16 %v1475
        %v4583 = vunpack.c.h.b16 %v1475
        %v4584 = vunpack.c.l.b16 %v1476
        %v4585 = vunpack.c.h.b16 %v1476
        %v4586 = vunpack.c.l.b16 %v1477
        %v4587 = vunpack.c.h.b16 %v1477
        %v4588 = vunpack.c.l.b16 %v1478
        %v4589 = vunpack.c.h.b16 %v1478
        %v4590 = vunpack.c.l.b16 %v1479
        %v4591 = vunpack.c.h.b16 %v1479
        %v4592 = vunpack.c.l.b16 %v1480
        %v4593 = vunpack.c.h.b16 %v1480
        %v4594 = vunpack.c.l.b16 %v1481
        %v4595 = vunpack.c.h.b16 %v1481
        %v4596 = vunpack.c.l.b16 %v1482
        %v4597 = vunpack.c.h.b16 %v1482
        %v4598 = vunpack.c.l.b16 %v1483
        %v4599 = vunpack.c.h.b16 %v1483
        %v4600 = vunpack.c.l.b16 %v1484
        %v4601 = vunpack.c.h.b16 %v1484
        %v4602 = vunpack.c.l.b16 %v1485
        %v4603 = vunpack.c.h.b16 %v1485
        %v4604 = vunpack.c.l.b16 %v1486
        %v4605 = vunpack.c.h.b16 %v1486
        %v4606 = vunpack.c.l.b16 %v1487
        %v4607 = vunpack.c.h.b16 %v1487
        %v4608 = vunpack.c.l.b16 %v1488
        %v4609 = vunpack.c.h.b16 %v1488
        %v4610 = vunpack.c.l.b16 %v1489
        %v4611 = vunpack.c.h.b16 %v1489
        %v4612 = vunpack.c.l.b16 %v1490
        %v4613 = vunpack.c.h.b16 %v1490
        %v4614 = vunpack.c.l.b16 %v1491
        %v4615 = vunpack.c.h.b16 %v1491
        %v4616 = vunpack.c.l.b16 %v1492
        %v4617 = vunpack.c.h.b16 %v1492
        %v4618 = vunpack.c.l.b16 %v1493
        %v4619 = vunpack.c.h.b16 %v1493
        %v4620 = vunpack.c.l.b16 %v1494
        %v4621 = vunpack.c.h.b16 %v1494
        %v4622 = vunpack.c.l.b16 %v1495
        %v4623 = vunpack.c.h.b16 %v1495
        %v4624 = vunpack.c.l.b16 %v1496
        %v4625 = vunpack.c.h.b16 %v1496
        %v4626 = vunpack.c.l.b16 %v1497
        %v4627 = vunpack.c.h.b16 %v1497
        %v4628 = vunpack.c.l.b16 %v1498
        %v4629 = vunpack.c.h.b16 %v1498
        %v4630 = vunpack.c.l.b16 %v1499
        %v4631 = vunpack.c.h.b16 %v1499
        %v4632 = vunpack.c.l.b16 %v1500
        %v4633 = vunpack.c.h.b16 %v1500
        %v4634 = vunpack.c.l.b16 %v1501
        %v4635 = vunpack.c.h.b16 %v1501
        %v4636 = vunpack.c.l.b16 %v1502
        %v4637 = vunpack.c.h.b16 %v1502
        %v4638 = vunpack.c.l.b16 %v1503
        %v4639 = vunpack.c.h.b16 %v1503
        %v4640 = vunpack.c.l.b16 %v1504
        %v4641 = vunpack.c.h.b16 %v1504
        %v4642 = vunpack.c.l.b16 %v1505
        %v4643 = vunpack.c.h.b16 %v1505
        %v4644 = vunpack.c.l.b16 %v1506
        %v4645 = vunpack.c.h.b16 %v1506
        %v4646 = vunpack.c.l.b16 %v1507
        %v4647 = vunpack.c.h.b16 %v1507
        %v4648 = vunpack.c.l.b16 %v1508
        %v4649 = vunpack.c.h.b16 %v1508
        %v4650 = vunpack.c.l.b16 %v1509
        %v4651 = vunpack.c.h.b16 %v1509
        %v4652 = vunpack.c.l.b16 %v1510
        %v4653 = vunpack.c.h.b16 %v1510
        %v4654 = vunpack.c.l.b16 %v1511
        %v4655 = vunpack.c.h.b16 %v1511
        %v4656 = vunpack.c.l.b16 %v1512
        %v4657 = vunpack.c.h.b16 %v1512
        %v4658 = vunpack.c.l.b16 %v1513
        %v4659 = vunpack.c.h.b16 %v1513
        %v4660 = vunpack.c.l.b16 %v1514
        %v4661 = vunpack.c.h.b16 %v1514
        %v4662 = vunpack.c.l.b16 %v1515
        %v4663 = vunpack.c.h.b16 %v1515
        %v4664 = vunpack.c.l.b16 %v1516
        %v4665 = vunpack.c.h.b16 %v1516
        %v4666 = vunpack.c.l.b16 %v1517
        %v4667 = vunpack.c.h.b16 %v1517
        %v4668 = vunpack.c.l.b16 %v1518
        %v4669 = vunpack.c.h.b16 %v1518
        %v4670 = vunpack.c.l.b16 %v1519
        %v4671 = vunpack.c.h.b16 %v1519
        %v4672 = vpack.c.b16 %v2632, %v2624
        %v4673 = vpack.c.b16 %v2633, %v2625
        %v4674 = vpack.c.b16 %v2634, %v2626
        %v4675 = vpack.c.b16 %v2635, %v2627
        %v4676 = vpack.c.b16 %v2636, %v2628
        %v4677 = vpack.c.b16 %v2637, %v2629
        %v4678 = vpack.c.b16 %v2638, %v2630
        %v4679 = vpack.c.b16 %v2639, %v2631
        %v4680 = vpack.c.b16 %v2648, %v2640
        %v4681 = vpack.c.b16 %v2649, %v2641
        %v4682 = vpack.c.b16 %v2650, %v2642
        %v4683 = vpack.c.b16 %v2651, %v2643
        %v4684 = vpack.c.b16 %v2652, %v2644
        %v4685 = vpack.c.b16 %v2653, %v2645
        %v4686 = vpack.c.b16 %v2654, %v2646
        %v4687 = vpack.c.b16 %v2655, %v2647
        %v4688 = vpack.c.b16 %v2664, %v2656
        %v4689 = vpack.c.b16 %v2665, %v2657
        %v4690 = vpack.c.b16 %v2666, %v2658
        %v4691 = vpack.c.b16 %v2667, %v2659
        %v4692 = vpack.c.b16 %v2668, %v2660
        %v4693 = vpack.c.b16 %v2669, %v2661
        %v4694 = vpack.c.b16 %v2670, %v2662
        %v4695 = vpack.c.b16 %v2671, %v2663
        %v4696 = vpack.c.b16 %v2680, %v2672
        %v4697 = vpack.c.b16 %v2681, %v2673
        %v4698 = vpack.c.b16 %v2682, %v2674
        %v4699 = vpack.c.b16 %v2683, %v2675
        %v4700 = vpack.c.b16 %v2684, %v2676
        %v4701 = vpack.c.b16 %v2685, %v2677
        %v4702 = vpack.c.b16 %v2686, %v2678
        %v4703 = vpack.c.b16 %v2687, %v2679
        %v4704 = vpack.c.b16 %v2696, %v2688
        %v4705 = vpack.c.b16 %v2697, %v2689
        %v4706 = vpack.c.b16 %v2698, %v2690
        %v4707 = vpack.c.b16 %v2699, %v2691
        %v4708 = vpack.c.b16 %v2700, %v2692
        %v4709 = vpack.c.b16 %v2701, %v2693
        %v4710 = vpack.c.b16 %v2702, %v2694
        %v4711 = vpack.c.b16 %v2703, %v2695
        %v4712 = vpack.c.b16 %v2712, %v2704
        %v4713 = vpack.c.b16 %v2713, %v2705
        %v4714 = vpack.c.b16 %v2714, %v2706
        %v4715 = vpack.c.b16 %v2715, %v2707
        %v4716 = vpack.c.b16 %v2716, %v2708
        %v4717 = vpack.c.b16 %v2717, %v2709
        %v4718 = vpack.c.b16 %v2718, %v2710
        %v4719 = vpack.c.b16 %v2719, %v2711
        %v4720 = vpack.c.b16 %v2728, %v2720
        %v4721 = vpack.c.b16 %v2729, %v2721
        %v4722 = vpack.c.b16 %v2730, %v2722
        %v4723 = vpack.c.b16 %v2731, %v2723
        %v4724 = vpack.c.b16 %v2732, %v2724
        %v4725 = vpack.c.b16 %v2733, %v2725
        %v4726 = vpack.c.b16 %v2734, %v2726
        %v4727 = vpack.c.b16 %v2735, %v2727
        %v4728 = vpack.c.b16 %v2744, %v2736
        %v4729 = vpack.c.b16 %v2745, %v2737
        %v4730 = vpack.c.b16 %v2746, %v2738
        %v4731 = vpack.c.b16 %v2747, %v2739
        %v4732 = vpack.c.b16 %v2748, %v2740
        %v4733 = vpack.c.b16 %v2749, %v2741
        %v4734 = vpack.c.b16 %v2750, %v2742
        %v4735 = vpack.c.b16 %v2751, %v2743
        %v4736 = vpack.c.b16 %v2760, %v2752
        %v4737 = vpack.c.b16 %v2761, %v2753
        %v4738 = vpack.c.b16 %v2762, %v2754
        %v4739 = vpack.c.b16 %v2763, %v2755
        %v4740 = vpack.c.b16 %v2764, %v2756
        %v4741 = vpack.c.b16 %v2765, %v2757
        %v4742 = vpack.c.b16 %v2766, %v2758
        %v4743 = vpack.c.b16 %v2767, %v2759
        %v4744 = vpack.c.b16 %v2776, %v2768
        %v4745 = vpack.c.b16 %v2777, %v2769
        %v4746 = vpack.c.b16 %v2778, %v2770
        %v4747 = vpack.c.b16 %v2779, %v2771
        %v4748 = vpack.c.b16 %v2780, %v2772
        %v4749 = vpack.c.b16 %v2781, %v2773
        %v4750 = vpack.c.b16 %v2782, %v2774
        %v4751 = vpack.c.b16 %v2783, %v2775
        %v4752 = vpack.c.b16 %v2792, %v2784
        %v4753 = vpack.c.b16 %v2793, %v2785
        %v4754 = vpack.c.b16 %v2794, %v2786
        %v4755 = vpack.c.b16 %v2795, %v2787
        %v4756 = vpack.c.b16 %v2796, %v2788
        %v4757 = vpack.c.b16 %v2797, %v2789
        %v4758 = vpack.c.b16 %v2798, %v2790
        %v4759 = vpack.c.b16 %v2799, %v2791
        %v4760 = vpack.c.b16 %v2808, %v2800
        %v4761 = vpack.c.b16 %v2809, %v2801
        %v4762 = vpack.c.b16 %v2810, %v2802
        %v4763 = vpack.c.b16 %v2811, %v2803
        %v4764 = vpack.c.b16 %v2812, %v2804
        %v4765 = vpack.c.b16 %v2813, %v2805
        %v4766 = vpack.c.b16 %v2814, %v2806
        %v4767 = vpack.c.b16 %v2815, %v2807
        %v4768 = vpack.c.b16 %v2824, %v2816
        %v4769 = vpack.c.b16 %v2825, %v2817
        %v4770 = vpack.c.b16 %v2826, %v2818
        %v4771 = vpack.c.b16 %v2827, %v2819
        %v4772 = vpack.c.b16 %v2828, %v2820
        %v4773 = vpack.c.b16 %v2829, %v2821
        %v4774 = vpack.c.b16 %v2830, %v2822
        %v4775 = vpack.c.b16 %v2831, %v2823
        %v4776 = vpack.c.b16 %v2840, %v2832
        %v4777 = vpack.c.b16 %v2841, %v2833
        %v4778 = vpack.c.b16 %v2842, %v2834
        %v4779 = vpack.c.b16 %v2843, %v2835
        %v4780 = vpack.c.b16 %v2844, %v2836
        %v4781 = vpack.c.b16 %v2845, %v2837
        %v4782 = vpack.c.b16 %v2846, %v2838
        %v4783 = vpack.c.b16 %v2847, %v2839
        %v4784 = vpack.c.b16 %v2856, %v2848
        %v4785 = vpack.c.b16 %v2857, %v2849
        %v4786 = vpack.c.b16 %v2858, %v2850
        %v4787 = vpack.c.b16 %v2859, %v2851
        %v4788 = vpack.c.b16 %v2860, %v2852
        %v4789 = vpack.c.b16 %v2861, %v2853
        %v4790 = vpack.c.b16 %v2862, %v2854
        %v4791 = vpack.c.b16 %v2863, %v2855
        %v4792 = vpack.c.b16 %v2872, %v2864
        %v4793 = vpack.c.b16 %v2873, %v2865
        %v4794 = vpack.c.b16 %v2874, %v2866
        %v4795 = vpack.c.b16 %v2875, %v2867
        %v4796 = vpack.c.b16 %v2876, %v2868
        %v4797 = vpack.c.b16 %v2877, %v2869
        %v4798 = vpack.c.b16 %v2878, %v2870
        %v4799 = vpack.c.b16 %v2879, %v2871
        %v4800 = vpack.c.b16 %v2888, %v2880
        %v4801 = vpack.c.b16 %v2889, %v2881
        %v4802 = vpack.c.b16 %v2890, %v2882
        %v4803 = vpack.c.b16 %v2891, %v2883
        %v4804 = vpack.c.b16 %v2892, %v2884
        %v4805 = vpack.c.b16 %v2893, %v2885
        %v4806 = vpack.c.b16 %v2894, %v2886
        %v4807 = vpack.c.b16 %v2895, %v2887
        %v4808 = vpack.c.b16 %v2904, %v2896
        %v4809 = vpack.c.b16 %v2905, %v2897
        %v4810 = vpack.c.b16 %v2906, %v2898
        %v4811 = vpack.c.b16 %v2907, %v2899
        %v4812 = vpack.c.b16 %v2908, %v2900
        %v4813 = vpack.c.b16 %v2909, %v2901
        %v4814 = vpack.c.b16 %v2910, %v2902
        %v4815 = vpack.c.b16 %v2911, %v2903
        %v4816 = vpack.c.b16 %v2920, %v2912
        %v4817 = vpack.c.b16 %v2921, %v2913
        %v4818 = vpack.c.b16 %v2922, %v2914
        %v4819 = vpack.c.b16 %v2923, %v2915
        %v4820 = vpack.c.b16 %v2924, %v2916
        %v4821 = vpack.c.b16 %v2925, %v2917
        %v4822 = vpack.c.b16 %v2926, %v2918
        %v4823 = vpack.c.b16 %v2927, %v2919
        %v4824 = vpack.c.b16 %v2936, %v2928
        %v4825 = vpack.c.b16 %v2937, %v2929
        %v4826 = vpack.c.b16 %v2938, %v2930
        %v4827 = vpack.c.b16 %v2939, %v2931
        %v4828 = vpack.c.b16 %v2940, %v2932
        %v4829 = vpack.c.b16 %v2941, %v2933
        %v4830 = vpack.c.b16 %v2942, %v2934
        %v4831 = vpack.c.b16 %v2943, %v2935
        %v4832 = vpack.c.b16 %v2952, %v2944
        %v4833 = vpack.c.b16 %v2953, %v2945
        %v4834 = vpack.c.b16 %v2954, %v2946
        %v4835 = vpack.c.b16 %v2955, %v2947
        %v4836 = vpack.c.b16 %v2956, %v2948
        %v4837 = vpack.c.b16 %v2957, %v2949
        %v4838 = vpack.c.b16 %v2958, %v2950
        %v4839 = vpack.c.b16 %v2959, %v2951
        %v4840 = vpack.c.b16 %v2968, %v2960
        %v4841 = vpack.c.b16 %v2969, %v2961
        %v4842 = vpack.c.b16 %v2970, %v2962
        %v4843 = vpack.c.b16 %v2971, %v2963
        %v4844 = vpack.c.b16 %v2972, %v2964
        %v4845 = vpack.c.b16 %v2973, %v2965
        %v4846 = vpack.c.b16 %v2974, %v2966
        %v4847 = vpack.c.b16 %v2975, %v2967
        %v4848 = vpack.c.b16 %v2984, %v2976
        %v4849 = vpack.c.b16 %v2985, %v2977
        %v4850 = vpack.c.b16 %v2986, %v2978
        %v4851 = vpack.c.b16 %v2987, %v2979
        %v4852 = vpack.c.b16 %v2988, %v2980
        %v4853 = vpack.c.b16 %v2989, %v2981
        %v4854 = vpack.c.b16 %v2990, %v2982
        %v4855 = vpack.c.b16 %v2991, %v2983
        %v4856 = vpack.c.b16 %v3000, %v2992
        %v4857 = vpack.c.b16 %v3001, %v2993
        %v4858 = vpack.c.b16 %v3002, %v2994
        %v4859 = vpack.c.b16 %v3003, %v2995
        %v4860 = vpack.c.b16 %v3004, %v2996
        %v4861 = vpack.c.b16 %v3005, %v2997
        %v4862 = vpack.c.b16 %v3006, %v2998
        %v4863 = vpack.c.b16 %v3007, %v2999
        %v4864 = vpack.c.b16 %v3016, %v3008
        %v4865 = vpack.c.b16 %v3017, %v3009
        %v4866 = vpack.c.b16 %v3018, %v3010
        %v4867 = vpack.c.b16 %v3019, %v3011
        %v4868 = vpack.c.b16 %v3020, %v3012
        %v4869 = vpack.c.b16 %v3021, %v3013
        %v4870 = vpack.c.b16 %v3022, %v3014
        %v4871 = vpack.c.b16 %v3023, %v3015
        %v4872 = vpack.c.b16 %v3032, %v3024
        %v4873 = vpack.c.b16 %v3033, %v3025
        %v4874 = vpack.c.b16 %v3034, %v3026
        %v4875 = vpack.c.b16 %v3035, %v3027
        %v4876 = vpack.c.b16 %v3036, %v3028
        %v4877 = vpack.c.b16 %v3037, %v3029
        %v4878 = vpack.c.b16 %v3038, %v3030
        %v4879 = vpack.c.b16 %v3039, %v3031
        %v4880 = vpack.c.b16 %v3048, %v3040
        %v4881 = vpack.c.b16 %v3049, %v3041
        %v4882 = vpack.c.b16 %v3050, %v3042
        %v4883 = vpack.c.b16 %v3051, %v3043
        %v4884 = vpack.c.b16 %v3052, %v3044
        %v4885 = vpack.c.b16 %v3053, %v3045
        %v4886 = vpack.c.b16 %v3054, %v3046
        %v4887 = vpack.c.b16 %v3055, %v3047
        %v4888 = vpack.c.b16 %v3064, %v3056
        %v4889 = vpack.c.b16 %v3065, %v3057
        %v4890 = vpack.c.b16 %v3066, %v3058
        %v4891 = vpack.c.b16 %v3067, %v3059
        %v4892 = vpack.c.b16 %v3068, %v3060
        %v4893 = vpack.c.b16 %v3069, %v3061
        %v4894 = vpack.c.b16 %v3070, %v3062
        %v4895 = vpack.c.b16 %v3071, %v3063
        %v4896 = vpack.c.b16 %v3080, %v3072
        %v4897 = vpack.c.b16 %v3081, %v3073
        %v4898 = vpack.c.b16 %v3082, %v3074
        %v4899 = vpack.c.b16 %v3083, %v3075
        %v4900 = vpack.c.b16 %v3084, %v3076
        %v4901 = vpack.c.b16 %v3085, %v3077
        %v4902 = vpack.c.b16 %v3086, %v3078
        %v4903 = vpack.c.b16 %v3087, %v3079
        %v4904 = vpack.c.b16 %v3096, %v3088
        %v4905 = vpack.c.b16 %v3097, %v3089
        %v4906 = vpack.c.b16 %v3098, %v3090
        %v4907 = vpack.c.b16 %v3099, %v3091
        %v4908 = vpack.c.b16 %v3100, %v3092
        %v4909 = vpack.c.b16 %v3101, %v3093
        %v4910 = vpack.c.b16 %v3102, %v3094
        %v4911 = vpack.c.b16 %v3103, %v3095
        %v4912 = vpack.c.b16 %v3112, %v3104
        %v4913 = vpack.c.b16 %v3113, %v3105
        %v4914 = vpack.c.b16 %v3114, %v3106
        %v4915 = vpack.c.b16 %v3115, %v3107
        %v4916 = vpack.c.b16 %v3116, %v3108
        %v4917 = vpack.c.b16 %v3117, %v3109
        %v4918 = vpack.c.b16 %v3118, %v3110
        %v4919 = vpack.c.b16 %v3119, %v3111
        %v4920 = vpack.c.b16 %v3128, %v3120
        %v4921 = vpack.c.b16 %v3129, %v3121
        %v4922 = vpack.c.b16 %v3130, %v3122
        %v4923 = vpack.c.b16 %v3131, %v3123
        %v4924 = vpack.c.b16 %v3132, %v3124
        %v4925 = vpack.c.b16 %v3133, %v3125
        %v4926 = vpack.c.b16 %v3134, %v3126
        %v4927 = vpack.c.b16 %v3135, %v3127
        %v4928 = vpack.c.b16 %v3144, %v3136
        %v4929 = vpack.c.b16 %v3145, %v3137
        %v4930 = vpack.c.b16 %v3146, %v3138
        %v4931 = vpack.c.b16 %v3147, %v3139
        %v4932 = vpack.c.b16 %v3148, %v3140
        %v4933 = vpack.c.b16 %v3149, %v3141
        %v4934 = vpack.c.b16 %v3150, %v3142
        %v4935 = vpack.c.b16 %v3151, %v3143
        %v4936 = vpack.c.b16 %v3160, %v3152
        %v4937 = vpack.c.b16 %v3161, %v3153
        %v4938 = vpack.c.b16 %v3162, %v3154
        %v4939 = vpack.c.b16 %v3163, %v3155
        %v4940 = vpack.c.b16 %v3164, %v3156
        %v4941 = vpack.c.b16 %v3165, %v3157
        %v4942 = vpack.c.b16 %v3166, %v3158
        %v4943 = vpack.c.b16 %v3167, %v3159
        %v4944 = vpack.c.b16 %v3176, %v3168
        %v4945 = vpack.c.b16 %v3177, %v3169
        %v4946 = vpack.c.b16 %v3178, %v3170
        %v4947 = vpack.c.b16 %v3179, %v3171
        %v4948 = vpack.c.b16 %v3180, %v3172
        %v4949 = vpack.c.b16 %v3181, %v3173
        %v4950 = vpack.c.b16 %v3182, %v3174
        %v4951 = vpack.c.b16 %v3183, %v3175
        %v4952 = vpack.c.b16 %v3192, %v3184
        %v4953 = vpack.c.b16 %v3193, %v3185
        %v4954 = vpack.c.b16 %v3194, %v3186
        %v4955 = vpack.c.b16 %v3195, %v3187
        %v4956 = vpack.c.b16 %v3196, %v3188
        %v4957 = vpack.c.b16 %v3197, %v3189
        %v4958 = vpack.c.b16 %v3198, %v3190
        %v4959 = vpack.c.b16 %v3199, %v3191
        %v4960 = vpack.c.b16 %v3208, %v3200
        %v4961 = vpack.c.b16 %v3209, %v3201
        %v4962 = vpack.c.b16 %v3210, %v3202
        %v4963 = vpack.c.b16 %v3211, %v3203
        %v4964 = vpack.c.b16 %v3212, %v3204
        %v4965 = vpack.c.b16 %v3213, %v3205
        %v4966 = vpack.c.b16 %v3214, %v3206
        %v4967 = vpack.c.b16 %v3215, %v3207
        %v4968 = vpack.c.b16 %v3224, %v3216
        %v4969 = vpack.c.b16 %v3225, %v3217
        %v4970 = vpack.c.b16 %v3226, %v3218
        %v4971 = vpack.c.b16 %v3227, %v3219
        %v4972 = vpack.c.b16 %v3228, %v3220
        %v4973 = vpack.c.b16 %v3229, %v3221
        %v4974 = vpack.c.b16 %v3230, %v3222
        %v4975 = vpack.c.b16 %v3231, %v3223
        %v4976 = vpack.c.b16 %v3240, %v3232
        %v4977 = vpack.c.b16 %v3241, %v3233
        %v4978 = vpack.c.b16 %v3242, %v3234
        %v4979 = vpack.c.b16 %v3243, %v3235
        %v4980 = vpack.c.b16 %v3244, %v3236
        %v4981 = vpack.c.b16 %v3245, %v3237
        %v4982 = vpack.c.b16 %v3246, %v3238
        %v4983 = vpack.c.b16 %v3247, %v3239
        %v4984 = vpack.c.b16 %v3256, %v3248
        %v4985 = vpack.c.b16 %v3257, %v3249
        %v4986 = vpack.c.b16 %v3258, %v3250
        %v4987 = vpack.c.b16 %v3259, %v3251
        %v4988 = vpack.c.b16 %v3260, %v3252
        %v4989 = vpack.c.b16 %v3261, %v3253
        %v4990 = vpack.c.b16 %v3262, %v3254
        %v4991 = vpack.c.b16 %v3263, %v3255
        %v4992 = vpack.c.b16 %v3272, %v3264
        %v4993 = vpack.c.b16 %v3273, %v3265
        %v4994 = vpack.c.b16 %v3274, %v3266
        %v4995 = vpack.c.b16 %v3275, %v3267
        %v4996 = vpack.c.b16 %v3276, %v3268
        %v4997 = vpack.c.b16 %v3277, %v3269
        %v4998 = vpack.c.b16 %v3278, %v3270
        %v4999 = vpack.c.b16 %v3279, %v3271
        %v5000 = vpack.c.b16 %v3288, %v3280
        %v5001 = vpack.c.b16 %v3289, %v3281
        %v5002 = vpack.c.b16 %v3290, %v3282
        %v5003 = vpack.c.b16 %v3291, %v3283
        %v5004 = vpack.c.b16 %v3292, %v3284
        %v5005 = vpack.c.b16 %v3293, %v3285
        %v5006 = vpack.c.b16 %v3294, %v3286
        %v5007 = vpack.c.b16 %v3295, %v3287
        %v5008 = vpack.c.b16 %v3304, %v3296
        %v5009 = vpack.c.b16 %v3305, %v3297
        %v5010 = vpack.c.b16 %v3306, %v3298
        %v5011 = vpack.c.b16 %v3307, %v3299
        %v5012 = vpack.c.b16 %v3308, %v3300
        %v5013 = vpack.c.b16 %v3309, %v3301
        %v5014 = vpack.c.b16 %v3310, %v3302
        %v5015 = vpack.c.b16 %v3311, %v3303
        %v5016 = vpack.c.b16 %v3320, %v3312
        %v5017 = vpack.c.b16 %v3321, %v3313
        %v5018 = vpack.c.b16 %v3322, %v3314
        %v5019 = vpack.c.b16 %v3323, %v3315
        %v5020 = vpack.c.b16 %v3324, %v3316
        %v5021 = vpack.c.b16 %v3325, %v3317
        %v5022 = vpack.c.b16 %v3326, %v3318
        %v5023 = vpack.c.b16 %v3327, %v3319
        %v5024 = vpack.c.b16 %v3336, %v3328
        %v5025 = vpack.c.b16 %v3337, %v3329
        %v5026 = vpack.c.b16 %v3338, %v3330
        %v5027 = vpack.c.b16 %v3339, %v3331
        %v5028 = vpack.c.b16 %v3340, %v3332
        %v5029 = vpack.c.b16 %v3341, %v3333
        %v5030 = vpack.c.b16 %v3342, %v3334
        %v5031 = vpack.c.b16 %v3343, %v3335
        %v5032 = vpack.c.b16 %v3352, %v3344
        %v5033 = vpack.c.b16 %v3353, %v3345
        %v5034 = vpack.c.b16 %v3354, %v3346
        %v5035 = vpack.c.b16 %v3355, %v3347
        %v5036 = vpack.c.b16 %v3356, %v3348
        %v5037 = vpack.c.b16 %v3357, %v3349
        %v5038 = vpack.c.b16 %v3358, %v3350
        %v5039 = vpack.c.b16 %v3359, %v3351
        %v5040 = vpack.c.b16 %v3368, %v3360
        %v5041 = vpack.c.b16 %v3369, %v3361
        %v5042 = vpack.c.b16 %v3370, %v3362
        %v5043 = vpack.c.b16 %v3371, %v3363
        %v5044 = vpack.c.b16 %v3372, %v3364
        %v5045 = vpack.c.b16 %v3373, %v3365
        %v5046 = vpack.c.b16 %v3374, %v3366
        %v5047 = vpack.c.b16 %v3375, %v3367
        %v5048 = vpack.c.b16 %v3384, %v3376
        %v5049 = vpack.c.b16 %v3385, %v3377
        %v5050 = vpack.c.b16 %v3386, %v3378
        %v5051 = vpack.c.b16 %v3387, %v3379
        %v5052 = vpack.c.b16 %v3388, %v3380
        %v5053 = vpack.c.b16 %v3389, %v3381
        %v5054 = vpack.c.b16 %v3390, %v3382
        %v5055 = vpack.c.b16 %v3391, %v3383
        %v5056 = vpack.c.b16 %v3400, %v3392
        %v5057 = vpack.c.b16 %v3401, %v3393
        %v5058 = vpack.c.b16 %v3402, %v3394
        %v5059 = vpack.c.b16 %v3403, %v3395
        %v5060 = vpack.c.b16 %v3404, %v3396
        %v5061 = vpack.c.b16 %v3405, %v3397
        %v5062 = vpack.c.b16 %v3406, %v3398
        %v5063 = vpack.c.b16 %v3407, %v3399
        %v5064 = vpack.c.b16 %v3416, %v3408
        %v5065 = vpack.c.b16 %v3417, %v3409
        %v5066 = vpack.c.b16 %v3418, %v3410
        %v5067 = vpack.c.b16 %v3419, %v3411
        %v5068 = vpack.c.b16 %v3420, %v3412
        %v5069 = vpack.c.b16 %v3421, %v3413
        %v5070 = vpack.c.b16 %v3422, %v3414
        %v5071 = vpack.c.b16 %v3423, %v3415
        %v5072 = vpack.c.b16 %v3432, %v3424
        %v5073 = vpack.c.b16 %v3433, %v3425
        %v5074 = vpack.c.b16 %v3434, %v3426
        %v5075 = vpack.c.b16 %v3435, %v3427
        %v5076 = vpack.c.b16 %v3436, %v3428
        %v5077 = vpack.c.b16 %v3437, %v3429
        %v5078 = vpack.c.b16 %v3438, %v3430
        %v5079 = vpack.c.b16 %v3439, %v3431
        %v5080 = vpack.c.b16 %v3448, %v3440
        %v5081 = vpack.c.b16 %v3449, %v3441
        %v5082 = vpack.c.b16 %v3450, %v3442
        %v5083 = vpack.c.b16 %v3451, %v3443
        %v5084 = vpack.c.b16 %v3452, %v3444
        %v5085 = vpack.c.b16 %v3453, %v3445
        %v5086 = vpack.c.b16 %v3454, %v3446
        %v5087 = vpack.c.b16 %v3455, %v3447
        %v5088 = vpack.c.b16 %v3464, %v3456
        %v5089 = vpack.c.b16 %v3465, %v3457
        %v5090 = vpack.c.b16 %v3466, %v3458
        %v5091 = vpack.c.b16 %v3467, %v3459
        %v5092 = vpack.c.b16 %v3468, %v3460
        %v5093 = vpack.c.b16 %v3469, %v3461
        %v5094 = vpack.c.b16 %v3470, %v3462
        %v5095 = vpack.c.b16 %v3471, %v3463
        %v5096 = vpack.c.b16 %v3480, %v3472
        %v5097 = vpack.c.b16 %v3481, %v3473
        %v5098 = vpack.c.b16 %v3482, %v3474
        %v5099 = vpack.c.b16 %v3483, %v3475
        %v5100 = vpack.c.b16 %v3484, %v3476
        %v5101 = vpack.c.b16 %v3485, %v3477
        %v5102 = vpack.c.b16 %v3486, %v3478
        %v5103 = vpack.c.b16 %v3487, %v3479
        %v5104 = vpack.c.b16 %v3496, %v3488
        %v5105 = vpack.c.b16 %v3497, %v3489
        %v5106 = vpack.c.b16 %v3498, %v3490
        %v5107 = vpack.c.b16 %v3499, %v3491
        %v5108 = vpack.c.b16 %v3500, %v3492
        %v5109 = vpack.c.b16 %v3501, %v3493
        %v5110 = vpack.c.b16 %v3502, %v3494
        %v5111 = vpack.c.b16 %v3503, %v3495
        %v5112 = vpack.c.b16 %v3512, %v3504
        %v5113 = vpack.c.b16 %v3513, %v3505
        %v5114 = vpack.c.b16 %v3514, %v3506
        %v5115 = vpack.c.b16 %v3515, %v3507
        %v5116 = vpack.c.b16 %v3516, %v3508
        %v5117 = vpack.c.b16 %v3517, %v3509
        %v5118 = vpack.c.b16 %v3518, %v3510
        %v5119 = vpack.c.b16 %v3519, %v3511
        %v5120 = vpack.c.b16 %v3528, %v3520
        %v5121 = vpack.c.b16 %v3529, %v3521
        %v5122 = vpack.c.b16 %v3530, %v3522
        %v5123 = vpack.c.b16 %v3531, %v3523
        %v5124 = vpack.c.b16 %v3532, %v3524
        %v5125 = vpack.c.b16 %v3533, %v3525
        %v5126 = vpack.c.b16 %v3534, %v3526
        %v5127 = vpack.c.b16 %v3535, %v3527
        %v5128 = vpack.c.b16 %v3544, %v3536
        %v5129 = vpack.c.b16 %v3545, %v3537
        %v5130 = vpack.c.b16 %v3546, %v3538
        %v5131 = vpack.c.b16 %v3547, %v3539
        %v5132 = vpack.c.b16 %v3548, %v3540
        %v5133 = vpack.c.b16 %v3549, %v3541
        %v5134 = vpack.c.b16 %v3550, %v3542
        %v5135 = vpack.c.b16 %v3551, %v3543
        %v5136 = vpack.c.b16 %v3560, %v3552
        %v5137 = vpack.c.b16 %v3561, %v3553
        %v5138 = vpack.c.b16 %v3562, %v3554
        %v5139 = vpack.c.b16 %v3563, %v3555
        %v5140 = vpack.c.b16 %v3564, %v3556
        %v5141 = vpack.c.b16 %v3565, %v3557
        %v5142 = vpack.c.b16 %v3566, %v3558
        %v5143 = vpack.c.b16 %v3567, %v3559
        %v5144 = vpack.c.b16 %v3576, %v3568
        %v5145 = vpack.c.b16 %v3577, %v3569
        %v5146 = vpack.c.b16 %v3578, %v3570
        %v5147 = vpack.c.b16 %v3579, %v3571
        %v5148 = vpack.c.b16 %v3580, %v3572
        %v5149 = vpack.c.b16 %v3581, %v3573
        %v5150 = vpack.c.b16 %v3582, %v3574
        %v5151 = vpack.c.b16 %v3583, %v3575
        %v5152 = vpack.c.b16 %v3592, %v3584
        %v5153 = vpack.c.b16 %v3593, %v3585
        %v5154 = vpack.c.b16 %v3594, %v3586
        %v5155 = vpack.c.b16 %v3595, %v3587
        %v5156 = vpack.c.b16 %v3596, %v3588
        %v5157 = vpack.c.b16 %v3597, %v3589
        %v5158 = vpack.c.b16 %v3598, %v3590
        %v5159 = vpack.c.b16 %v3599, %v3591
        %v5160 = vpack.c.b16 %v3608, %v3600
        %v5161 = vpack.c.b16 %v3609, %v3601
        %v5162 = vpack.c.b16 %v3610, %v3602
        %v5163 = vpack.c.b16 %v3611, %v3603
        %v5164 = vpack.c.b16 %v3612, %v3604
        %v5165 = vpack.c.b16 %v3613, %v3605
        %v5166 = vpack.c.b16 %v3614, %v3606
        %v5167 = vpack.c.b16 %v3615, %v3607
        %v5168 = vpack.c.b16 %v3624, %v3616
        %v5169 = vpack.c.b16 %v3625, %v3617
        %v5170 = vpack.c.b16 %v3626, %v3618
        %v5171 = vpack.c.b16 %v3627, %v3619
        %v5172 = vpack.c.b16 %v3628, %v3620
        %v5173 = vpack.c.b16 %v3629, %v3621
        %v5174 = vpack.c.b16 %v3630, %v3622
        %v5175 = vpack.c.b16 %v3631, %v3623
        %v5176 = vpack.c.b16 %v3640, %v3632
        %v5177 = vpack.c.b16 %v3641, %v3633
        %v5178 = vpack.c.b16 %v3642, %v3634
        %v5179 = vpack.c.b16 %v3643, %v3635
        %v5180 = vpack.c.b16 %v3644, %v3636
        %v5181 = vpack.c.b16 %v3645, %v3637
        %v5182 = vpack.c.b16 %v3646, %v3638
        %v5183 = vpack.c.b16 %v3647, %v3639
        %v5184 = vpack.c.b16 %v3656, %v3648
        %v5185 = vpack.c.b16 %v3657, %v3649
        %v5186 = vpack.c.b16 %v3658, %v3650
        %v5187 = vpack.c.b16 %v3659, %v3651
        %v5188 = vpack.c.b16 %v3660, %v3652
        %v5189 = vpack.c.b16 %v3661, %v3653
        %v5190 = vpack.c.b16 %v3662, %v3654
        %v5191 = vpack.c.b16 %v3663, %v3655
        %v5192 = vpack.c.b16 %v3672, %v3664
        %v5193 = vpack.c.b16 %v3673, %v3665
        %v5194 = vpack.c.b16 %v3674, %v3666
        %v5195 = vpack.c.b16 %v3675, %v3667
        %v5196 = vpack.c.b16 %v3676, %v3668
        %v5197 = vpack.c.b16 %v3677, %v3669
        %v5198 = vpack.c.b16 %v3678, %v3670
        %v5199 = vpack.c.b16 %v3679, %v3671
        %v5200 = vpack.c.b16 %v3688, %v3680
        %v5201 = vpack.c.b16 %v3689, %v3681
        %v5202 = vpack.c.b16 %v3690, %v3682
        %v5203 = vpack.c.b16 %v3691, %v3683
        %v5204 = vpack.c.b16 %v3692, %v3684
        %v5205 = vpack.c.b16 %v3693, %v3685
        %v5206 = vpack.c.b16 %v3694, %v3686
        %v5207 = vpack.c.b16 %v3695, %v3687
        %v5208 = vpack.c.b16 %v3704, %v3696
        %v5209 = vpack.c.b16 %v3705, %v3697
        %v5210 = vpack.c.b16 %v3706, %v3698
        %v5211 = vpack.c.b16 %v3707, %v3699
        %v5212 = vpack.c.b16 %v3708, %v3700
        %v5213 = vpack.c.b16 %v3709, %v3701
        %v5214 = vpack.c.b16 %v3710, %v3702
        %v5215 = vpack.c.b16 %v3711, %v3703
        %v5216 = vpack.c.b16 %v3720, %v3712
        %v5217 = vpack.c.b16 %v3721, %v3713
        %v5218 = vpack.c.b16 %v3722, %v3714
        %v5219 = vpack.c.b16 %v3723, %v3715
        %v5220 = vpack.c.b16 %v3724, %v3716
        %v5221 = vpack.c.b16 %v3725, %v3717
        %v5222 = vpack.c.b16 %v3726, %v3718
        %v5223 = vpack.c.b16 %v3727, %v3719
        %v5224 = vpack.c.b16 %v3736, %v3728
        %v5225 = vpack.c.b16 %v3737, %v3729
        %v5226 = vpack.c.b16 %v3738, %v3730
        %v5227 = vpack.c.b16 %v3739, %v3731
        %v5228 = vpack.c.b16 %v3740, %v3732
        %v5229 = vpack.c.b16 %v3741, %v3733
        %v5230 = vpack.c.b16 %v3742, %v3734
        %v5231 = vpack.c.b16 %v3743, %v3735
        %v5232 = vpack.c.b16 %v3752, %v3744
        %v5233 = vpack.c.b16 %v3753, %v3745
        %v5234 = vpack.c.b16 %v3754, %v3746
        %v5235 = vpack.c.b16 %v3755, %v3747
        %v5236 = vpack.c.b16 %v3756, %v3748
        %v5237 = vpack.c.b16 %v3757, %v3749
        %v5238 = vpack.c.b16 %v3758, %v3750
        %v5239 = vpack.c.b16 %v3759, %v3751
        %v5240 = vpack.c.b16 %v3768, %v3760
        %v5241 = vpack.c.b16 %v3769, %v3761
        %v5242 = vpack.c.b16 %v3770, %v3762
        %v5243 = vpack.c.b16 %v3771, %v3763
        %v5244 = vpack.c.b16 %v3772, %v3764
        %v5245 = vpack.c.b16 %v3773, %v3765
        %v5246 = vpack.c.b16 %v3774, %v3766
        %v5247 = vpack.c.b16 %v3775, %v3767
        %v5248 = vpack.c.b16 %v3784, %v3776
        %v5249 = vpack.c.b16 %v3785, %v3777
        %v5250 = vpack.c.b16 %v3786, %v3778
        %v5251 = vpack.c.b16 %v3787, %v3779
        %v5252 = vpack.c.b16 %v3788, %v3780
        %v5253 = vpack.c.b16 %v3789, %v3781
        %v5254 = vpack.c.b16 %v3790, %v3782
        %v5255 = vpack.c.b16 %v3791, %v3783
        %v5256 = vpack.c.b16 %v3800, %v3792
        %v5257 = vpack.c.b16 %v3801, %v3793
        %v5258 = vpack.c.b16 %v3802, %v3794
        %v5259 = vpack.c.b16 %v3803, %v3795
        %v5260 = vpack.c.b16 %v3804, %v3796
        %v5261 = vpack.c.b16 %v3805, %v3797
        %v5262 = vpack.c.b16 %v3806, %v3798
        %v5263 = vpack.c.b16 %v3807, %v3799
        %v5264 = vpack.c.b16 %v3816, %v3808
        %v5265 = vpack.c.b16 %v3817, %v3809
        %v5266 = vpack.c.b16 %v3818, %v3810
        %v5267 = vpack.c.b16 %v3819, %v3811
        %v5268 = vpack.c.b16 %v3820, %v3812
        %v5269 = vpack.c.b16 %v3821, %v3813
        %v5270 = vpack.c.b16 %v3822, %v3814
        %v5271 = vpack.c.b16 %v3823, %v3815
        %v5272 = vpack.c.b16 %v3832, %v3824
        %v5273 = vpack.c.b16 %v3833, %v3825
        %v5274 = vpack.c.b16 %v3834, %v3826
        %v5275 = vpack.c.b16 %v3835, %v3827
        %v5276 = vpack.c.b16 %v3836, %v3828
        %v5277 = vpack.c.b16 %v3837, %v3829
        %v5278 = vpack.c.b16 %v3838, %v3830
        %v5279 = vpack.c.b16 %v3839, %v3831
        %v5280 = vpack.c.b16 %v3848, %v3840
        %v5281 = vpack.c.b16 %v3849, %v3841
        %v5282 = vpack.c.b16 %v3850, %v3842
        %v5283 = vpack.c.b16 %v3851, %v3843
        %v5284 = vpack.c.b16 %v3852, %v3844
        %v5285 = vpack.c.b16 %v3853, %v3845
        %v5286 = vpack.c.b16 %v3854, %v3846
        %v5287 = vpack.c.b16 %v3855, %v3847
        %v5288 = vpack.c.b16 %v3864, %v3856
        %v5289 = vpack.c.b16 %v3865, %v3857
        %v5290 = vpack.c.b16 %v3866, %v3858
        %v5291 = vpack.c.b16 %v3867, %v3859
        %v5292 = vpack.c.b16 %v3868, %v3860
        %v5293 = vpack.c.b16 %v3869, %v3861
        %v5294 = vpack.c.b16 %v3870, %v3862
        %v5295 = vpack.c.b16 %v3871, %v3863
        %v5296 = vpack.c.b16 %v3880, %v3872
        %v5297 = vpack.c.b16 %v3881, %v3873
        %v5298 = vpack.c.b16 %v3882, %v3874
        %v5299 = vpack.c.b16 %v3883, %v3875
        %v5300 = vpack.c.b16 %v3884, %v3876
        %v5301 = vpack.c.b16 %v3885, %v3877
        %v5302 = vpack.c.b16 %v3886, %v3878
        %v5303 = vpack.c.b16 %v3887, %v3879
        %v5304 = vpack.c.b16 %v3896, %v3888
        %v5305 = vpack.c.b16 %v3897, %v3889
        %v5306 = vpack.c.b16 %v3898, %v3890
        %v5307 = vpack.c.b16 %v3899, %v3891
        %v5308 = vpack.c.b16 %v3900, %v3892
        %v5309 = vpack.c.b16 %v3901, %v3893
        %v5310 = vpack.c.b16 %v3902, %v3894
        %v5311 = vpack.c.b16 %v3903, %v3895
        %v5312 = vpack.c.b16 %v3912, %v3904
        %v5313 = vpack.c.b16 %v3913, %v3905
        %v5314 = vpack.c.b16 %v3914, %v3906
        %v5315 = vpack.c.b16 %v3915, %v3907
        %v5316 = vpack.c.b16 %v3916, %v3908
        %v5317 = vpack.c.b16 %v3917, %v3909
        %v5318 = vpack.c.b16 %v3918, %v3910
        %v5319 = vpack.c.b16 %v3919, %v3911
        %v5320 = vpack.c.b16 %v3928, %v3920
        %v5321 = vpack.c.b16 %v3929, %v3921
        %v5322 = vpack.c.b16 %v3930, %v3922
        %v5323 = vpack.c.b16 %v3931, %v3923
        %v5324 = vpack.c.b16 %v3932, %v3924
        %v5325 = vpack.c.b16 %v3933, %v3925
        %v5326 = vpack.c.b16 %v3934, %v3926
        %v5327 = vpack.c.b16 %v3935, %v3927
        %v5328 = vpack.c.b16 %v3944, %v3936
        %v5329 = vpack.c.b16 %v3945, %v3937
        %v5330 = vpack.c.b16 %v3946, %v3938
        %v5331 = vpack.c.b16 %v3947, %v3939
        %v5332 = vpack.c.b16 %v3948, %v3940
        %v5333 = vpack.c.b16 %v3949, %v3941
        %v5334 = vpack.c.b16 %v3950, %v3942
        %v5335 = vpack.c.b16 %v3951, %v3943
        %v5336 = vpack.c.b16 %v3960, %v3952
        %v5337 = vpack.c.b16 %v3961, %v3953
        %v5338 = vpack.c.b16 %v3962, %v3954
        %v5339 = vpack.c.b16 %v3963, %v3955
        %v5340 = vpack.c.b16 %v3964, %v3956
        %v5341 = vpack.c.b16 %v3965, %v3957
        %v5342 = vpack.c.b16 %v3966, %v3958
        %v5343 = vpack.c.b16 %v3967, %v3959
        %v5344 = vpack.c.b16 %v3976, %v3968
        %v5345 = vpack.c.b16 %v3977, %v3969
        %v5346 = vpack.c.b16 %v3978, %v3970
        %v5347 = vpack.c.b16 %v3979, %v3971
        %v5348 = vpack.c.b16 %v3980, %v3972
        %v5349 = vpack.c.b16 %v3981, %v3973
        %v5350 = vpack.c.b16 %v3982, %v3974
        %v5351 = vpack.c.b16 %v3983, %v3975
        %v5352 = vpack.c.b16 %v3992, %v3984
        %v5353 = vpack.c.b16 %v3993, %v3985
        %v5354 = vpack.c.b16 %v3994, %v3986
        %v5355 = vpack.c.b16 %v3995, %v3987
        %v5356 = vpack.c.b16 %v3996, %v3988
        %v5357 = vpack.c.b16 %v3997, %v3989
        %v5358 = vpack.c.b16 %v3998, %v3990
        %v5359 = vpack.c.b16 %v3999, %v3991
        %v5360 = vpack.c.b16 %v4008, %v4000
        %v5361 = vpack.c.b16 %v4009, %v4001
        %v5362 = vpack.c.b16 %v4010, %v4002
        %v5363 = vpack.c.b16 %v4011, %v4003
        %v5364 = vpack.c.b16 %v4012, %v4004
        %v5365 = vpack.c.b16 %v4013, %v4005
        %v5366 = vpack.c.b16 %v4014, %v4006
        %v5367 = vpack.c.b16 %v4015, %v4007
        %v5368 = vpack.c.b16 %v4024, %v4016
        %v5369 = vpack.c.b16 %v4025, %v4017
        %v5370 = vpack.c.b16 %v4026, %v4018
        %v5371 = vpack.c.b16 %v4027, %v4019
        %v5372 = vpack.c.b16 %v4028, %v4020
        %v5373 = vpack.c.b16 %v4029, %v4021
        %v5374 = vpack.c.b16 %v4030, %v4022
        %v5375 = vpack.c.b16 %v4031, %v4023
        %v5376 = vpack.c.b16 %v4040, %v4032
        %v5377 = vpack.c.b16 %v4041, %v4033
        %v5378 = vpack.c.b16 %v4042, %v4034
        %v5379 = vpack.c.b16 %v4043, %v4035
        %v5380 = vpack.c.b16 %v4044, %v4036
        %v5381 = vpack.c.b16 %v4045, %v4037
        %v5382 = vpack.c.b16 %v4046, %v4038
        %v5383 = vpack.c.b16 %v4047, %v4039
        %v5384 = vpack.c.b16 %v4056, %v4048
        %v5385 = vpack.c.b16 %v4057, %v4049
        %v5386 = vpack.c.b16 %v4058, %v4050
        %v5387 = vpack.c.b16 %v4059, %v4051
        %v5388 = vpack.c.b16 %v4060, %v4052
        %v5389 = vpack.c.b16 %v4061, %v4053
        %v5390 = vpack.c.b16 %v4062, %v4054
        %v5391 = vpack.c.b16 %v4063, %v4055
        %v5392 = vpack.c.b16 %v4072, %v4064
        %v5393 = vpack.c.b16 %v4073, %v4065
        %v5394 = vpack.c.b16 %v4074, %v4066
        %v5395 = vpack.c.b16 %v4075, %v4067
        %v5396 = vpack.c.b16 %v4076, %v4068
        %v5397 = vpack.c.b16 %v4077, %v4069
        %v5398 = vpack.c.b16 %v4078, %v4070
        %v5399 = vpack.c.b16 %v4079, %v4071
        %v5400 = vpack.c.b16 %v4088, %v4080
        %v5401 = vpack.c.b16 %v4089, %v4081
        %v5402 = vpack.c.b16 %v4090, %v4082
        %v5403 = vpack.c.b16 %v4091, %v4083
        %v5404 = vpack.c.b16 %v4092, %v4084
        %v5405 = vpack.c.b16 %v4093, %v4085
        %v5406 = vpack.c.b16 %v4094, %v4086
        %v5407 = vpack.c.b16 %v4095, %v4087
        %v5408 = vpack.c.b16 %v4104, %v4096
        %v5409 = vpack.c.b16 %v4105, %v4097
        %v5410 = vpack.c.b16 %v4106, %v4098
        %v5411 = vpack.c.b16 %v4107, %v4099
        %v5412 = vpack.c.b16 %v4108, %v4100
        %v5413 = vpack.c.b16 %v4109, %v4101
        %v5414 = vpack.c.b16 %v4110, %v4102
        %v5415 = vpack.c.b16 %v4111, %v4103
        %v5416 = vpack.c.b16 %v4120, %v4112
        %v5417 = vpack.c.b16 %v4121, %v4113
        %v5418 = vpack.c.b16 %v4122, %v4114
        %v5419 = vpack.c.b16 %v4123, %v4115
        %v5420 = vpack.c.b16 %v4124, %v4116
        %v5421 = vpack.c.b16 %v4125, %v4117
        %v5422 = vpack.c.b16 %v4126, %v4118
        %v5423 = vpack.c.b16 %v4127, %v4119
        %v5424 = vpack.c.b16 %v4136, %v4128
        %v5425 = vpack.c.b16 %v4137, %v4129
        %v5426 = vpack.c.b16 %v4138, %v4130
        %v5427 = vpack.c.b16 %v4139, %v4131
        %v5428 = vpack.c.b16 %v4140, %v4132
        %v5429 = vpack.c.b16 %v4141, %v4133
        %v5430 = vpack.c.b16 %v4142, %v4134
        %v5431 = vpack.c.b16 %v4143, %v4135
        %v5432 = vpack.c.b16 %v4152, %v4144
        %v5433 = vpack.c.b16 %v4153, %v4145
        %v5434 = vpack.c.b16 %v4154, %v4146
        %v5435 = vpack.c.b16 %v4155, %v4147
        %v5436 = vpack.c.b16 %v4156, %v4148
        %v5437 = vpack.c.b16 %v4157, %v4149
        %v5438 = vpack.c.b16 %v4158, %v4150
        %v5439 = vpack.c.b16 %v4159, %v4151
        %v5440 = vpack.c.b16 %v4168, %v4160
        %v5441 = vpack.c.b16 %v4169, %v4161
        %v5442 = vpack.c.b16 %v4170, %v4162
        %v5443 = vpack.c.b16 %v4171, %v4163
        %v5444 = vpack.c.b16 %v4172, %v4164
        %v5445 = vpack.c.b16 %v4173, %v4165
        %v5446 = vpack.c.b16 %v4174, %v4166
        %v5447 = vpack.c.b16 %v4175, %v4167
        %v5448 = vpack.c.b16 %v4184, %v4176
        %v5449 = vpack.c.b16 %v4185, %v4177
        %v5450 = vpack.c.b16 %v4186, %v4178
        %v5451 = vpack.c.b16 %v4187, %v4179
        %v5452 = vpack.c.b16 %v4188, %v4180
        %v5453 = vpack.c.b16 %v4189, %v4181
        %v5454 = vpack.c.b16 %v4190, %v4182
        %v5455 = vpack.c.b16 %v4191, %v4183
        %v5456 = vpack.c.b16 %v4200, %v4192
        %v5457 = vpack.c.b16 %v4201, %v4193
        %v5458 = vpack.c.b16 %v4202, %v4194
        %v5459 = vpack.c.b16 %v4203, %v4195
        %v5460 = vpack.c.b16 %v4204, %v4196
        %v5461 = vpack.c.b16 %v4205, %v4197
        %v5462 = vpack.c.b16 %v4206, %v4198
        %v5463 = vpack.c.b16 %v4207, %v4199
        %v5464 = vpack.c.b16 %v4216, %v4208
        %v5465 = vpack.c.b16 %v4217, %v4209
        %v5466 = vpack.c.b16 %v4218, %v4210
        %v5467 = vpack.c.b16 %v4219, %v4211
        %v5468 = vpack.c.b16 %v4220, %v4212
        %v5469 = vpack.c.b16 %v4221, %v4213
        %v5470 = vpack.c.b16 %v4222, %v4214
        %v5471 = vpack.c.b16 %v4223, %v4215
        %v5472 = vpack.c.b16 %v4232, %v4224
        %v5473 = vpack.c.b16 %v4233, %v4225
        %v5474 = vpack.c.b16 %v4234, %v4226
        %v5475 = vpack.c.b16 %v4235, %v4227
        %v5476 = vpack.c.b16 %v4236, %v4228
        %v5477 = vpack.c.b16 %v4237, %v4229
        %v5478 = vpack.c.b16 %v4238, %v4230
        %v5479 = vpack.c.b16 %v4239, %v4231
        %v5480 = vpack.c.b16 %v4248, %v4240
        %v5481 = vpack.c.b16 %v4249, %v4241
        %v5482 = vpack.c.b16 %v4250, %v4242
        %v5483 = vpack.c.b16 %v4251, %v4243
        %v5484 = vpack.c.b16 %v4252, %v4244
        %v5485 = vpack.c.b16 %v4253, %v4245
        %v5486 = vpack.c.b16 %v4254, %v4246
        %v5487 = vpack.c.b16 %v4255, %v4247
        %v5488 = vpack.c.b16 %v4264, %v4256
        %v5489 = vpack.c.b16 %v4265, %v4257
        %v5490 = vpack.c.b16 %v4266, %v4258
        %v5491 = vpack.c.b16 %v4267, %v4259
        %v5492 = vpack.c.b16 %v4268, %v4260
        %v5493 = vpack.c.b16 %v4269, %v4261
        %v5494 = vpack.c.b16 %v4270, %v4262
        %v5495 = vpack.c.b16 %v4271, %v4263
        %v5496 = vpack.c.b16 %v4280, %v4272
        %v5497 = vpack.c.b16 %v4281, %v4273
        %v5498 = vpack.c.b16 %v4282, %v4274
        %v5499 = vpack.c.b16 %v4283, %v4275
        %v5500 = vpack.c.b16 %v4284, %v4276
        %v5501 = vpack.c.b16 %v4285, %v4277
        %v5502 = vpack.c.b16 %v4286, %v4278
        %v5503 = vpack.c.b16 %v4287, %v4279
        %v5504 = vpack.c.b16 %v4296, %v4288
        %v5505 = vpack.c.b16 %v4297, %v4289
        %v5506 = vpack.c.b16 %v4298, %v4290
        %v5507 = vpack.c.b16 %v4299, %v4291
        %v5508 = vpack.c.b16 %v4300, %v4292
        %v5509 = vpack.c.b16 %v4301, %v4293
        %v5510 = vpack.c.b16 %v4302, %v4294
        %v5511 = vpack.c.b16 %v4303, %v4295
        %v5512 = vpack.c.b16 %v4312, %v4304
        %v5513 = vpack.c.b16 %v4313, %v4305
        %v5514 = vpack.c.b16 %v4314, %v4306
        %v5515 = vpack.c.b16 %v4315, %v4307
        %v5516 = vpack.c.b16 %v4316, %v4308
        %v5517 = vpack.c.b16 %v4317, %v4309
        %v5518 = vpack.c.b16 %v4318, %v4310
        %v5519 = vpack.c.b16 %v4319, %v4311
        %v5520 = vpack.c.b16 %v4328, %v4320
        %v5521 = vpack.c.b16 %v4329, %v4321
        %v5522 = vpack.c.b16 %v4330, %v4322
        %v5523 = vpack.c.b16 %v4331, %v4323
        %v5524 = vpack.c.b16 %v4332, %v4324
        %v5525 = vpack.c.b16 %v4333, %v4325
        %v5526 = vpack.c.b16 %v4334, %v4326
        %v5527 = vpack.c.b16 %v4335, %v4327
        %v5528 = vpack.c.b16 %v4344, %v4336
        %v5529 = vpack.c.b16 %v4345, %v4337
        %v5530 = vpack.c.b16 %v4346, %v4338
        %v5531 = vpack.c.b16 %v4347, %v4339
        %v5532 = vpack.c.b16 %v4348, %v4340
        %v5533 = vpack.c.b16 %v4349, %v4341
        %v5534 = vpack.c.b16 %v4350, %v4342
        %v5535 = vpack.c.b16 %v4351, %v4343
        %v5536 = vpack.c.b16 %v4360, %v4352
        %v5537 = vpack.c.b16 %v4361, %v4353
        %v5538 = vpack.c.b16 %v4362, %v4354
        %v5539 = vpack.c.b16 %v4363, %v4355
        %v5540 = vpack.c.b16 %v4364, %v4356
        %v5541 = vpack.c.b16 %v4365, %v4357
        %v5542 = vpack.c.b16 %v4366, %v4358
        %v5543 = vpack.c.b16 %v4367, %v4359
        %v5544 = vpack.c.b16 %v4376, %v4368
        %v5545 = vpack.c.b16 %v4377, %v4369
        %v5546 = vpack.c.b16 %v4378, %v4370
        %v5547 = vpack.c.b16 %v4379, %v4371
        %v5548 = vpack.c.b16 %v4380, %v4372
        %v5549 = vpack.c.b16 %v4381, %v4373
        %v5550 = vpack.c.b16 %v4382, %v4374
        %v5551 = vpack.c.b16 %v4383, %v4375
        %v5552 = vpack.c.b16 %v4392, %v4384
        %v5553 = vpack.c.b16 %v4393, %v4385
        %v5554 = vpack.c.b16 %v4394, %v4386
        %v5555 = vpack.c.b16 %v4395, %v4387
        %v5556 = vpack.c.b16 %v4396, %v4388
        %v5557 = vpack.c.b16 %v4397, %v4389
        %v5558 = vpack.c.b16 %v4398, %v4390
        %v5559 = vpack.c.b16 %v4399, %v4391
        %v5560 = vpack.c.b16 %v4408, %v4400
        %v5561 = vpack.c.b16 %v4409, %v4401
        %v5562 = vpack.c.b16 %v4410, %v4402
        %v5563 = vpack.c.b16 %v4411, %v4403
        %v5564 = vpack.c.b16 %v4412, %v4404
        %v5565 = vpack.c.b16 %v4413, %v4405
        %v5566 = vpack.c.b16 %v4414, %v4406
        %v5567 = vpack.c.b16 %v4415, %v4407
        %v5568 = vpack.c.b16 %v4424, %v4416
        %v5569 = vpack.c.b16 %v4425, %v4417
        %v5570 = vpack.c.b16 %v4426, %v4418
        %v5571 = vpack.c.b16 %v4427, %v4419
        %v5572 = vpack.c.b16 %v4428, %v4420
        %v5573 = vpack.c.b16 %v4429, %v4421
        %v5574 = vpack.c.b16 %v4430, %v4422
        %v5575 = vpack.c.b16 %v4431, %v4423
        %v5576 = vpack.c.b16 %v4440, %v4432
        %v5577 = vpack.c.b16 %v4441, %v4433
        %v5578 = vpack.c.b16 %v4442, %v4434
        %v5579 = vpack.c.b16 %v4443, %v4435
        %v5580 = vpack.c.b16 %v4444, %v4436
        %v5581 = vpack.c.b16 %v4445, %v4437
        %v5582 = vpack.c.b16 %v4446, %v4438
        %v5583 = vpack.c.b16 %v4447, %v4439
        %v5584 = vpack.c.b16 %v4456, %v4448
        %v5585 = vpack.c.b16 %v4457, %v4449
        %v5586 = vpack.c.b16 %v4458, %v4450
        %v5587 = vpack.c.b16 %v4459, %v4451
        %v5588 = vpack.c.b16 %v4460, %v4452
        %v5589 = vpack.c.b16 %v4461, %v4453
        %v5590 = vpack.c.b16 %v4462, %v4454
        %v5591 = vpack.c.b16 %v4463, %v4455
        %v5592 = vpack.c.b16 %v4472, %v4464
        %v5593 = vpack.c.b16 %v4473, %v4465
        %v5594 = vpack.c.b16 %v4474, %v4466
        %v5595 = vpack.c.b16 %v4475, %v4467
        %v5596 = vpack.c.b16 %v4476, %v4468
        %v5597 = vpack.c.b16 %v4477, %v4469
        %v5598 = vpack.c.b16 %v4478, %v4470
        %v5599 = vpack.c.b16 %v4479, %v4471
        %v5600 = vpack.c.b16 %v4488, %v4480
        %v5601 = vpack.c.b16 %v4489, %v4481
        %v5602 = vpack.c.b16 %v4490, %v4482
        %v5603 = vpack.c.b16 %v4491, %v4483
        %v5604 = vpack.c.b16 %v4492, %v4484
        %v5605 = vpack.c.b16 %v4493, %v4485
        %v5606 = vpack.c.b16 %v4494, %v4486
        %v5607 = vpack.c.b16 %v4495, %v4487
        %v5608 = vpack.c.b16 %v4504, %v4496
        %v5609 = vpack.c.b16 %v4505, %v4497
        %v5610 = vpack.c.b16 %v4506, %v4498
        %v5611 = vpack.c.b16 %v4507, %v4499
        %v5612 = vpack.c.b16 %v4508, %v4500
        %v5613 = vpack.c.b16 %v4509, %v4501
        %v5614 = vpack.c.b16 %v4510, %v4502
        %v5615 = vpack.c.b16 %v4511, %v4503
        %v5616 = vpack.c.b16 %v4520, %v4512
        %v5617 = vpack.c.b16 %v4521, %v4513
        %v5618 = vpack.c.b16 %v4522, %v4514
        %v5619 = vpack.c.b16 %v4523, %v4515
        %v5620 = vpack.c.b16 %v4524, %v4516
        %v5621 = vpack.c.b16 %v4525, %v4517
        %v5622 = vpack.c.b16 %v4526, %v4518
        %v5623 = vpack.c.b16 %v4527, %v4519
        %v5624 = vpack.c.b16 %v4536, %v4528
        %v5625 = vpack.c.b16 %v4537, %v4529
        %v5626 = vpack.c.b16 %v4538, %v4530
        %v5627 = vpack.c.b16 %v4539, %v4531
        %v5628 = vpack.c.b16 %v4540, %v4532
        %v5629 = vpack.c.b16 %v4541, %v4533
        %v5630 = vpack.c.b16 %v4542, %v4534
        %v5631 = vpack.c.b16 %v4543, %v4535
        %v5632 = vpack.c.b16 %v4552, %v4544
        %v5633 = vpack.c.b16 %v4553, %v4545
        %v5634 = vpack.c.b16 %v4554, %v4546
        %v5635 = vpack.c.b16 %v4555, %v4547
        %v5636 = vpack.c.b16 %v4556, %v4548
        %v5637 = vpack.c.b16 %v4557, %v4549
        %v5638 = vpack.c.b16 %v4558, %v4550
        %v5639 = vpack.c.b16 %v4559, %v4551
        %v5640 = vpack.c.b16 %v4568, %v4560
        %v5641 = vpack.c.b16 %v4569, %v4561
        %v5642 = vpack.c.b16 %v4570, %v4562
        %v5643 = vpack.c.b16 %v4571, %v4563
        %v5644 = vpack.c.b16 %v4572, %v4564
        %v5645 = vpack.c.b16 %v4573, %v4565
        %v5646 = vpack.c.b16 %v4574, %v4566
        %v5647 = vpack.c.b16 %v4575, %v4567
        %v5648 = vpack.c.b16 %v4584, %v4576
        %v5649 = vpack.c.b16 %v4585, %v4577
        %v5650 = vpack.c.b16 %v4586, %v4578
        %v5651 = vpack.c.b16 %v4587, %v4579
        %v5652 = vpack.c.b16 %v4588, %v4580
        %v5653 = vpack.c.b16 %v4589, %v4581
        %v5654 = vpack.c.b16 %v4590, %v4582
        %v5655 = vpack.c.b16 %v4591, %v4583
        %v5656 = vpack.c.b16 %v4600, %v4592
        %v5657 = vpack.c.b16 %v4601, %v4593
        %v5658 = vpack.c.b16 %v4602, %v4594
        %v5659 = vpack.c.b16 %v4603, %v4595
        %v5660 = vpack.c.b16 %v4604, %v4596
        %v5661 = vpack.c.b16 %v4605, %v4597
        %v5662 = vpack.c.b16 %v4606, %v4598
        %v5663 = vpack.c.b16 %v4607, %v4599
        %v5664 = vpack.c.b16 %v4616, %v4608
        %v5665 = vpack.c.b16 %v4617, %v4609
        %v5666 = vpack.c.b16 %v4618, %v4610
        %v5667 = vpack.c.b16 %v4619, %v4611
        %v5668 = vpack.c.b16 %v4620, %v4612
        %v5669 = vpack.c.b16 %v4621, %v4613
        %v5670 = vpack.c.b16 %v4622, %v4614
        %v5671 = vpack.c.b16 %v4623, %v4615
        %v5672 = vpack.c.b16 %v4632, %v4624
        %v5673 = vpack.c.b16 %v4633, %v4625
        %v5674 = vpack.c.b16 %v4634, %v4626
        %v5675 = vpack.c.b16 %v4635, %v4627
        %v5676 = vpack.c.b16 %v4636, %v4628
        %v5677 = vpack.c.b16 %v4637, %v4629
        %v5678 = vpack.c.b16 %v4638, %v4630
        %v5679 = vpack.c.b16 %v4639, %v4631
        %v5680 = vpack.c.b16 %v4648, %v4640
        %v5681 = vpack.c.b16 %v4649, %v4641
        %v5682 = vpack.c.b16 %v4650, %v4642
        %v5683 = vpack.c.b16 %v4651, %v4643
        %v5684 = vpack.c.b16 %v4652, %v4644
        %v5685 = vpack.c.b16 %v4653, %v4645
        %v5686 = vpack.c.b16 %v4654, %v4646
        %v5687 = vpack.c.b16 %v4655, %v4647
        %v5688 = vpack.c.b16 %v4664, %v4656
        %v5689 = vpack.c.b16 %v4665, %v4657
        %v5690 = vpack.c.b16 %v4666, %v4658
        %v5691 = vpack.c.b16 %v4667, %v4659
        %v5692 = vpack.c.b16 %v4668, %v4660
        %v5693 = vpack.c.b16 %v4669, %v4661
        %v5694 = vpack.c.b16 %v4670, %v4662
        %v5695 = vpack.c.b16 %v4671, %v4663
        %6720 = vmatprep.subr.bf16.mxu0 %v4673
        %6721 = vmatpush1.bf16.msra.mxu0 %v4672
        %6722 = vmatprep.subr.bf16.mxu0 %v4681
        %6723 = vmatpush1.bf16.msra.mxu0 %v4680
        %6724 = vmatprep.subr.bf16.mxu0 %v4689
        %6725 = vmatpush1.bf16.msra.mxu0 %v4688
        %6726 = vmatprep.subr.bf16.mxu0 %v4697
        %6727 = vmatpush1.bf16.msra.mxu0 %v4696
        %6728 = vmatprep.subr.bf16.mxu0 %v4705
        %6729 = vmatpush1.bf16.msra.mxu0 %v4704
        %6730 = vmatprep.subr.bf16.mxu0 %v4713
        %6731 = vmatpush1.bf16.msra.mxu0 %v4712
        %6732 = vmatprep.subr.bf16.mxu0 %v4721
        %6733 = vmatpush1.bf16.msra.mxu0 %v4720
        %6734 = vmatprep.subr.bf16.mxu0 %v4729
        %6735 = vmatpush1.bf16.msra.mxu0 %v4728
        %6736 = vmatprep.subr.bf16.mxu0 %v4737
        %6737 = vmatpush1.bf16.msra.mxu0 %v4736
        %6738 = vmatprep.subr.bf16.mxu0 %v4745
        %6739 = vmatpush1.bf16.msra.mxu0 %v4744
        %6740 = vmatprep.subr.bf16.mxu0 %v4753
        %6741 = vmatpush1.bf16.msra.mxu0 %v4752
        %6742 = vmatprep.subr.bf16.mxu0 %v4761
        %6743 = vmatpush1.bf16.msra.mxu0 %v4760
        %6744 = vmatprep.subr.bf16.mxu0 %v4769
        %6745 = vmatpush1.bf16.msra.mxu0 %v4768
        %6746 = vmatprep.subr.bf16.mxu0 %v4777
        %6747 = vmatpush1.bf16.msra.mxu0 %v4776
        %6748 = vmatprep.subr.bf16.mxu0 %v4785
        %6749 = vmatpush1.bf16.msra.mxu0 %v4784
        %6750 = vmatprep.subr.bf16.mxu0 %v4793
        %6751 = vmatpush1.bf16.msra.mxu0 %v4792
        %6752 = vmatprep.mubr.bf16.mxu0 %v1569
        %6753 = vmatmul.mubr.bf16.gmra.mrb[0].mxu0 %v1568
        %v6754 = vpop.f32.mrb[0].mxu0
        %v6755 = vadd.f32 0.0, %v6754
        %v6756 = vpop.f32.mrb[0].mxu0
        %v6757 = vadd.f32 0.0, %v6756
        %v6758 = vpop.f32.mrb[0].mxu0
        %v6759 = vadd.f32 0.0, %v6758
        %v6760 = vpop.f32.mrb[0].mxu0
        %v6761 = vadd.f32 0.0, %v6760
        %6762 = vdwg.mxu0
        %6763 = vmatprep.subr.bf16.mxu0 %v4801
        %6764 = vmatpush1.bf16.msra.mxu0 %v4800
        %6765 = vmatprep.subr.bf16.mxu0 %v4809
        %6766 = vmatpush1.bf16.msra.mxu0 %v4808
        %6767 = vmatprep.subr.bf16.mxu0 %v4817
        %6768 = vmatpush1.bf16.msra.mxu0 %v4816
        %6769 = vmatprep.subr.bf16.mxu0 %v4825
        %6770 = vmatpush1.bf16.msra.mxu0 %v4824
        %6771 = vmatprep.subr.bf16.mxu0 %v4833
        %6772 = vmatpush1.bf16.msra.mxu0 %v4832
        %6773 = vmatprep.subr.bf16.mxu0 %v4841
        %6774 = vmatpush1.bf16.msra.mxu0 %v4840
        %6775 = vmatprep.subr.bf16.mxu0 %v4849
        %6776 = vmatpush1.bf16.msra.mxu0 %v4848
        %6777 = vmatprep.subr.bf16.mxu0 %v4857
        %6778 = vmatpush1.bf16.msra.mxu0 %v4856
        %6779 = vmatprep.subr.bf16.mxu0 %v4865
        %6780 = vmatpush1.bf16.msra.mxu0 %v4864
        %6781 = vmatprep.subr.bf16.mxu0 %v4873
        %6782 = vmatpush1.bf16.msra.mxu0 %v4872
        %6783 = vmatprep.subr.bf16.mxu0 %v4881
        %6784 = vmatpush1.bf16.msra.mxu0 %v4880
        %6785 = vmatprep.subr.bf16.mxu0 %v4889
        %6786 = vmatpush1.bf16.msra.mxu0 %v4888
        %6787 = vmatprep.subr.bf16.mxu0 %v4897
        %6788 = vmatpush1.bf16.msra.mxu0 %v4896
        %6789 = vmatprep.subr.bf16.mxu0 %v4905
        %6790 = vmatpush1.bf16.msra.mxu0 %v4904
        %6791 = vmatprep.subr.bf16.mxu0 %v4913
        %6792 = vmatpush1.bf16.msra.mxu0 %v4912
        %6793 = vmatprep.subr.bf16.mxu0 %v4921
        %6794 = vmatpush1.bf16.msra.mxu0 %v4920
        %6795 = vmatprep.mubr.bf16.mxu0 %v1571
        %6796 = vmatmul.mubr.bf16.gmra.mrb[0].mxu0 %v1570
        %v6797 = vpop.f32.mrb[0].mxu0
        %v6798 = vadd.f32 %v6755, %v6797
        %v6799 = vpop.f32.mrb[0].mxu0
        %v6800 = vadd.f32 %v6757, %v6799
        %v6801 = vpop.f32.mrb[0].mxu0
        %v6802 = vadd.f32 %v6759, %v6801
        %v6803 = vpop.f32.mrb[0].mxu0
        %v6804 = vadd.f32 %v6761, %v6803
        %6805 = vdwg.mxu0
        %6806 = vmatprep.subr.bf16.mxu0 %v4929
        %6807 = vmatpush1.bf16.msra.mxu0 %v4928
        %6808 = vmatprep.subr.bf16.mxu0 %v4937
        %6809 = vmatpush1.bf16.msra.mxu0 %v4936
        %6810 = vmatprep.subr.bf16.mxu0 %v4945
        %6811 = vmatpush1.bf16.msra.mxu0 %v4944
        %6812 = vmatprep.subr.bf16.mxu0 %v4953
        %6813 = vmatpush1.bf16.msra.mxu0 %v4952
        %6814 = vmatprep.subr.bf16.mxu0 %v4961
        %6815 = vmatpush1.bf16.msra.mxu0 %v4960
        %6816 = vmatprep.subr.bf16.mxu0 %v4969
        %6817 = vmatpush1.bf16.msra.mxu0 %v4968
        %6818 = vmatprep.subr.bf16.mxu0 %v4977
        %6819 = vmatpush1.bf16.msra.mxu0 %v4976
        %6820 = vmatprep.subr.bf16.mxu0 %v4985
        %6821 = vmatpush1.bf16.msra.mxu0 %v4984
        %6822 = vmatprep.subr.bf16.mxu0 %v4993
        %6823 = vmatpush1.bf16.msra.mxu0 %v4992
        %6824 = vmatprep.subr.bf16.mxu0 %v5001
        %6825 = vmatpush1.bf16.msra.mxu0 %v5000
        %6826 = vmatprep.subr.bf16.mxu0 %v5009
        %6827 = vmatpush1.bf16.msra.mxu0 %v5008
        %6828 = vmatprep.subr.bf16.mxu0 %v5017
        %6829 = vmatpush1.bf16.msra.mxu0 %v5016
        %6830 = vmatprep.subr.bf16.mxu0 %v5025
        %6831 = vmatpush1.bf16.msra.mxu0 %v5024
        %6832 = vmatprep.subr.bf16.mxu0 %v5033
        %6833 = vmatpush1.bf16.msra.mxu0 %v5032
        %6834 = vmatprep.subr.bf16.mxu0 %v5041
        %6835 = vmatpush1.bf16.msra.mxu0 %v5040
        %6836 = vmatprep.subr.bf16.mxu0 %v5049
        %6837 = vmatpush1.bf16.msra.mxu0 %v5048
        %6838 = vmatprep.mubr.bf16.mxu0 %v1573
        %6839 = vmatmul.mubr.bf16.gmra.mrb[0].mxu0 %v1572
        %v6840 = vpop.f32.mrb[0].mxu0
        %v6841 = vadd.f32 %v6798, %v6840
        %v6842 = vpop.f32.mrb[0].mxu0
        %v6843 = vadd.f32 %v6800, %v6842
        %v6844 = vpop.f32.mrb[0].mxu0
        %v6845 = vadd.f32 %v6802, %v6844
        %v6846 = vpop.f32.mrb[0].mxu0
        %v6847 = vadd.f32 %v6804, %v6846
        %6848 = vdwg.mxu0
        %6849 = vmatprep.subr.bf16.mxu0 %v5057
        %6850 = vmatpush1.bf16.msra.mxu0 %v5056
        %6851 = vmatprep.subr.bf16.mxu0 %v5065
        %6852 = vmatpush1.bf16.msra.mxu0 %v5064
        %6853 = vmatprep.subr.bf16.mxu0 %v5073
        %6854 = vmatpush1.bf16.msra.mxu0 %v5072
        %6855 = vmatprep.subr.bf16.mxu0 %v5081
        %6856 = vmatpush1.bf16.msra.mxu0 %v5080
        %6857 = vmatprep.subr.bf16.mxu0 %v5089
        %6858 = vmatpush1.bf16.msra.mxu0 %v5088
        %6859 = vmatprep.subr.bf16.mxu0 %v5097
        %6860 = vmatpush1.bf16.msra.mxu0 %v5096
        %6861 = vmatprep.subr.bf16.mxu0 %v5105
        %6862 = vmatpush1.bf16.msra.mxu0 %v5104
        %6863 = vmatprep.subr.bf16.mxu0 %v5113
        %6864 = vmatpush1.bf16.msra.mxu0 %v5112
        %6865 = vmatprep.subr.bf16.mxu0 %v5121
        %6866 = vmatpush1.bf16.msra.mxu0 %v5120
        %6867 = vmatprep.subr.bf16.mxu0 %v5129
        %6868 = vmatpush1.bf16.msra.mxu0 %v5128
        %6869 = vmatprep.subr.bf16.mxu0 %v5137
        %6870 = vmatpush1.bf16.msra.mxu0 %v5136
        %6871 = vmatprep.subr.bf16.mxu0 %v5145
        %6872 = vmatpush1.bf16.msra.mxu0 %v5144
        %6873 = vmatprep.subr.bf16.mxu0 %v5153
        %6874 = vmatpush1.bf16.msra.mxu0 %v5152
        %6875 = vmatprep.subr.bf16.mxu0 %v5161
        %6876 = vmatpush1.bf16.msra.mxu0 %v5160
        %6877 = vmatprep.subr.bf16.mxu0 %v5169
        %6878 = vmatpush1.bf16.msra.mxu0 %v5168
        %6879 = vmatprep.subr.bf16.mxu0 %v5177
        %6880 = vmatpush1.bf16.msra.mxu0 %v5176
        %6881 = vmatprep.mubr.bf16.mxu0 %v1575
        %6882 = vmatmul.mubr.bf16.gmra.mrb[0].mxu0 %v1574
        %v6883 = vpop.f32.mrb[0].mxu0
        %v6884 = vadd.f32 %v6841, %v6883
        %v6885 = vpop.f32.mrb[0].mxu0
        %v6886 = vadd.f32 %v6843, %v6885
        %v6887 = vpop.f32.mrb[0].mxu0
        %v6888 = vadd.f32 %v6845, %v6887
        %v6889 = vpop.f32.mrb[0].mxu0
        %v6890 = vadd.f32 %v6847, %v6889
        %6891 = vdwg.mxu0
        %6892 = vmatprep.subr.bf16.mxu0 %v5185
        %6893 = vmatpush1.bf16.msra.mxu0 %v5184
        %6894 = vmatprep.subr.bf16.mxu0 %v5193
        %6895 = vmatpush1.bf16.msra.mxu0 %v5192
        %6896 = vmatprep.subr.bf16.mxu0 %v5201
        %6897 = vmatpush1.bf16.msra.mxu0 %v5200
        %6898 = vmatprep.subr.bf16.mxu0 %v5209
        %6899 = vmatpush1.bf16.msra.mxu0 %v5208
        %6900 = vmatprep.subr.bf16.mxu0 %v5217
        %6901 = vmatpush1.bf16.msra.mxu0 %v5216
        %6902 = vmatprep.subr.bf16.mxu0 %v5225
        %6903 = vmatpush1.bf16.msra.mxu0 %v5224
        %6904 = vmatprep.subr.bf16.mxu0 %v5233
        %6905 = vmatpush1.bf16.msra.mxu0 %v5232
        %6906 = vmatprep.subr.bf16.mxu0 %v5241
        %6907 = vmatpush1.bf16.msra.mxu0 %v5240
        %6908 = vmatprep.subr.bf16.mxu0 %v5249
        %6909 = vmatpush1.bf16.msra.mxu0 %v5248
        %6910 = vmatprep.subr.bf16.mxu0 %v5257
        %6911 = vmatpush1.bf16.msra.mxu0 %v5256
        %6912 = vmatprep.subr.bf16.mxu0 %v5265
        %6913 = vmatpush1.bf16.msra.mxu0 %v5264
        %6914 = vmatprep.subr.bf16.mxu0 %v5273
        %6915 = vmatpush1.bf16.msra.mxu0 %v5272
        %6916 = vmatprep.subr.bf16.mxu0 %v5281
        %6917 = vmatpush1.bf16.msra.mxu0 %v5280
        %6918 = vmatprep.subr.bf16.mxu0 %v5289
        %6919 = vmatpush1.bf16.msra.mxu0 %v5288
        %6920 = vmatprep.subr.bf16.mxu0 %v5297
        %6921 = vmatpush1.bf16.msra.mxu0 %v5296
        %6922 = vmatprep.subr.bf16.mxu0 %v5305
        %6923 = vmatpush1.bf16.msra.mxu0 %v5304
        %6924 = vmatprep.mubr.bf16.mxu0 %v1577
        %6925 = vmatmul.mubr.bf16.gmra.mrb[0].mxu0 %v1576
        %v6926 = vpop.f32.mrb[0].mxu0
        %v6927 = vadd.f32 %v6884, %v6926
        %v6928 = vpop.f32.mrb[0].mxu0
        %v6929 = vadd.f32 %v6886, %v6928
        %v6930 = vpop.f32.mrb[0].mxu0
        %v6931 = vadd.f32 %v6888, %v6930
        %v6932 = vpop.f32.mrb[0].mxu0
        %v6933 = vadd.f32 %v6890, %v6932
        %6934 = vdwg.mxu0
        %6935 = vmatprep.subr.bf16.mxu0 %v5313
        %6936 = vmatpush1.bf16.msra.mxu0 %v5312
        %6937 = vmatprep.subr.bf16.mxu0 %v5321
        %6938 = vmatpush1.bf16.msra.mxu0 %v5320
        %6939 = vmatprep.subr.bf16.mxu0 %v5329
        %6940 = vmatpush1.bf16.msra.mxu0 %v5328
        %6941 = vmatprep.subr.bf16.mxu0 %v5337
        %6942 = vmatpush1.bf16.msra.mxu0 %v5336
        %6943 = vmatprep.subr.bf16.mxu0 %v5345
        %6944 = vmatpush1.bf16.msra.mxu0 %v5344
        %6945 = vmatprep.subr.bf16.mxu0 %v5353
        %6946 = vmatpush1.bf16.msra.mxu0 %v5352
        %6947 = vmatprep.subr.bf16.mxu0 %v5361
        %6948 = vmatpush1.bf16.msra.mxu0 %v5360
        %6949 = vmatprep.subr.bf16.mxu0 %v5369
        %6950 = vmatpush1.bf16.msra.mxu0 %v5368
        %6951 = vmatprep.subr.bf16.mxu0 %v5377
        %6952 = vmatpush1.bf16.msra.mxu0 %v5376
        %6953 = vmatprep.subr.bf16.mxu0 %v5385
        %6954 = vmatpush1.bf16.msra.mxu0 %v5384
        %6955 = vmatprep.subr.bf16.mxu0 %v5393
        %6956 = vmatpush1.bf16.msra.mxu0 %v5392
        %6957 = vmatprep.subr.bf16.mxu0 %v5401
        %6958 = vmatpush1.bf16.msra.mxu0 %v5400
        %6959 = vmatprep.subr.bf16.mxu0 %v5409
        %6960 = vmatpush1.bf16.msra.mxu0 %v5408
        %6961 = vmatprep.subr.bf16.mxu0 %v5417
        %6962 = vmatpush1.bf16.msra.mxu0 %v5416
        %6963 = vmatprep.subr.bf16.mxu0 %v5425
        %6964 = vmatpush1.bf16.msra.mxu0 %v5424
        %6965 = vmatprep.subr.bf16.mxu0 %v5433
        %6966 = vmatpush1.bf16.msra.mxu0 %v5432
        %6967 = vmatprep.mubr.bf16.mxu0 %v1579
        %6968 = vmatmul.mubr.bf16.gmra.mrb[0].mxu0 %v1578
        %v6969 = vpop.f32.mrb[0].mxu0
        %v6970 = vadd.f32 %v6927, %v6969
        %v6971 = vpop.f32.mrb[0].mxu0
        %v6972 = vadd.f32 %v6929, %v6971
        %v6973 = vpop.f32.mrb[0].mxu0
        %v6974 = vadd.f32 %v6931, %v6973
        %v6975 = vpop.f32.mrb[0].mxu0
        %v6976 = vadd.f32 %v6933, %v6975
        %6977 = vdwg.mxu0
        %6978 = vmatprep.subr.bf16.mxu0 %v5441
        %6979 = vmatpush1.bf16.msra.mxu0 %v5440
        %6980 = vmatprep.subr.bf16.mxu0 %v5449
        %6981 = vmatpush1.bf16.msra.mxu0 %v5448
        %6982 = vmatprep.subr.bf16.mxu0 %v5457
        %6983 = vmatpush1.bf16.msra.mxu0 %v5456
        %6984 = vmatprep.subr.bf16.mxu0 %v5465
        %6985 = vmatpush1.bf16.msra.mxu0 %v5464
        %6986 = vmatprep.subr.bf16.mxu0 %v5473
        %6987 = vmatpush1.bf16.msra.mxu0 %v5472
        %6988 = vmatprep.subr.bf16.mxu0 %v5481
        %6989 = vmatpush1.bf16.msra.mxu0 %v5480
        %6990 = vmatprep.subr.bf16.mxu0 %v5489
        %6991 = vmatpush1.bf16.msra.mxu0 %v5488
        %6992 = vmatprep.subr.bf16.mxu0 %v5497
        %6993 = vmatpush1.bf16.msra.mxu0 %v5496
        %6994 = vmatprep.subr.bf16.mxu0 %v5505
        %6995 = vmatpush1.bf16.msra.mxu0 %v5504
        %6996 = vmatprep.subr.bf16.mxu0 %v5513
        %6997 = vmatpush1.bf16.msra.mxu0 %v5512
        %6998 = vmatprep.subr.bf16.mxu0 %v5521
        %6999 = vmatpush1.bf16.msra.mxu0 %v5520
        %7000 = vmatprep.subr.bf16.mxu0 %v5529
        %7001 = vmatpush1.bf16.msra.mxu0 %v5528
        %7002 = vmatprep.subr.bf16.mxu0 %v5537
        %7003 = vmatpush1.bf16.msra.mxu0 %v5536
        %7004 = vmatprep.subr.bf16.mxu0 %v5545
        %7005 = vmatpush1.bf16.msra.mxu0 %v5544
        %7006 = vmatprep.subr.bf16.mxu0 %v5553
        %7007 = vmatpush1.bf16.msra.mxu0 %v5552
        %7008 = vmatprep.subr.bf16.mxu0 %v5561
        %7009 = vmatpush1.bf16.msra.mxu0 %v5560
        %7010 = vmatprep.mubr.bf16.mxu0 %v1581
        %7011 = vmatmul.mubr.bf16.gmra.mrb[0].mxu0 %v1580
        %v7012 = vpop.f32.mrb[0].mxu0
        %v7013 = vadd.f32 %v6970, %v7012
        %v7014 = vpop.f32.mrb[0].mxu0
        %v7015 = vadd.f32 %v6972, %v7014
        %v7016 = vpop.f32.mrb[0].mxu0
        %v7017 = vadd.f32 %v6974, %v7016
        %v7018 = vpop.f32.mrb[0].mxu0
        %v7019 = vadd.f32 %v6976, %v7018
        %7020 = vdwg.mxu0
        %7021 = vmatprep.subr.bf16.mxu0 %v5569
        %7022 = vmatpush1.bf16.msra.mxu0 %v5568
        %7023 = vmatprep.subr.bf16.mxu0 %v5577
        %7024 = vmatpush1.bf16.msra.mxu0 %v5576
        %7025 = vmatprep.subr.bf16.mxu0 %v5585
        %7026 = vmatpush1.bf16.msra.mxu0 %v5584
        %7027 = vmatprep.subr.bf16.mxu0 %v5593
        %7028 = vmatpush1.bf16.msra.mxu0 %v5592
        %7029 = vmatprep.subr.bf16.mxu0 %v5601
        %7030 = vmatpush1.bf16.msra.mxu0 %v5600
        %7031 = vmatprep.subr.bf16.mxu0 %v5609
        %7032 = vmatpush1.bf16.msra.mxu0 %v5608
        %7033 = vmatprep.subr.bf16.mxu0 %v5617
        %7034 = vmatpush1.bf16.msra.mxu0 %v5616
        %7035 = vmatprep.subr.bf16.mxu0 %v5625
        %7036 = vmatpush1.bf16.msra.mxu0 %v5624
        %7037 = vmatprep.subr.bf16.mxu0 %v5633
        %7038 = vmatpush1.bf16.msra.mxu0 %v5632
        %7039 = vmatprep.subr.bf16.mxu0 %v5641
        %7040 = vmatpush1.bf16.msra.mxu0 %v5640
        %7041 = vmatprep.subr.bf16.mxu0 %v5649
        %7042 = vmatpush1.bf16.msra.mxu0 %v5648
        %7043 = vmatprep.subr.bf16.mxu0 %v5657
        %7044 = vmatpush1.bf16.msra.mxu0 %v5656
        %7045 = vmatprep.subr.bf16.mxu0 %v5665
        %7046 = vmatpush1.bf16.msra.mxu0 %v5664
        %7047 = vmatprep.subr.bf16.mxu0 %v5673
        %7048 = vmatpush1.bf16.msra.mxu0 %v5672
        %7049 = vmatprep.subr.bf16.mxu0 %v5681
        %7050 = vmatpush1.bf16.msra.mxu0 %v5680
        %7051 = vmatprep.subr.bf16.mxu0 %v5689
        %7052 = vmatpush1.bf16.msra.mxu0 %v5688
        %7053 = vmatprep.mubr.bf16.mxu0 %v1583
        %7054 = vmatmul.mubr.bf16.gmra.mrb[0].mxu0 %v1582
        %v7055 = vpop.f32.mrb[0].mxu0
        %v7056 = vadd.f32 %v7013, %v7055
        %v7057 = vpop.f32.mrb[0].mxu0
        %v7058 = vadd.f32 %v7015, %v7057
        %v7059 = vpop.f32.mrb[0].mxu0
        %v7060 = vadd.f32 %v7017, %v7059
        %v7061 = vpop.f32.mrb[0].mxu0
        %v7062 = vadd.f32 %v7019, %v7061
        %7063 = vdwg.mxu0
        %7064 = vmatprep.subr.bf16.mxu0 %v4675
        %7065 = vmatpush1.bf16.msra.mxu0 %v4674
        %7066 = vmatprep.subr.bf16.mxu0 %v4683
        %7067 = vmatpush1.bf16.msra.mxu0 %v4682
        %7068 = vmatprep.subr.bf16.mxu0 %v4691
        %7069 = vmatpush1.bf16.msra.mxu0 %v4690
        %7070 = vmatprep.subr.bf16.mxu0 %v4699
        %7071 = vmatpush1.bf16.msra.mxu0 %v4698
        %7072 = vmatprep.subr.bf16.mxu0 %v4707
        %7073 = vmatpush1.bf16.msra.mxu0 %v4706
        %7074 = vmatprep.subr.bf16.mxu0 %v4715
        %7075 = vmatpush1.bf16.msra.mxu0 %v4714
        %7076 = vmatprep.subr.bf16.mxu0 %v4723
        %7077 = vmatpush1.bf16.msra.mxu0 %v4722
        %7078 = vmatprep.subr.bf16.mxu0 %v4731
        %7079 = vmatpush1.bf16.msra.mxu0 %v4730
        %7080 = vmatprep.subr.bf16.mxu0 %v4739
        %7081 = vmatpush1.bf16.msra.mxu0 %v4738
        %7082 = vmatprep.subr.bf16.mxu0 %v4747
        %7083 = vmatpush1.bf16.msra.mxu0 %v4746
        %7084 = vmatprep.subr.bf16.mxu0 %v4755
        %7085 = vmatpush1.bf16.msra.mxu0 %v4754
        %7086 = vmatprep.subr.bf16.mxu0 %v4763
        %7087 = vmatpush1.bf16.msra.mxu0 %v4762
        %7088 = vmatprep.subr.bf16.mxu0 %v4771
        %7089 = vmatpush1.bf16.msra.mxu0 %v4770
        %7090 = vmatprep.subr.bf16.mxu0 %v4779
        %7091 = vmatpush1.bf16.msra.mxu0 %v4778
        %7092 = vmatprep.subr.bf16.mxu0 %v4787
        %7093 = vmatpush1.bf16.msra.mxu0 %v4786
        %7094 = vmatprep.subr.bf16.mxu0 %v4795
        %7095 = vmatpush1.bf16.msra.mxu0 %v4794
        %7096 = vmatprep.mubr.bf16.mxu0 %v1569
        %7097 = vmatmul.mubr.bf16.gmra.mrb[0].mxu0 %v1568
        %v7098 = vpop.f32.mrb[0].mxu0
        %v7099 = vadd.f32 0.0, %v7098
        %v7100 = vpop.f32.mrb[0].mxu0
        %v7101 = vadd.f32 0.0, %v7100
        %v7102 = vpop.f32.mrb[0].mxu0
        %v7103 = vadd.f32 0.0, %v7102
        %v7104 = vpop.f32.mrb[0].mxu0
        %v7105 = vadd.f32 0.0, %v7104
        %7106 = vdwg.mxu0
        %7107 = vmatprep.subr.bf16.mxu0 %v4803
        %7108 = vmatpush1.bf16.msra.mxu0 %v4802
        %7109 = vmatprep.subr.bf16.mxu0 %v4811
        %7110 = vmatpush1.bf16.msra.mxu0 %v4810
        %7111 = vmatprep.subr.bf16.mxu0 %v4819
        %7112 = vmatpush1.bf16.msra.mxu0 %v4818
        %7113 = vmatprep.subr.bf16.mxu0 %v4827
        %7114 = vmatpush1.bf16.msra.mxu0 %v4826
        %7115 = vmatprep.subr.bf16.mxu0 %v4835
        %7116 = vmatpush1.bf16.msra.mxu0 %v4834
        %7117 = vmatprep.subr.bf16.mxu0 %v4843
        %7118 = vmatpush1.bf16.msra.mxu0 %v4842
        %7119 = vmatprep.subr.bf16.mxu0 %v4851
        %7120 = vmatpush1.bf16.msra.mxu0 %v4850
        %7121 = vmatprep.subr.bf16.mxu0 %v4859
        %7122 = vmatpush1.bf16.msra.mxu0 %v4858
        %7123 = vmatprep.subr.bf16.mxu0 %v4867
        %7124 = vmatpush1.bf16.msra.mxu0 %v4866
        %7125 = vmatprep.subr.bf16.mxu0 %v4875
        %7126 = vmatpush1.bf16.msra.mxu0 %v4874
        %7127 = vmatprep.subr.bf16.mxu0 %v4883
        %7128 = vmatpush1.bf16.msra.mxu0 %v4882
        %7129 = vmatprep.subr.bf16.mxu0 %v4891
        %7130 = vmatpush1.bf16.msra.mxu0 %v4890
        %7131 = vmatprep.subr.bf16.mxu0 %v4899
        %7132 = vmatpush1.bf16.msra.mxu0 %v4898
        %7133 = vmatprep.subr.bf16.mxu0 %v4907
        %7134 = vmatpush1.bf16.msra.mxu0 %v4906
        %7135 = vmatprep.subr.bf16.mxu0 %v4915
        %7136 = vmatpush1.bf16.msra.mxu0 %v4914
        %7137 = vmatprep.subr.bf16.mxu0 %v4923
        %7138 = vmatpush1.bf16.msra.mxu0 %v4922
        %7139 = vmatprep.mubr.bf16.mxu0 %v1571
        %7140 = vmatmul.mubr.bf16.gmra.mrb[0].mxu0 %v1570
        %v7141 = vpop.f32.mrb[0].mxu0
        %v7142 = vadd.f32 %v7099, %v7141
        %v7143 = vpop.f32.mrb[0].mxu0
        %v7144 = vadd.f32 %v7101, %v7143
        %v7145 = vpop.f32.mrb[0].mxu0
        %v7146 = vadd.f32 %v7103, %v7145
        %v7147 = vpop.f32.mrb[0].mxu0
        %v7148 = vadd.f32 %v7105, %v7147
        %7149 = vdwg.mxu0
        %7150 = vmatprep.subr.bf16.mxu0 %v4931
        %7151 = vmatpush1.bf16.msra.mxu0 %v4930
        %7152 = vmatprep.subr.bf16.mxu0 %v4939
        %7153 = vmatpush1.bf16.msra.mxu0 %v4938
        %7154 = vmatprep.subr.bf16.mxu0 %v4947
        %7155 = vmatpush1.bf16.msra.mxu0 %v4946
        %7156 = vmatprep.subr.bf16.mxu0 %v4955
        %7157 = vmatpush1.bf16.msra.mxu0 %v4954
        %7158 = vmatprep.subr.bf16.mxu0 %v4963
        %7159 = vmatpush1.bf16.msra.mxu0 %v4962
        %7160 = vmatprep.subr.bf16.mxu0 %v4971
        %7161 = vmatpush1.bf16.msra.mxu0 %v4970
        %7162 = vmatprep.subr.bf16.mxu0 %v4979
        %7163 = vmatpush1.bf16.msra.mxu0 %v4978
        %7164 = vmatprep.subr.bf16.mxu0 %v4987
        %7165 = vmatpush1.bf16.msra.mxu0 %v4986
        %7166 = vmatprep.subr.bf16.mxu0 %v4995
        %7167 = vmatpush1.bf16.msra.mxu0 %v4994
        %7168 = vmatprep.subr.bf16.mxu0 %v5003
        %7169 = vmatpush1.bf16.msra.mxu0 %v5002
        %7170 = vmatprep.subr.bf16.mxu0 %v5011
        %7171 = vmatpush1.bf16.msra.mxu0 %v5010
        %7172 = vmatprep.subr.bf16.mxu0 %v5019
        %7173 = vmatpush1.bf16.msra.mxu0 %v5018
        %7174 = vmatprep.subr.bf16.mxu0 %v5027
        %7175 = vmatpush1.bf16.msra.mxu0 %v5026
        %7176 = vmatprep.subr.bf16.mxu0 %v5035
        %7177 = vmatpush1.bf16.msra.mxu0 %v5034
        %7178 = vmatprep.subr.bf16.mxu0 %v5043
        %7179 = vmatpush1.bf16.msra.mxu0 %v5042
        %7180 = vmatprep.subr.bf16.mxu0 %v5051
        %7181 = vmatpush1.bf16.msra.mxu0 %v5050
        %7182 = vmatprep.mubr.bf16.mxu0 %v1573
        %7183 = vmatmul.mubr.bf16.gmra.mrb[0].mxu0 %v1572
        %v7184 = vpop.f32.mrb[0].mxu0
        %v7185 = vadd.f32 %v7142, %v7184
        %v7186 = vpop.f32.mrb[0].mxu0
        %v7187 = vadd.f32 %v7144, %v7186
        %v7188 = vpop.f32.mrb[0].mxu0
        %v7189 = vadd.f32 %v7146, %v7188
        %v7190 = vpop.f32.mrb[0].mxu0
        %v7191 = vadd.f32 %v7148, %v7190
        %7192 = vdwg.mxu0
        %7193 = vmatprep.subr.bf16.mxu0 %v5059
        %7194 = vmatpush1.bf16.msra.mxu0 %v5058
        %7195 = vmatprep.subr.bf16.mxu0 %v5067
        %7196 = vmatpush1.bf16.msra.mxu0 %v5066
        %7197 = vmatprep.subr.bf16.mxu0 %v5075
        %7198 = vmatpush1.bf16.msra.mxu0 %v5074
        %7199 = vmatprep.subr.bf16.mxu0 %v5083
        %7200 = vmatpush1.bf16.msra.mxu0 %v5082
        %7201 = vmatprep.subr.bf16.mxu0 %v5091
        %7202 = vmatpush1.bf16.msra.mxu0 %v5090
        %7203 = vmatprep.subr.bf16.mxu0 %v5099
        %7204 = vmatpush1.bf16.msra.mxu0 %v5098
        %7205 = vmatprep.subr.bf16.mxu0 %v5107
        %7206 = vmatpush1.bf16.msra.mxu0 %v5106
        %7207 = vmatprep.subr.bf16.mxu0 %v5115
        %7208 = vmatpush1.bf16.msra.mxu0 %v5114
        %7209 = vmatprep.subr.bf16.mxu0 %v5123
        %7210 = vmatpush1.bf16.msra.mxu0 %v5122
        %7211 = vmatprep.subr.bf16.mxu0 %v5131
        %7212 = vmatpush1.bf16.msra.mxu0 %v5130
        %7213 = vmatprep.subr.bf16.mxu0 %v5139
        %7214 = vmatpush1.bf16.msra.mxu0 %v5138
        %7215 = vmatprep.subr.bf16.mxu0 %v5147
        %7216 = vmatpush1.bf16.msra.mxu0 %v5146
        %7217 = vmatprep.subr.bf16.mxu0 %v5155
        %7218 = vmatpush1.bf16.msra.mxu0 %v5154
        %7219 = vmatprep.subr.bf16.mxu0 %v5163
        %7220 = vmatpush1.bf16.msra.mxu0 %v5162
        %7221 = vmatprep.subr.bf16.mxu0 %v5171
        %7222 = vmatpush1.bf16.msra.mxu0 %v5170
        %7223 = vmatprep.subr.bf16.mxu0 %v5179
        %7224 = vmatpush1.bf16.msra.mxu0 %v5178
        %7225 = vmatprep.mubr.bf16.mxu0 %v1575
        %7226 = vmatmul.mubr.bf16.gmra.mrb[0].mxu0 %v1574
        %v7227 = vpop.f32.mrb[0].mxu0
        %v7228 = vadd.f32 %v7185, %v7227
        %v7229 = vpop.f32.mrb[0].mxu0
        %v7230 = vadd.f32 %v7187, %v7229
        %v7231 = vpop.f32.mrb[0].mxu0
        %v7232 = vadd.f32 %v7189, %v7231
        %v7233 = vpop.f32.mrb[0].mxu0
        %v7234 = vadd.f32 %v7191, %v7233
        %7235 = vdwg.mxu0
        %7236 = vmatprep.subr.bf16.mxu0 %v5187
        %7237 = vmatpush1.bf16.msra.mxu0 %v5186
        %7238 = vmatprep.subr.bf16.mxu0 %v5195
        %7239 = vmatpush1.bf16.msra.mxu0 %v5194
        %7240 = vmatprep.subr.bf16.mxu0 %v5203
        %7241 = vmatpush1.bf16.msra.mxu0 %v5202
        %7242 = vmatprep.subr.bf16.mxu0 %v5211
        %7243 = vmatpush1.bf16.msra.mxu0 %v5210
        %7244 = vmatprep.subr.bf16.mxu0 %v5219
        %7245 = vmatpush1.bf16.msra.mxu0 %v5218
        %7246 = vmatprep.subr.bf16.mxu0 %v5227
        %7247 = vmatpush1.bf16.msra.mxu0 %v5226
        %7248 = vmatprep.subr.bf16.mxu0 %v5235
        %7249 = vmatpush1.bf16.msra.mxu0 %v5234
        %7250 = vmatprep.subr.bf16.mxu0 %v5243
        %7251 = vmatpush1.bf16.msra.mxu0 %v5242
        %7252 = vmatprep.subr.bf16.mxu0 %v5251
        %7253 = vmatpush1.bf16.msra.mxu0 %v5250
        %7254 = vmatprep.subr.bf16.mxu0 %v5259
        %7255 = vmatpush1.bf16.msra.mxu0 %v5258
        %7256 = vmatprep.subr.bf16.mxu0 %v5267
        %7257 = vmatpush1.bf16.msra.mxu0 %v5266
        %7258 = vmatprep.subr.bf16.mxu0 %v5275
        %7259 = vmatpush1.bf16.msra.mxu0 %v5274
        %7260 = vmatprep.subr.bf16.mxu0 %v5283
        %7261 = vmatpush1.bf16.msra.mxu0 %v5282
        %7262 = vmatprep.subr.bf16.mxu0 %v5291
        %7263 = vmatpush1.bf16.msra.mxu0 %v5290
        %7264 = vmatprep.subr.bf16.mxu0 %v5299
        %7265 = vmatpush1.bf16.msra.mxu0 %v5298
        %7266 = vmatprep.subr.bf16.mxu0 %v5307
        %7267 = vmatpush1.bf16.msra.mxu0 %v5306
        %7268 = vmatprep.mubr.bf16.mxu0 %v1577
        %7269 = vmatmul.mubr.bf16.gmra.mrb[0].mxu0 %v1576
        %v7270 = vpop.f32.mrb[0].mxu0
        %v7271 = vadd.f32 %v7228, %v7270
        %v7272 = vpop.f32.mrb[0].mxu0
        %v7273 = vadd.f32 %v7230, %v7272
        %v7274 = vpop.f32.mrb[0].mxu0
        %v7275 = vadd.f32 %v7232, %v7274
        %v7276 = vpop.f32.mrb[0].mxu0
        %v7277 = vadd.f32 %v7234, %v7276
        %7278 = vdwg.mxu0
        %7279 = vmatprep.subr.bf16.mxu0 %v5315
        %7280 = vmatpush1.bf16.msra.mxu0 %v5314
        %7281 = vmatprep.subr.bf16.mxu0 %v5323
        %7282 = vmatpush1.bf16.msra.mxu0 %v5322
        %7283 = vmatprep.subr.bf16.mxu0 %v5331
        %7284 = vmatpush1.bf16.msra.mxu0 %v5330
        %7285 = vmatprep.subr.bf16.mxu0 %v5339
        %7286 = vmatpush1.bf16.msra.mxu0 %v5338
        %7287 = vmatprep.subr.bf16.mxu0 %v5347
        %7288 = vmatpush1.bf16.msra.mxu0 %v5346
        %7289 = vmatprep.subr.bf16.mxu0 %v5355
        %7290 = vmatpush1.bf16.msra.mxu0 %v5354
        %7291 = vmatprep.subr.bf16.mxu0 %v5363
        %7292 = vmatpush1.bf16.msra.mxu0 %v5362
        %7293 = vmatprep.subr.bf16.mxu0 %v5371
        %7294 = vmatpush1.bf16.msra.mxu0 %v5370
        %7295 = vmatprep.subr.bf16.mxu0 %v5379
        %7296 = vmatpush1.bf16.msra.mxu0 %v5378
        %7297 = vmatprep.subr.bf16.mxu0 %v5387
        %7298 = vmatpush1.bf16.msra.mxu0 %v5386
        %7299 = vmatprep.subr.bf16.mxu0 %v5395
        %7300 = vmatpush1.bf16.msra.mxu0 %v5394
        %7301 = vmatprep.subr.bf16.mxu0 %v5403
        %7302 = vmatpush1.bf16.msra.mxu0 %v5402
        %7303 = vmatprep.subr.bf16.mxu0 %v5411
        %7304 = vmatpush1.bf16.msra.mxu0 %v5410
        %7305 = vmatprep.subr.bf16.mxu0 %v5419
        %7306 = vmatpush1.bf16.msra.mxu0 %v5418
        %7307 = vmatprep.subr.bf16.mxu0 %v5427
        %7308 = vmatpush1.bf16.msra.mxu0 %v5426
        %7309 = vmatprep.subr.bf16.mxu0 %v5435
        %7310 = vmatpush1.bf16.msra.mxu0 %v5434
        %7311 = vmatprep.mubr.bf16.mxu0 %v1579
        %7312 = vmatmul.mubr.bf16.gmra.mrb[0].mxu0 %v1578
        %v7313 = vpop.f32.mrb[0].mxu0
        %v7314 = vadd.f32 %v7271, %v7313
        %v7315 = vpop.f32.mrb[0].mxu0
        %v7316 = vadd.f32 %v7273, %v7315
        %v7317 = vpop.f32.mrb[0].mxu0
        %v7318 = vadd.f32 %v7275, %v7317
        %v7319 = vpop.f32.mrb[0].mxu0
        %v7320 = vadd.f32 %v7277, %v7319
        %7321 = vdwg.mxu0
        %7322 = vmatprep.subr.bf16.mxu0 %v5443
        %7323 = vmatpush1.bf16.msra.mxu0 %v5442
        %7324 = vmatprep.subr.bf16.mxu0 %v5451
        %7325 = vmatpush1.bf16.msra.mxu0 %v5450
        %7326 = vmatprep.subr.bf16.mxu0 %v5459
        %7327 = vmatpush1.bf16.msra.mxu0 %v5458
        %7328 = vmatprep.subr.bf16.mxu0 %v5467
        %7329 = vmatpush1.bf16.msra.mxu0 %v5466
        %7330 = vmatprep.subr.bf16.mxu0 %v5475
        %7331 = vmatpush1.bf16.msra.mxu0 %v5474
        %7332 = vmatprep.subr.bf16.mxu0 %v5483
        %7333 = vmatpush1.bf16.msra.mxu0 %v5482
        %7334 = vmatprep.subr.bf16.mxu0 %v5491
        %7335 = vmatpush1.bf16.msra.mxu0 %v5490
        %7336 = vmatprep.subr.bf16.mxu0 %v5499
        %7337 = vmatpush1.bf16.msra.mxu0 %v5498
        %7338 = vmatprep.subr.bf16.mxu0 %v5507
        %7339 = vmatpush1.bf16.msra.mxu0 %v5506
        %7340 = vmatprep.subr.bf16.mxu0 %v5515
        %7341 = vmatpush1.bf16.msra.mxu0 %v5514
        %7342 = vmatprep.subr.bf16.mxu0 %v5523
        %7343 = vmatpush1.bf16.msra.mxu0 %v5522
        %7344 = vmatprep.subr.bf16.mxu0 %v5531
        %7345 = vmatpush1.bf16.msra.mxu0 %v5530
        %7346 = vmatprep.subr.bf16.mxu0 %v5539
        %7347 = vmatpush1.bf16.msra.mxu0 %v5538
        %7348 = vmatprep.subr.bf16.mxu0 %v5547
        %7349 = vmatpush1.bf16.msra.mxu0 %v5546
        %7350 = vmatprep.subr.bf16.mxu0 %v5555
        %7351 = vmatpush1.bf16.msra.mxu0 %v5554
        %7352 = vmatprep.subr.bf16.mxu0 %v5563
        %7353 = vmatpush1.bf16.msra.mxu0 %v5562
        %7354 = vmatprep.mubr.bf16.mxu0 %v1581
        %7355 = vmatmul.mubr.bf16.gmra.mrb[0].mxu0 %v1580
        %v7356 = vpop.f32.mrb[0].mxu0
        %v7357 = vadd.f32 %v7314, %v7356
        %v7358 = vpop.f32.mrb[0].mxu0
        %v7359 = vadd.f32 %v7316, %v7358
        %v7360 = vpop.f32.mrb[0].mxu0
        %v7361 = vadd.f32 %v7318, %v7360
        %v7362 = vpop.f32.mrb[0].mxu0
        %v7363 = vadd.f32 %v7320, %v7362
        %7364 = vdwg.mxu0
        %7365 = vmatprep.subr.bf16.mxu0 %v5571
        %7366 = vmatpush1.bf16.msra.mxu0 %v5570
        %7367 = vmatprep.subr.bf16.mxu0 %v5579
        %7368 = vmatpush1.bf16.msra.mxu0 %v5578
        %7369 = vmatprep.subr.bf16.mxu0 %v5587
        %7370 = vmatpush1.bf16.msra.mxu0 %v5586
        %7371 = vmatprep.subr.bf16.mxu0 %v5595
        %7372 = vmatpush1.bf16.msra.mxu0 %v5594
        %7373 = vmatprep.subr.bf16.mxu0 %v5603
        %7374 = vmatpush1.bf16.msra.mxu0 %v5602
        %7375 = vmatprep.subr.bf16.mxu0 %v5611
        %7376 = vmatpush1.bf16.msra.mxu0 %v5610
        %7377 = vmatprep.subr.bf16.mxu0 %v5619
        %7378 = vmatpush1.bf16.msra.mxu0 %v5618
        %7379 = vmatprep.subr.bf16.mxu0 %v5627
        %7380 = vmatpush1.bf16.msra.mxu0 %v5626
        %7381 = vmatprep.subr.bf16.mxu0 %v5635
        %7382 = vmatpush1.bf16.msra.mxu0 %v5634
        %7383 = vmatprep.subr.bf16.mxu0 %v5643
        %7384 = vmatpush1.bf16.msra.mxu0 %v5642
        %7385 = vmatprep.subr.bf16.mxu0 %v5651
        %7386 = vmatpush1.bf16.msra.mxu0 %v5650
        %7387 = vmatprep.subr.bf16.mxu0 %v5659
        %7388 = vmatpush1.bf16.msra.mxu0 %v5658
        %7389 = vmatprep.subr.bf16.mxu0 %v5667
        %7390 = vmatpush1.bf16.msra.mxu0 %v5666
        %7391 = vmatprep.subr.bf16.mxu0 %v5675
        %7392 = vmatpush1.bf16.msra.mxu0 %v5674
        %7393 = vmatprep.subr.bf16.mxu0 %v5683
        %7394 = vmatpush1.bf16.msra.mxu0 %v5682
        %7395 = vmatprep.subr.bf16.mxu0 %v5691
        %7396 = vmatpush1.bf16.msra.mxu0 %v5690
        %7397 = vmatprep.mubr.bf16.mxu0 %v1583
        %7398 = vmatmul.mubr.bf16.gmra.mrb[0].mxu0 %v1582
        %v7399 = vpop.f32.mrb[0].mxu0
        %v7400 = vadd.f32 %v7357, %v7399
        %v7401 = vpop.f32.mrb[0].mxu0
        %v7402 = vadd.f32 %v7359, %v7401
        %v7403 = vpop.f32.mrb[0].mxu0
        %v7404 = vadd.f32 %v7361, %v7403
        %v7405 = vpop.f32.mrb[0].mxu0
        %v7406 = vadd.f32 %v7363, %v7405
        %7407 = vdwg.mxu0
        %7408 = vmatprep.subr.bf16.mxu0 %v4677
        %7409 = vmatpush1.bf16.msra.mxu0 %v4676
        %7410 = vmatprep.subr.bf16.mxu0 %v4685
        %7411 = vmatpush1.bf16.msra.mxu0 %v4684
        %7412 = vmatprep.subr.bf16.mxu0 %v4693
        %7413 = vmatpush1.bf16.msra.mxu0 %v4692
        %7414 = vmatprep.subr.bf16.mxu0 %v4701
        %7415 = vmatpush1.bf16.msra.mxu0 %v4700
        %7416 = vmatprep.subr.bf16.mxu0 %v4709
        %7417 = vmatpush1.bf16.msra.mxu0 %v4708
        %7418 = vmatprep.subr.bf16.mxu0 %v4717
        %7419 = vmatpush1.bf16.msra.mxu0 %v4716
        %7420 = vmatprep.subr.bf16.mxu0 %v4725
        %7421 = vmatpush1.bf16.msra.mxu0 %v4724
        %7422 = vmatprep.subr.bf16.mxu0 %v4733
        %7423 = vmatpush1.bf16.msra.mxu0 %v4732
        %7424 = vmatprep.subr.bf16.mxu0 %v4741
        %7425 = vmatpush1.bf16.msra.mxu0 %v4740
        %7426 = vmatprep.subr.bf16.mxu0 %v4749
        %7427 = vmatpush1.bf16.msra.mxu0 %v4748
        %7428 = vmatprep.subr.bf16.mxu0 %v4757
        %7429 = vmatpush1.bf16.msra.mxu0 %v4756
        %7430 = vmatprep.subr.bf16.mxu0 %v4765
        %7431 = vmatpush1.bf16.msra.mxu0 %v4764
        %7432 = vmatprep.subr.bf16.mxu0 %v4773
        %7433 = vmatpush1.bf16.msra.mxu0 %v4772
        %7434 = vmatprep.subr.bf16.mxu0 %v4781
        %7435 = vmatpush1.bf16.msra.mxu0 %v4780
        %7436 = vmatprep.subr.bf16.mxu0 %v4789
        %7437 = vmatpush1.bf16.msra.mxu0 %v4788
        %7438 = vmatprep.subr.bf16.mxu0 %v4797
        %7439 = vmatpush1.bf16.msra.mxu0 %v4796
        %7440 = vmatprep.mubr.bf16.mxu0 %v1569
        %7441 = vmatmul.mubr.bf16.gmra.mrb[0].mxu0 %v1568
        %v7442 = vpop.f32.mrb[0].mxu0
        %v7443 = vadd.f32 0.0, %v7442
        %v7444 = vpop.f32.mrb[0].mxu0
        %v7445 = vadd.f32 0.0, %v7444
        %v7446 = vpop.f32.mrb[0].mxu0
        %v7447 = vadd.f32 0.0, %v7446
        %v7448 = vpop.f32.mrb[0].mxu0
        %v7449 = vadd.f32 0.0, %v7448
        %7450 = vdwg.mxu0
        %7451 = vmatprep.subr.bf16.mxu0 %v4805
        %7452 = vmatpush1.bf16.msra.mxu0 %v4804
        %7453 = vmatprep.subr.bf16.mxu0 %v4813
        %7454 = vmatpush1.bf16.msra.mxu0 %v4812
        %7455 = vmatprep.subr.bf16.mxu0 %v4821
        %7456 = vmatpush1.bf16.msra.mxu0 %v4820
        %7457 = vmatprep.subr.bf16.mxu0 %v4829
        %7458 = vmatpush1.bf16.msra.mxu0 %v4828
        %7459 = vmatprep.subr.bf16.mxu0 %v4837
        %7460 = vmatpush1.bf16.msra.mxu0 %v4836
        %7461 = vmatprep.subr.bf16.mxu0 %v4845
        %7462 = vmatpush1.bf16.msra.mxu0 %v4844
        %7463 = vmatprep.subr.bf16.mxu0 %v4853
        %7464 = vmatpush1.bf16.msra.mxu0 %v4852
        %7465 = vmatprep.subr.bf16.mxu0 %v4861
        %7466 = vmatpush1.bf16.msra.mxu0 %v4860
        %7467 = vmatprep.subr.bf16.mxu0 %v4869
        %7468 = vmatpush1.bf16.msra.mxu0 %v4868
        %7469 = vmatprep.subr.bf16.mxu0 %v4877
        %7470 = vmatpush1.bf16.msra.mxu0 %v4876
        %7471 = vmatprep.subr.bf16.mxu0 %v4885
        %7472 = vmatpush1.bf16.msra.mxu0 %v4884
        %7473 = vmatprep.subr.bf16.mxu0 %v4893
        %7474 = vmatpush1.bf16.msra.mxu0 %v4892
        %7475 = vmatprep.subr.bf16.mxu0 %v4901
        %7476 = vmatpush1.bf16.msra.mxu0 %v4900
        %7477 = vmatprep.subr.bf16.mxu0 %v4909
        %7478 = vmatpush1.bf16.msra.mxu0 %v4908
        %7479 = vmatprep.subr.bf16.mxu0 %v4917
        %7480 = vmatpush1.bf16.msra.mxu0 %v4916
        %7481 = vmatprep.subr.bf16.mxu0 %v4925
        %7482 = vmatpush1.bf16.msra.mxu0 %v4924
        %7483 = vmatprep.mubr.bf16.mxu0 %v1571
        %7484 = vmatmul.mubr.bf16.gmra.mrb[0].mxu0 %v1570
        %v7485 = vpop.f32.mrb[0].mxu0
        %v7486 = vadd.f32 %v7443, %v7485
        %v7487 = vpop.f32.mrb[0].mxu0
        %v7488 = vadd.f32 %v7445, %v7487
        %v7489 = vpop.f32.mrb[0].mxu0
        %v7490 = vadd.f32 %v7447, %v7489
        %v7491 = vpop.f32.mrb[0].mxu0
        %v7492 = vadd.f32 %v7449, %v7491
        %7493 = vdwg.mxu0
        %7494 = vmatprep.subr.bf16.mxu0 %v4933
        %7495 = vmatpush1.bf16.msra.mxu0 %v4932
        %7496 = vmatprep.subr.bf16.mxu0 %v4941
        %7497 = vmatpush1.bf16.msra.mxu0 %v4940
        %7498 = vmatprep.subr.bf16.mxu0 %v4949
        %7499 = vmatpush1.bf16.msra.mxu0 %v4948
        %7500 = vmatprep.subr.bf16.mxu0 %v4957
        %7501 = vmatpush1.bf16.msra.mxu0 %v4956
        %7502 = vmatprep.subr.bf16.mxu0 %v4965
        %7503 = vmatpush1.bf16.msra.mxu0 %v4964
        %7504 = vmatprep.subr.bf16.mxu0 %v4973
        %7505 = vmatpush1.bf16.msra.mxu0 %v4972
        %7506 = vmatprep.subr.bf16.mxu0 %v4981
        %7507 = vmatpush1.bf16.msra.mxu0 %v4980
        %7508 = vmatprep.subr.bf16.mxu0 %v4989
        %7509 = vmatpush1.bf16.msra.mxu0 %v4988
        %7510 = vmatprep.subr.bf16.mxu0 %v4997
        %7511 = vmatpush1.bf16.msra.mxu0 %v4996
        %7512 = vmatprep.subr.bf16.mxu0 %v5005
        %7513 = vmatpush1.bf16.msra.mxu0 %v5004
        %7514 = vmatprep.subr.bf16.mxu0 %v5013
        %7515 = vmatpush1.bf16.msra.mxu0 %v5012
        %7516 = vmatprep.subr.bf16.mxu0 %v5021
        %7517 = vmatpush1.bf16.msra.mxu0 %v5020
        %7518 = vmatprep.subr.bf16.mxu0 %v5029
        %7519 = vmatpush1.bf16.msra.mxu0 %v5028
        %7520 = vmatprep.subr.bf16.mxu0 %v5037
        %7521 = vmatpush1.bf16.msra.mxu0 %v5036
        %7522 = vmatprep.subr.bf16.mxu0 %v5045
        %7523 = vmatpush1.bf16.msra.mxu0 %v5044
        %7524 = vmatprep.subr.bf16.mxu0 %v5053
        %7525 = vmatpush1.bf16.msra.mxu0 %v5052
        %7526 = vmatprep.mubr.bf16.mxu0 %v1573
        %7527 = vmatmul.mubr.bf16.gmra.mrb[0].mxu0 %v1572
        %v7528 = vpop.f32.mrb[0].mxu0
        %v7529 = vadd.f32 %v7486, %v7528
        %v7530 = vpop.f32.mrb[0].mxu0
        %v7531 = vadd.f32 %v7488, %v7530
        %v7532 = vpop.f32.mrb[0].mxu0
        %v7533 = vadd.f32 %v7490, %v7532
        %v7534 = vpop.f32.mrb[0].mxu0
        %v7535 = vadd.f32 %v7492, %v7534
        %7536 = vdwg.mxu0
        %7537 = vmatprep.subr.bf16.mxu0 %v5061
        %7538 = vmatpush1.bf16.msra.mxu0 %v5060
        %7539 = vmatprep.subr.bf16.mxu0 %v5069
        %7540 = vmatpush1.bf16.msra.mxu0 %v5068
        %7541 = vmatprep.subr.bf16.mxu0 %v5077
        %7542 = vmatpush1.bf16.msra.mxu0 %v5076
        %7543 = vmatprep.subr.bf16.mxu0 %v5085
        %7544 = vmatpush1.bf16.msra.mxu0 %v5084
        %7545 = vmatprep.subr.bf16.mxu0 %v5093
        %7546 = vmatpush1.bf16.msra.mxu0 %v5092
        %7547 = vmatprep.subr.bf16.mxu0 %v5101
        %7548 = vmatpush1.bf16.msra.mxu0 %v5100
        %7549 = vmatprep.subr.bf16.mxu0 %v5109
        %7550 = vmatpush1.bf16.msra.mxu0 %v5108
        %7551 = vmatprep.subr.bf16.mxu0 %v5117
        %7552 = vmatpush1.bf16.msra.mxu0 %v5116
        %7553 = vmatprep.subr.bf16.mxu0 %v5125
        %7554 = vmatpush1.bf16.msra.mxu0 %v5124
        %7555 = vmatprep.subr.bf16.mxu0 %v5133
        %7556 = vmatpush1.bf16.msra.mxu0 %v5132
        %7557 = vmatprep.subr.bf16.mxu0 %v5141
        %7558 = vmatpush1.bf16.msra.mxu0 %v5140
        %7559 = vmatprep.subr.bf16.mxu0 %v5149
        %7560 = vmatpush1.bf16.msra.mxu0 %v5148
        %7561 = vmatprep.subr.bf16.mxu0 %v5157
        %7562 = vmatpush1.bf16.msra.mxu0 %v5156
        %7563 = vmatprep.subr.bf16.mxu0 %v5165
        %7564 = vmatpush1.bf16.msra.mxu0 %v5164
        %7565 = vmatprep.subr.bf16.mxu0 %v5173
        %7566 = vmatpush1.bf16.msra.mxu0 %v5172
        %7567 = vmatprep.subr.bf16.mxu0 %v5181
        %7568 = vmatpush1.bf16.msra.mxu0 %v5180
        %7569 = vmatprep.mubr.bf16.mxu0 %v1575
        %7570 = vmatmul.mubr.bf16.gmra.mrb[0].mxu0 %v1574
        %v7571 = vpop.f32.mrb[0].mxu0
        %v7572 = vadd.f32 %v7529, %v7571
        %v7573 = vpop.f32.mrb[0].mxu0
        %v7574 = vadd.f32 %v7531, %v7573
        %v7575 = vpop.f32.mrb[0].mxu0
        %v7576 = vadd.f32 %v7533, %v7575
        %v7577 = vpop.f32.mrb[0].mxu0
        %v7578 = vadd.f32 %v7535, %v7577
        %7579 = vdwg.mxu0
        %7580 = vmatprep.subr.bf16.mxu0 %v5189
        %7581 = vmatpush1.bf16.msra.mxu0 %v5188
        %7582 = vmatprep.subr.bf16.mxu0 %v5197
        %7583 = vmatpush1.bf16.msra.mxu0 %v5196
        %7584 = vmatprep.subr.bf16.mxu0 %v5205
        %7585 = vmatpush1.bf16.msra.mxu0 %v5204
        %7586 = vmatprep.subr.bf16.mxu0 %v5213
        %7587 = vmatpush1.bf16.msra.mxu0 %v5212
        %7588 = vmatprep.subr.bf16.mxu0 %v5221
        %7589 = vmatpush1.bf16.msra.mxu0 %v5220
        %7590 = vmatprep.subr.bf16.mxu0 %v5229
        %7591 = vmatpush1.bf16.msra.mxu0 %v5228
        %7592 = vmatprep.subr.bf16.mxu0 %v5237
        %7593 = vmatpush1.bf16.msra.mxu0 %v5236
        %7594 = vmatprep.subr.bf16.mxu0 %v5245
        %7595 = vmatpush1.bf16.msra.mxu0 %v5244
        %7596 = vmatprep.subr.bf16.mxu0 %v5253
        %7597 = vmatpush1.bf16.msra.mxu0 %v5252
        %7598 = vmatprep.subr.bf16.mxu0 %v5261
        %7599 = vmatpush1.bf16.msra.mxu0 %v5260
        %7600 = vmatprep.subr.bf16.mxu0 %v5269
        %7601 = vmatpush1.bf16.msra.mxu0 %v5268
        %7602 = vmatprep.subr.bf16.mxu0 %v5277
        %7603 = vmatpush1.bf16.msra.mxu0 %v5276
        %7604 = vmatprep.subr.bf16.mxu0 %v5285
        %7605 = vmatpush1.bf16.msra.mxu0 %v5284
        %7606 = vmatprep.subr.bf16.mxu0 %v5293
        %7607 = vmatpush1.bf16.msra.mxu0 %v5292
        %7608 = vmatprep.subr.bf16.mxu0 %v5301
        %7609 = vmatpush1.bf16.msra.mxu0 %v5300
        %7610 = vmatprep.subr.bf16.mxu0 %v5309
        %7611 = vmatpush1.bf16.msra.mxu0 %v5308
        %7612 = vmatprep.mubr.bf16.mxu0 %v1577
        %7613 = vmatmul.mubr.bf16.gmra.mrb[0].mxu0 %v1576
        %v7614 = vpop.f32.mrb[0].mxu0
        %v7615 = vadd.f32 %v7572, %v7614
        %v7616 = vpop.f32.mrb[0].mxu0
        %v7617 = vadd.f32 %v7574, %v7616
        %v7618 = vpop.f32.mrb[0].mxu0
        %v7619 = vadd.f32 %v7576, %v7618
        %v7620 = vpop.f32.mrb[0].mxu0
        %v7621 = vadd.f32 %v7578, %v7620
        %7622 = vdwg.mxu0
        %7623 = vmatprep.subr.bf16.mxu0 %v5317
        %7624 = vmatpush1.bf16.msra.mxu0 %v5316
        %7625 = vmatprep.subr.bf16.mxu0 %v5325
        %7626 = vmatpush1.bf16.msra.mxu0 %v5324
        %7627 = vmatprep.subr.bf16.mxu0 %v5333
        %7628 = vmatpush1.bf16.msra.mxu0 %v5332
        %7629 = vmatprep.subr.bf16.mxu0 %v5341
        %7630 = vmatpush1.bf16.msra.mxu0 %v5340
        %7631 = vmatprep.subr.bf16.mxu0 %v5349
        %7632 = vmatpush1.bf16.msra.mxu0 %v5348
        %7633 = vmatprep.subr.bf16.mxu0 %v5357
        %7634 = vmatpush1.bf16.msra.mxu0 %v5356
        %7635 = vmatprep.subr.bf16.mxu0 %v5365
        %7636 = vmatpush1.bf16.msra.mxu0 %v5364
        %7637 = vmatprep.subr.bf16.mxu0 %v5373
        %7638 = vmatpush1.bf16.msra.mxu0 %v5372
        %7639 = vmatprep.subr.bf16.mxu0 %v5381
        %7640 = vmatpush1.bf16.msra.mxu0 %v5380
        %7641 = vmatprep.subr.bf16.mxu0 %v5389
        %7642 = vmatpush1.bf16.msra.mxu0 %v5388
        %7643 = vmatprep.subr.bf16.mxu0 %v5397
        %7644 = vmatpush1.bf16.msra.mxu0 %v5396
        %7645 = vmatprep.subr.bf16.mxu0 %v5405
        %7646 = vmatpush1.bf16.msra.mxu0 %v5404
        %7647 = vmatprep.subr.bf16.mxu0 %v5413
        %7648 = vmatpush1.bf16.msra.mxu0 %v5412
        %7649 = vmatprep.subr.bf16.mxu0 %v5421
        %7650 = vmatpush1.bf16.msra.mxu0 %v5420
        %7651 = vmatprep.subr.bf16.mxu0 %v5429
        %7652 = vmatpush1.bf16.msra.mxu0 %v5428
        %7653 = vmatprep.subr.bf16.mxu0 %v5437
        %7654 = vmatpush1.bf16.msra.mxu0 %v5436
        %7655 = vmatprep.mubr.bf16.mxu0 %v1579
        %7656 = vmatmul.mubr.bf16.gmra.mrb[0].mxu0 %v1578
        %v7657 = vpop.f32.mrb[0].mxu0
        %v7658 = vadd.f32 %v7615, %v7657
        %v7659 = vpop.f32.mrb[0].mxu0
        %v7660 = vadd.f32 %v7617, %v7659
        %v7661 = vpop.f32.mrb[0].mxu0
        %v7662 = vadd.f32 %v7619, %v7661
        %v7663 = vpop.f32.mrb[0].mxu0
        %v7664 = vadd.f32 %v7621, %v7663
        %7665 = vdwg.mxu0
        %7666 = vmatprep.subr.bf16.mxu0 %v5445
        %7667 = vmatpush1.bf16.msra.mxu0 %v5444
        %7668 = vmatprep.subr.bf16.mxu0 %v5453
        %7669 = vmatpush1.bf16.msra.mxu0 %v5452
        %7670 = vmatprep.subr.bf16.mxu0 %v5461
        %7671 = vmatpush1.bf16.msra.mxu0 %v5460
        %7672 = vmatprep.subr.bf16.mxu0 %v5469
        %7673 = vmatpush1.bf16.msra.mxu0 %v5468
        %7674 = vmatprep.subr.bf16.mxu0 %v5477
        %7675 = vmatpush1.bf16.msra.mxu0 %v5476
        %7676 = vmatprep.subr.bf16.mxu0 %v5485
        %7677 = vmatpush1.bf16.msra.mxu0 %v5484
        %7678 = vmatprep.subr.bf16.mxu0 %v5493
        %7679 = vmatpush1.bf16.msra.mxu0 %v5492
        %7680 = vmatprep.subr.bf16.mxu0 %v5501
        %7681 = vmatpush1.bf16.msra.mxu0 %v5500
        %7682 = vmatprep.subr.bf16.mxu0 %v5509
        %7683 = vmatpush1.bf16.msra.mxu0 %v5508
        %7684 = vmatprep.subr.bf16.mxu0 %v5517
        %7685 = vmatpush1.bf16.msra.mxu0 %v5516
        %7686 = vmatprep.subr.bf16.mxu0 %v5525
        %7687 = vmatpush1.bf16.msra.mxu0 %v5524
        %7688 = vmatprep.subr.bf16.mxu0 %v5533
        %7689 = vmatpush1.bf16.msra.mxu0 %v5532
        %7690 = vmatprep.subr.bf16.mxu0 %v5541
        %7691 = vmatpush1.bf16.msra.mxu0 %v5540
        %7692 = vmatprep.subr.bf16.mxu0 %v5549
        %7693 = vmatpush1.bf16.msra.mxu0 %v5548
        %7694 = vmatprep.subr.bf16.mxu0 %v5557
        %7695 = vmatpush1.bf16.msra.mxu0 %v5556
        %7696 = vmatprep.subr.bf16.mxu0 %v5565
        %7697 = vmatpush1.bf16.msra.mxu0 %v5564
        %7698 = vmatprep.mubr.bf16.mxu0 %v1581
        %7699 = vmatmul.mubr.bf16.gmra.mrb[0].mxu0 %v1580
        %v7700 = vpop.f32.mrb[0].mxu0
        %v7701 = vadd.f32 %v7658, %v7700
        %v7702 = vpop.f32.mrb[0].mxu0
        %v7703 = vadd.f32 %v7660, %v7702
        %v7704 = vpop.f32.mrb[0].mxu0
        %v7705 = vadd.f32 %v7662, %v7704
        %v7706 = vpop.f32.mrb[0].mxu0
        %v7707 = vadd.f32 %v7664, %v7706
        %7708 = vdwg.mxu0
        %7709 = vmatprep.subr.bf16.mxu0 %v5573
        %7710 = vmatpush1.bf16.msra.mxu0 %v5572
        %7711 = vmatprep.subr.bf16.mxu0 %v5581
        %7712 = vmatpush1.bf16.msra.mxu0 %v5580
        %7713 = vmatprep.subr.bf16.mxu0 %v5589
        %7714 = vmatpush1.bf16.msra.mxu0 %v5588
        %7715 = vmatprep.subr.bf16.mxu0 %v5597
        %7716 = vmatpush1.bf16.msra.mxu0 %v5596
        %7717 = vmatprep.subr.bf16.mxu0 %v5605
        %7718 = vmatpush1.bf16.msra.mxu0 %v5604
        %7719 = vmatprep.subr.bf16.mxu0 %v5613
        %7720 = vmatpush1.bf16.msra.mxu0 %v5612
        %7721 = vmatprep.subr.bf16.mxu0 %v5621
        %7722 = vmatpush1.bf16.msra.mxu0 %v5620
        %7723 = vmatprep.subr.bf16.mxu0 %v5629
        %7724 = vmatpush1.bf16.msra.mxu0 %v5628
        %7725 = vmatprep.subr.bf16.mxu0 %v5637
        %7726 = vmatpush1.bf16.msra.mxu0 %v5636
        %7727 = vmatprep.subr.bf16.mxu0 %v5645
        %7728 = vmatpush1.bf16.msra.mxu0 %v5644
        %7729 = vmatprep.subr.bf16.mxu0 %v5653
        %7730 = vmatpush1.bf16.msra.mxu0 %v5652
        %7731 = vmatprep.subr.bf16.mxu0 %v5661
        %7732 = vmatpush1.bf16.msra.mxu0 %v5660
        %7733 = vmatprep.subr.bf16.mxu0 %v5669
        %7734 = vmatpush1.bf16.msra.mxu0 %v5668
        %7735 = vmatprep.subr.bf16.mxu0 %v5677
        %7736 = vmatpush1.bf16.msra.mxu0 %v5676
        %7737 = vmatprep.subr.bf16.mxu0 %v5685
        %7738 = vmatpush1.bf16.msra.mxu0 %v5684
        %7739 = vmatprep.subr.bf16.mxu0 %v5693
        %7740 = vmatpush1.bf16.msra.mxu0 %v5692
        %7741 = vmatprep.mubr.bf16.mxu0 %v1583
        %7742 = vmatmul.mubr.bf16.gmra.mrb[0].mxu0 %v1582
        %v7743 = vpop.f32.mrb[0].mxu0
        %v7744 = vadd.f32 %v7701, %v7743
        %v7745 = vpop.f32.mrb[0].mxu0
        %v7746 = vadd.f32 %v7703, %v7745
        %v7747 = vpop.f32.mrb[0].mxu0
        %v7748 = vadd.f32 %v7705, %v7747
        %v7749 = vpop.f32.mrb[0].mxu0
        %v7750 = vadd.f32 %v7707, %v7749
        %7751 = vdwg.mxu0
        %7752 = vmatprep.subr.bf16.mxu0 %v4679
        %7753 = vmatpush1.bf16.msra.mxu0 %v4678
        %7754 = vmatprep.subr.bf16.mxu0 %v4687
        %7755 = vmatpush1.bf16.msra.mxu0 %v4686
        %7756 = vmatprep.subr.bf16.mxu0 %v4695
        %7757 = vmatpush1.bf16.msra.mxu0 %v4694
        %7758 = vmatprep.subr.bf16.mxu0 %v4703
        %7759 = vmatpush1.bf16.msra.mxu0 %v4702
        %7760 = vmatprep.subr.bf16.mxu0 %v4711
        %7761 = vmatpush1.bf16.msra.mxu0 %v4710
        %7762 = vmatprep.subr.bf16.mxu0 %v4719
        %7763 = vmatpush1.bf16.msra.mxu0 %v4718
        %7764 = vmatprep.subr.bf16.mxu0 %v4727
        %7765 = vmatpush1.bf16.msra.mxu0 %v4726
        %7766 = vmatprep.subr.bf16.mxu0 %v4735
        %7767 = vmatpush1.bf16.msra.mxu0 %v4734
        %7768 = vmatprep.subr.bf16.mxu0 %v4743
        %7769 = vmatpush1.bf16.msra.mxu0 %v4742
        %7770 = vmatprep.subr.bf16.mxu0 %v4751
        %7771 = vmatpush1.bf16.msra.mxu0 %v4750
        %7772 = vmatprep.subr.bf16.mxu0 %v4759
        %7773 = vmatpush1.bf16.msra.mxu0 %v4758
        %7774 = vmatprep.subr.bf16.mxu0 %v4767
        %7775 = vmatpush1.bf16.msra.mxu0 %v4766
        %7776 = vmatprep.subr.bf16.mxu0 %v4775
        %7777 = vmatpush1.bf16.msra.mxu0 %v4774
        %7778 = vmatprep.subr.bf16.mxu0 %v4783
        %7779 = vmatpush1.bf16.msra.mxu0 %v4782
        %7780 = vmatprep.subr.bf16.mxu0 %v4791
        %7781 = vmatpush1.bf16.msra.mxu0 %v4790
        %7782 = vmatprep.subr.bf16.mxu0 %v4799
        %7783 = vmatpush1.bf16.msra.mxu0 %v4798
        %7784 = vmatprep.mubr.bf16.mxu0 %v1569
        %7785 = vmatmul.mubr.bf16.gmra.mrb[0].mxu0 %v1568
        %v7786 = vpop.f32.mrb[0].mxu0
        %v7787 = vadd.f32 0.0, %v7786
        %v7788 = vpop.f32.mrb[0].mxu0
        %v7789 = vadd.f32 0.0, %v7788
        %v7790 = vpop.f32.mrb[0].mxu0
        %v7791 = vadd.f32 0.0, %v7790
        %v7792 = vpop.f32.mrb[0].mxu0
        %v7793 = vadd.f32 0.0, %v7792
        %7794 = vdwg.mxu0
        %7795 = vmatprep.subr.bf16.mxu0 %v4807
        %7796 = vmatpush1.bf16.msra.mxu0 %v4806
        %7797 = vmatprep.subr.bf16.mxu0 %v4815
        %7798 = vmatpush1.bf16.msra.mxu0 %v4814
        %7799 = vmatprep.subr.bf16.mxu0 %v4823
        %7800 = vmatpush1.bf16.msra.mxu0 %v4822
        %7801 = vmatprep.subr.bf16.mxu0 %v4831
        %7802 = vmatpush1.bf16.msra.mxu0 %v4830
        %7803 = vmatprep.subr.bf16.mxu0 %v4839
        %7804 = vmatpush1.bf16.msra.mxu0 %v4838
        %7805 = vmatprep.subr.bf16.mxu0 %v4847
        %7806 = vmatpush1.bf16.msra.mxu0 %v4846
        %7807 = vmatprep.subr.bf16.mxu0 %v4855
        %7808 = vmatpush1.bf16.msra.mxu0 %v4854
        %7809 = vmatprep.subr.bf16.mxu0 %v4863
        %7810 = vmatpush1.bf16.msra.mxu0 %v4862
        %7811 = vmatprep.subr.bf16.mxu0 %v4871
        %7812 = vmatpush1.bf16.msra.mxu0 %v4870
        %7813 = vmatprep.subr.bf16.mxu0 %v4879
        %7814 = vmatpush1.bf16.msra.mxu0 %v4878
        %7815 = vmatprep.subr.bf16.mxu0 %v4887
        %7816 = vmatpush1.bf16.msra.mxu0 %v4886
        %7817 = vmatprep.subr.bf16.mxu0 %v4895
        %7818 = vmatpush1.bf16.msra.mxu0 %v4894
        %7819 = vmatprep.subr.bf16.mxu0 %v4903
        %7820 = vmatpush1.bf16.msra.mxu0 %v4902
        %7821 = vmatprep.subr.bf16.mxu0 %v4911
        %7822 = vmatpush1.bf16.msra.mxu0 %v4910
        %7823 = vmatprep.subr.bf16.mxu0 %v4919
        %7824 = vmatpush1.bf16.msra.mxu0 %v4918
        %7825 = vmatprep.subr.bf16.mxu0 %v4927
        %7826 = vmatpush1.bf16.msra.mxu0 %v4926
        %7827 = vmatprep.mubr.bf16.mxu0 %v1571
        %7828 = vmatmul.mubr.bf16.gmra.mrb[0].mxu0 %v1570
        %v7829 = vpop.f32.mrb[0].mxu0
        %v7830 = vadd.f32 %v7787, %v7829
        %v7831 = vpop.f32.mrb[0].mxu0
        %v7832 = vadd.f32 %v7789, %v7831
        %v7833 = vpop.f32.mrb[0].mxu0
        %v7834 = vadd.f32 %v7791, %v7833
        %v7835 = vpop.f32.mrb[0].mxu0
        %v7836 = vadd.f32 %v7793, %v7835
        %7837 = vdwg.mxu0
        %7838 = vmatprep.subr.bf16.mxu0 %v4935
        %7839 = vmatpush1.bf16.msra.mxu0 %v4934
        %7840 = vmatprep.subr.bf16.mxu0 %v4943
        %7841 = vmatpush1.bf16.msra.mxu0 %v4942
        %7842 = vmatprep.subr.bf16.mxu0 %v4951
        %7843 = vmatpush1.bf16.msra.mxu0 %v4950
        %7844 = vmatprep.subr.bf16.mxu0 %v4959
        %7845 = vmatpush1.bf16.msra.mxu0 %v4958
        %7846 = vmatprep.subr.bf16.mxu0 %v4967
        %7847 = vmatpush1.bf16.msra.mxu0 %v4966
        %7848 = vmatprep.subr.bf16.mxu0 %v4975
        %7849 = vmatpush1.bf16.msra.mxu0 %v4974
        %7850 = vmatprep.subr.bf16.mxu0 %v4983
        %7851 = vmatpush1.bf16.msra.mxu0 %v4982
        %7852 = vmatprep.subr.bf16.mxu0 %v4991
        %7853 = vmatpush1.bf16.msra.mxu0 %v4990
        %7854 = vmatprep.subr.bf16.mxu0 %v4999
        %7855 = vmatpush1.bf16.msra.mxu0 %v4998
        %7856 = vmatprep.subr.bf16.mxu0 %v5007
        %7857 = vmatpush1.bf16.msra.mxu0 %v5006
        %7858 = vmatprep.subr.bf16.mxu0 %v5015
        %7859 = vmatpush1.bf16.msra.mxu0 %v5014
        %7860 = vmatprep.subr.bf16.mxu0 %v5023
        %7861 = vmatpush1.bf16.msra.mxu0 %v5022
        %7862 = vmatprep.subr.bf16.mxu0 %v5031
        %7863 = vmatpush1.bf16.msra.mxu0 %v5030
        %7864 = vmatprep.subr.bf16.mxu0 %v5039
        %7865 = vmatpush1.bf16.msra.mxu0 %v5038
        %7866 = vmatprep.subr.bf16.mxu0 %v5047
        %7867 = vmatpush1.bf16.msra.mxu0 %v5046
        %7868 = vmatprep.subr.bf16.mxu0 %v5055
        %7869 = vmatpush1.bf16.msra.mxu0 %v5054
        %7870 = vmatprep.mubr.bf16.mxu0 %v1573
        %7871 = vmatmul.mubr.bf16.gmra.mrb[0].mxu0 %v1572
        %v7872 = vpop.f32.mrb[0].mxu0
        %v7873 = vadd.f32 %v7830, %v7872
        %v7874 = vpop.f32.mrb[0].mxu0
        %v7875 = vadd.f32 %v7832, %v7874
        %v7876 = vpop.f32.mrb[0].mxu0
        %v7877 = vadd.f32 %v7834, %v7876
        %v7878 = vpop.f32.mrb[0].mxu0
        %v7879 = vadd.f32 %v7836, %v7878
        %7880 = vdwg.mxu0
        %7881 = vmatprep.subr.bf16.mxu0 %v5063
        %7882 = vmatpush1.bf16.msra.mxu0 %v5062
        %7883 = vmatprep.subr.bf16.mxu0 %v5071
        %7884 = vmatpush1.bf16.msra.mxu0 %v5070
        %7885 = vmatprep.subr.bf16.mxu0 %v5079
        %7886 = vmatpush1.bf16.msra.mxu0 %v5078
        %7887 = vmatprep.subr.bf16.mxu0 %v5087
        %7888 = vmatpush1.bf16.msra.mxu0 %v5086
        %7889 = vmatprep.subr.bf16.mxu0 %v5095
        %7890 = vmatpush1.bf16.msra.mxu0 %v5094
        %7891 = vmatprep.subr.bf16.mxu0 %v5103
        %7892 = vmatpush1.bf16.msra.mxu0 %v5102
        %7893 = vmatprep.subr.bf16.mxu0 %v5111
        %7894 = vmatpush1.bf16.msra.mxu0 %v5110
        %7895 = vmatprep.subr.bf16.mxu0 %v5119
        %7896 = vmatpush1.bf16.msra.mxu0 %v5118
        %7897 = vmatprep.subr.bf16.mxu0 %v5127
        %7898 = vmatpush1.bf16.msra.mxu0 %v5126
        %7899 = vmatprep.subr.bf16.mxu0 %v5135
        %7900 = vmatpush1.bf16.msra.mxu0 %v5134
        %7901 = vmatprep.subr.bf16.mxu0 %v5143
        %7902 = vmatpush1.bf16.msra.mxu0 %v5142
        %7903 = vmatprep.subr.bf16.mxu0 %v5151
        %7904 = vmatpush1.bf16.msra.mxu0 %v5150
        %7905 = vmatprep.subr.bf16.mxu0 %v5159
        %7906 = vmatpush1.bf16.msra.mxu0 %v5158
        %7907 = vmatprep.subr.bf16.mxu0 %v5167
        %7908 = vmatpush1.bf16.msra.mxu0 %v5166
        %7909 = vmatprep.subr.bf16.mxu0 %v5175
        %7910 = vmatpush1.bf16.msra.mxu0 %v5174
        %7911 = vmatprep.subr.bf16.mxu0 %v5183
        %7912 = vmatpush1.bf16.msra.mxu0 %v5182
        %7913 = vmatprep.mubr.bf16.mxu0 %v1575
        %7914 = vmatmul.mubr.bf16.gmra.mrb[0].mxu0 %v1574
        %v7915 = vpop.f32.mrb[0].mxu0
        %v7916 = vadd.f32 %v7873, %v7915
        %v7917 = vpop.f32.mrb[0].mxu0
        %v7918 = vadd.f32 %v7875, %v7917
        %v7919 = vpop.f32.mrb[0].mxu0
        %v7920 = vadd.f32 %v7877, %v7919
        %v7921 = vpop.f32.mrb[0].mxu0
        %v7922 = vadd.f32 %v7879, %v7921
        %7923 = vdwg.mxu0
        %7924 = vmatprep.subr.bf16.mxu0 %v5191
        %7925 = vmatpush1.bf16.msra.mxu0 %v5190
        %7926 = vmatprep.subr.bf16.mxu0 %v5199
        %7927 = vmatpush1.bf16.msra.mxu0 %v5198
        %7928 = vmatprep.subr.bf16.mxu0 %v5207
        %7929 = vmatpush1.bf16.msra.mxu0 %v5206
        %7930 = vmatprep.subr.bf16.mxu0 %v5215
        %7931 = vmatpush1.bf16.msra.mxu0 %v5214
        %7932 = vmatprep.subr.bf16.mxu0 %v5223
        %7933 = vmatpush1.bf16.msra.mxu0 %v5222
        %7934 = vmatprep.subr.bf16.mxu0 %v5231
        %7935 = vmatpush1.bf16.msra.mxu0 %v5230
        %7936 = vmatprep.subr.bf16.mxu0 %v5239
        %7937 = vmatpush1.bf16.msra.mxu0 %v5238
        %7938 = vmatprep.subr.bf16.mxu0 %v5247
        %7939 = vmatpush1.bf16.msra.mxu0 %v5246
        %7940 = vmatprep.subr.bf16.mxu0 %v5255
        %7941 = vmatpush1.bf16.msra.mxu0 %v5254
        %7942 = vmatprep.subr.bf16.mxu0 %v5263
        %7943 = vmatpush1.bf16.msra.mxu0 %v5262
        %7944 = vmatprep.subr.bf16.mxu0 %v5271
        %7945 = vmatpush1.bf16.msra.mxu0 %v5270
        %7946 = vmatprep.subr.bf16.mxu0 %v5279
        %7947 = vmatpush1.bf16.msra.mxu0 %v5278
        %7948 = vmatprep.subr.bf16.mxu0 %v5287
        %7949 = vmatpush1.bf16.msra.mxu0 %v5286
        %7950 = vmatprep.subr.bf16.mxu0 %v5295
        %7951 = vmatpush1.bf16.msra.mxu0 %v5294
        %7952 = vmatprep.subr.bf16.mxu0 %v5303
        %7953 = vmatpush1.bf16.msra.mxu0 %v5302
        %7954 = vmatprep.subr.bf16.mxu0 %v5311
        %7955 = vmatpush1.bf16.msra.mxu0 %v5310
        %7956 = vmatprep.mubr.bf16.mxu0 %v1577
        %7957 = vmatmul.mubr.bf16.gmra.mrb[0].mxu0 %v1576
        %v7958 = vpop.f32.mrb[0].mxu0
        %v7959 = vadd.f32 %v7916, %v7958
        %v7960 = vpop.f32.mrb[0].mxu0
        %v7961 = vadd.f32 %v7918, %v7960
        %v7962 = vpop.f32.mrb[0].mxu0
        %v7963 = vadd.f32 %v7920, %v7962
        %v7964 = vpop.f32.mrb[0].mxu0
        %v7965 = vadd.f32 %v7922, %v7964
        %7966 = vdwg.mxu0
        %7967 = vmatprep.subr.bf16.mxu0 %v5319
        %7968 = vmatpush1.bf16.msra.mxu0 %v5318
        %7969 = vmatprep.subr.bf16.mxu0 %v5327
        %7970 = vmatpush1.bf16.msra.mxu0 %v5326
        %7971 = vmatprep.subr.bf16.mxu0 %v5335
        %7972 = vmatpush1.bf16.msra.mxu0 %v5334
        %7973 = vmatprep.subr.bf16.mxu0 %v5343
        %7974 = vmatpush1.bf16.msra.mxu0 %v5342
        %7975 = vmatprep.subr.bf16.mxu0 %v5351
        %7976 = vmatpush1.bf16.msra.mxu0 %v5350
        %7977 = vmatprep.subr.bf16.mxu0 %v5359
        %7978 = vmatpush1.bf16.msra.mxu0 %v5358
        %7979 = vmatprep.subr.bf16.mxu0 %v5367
        %7980 = vmatpush1.bf16.msra.mxu0 %v5366
        %7981 = vmatprep.subr.bf16.mxu0 %v5375
        %7982 = vmatpush1.bf16.msra.mxu0 %v5374
        %7983 = vmatprep.subr.bf16.mxu0 %v5383
        %7984 = vmatpush1.bf16.msra.mxu0 %v5382
        %7985 = vmatprep.subr.bf16.mxu0 %v5391
        %7986 = vmatpush1.bf16.msra.mxu0 %v5390
        %7987 = vmatprep.subr.bf16.mxu0 %v5399
        %7988 = vmatpush1.bf16.msra.mxu0 %v5398
        %7989 = vmatprep.subr.bf16.mxu0 %v5407
        %7990 = vmatpush1.bf16.msra.mxu0 %v5406
        %7991 = vmatprep.subr.bf16.mxu0 %v5415
        %7992 = vmatpush1.bf16.msra.mxu0 %v5414
        %7993 = vmatprep.subr.bf16.mxu0 %v5423
        %7994 = vmatpush1.bf16.msra.mxu0 %v5422
        %7995 = vmatprep.subr.bf16.mxu0 %v5431
        %7996 = vmatpush1.bf16.msra.mxu0 %v5430
        %7997 = vmatprep.subr.bf16.mxu0 %v5439
        %7998 = vmatpush1.bf16.msra.mxu0 %v5438
        %7999 = vmatprep.mubr.bf16.mxu0 %v1579
        %8000 = vmatmul.mubr.bf16.gmra.mrb[0].mxu0 %v1578
        %v8001 = vpop.f32.mrb[0].mxu0
        %v8002 = vadd.f32 %v7959, %v8001
        %v8003 = vpop.f32.mrb[0].mxu0
        %v8004 = vadd.f32 %v7961, %v8003
        %v8005 = vpop.f32.mrb[0].mxu0
        %v8006 = vadd.f32 %v7963, %v8005
        %v8007 = vpop.f32.mrb[0].mxu0
        %v8008 = vadd.f32 %v7965, %v8007
        %8009 = vdwg.mxu0
        %8010 = vmatprep.subr.bf16.mxu0 %v5447
        %8011 = vmatpush1.bf16.msra.mxu0 %v5446
        %8012 = vmatprep.subr.bf16.mxu0 %v5455
        %8013 = vmatpush1.bf16.msra.mxu0 %v5454
        %8014 = vmatprep.subr.bf16.mxu0 %v5463
        %8015 = vmatpush1.bf16.msra.mxu0 %v5462
        %8016 = vmatprep.subr.bf16.mxu0 %v5471
        %8017 = vmatpush1.bf16.msra.mxu0 %v5470
        %8018 = vmatprep.subr.bf16.mxu0 %v5479
        %8019 = vmatpush1.bf16.msra.mxu0 %v5478
        %8020 = vmatprep.subr.bf16.mxu0 %v5487
        %8021 = vmatpush1.bf16.msra.mxu0 %v5486
        %8022 = vmatprep.subr.bf16.mxu0 %v5495
        %8023 = vmatpush1.bf16.msra.mxu0 %v5494
        %8024 = vmatprep.subr.bf16.mxu0 %v5503
        %8025 = vmatpush1.bf16.msra.mxu0 %v5502
        %8026 = vmatprep.subr.bf16.mxu0 %v5511
        %8027 = vmatpush1.bf16.msra.mxu0 %v5510
        %8028 = vmatprep.subr.bf16.mxu0 %v5519
        %8029 = vmatpush1.bf16.msra.mxu0 %v5518
        %8030 = vmatprep.subr.bf16.mxu0 %v5527
        %8031 = vmatpush1.bf16.msra.mxu0 %v5526
        %8032 = vmatprep.subr.bf16.mxu0 %v5535
        %8033 = vmatpush1.bf16.msra.mxu0 %v5534
        %8034 = vmatprep.subr.bf16.mxu0 %v5543
        %8035 = vmatpush1.bf16.msra.mxu0 %v5542
        %8036 = vmatprep.subr.bf16.mxu0 %v5551
        %8037 = vmatpush1.bf16.msra.mxu0 %v5550
        %8038 = vmatprep.subr.bf16.mxu0 %v5559
        %8039 = vmatpush1.bf16.msra.mxu0 %v5558
        %8040 = vmatprep.subr.bf16.mxu0 %v5567
        %8041 = vmatpush1.bf16.msra.mxu0 %v5566
        %8042 = vmatprep.mubr.bf16.mxu0 %v1581
        %8043 = vmatmul.mubr.bf16.gmra.mrb[0].mxu0 %v1580
        %v8044 = vpop.f32.mrb[0].mxu0
        %v8045 = vadd.f32 %v8002, %v8044
        %v8046 = vpop.f32.mrb[0].mxu0
        %v8047 = vadd.f32 %v8004, %v8046
        %v8048 = vpop.f32.mrb[0].mxu0
        %v8049 = vadd.f32 %v8006, %v8048
        %v8050 = vpop.f32.mrb[0].mxu0
        %v8051 = vadd.f32 %v8008, %v8050
        %8052 = vdwg.mxu0
        %8053 = vmatprep.subr.bf16.mxu0 %v5575
        %8054 = vmatpush1.bf16.msra.mxu0 %v5574
        %8055 = vmatprep.subr.bf16.mxu0 %v5583
        %8056 = vmatpush1.bf16.msra.mxu0 %v5582
        %8057 = vmatprep.subr.bf16.mxu0 %v5591
        %8058 = vmatpush1.bf16.msra.mxu0 %v5590
        %8059 = vmatprep.subr.bf16.mxu0 %v5599
        %8060 = vmatpush1.bf16.msra.mxu0 %v5598
        %8061 = vmatprep.subr.bf16.mxu0 %v5607
        %8062 = vmatpush1.bf16.msra.mxu0 %v5606
        %8063 = vmatprep.subr.bf16.mxu0 %v5615
        %8064 = vmatpush1.bf16.msra.mxu0 %v5614
        %8065 = vmatprep.subr.bf16.mxu0 %v5623
        %8066 = vmatpush1.bf16.msra.mxu0 %v5622
        %8067 = vmatprep.subr.bf16.mxu0 %v5631
        %8068 = vmatpush1.bf16.msra.mxu0 %v5630
        %8069 = vmatprep.subr.bf16.mxu0 %v5639
        %8070 = vmatpush1.bf16.msra.mxu0 %v5638
        %8071 = vmatprep.subr.bf16.mxu0 %v5647
        %8072 = vmatpush1.bf16.msra.mxu0 %v5646
        %8073 = vmatprep.subr.bf16.mxu0 %v5655
        %8074 = vmatpush1.bf16.msra.mxu0 %v5654
        %8075 = vmatprep.subr.bf16.mxu0 %v5663
        %8076 = vmatpush1.bf16.msra.mxu0 %v5662
        %8077 = vmatprep.subr.bf16.mxu0 %v5671
        %8078 = vmatpush1.bf16.msra.mxu0 %v5670
        %8079 = vmatprep.subr.bf16.mxu0 %v5679
        %8080 = vmatpush1.bf16.msra.mxu0 %v5678
        %8081 = vmatprep.subr.bf16.mxu0 %v5687
        %8082 = vmatpush1.bf16.msra.mxu0 %v5686
        %8083 = vmatprep.subr.bf16.mxu0 %v5695
        %8084 = vmatpush1.bf16.msra.mxu0 %v5694
        %8085 = vmatprep.mubr.bf16.mxu0 %v1583
        %8086 = vmatmul.mubr.bf16.gmra.mrb[0].mxu0 %v1582
        %v8087 = vpop.f32.mrb[0].mxu0
        %v8088 = vadd.f32 %v8045, %v8087
        %v8089 = vpop.f32.mrb[0].mxu0
        %v8090 = vadd.f32 %v8047, %v8089
        %v8091 = vpop.f32.mrb[0].mxu0
        %v8092 = vadd.f32 %v8049, %v8091
        %v8093 = vpop.f32.mrb[0].mxu0
        %v8094 = vadd.f32 %v8051, %v8093
        %8095 = vdwg.mxu0
        %v8096 = vadd.f32 %v464, %v7056
        %v8097 = vadd.f32 %v465, %v7058
        %v8098 = vadd.f32 %v466, %v7400
        %v8099 = vadd.f32 %v467, %v7402
        %v8100 = vadd.f32 %v468, %v7744
        %v8101 = vadd.f32 %v469, %v7746
        %v8102 = vadd.f32 %v470, %v8088
        %v8103 = vadd.f32 %v471, %v8090
        %v8104 = vadd.f32 %v472, %v7060
        %v8105 = vadd.f32 %v473, %v7062
        %v8106 = vadd.f32 %v474, %v7404
        %v8107 = vadd.f32 %v475, %v7406
        %v8108 = vadd.f32 %v476, %v7748
        %v8109 = vadd.f32 %v477, %v7750
        %v8110 = vadd.f32 %v478, %v8092
        %v8111 = vadd.f32 %v479, %v8094
        %8112 = vst [vmem:[#allocation2] sm:$0xff] %v8096
        %8113 = vst [vmem:[#allocation2 + $0x8] sm:$0xff] %v8097
        %8114 = vst [vmem:[#allocation2 + $0x10] sm:$0xff] %v8098
        %8115 = vst [vmem:[#allocation2 + $0x18] sm:$0xff] %v8099
        %8116 = vst [vmem:[#allocation2 + $0x20] sm:$0xff] %v8100
        %8117 = vst [vmem:[#allocation2 + $0x28] sm:$0xff] %v8101
        %8118 = vst [vmem:[#allocation2 + $0x30] sm:$0xff] %v8102
        %8119 = vst [vmem:[#allocation2 + $0x38] sm:$0xff] %v8103
        %8120 = vst [vmem:[#allocation2 + $0x40] sm:$0xff] %v8104
        %8121 = vst [vmem:[#allocation2 + $0x48] sm:$0xff] %v8105
        %8122 = vst [vmem:[#allocation2 + $0x50] sm:$0xff] %v8106
        %8123 = vst [vmem:[#allocation2 + $0x58] sm:$0xff] %v8107
        %8124 = vst [vmem:[#allocation2 + $0x60] sm:$0xff] %v8108
        %8125 = vst [vmem:[#allocation2 + $0x68] sm:$0xff] %v8109
        %8126 = vst [vmem:[#allocation2 + $0x70] sm:$0xff] %v8110
        %8127 = vst [vmem:[#allocation2 + $0x78] sm:$0xff] %v8111
        %p8128 = scmp.eq.s32.totalorder %s28, 1
        // Predicated region
        $region96: #{decoder_forward.1} parent=66 // pred_check
          %p8129 = pneg %p8128
        $region97: #{decoder_forward.1} parent=66 // pred_check_branch
          %8131 = sbr.rel (%p8129) target = $region99
        $region98: #{decoder_forward.1} parent=66 // pred_region
          %v8132 = vld [vmem:[#allocation2] sm:$0xff]
          %v8133 = vld [vmem:[#allocation2 + $0x8] sm:$0xff]
          %v8134 = vld [vmem:[#allocation2 + $0x10] sm:$0xff]
          %v8135 = vld [vmem:[#allocation2 + $0x18] sm:$0xff]
          %v8136 = vld [vmem:[#allocation2 + $0x20] sm:$0xff]
          %v8137 = vld [vmem:[#allocation2 + $0x28] sm:$0xff]
          %v8138 = vld [vmem:[#allocation2 + $0x30] sm:$0xff]
          %v8139 = vld [vmem:[#allocation2 + $0x38] sm:$0xff]
          %v8140 = vld [vmem:[#allocation2 + $0x40] sm:$0xff]
          %v8141 = vld [vmem:[#allocation2 + $0x48] sm:$0xff]
          %v8142 = vld [vmem:[#allocation2 + $0x50] sm:$0xff]
          %v8143 = vld [vmem:[#allocation2 + $0x58] sm:$0xff]
          %v8144 = vld [vmem:[#allocation2 + $0x60] sm:$0xff]
          %v8145 = vld [vmem:[#allocation2 + $0x68] sm:$0xff]
          %v8146 = vld [vmem:[#allocation2 + $0x70] sm:$0xff]
          %v8147 = vld [vmem:[#allocation2 + $0x78] sm:$0xff]
          %v8148 = vld [vmem:[#allocation6] sm:$0xff]
          %v8150 = vlaneseq
          %v8151 = vshrl.u32 %v8150, 7
          %v8152 = vsub.s32 0, %v8151
          %v8153 = vrot.slane %v8148, %v8152
          %v8154 = vlaneseq
          %v8155 = vshrl.u32 %v8154, 7
          %v8156 = vsub.s32 1, %v8155
          %v8157 = vrot.slane %v8148, %v8156
          %v8158 = vlaneseq
          %v8159 = vshrl.u32 %v8158, 7
          %v8160 = vsub.s32 2, %v8159
          %v8161 = vrot.slane %v8148, %v8160
          %v8162 = vlaneseq
          %v8163 = vshrl.u32 %v8162, 7
          %v8164 = vsub.s32 3, %v8163
          %v8165 = vrot.slane %v8148, %v8164
          %v8166 = vlaneseq
          %v8167 = vshrl.u32 %v8166, 7
          %v8168 = vsub.s32 4, %v8167
          %v8169 = vrot.slane %v8148, %v8168
          %v8170 = vlaneseq
          %v8171 = vshrl.u32 %v8170, 7
          %v8172 = vsub.s32 5, %v8171
          %v8173 = vrot.slane %v8148, %v8172
          %v8174 = vlaneseq
          %v8175 = vshrl.u32 %v8174, 7
          %v8176 = vsub.s32 6, %v8175
          %v8177 = vrot.slane %v8148, %v8176
          %v8178 = vlaneseq
          %v8179 = vshrl.u32 %v8178, 7
          %v8180 = vsub.s32 7, %v8179
          %v8181 = vrot.slane %v8148, %v8180
          %v8190 = vadd.f32 %v8132, %v8153
          %v8191 = vadd.f32 %v8133, %v8157
          %v8192 = vadd.f32 %v8134, %v8161
          %v8193 = vadd.f32 %v8135, %v8165
          %v8194 = vadd.f32 %v8136, %v8169
          %v8195 = vadd.f32 %v8137, %v8173
          %v8196 = vadd.f32 %v8138, %v8177
          %v8197 = vadd.f32 %v8139, %v8181
          %v8198 = vadd.f32 %v8140, %v8153
          %v8199 = vadd.f32 %v8141, %v8157
          %v8200 = vadd.f32 %v8142, %v8161
          %v8201 = vadd.f32 %v8143, %v8165
          %v8202 = vadd.f32 %v8144, %v8169
          %v8203 = vadd.f32 %v8145, %v8173
          %v8204 = vadd.f32 %v8146, %v8177
          %v8205 = vadd.f32 %v8147, %v8181
          %v8206 = vtanh.pop %v8190
          %v8207 = vtanh.pop %v8191
          %v8208 = vtanh.pop %v8192
          %v8209 = vtanh.pop %v8193
          %v8210 = vtanh.pop %v8194
          %v8211 = vtanh.pop %v8195
          %v8212 = vtanh.pop %v8196
          %v8213 = vtanh.pop %v8197
          %v8214 = vtanh.pop %v8198
          %v8215 = vtanh.pop %v8199
          %v8216 = vtanh.pop %v8200
          %v8217 = vtanh.pop %v8201
          %v8218 = vtanh.pop %v8202
          %v8219 = vtanh.pop %v8203
          %v8220 = vtanh.pop %v8204
          %v8221 = vtanh.pop %v8205
          %v8222 = vpack.c.bf16 %v8214, %v8206
          %v8223 = vpack.c.bf16 %v8215, %v8207
          %v8224 = vpack.c.bf16 %v8216, %v8208
          %v8225 = vpack.c.bf16 %v8217, %v8209
          %v8226 = vpack.c.bf16 %v8218, %v8210
          %v8227 = vpack.c.bf16 %v8219, %v8211
          %v8228 = vpack.c.bf16 %v8220, %v8212
          %v8229 = vpack.c.bf16 %v8221, %v8213
          %v8230 = vld [vmem:[%s3] sm:$0xf]
          %v8231 = vld [vmem:[%s3 + $0x4] sm:$0xf]
          %v8232 = vld [vmem:[%s3 + $0x8] sm:$0xf]
          %v8233 = vld [vmem:[%s3 + $0xc] sm:$0xf]
          %v8234 = vld [vmem:[%s3 + $0x10] sm:$0xf]
          %v8235 = vld [vmem:[%s3 + $0x14] sm:$0xf]
          %v8236 = vld [vmem:[%s3 + $0x18] sm:$0xf]
          %v8237 = vld [vmem:[%s3 + $0x1c] sm:$0xf]
          %v8238 = vld [vmem:[%s3 + $0x20] sm:$0xf]
          %v8239 = vld [vmem:[%s3 + $0x24] sm:$0xf]
          %v8240 = vld [vmem:[%s3 + $0x28] sm:$0xf]
          %v8241 = vld [vmem:[%s3 + $0x2c] sm:$0xf]
          %v8242 = vld [vmem:[%s3 + $0x30] sm:$0xf]
          %v8243 = vld [vmem:[%s3 + $0x34] sm:$0xf]
          %v8244 = vld [vmem:[%s3 + $0x38] sm:$0xf]
          %v8245 = vld [vmem:[%s3 + $0x3c] sm:$0xf]
          %v8246 = vld [vmem:[%s3 + $0x40] sm:$0xf]
          %v8247 = vld [vmem:[%s3 + $0x44] sm:$0xf]
          %v8248 = vld [vmem:[%s3 + $0x48] sm:$0xf]
          %v8249 = vld [vmem:[%s3 + $0x4c] sm:$0xf]
          %v8250 = vld [vmem:[%s3 + $0x50] sm:$0xf]
          %v8251 = vld [vmem:[%s3 + $0x54] sm:$0xf]
          %v8252 = vld [vmem:[%s3 + $0x58] sm:$0xf]
          %v8253 = vld [vmem:[%s3 + $0x5c] sm:$0xf]
          %v8254 = vld [vmem:[%s3 + $0x60] sm:$0xf]
          %v8255 = vld [vmem:[%s3 + $0x64] sm:$0xf]
          %v8256 = vld [vmem:[%s3 + $0x68] sm:$0xf]
          %v8257 = vld [vmem:[%s3 + $0x6c] sm:$0xf]
          %v8258 = vld [vmem:[%s3 + $0x70] sm:$0xf]
          %v8259 = vld [vmem:[%s3 + $0x74] sm:$0xf]
          %v8260 = vld [vmem:[%s3 + $0x78] sm:$0xf]
          %v8261 = vld [vmem:[%s3 + $0x7c] sm:$0xf]
          %v8262 = vld [vmem:[%s3 + $0x80] sm:$0xf]
          %v8263 = vld [vmem:[%s3 + $0x84] sm:$0xf]
          %v8264 = vld [vmem:[%s3 + $0x88] sm:$0xf]
          %v8265 = vld [vmem:[%s3 + $0x8c] sm:$0xf]
          %v8266 = vld [vmem:[%s3 + $0x90] sm:$0xf]
          %v8267 = vld [vmem:[%s3 + $0x94] sm:$0xf]
          %v8268 = vld [vmem:[%s3 + $0x98] sm:$0xf]
          %v8269 = vld [vmem:[%s3 + $0x9c] sm:$0xf]
          %v8270 = vld [vmem:[%s3 + $0xa0] sm:$0xf]
          %v8271 = vld [vmem:[%s3 + $0xa4] sm:$0xf]
          %v8272 = vld [vmem:[%s3 + $0xa8] sm:$0xf]
          %v8273 = vld [vmem:[%s3 + $0xac] sm:$0xf]
          %v8274 = vld [vmem:[%s3 + $0xb0] sm:$0xf]
          %v8275 = vld [vmem:[%s3 + $0xb4] sm:$0xf]
          %v8276 = vld [vmem:[%s3 + $0xb8] sm:$0xf]
          %v8277 = vld [vmem:[%s3 + $0xbc] sm:$0xf]
          %v8278 = vld [vmem:[%s3 + $0xc0] sm:$0xf]
          %v8279 = vld [vmem:[%s3 + $0xc4] sm:$0xf]
          %v8280 = vld [vmem:[%s3 + $0xc8] sm:$0xf]
          %v8281 = vld [vmem:[%s3 + $0xcc] sm:$0xf]
          %v8282 = vld [vmem:[%s3 + $0xd0] sm:$0xf]
          %v8283 = vld [vmem:[%s3 + $0xd4] sm:$0xf]
          %v8284 = vld [vmem:[%s3 + $0xd8] sm:$0xf]
          %v8285 = vld [vmem:[%s3 + $0xdc] sm:$0xf]
          %v8286 = vld [vmem:[%s3 + $0xe0] sm:$0xf]
          %v8287 = vld [vmem:[%s3 + $0xe4] sm:$0xf]
          %v8288 = vld [vmem:[%s3 + $0xe8] sm:$0xf]
          %v8289 = vld [vmem:[%s3 + $0xec] sm:$0xf]
          %v8290 = vld [vmem:[%s3 + $0xf0] sm:$0xf]
          %v8291 = vld [vmem:[%s3 + $0xf4] sm:$0xf]
          %v8292 = vld [vmem:[%s3 + $0xf8] sm:$0xf]
          %v8293 = vld [vmem:[%s3 + $0xfc] sm:$0xf]
          %v8294 = vld [vmem:[%s3 + $0x100] sm:$0xf]
          %v8295 = vld [vmem:[%s3 + $0x104] sm:$0xf]
          %v8296 = vld [vmem:[%s3 + $0x108] sm:$0xf]
          %v8297 = vld [vmem:[%s3 + $0x10c] sm:$0xf]
          %v8298 = vld [vmem:[%s3 + $0x110] sm:$0xf]
          %v8299 = vld [vmem:[%s3 + $0x114] sm:$0xf]
          %v8300 = vld [vmem:[%s3 + $0x118] sm:$0xf]
          %v8301 = vld [vmem:[%s3 + $0x11c] sm:$0xf]
          %v8302 = vld [vmem:[%s3 + $0x120] sm:$0xf]
          %v8303 = vld [vmem:[%s3 + $0x124] sm:$0xf]
          %v8304 = vld [vmem:[%s3 + $0x128] sm:$0xf]
          %v8305 = vld [vmem:[%s3 + $0x12c] sm:$0xf]
          %v8306 = vld [vmem:[%s3 + $0x130] sm:$0xf]
          %v8307 = vld [vmem:[%s3 + $0x134] sm:$0xf]
          %v8308 = vld [vmem:[%s3 + $0x138] sm:$0xf]
          %v8309 = vld [vmem:[%s3 + $0x13c] sm:$0xf]
          %v8310 = vld [vmem:[%s3 + $0x140] sm:$0xf]
          %v8311 = vld [vmem:[%s3 + $0x144] sm:$0xf]
          %v8312 = vld [vmem:[%s3 + $0x148] sm:$0xf]
          %v8313 = vld [vmem:[%s3 + $0x14c] sm:$0xf]
          %v8314 = vld [vmem:[%s3 + $0x150] sm:$0xf]
          %v8315 = vld [vmem:[%s3 + $0x154] sm:$0xf]
          %v8316 = vld [vmem:[%s3 + $0x158] sm:$0xf]
          %v8317 = vld [vmem:[%s3 + $0x15c] sm:$0xf]
          %v8318 = vld [vmem:[%s3 + $0x160] sm:$0xf]
          %v8319 = vld [vmem:[%s3 + $0x164] sm:$0xf]
          %v8320 = vld [vmem:[%s3 + $0x168] sm:$0xf]
          %v8321 = vld [vmem:[%s3 + $0x16c] sm:$0xf]
          %v8322 = vld [vmem:[%s3 + $0x170] sm:$0xf]
          %v8323 = vld [vmem:[%s3 + $0x174] sm:$0xf]
          %v8324 = vld [vmem:[%s3 + $0x178] sm:$0xf]
          %v8325 = vld [vmem:[%s3 + $0x17c] sm:$0xf]
          %v8326 = vld [vmem:[%s3 + $0x180] sm:$0xf]
          %v8327 = vld [vmem:[%s3 + $0x184] sm:$0xf]
          %v8328 = vld [vmem:[%s3 + $0x188] sm:$0xf]
          %v8329 = vld [vmem:[%s3 + $0x18c] sm:$0xf]
          %v8330 = vld [vmem:[%s3 + $0x190] sm:$0xf]
          %v8331 = vld [vmem:[%s3 + $0x194] sm:$0xf]
          %v8332 = vld [vmem:[%s3 + $0x198] sm:$0xf]
          %v8333 = vld [vmem:[%s3 + $0x19c] sm:$0xf]
          %v8334 = vld [vmem:[%s3 + $0x1a0] sm:$0xf]
          %v8335 = vld [vmem:[%s3 + $0x1a4] sm:$0xf]
          %v8336 = vld [vmem:[%s3 + $0x1a8] sm:$0xf]
          %v8337 = vld [vmem:[%s3 + $0x1ac] sm:$0xf]
          %v8338 = vld [vmem:[%s3 + $0x1b0] sm:$0xf]
          %v8339 = vld [vmem:[%s3 + $0x1b4] sm:$0xf]
          %v8340 = vld [vmem:[%s3 + $0x1b8] sm:$0xf]
          %v8341 = vld [vmem:[%s3 + $0x1bc] sm:$0xf]
          %v8342 = vld [vmem:[%s3 + $0x1c0] sm:$0xf]
          %v8343 = vld [vmem:[%s3 + $0x1c4] sm:$0xf]
          %v8344 = vld [vmem:[%s3 + $0x1c8] sm:$0xf]
          %v8345 = vld [vmem:[%s3 + $0x1cc] sm:$0xf]
          %v8346 = vld [vmem:[%s3 + $0x1d0] sm:$0xf]
          %v8347 = vld [vmem:[%s3 + $0x1d4] sm:$0xf]
          %v8348 = vld [vmem:[%s3 + $0x1d8] sm:$0xf]
          %v8349 = vld [vmem:[%s3 + $0x1dc] sm:$0xf]
          %v8350 = vld [vmem:[%s3 + $0x1e0] sm:$0xf]
          %v8351 = vld [vmem:[%s3 + $0x1e4] sm:$0xf]
          %v8352 = vld [vmem:[%s3 + $0x1e8] sm:$0xf]
          %v8353 = vld [vmem:[%s3 + $0x1ec] sm:$0xf]
          %v8354 = vld [vmem:[%s3 + $0x1f0] sm:$0xf]
          %v8355 = vld [vmem:[%s3 + $0x1f4] sm:$0xf]
          %v8356 = vld [vmem:[%s3 + $0x1f8] sm:$0xf]
          %v8357 = vld [vmem:[%s3 + $0x1fc] sm:$0xf]
          %v8358 = vld [vmem:[#allocation8] sm:$0x1]
          %v8360 = vlaneseq
          %v8361 = vshrl.u32 %v8360, 7
          %v8362 = vsub.s32 0, %v8361
          %v8363 = vrot.slane %v8358, %v8362
          %v8493 = vunpack.c.l.b16 %v8230
          %v8494 = vunpack.c.l.b16 %v8231
          %v8495 = vunpack.c.l.b16 %v8232
          %v8496 = vunpack.c.l.b16 %v8233
          %v8497 = vunpack.c.l.b16 %v8234
          %v8498 = vunpack.c.l.b16 %v8235
          %v8499 = vunpack.c.l.b16 %v8236
          %v8500 = vunpack.c.l.b16 %v8237
          %v8501 = vunpack.c.l.b16 %v8238
          %v8502 = vunpack.c.l.b16 %v8239
          %v8503 = vunpack.c.l.b16 %v8240
          %v8504 = vunpack.c.l.b16 %v8241
          %v8505 = vunpack.c.l.b16 %v8242
          %v8506 = vunpack.c.l.b16 %v8243
          %v8507 = vunpack.c.l.b16 %v8244
          %v8508 = vunpack.c.l.b16 %v8245
          %v8509 = vunpack.c.l.b16 %v8246
          %v8510 = vunpack.c.l.b16 %v8247
          %v8511 = vunpack.c.l.b16 %v8248
          %v8512 = vunpack.c.l.b16 %v8249
          %v8513 = vunpack.c.l.b16 %v8250
          %v8514 = vunpack.c.l.b16 %v8251
          %v8515 = vunpack.c.l.b16 %v8252
          %v8516 = vunpack.c.l.b16 %v8253
          %v8517 = vunpack.c.l.b16 %v8254
          %v8518 = vunpack.c.l.b16 %v8255
          %v8519 = vunpack.c.l.b16 %v8256
          %v8520 = vunpack.c.l.b16 %v8257
          %v8521 = vunpack.c.l.b16 %v8258
          %v8522 = vunpack.c.l.b16 %v8259
          %v8523 = vunpack.c.l.b16 %v8260
          %v8524 = vunpack.c.l.b16 %v8261
          %v8525 = vunpack.c.l.b16 %v8262
          %v8526 = vunpack.c.l.b16 %v8263
          %v8527 = vunpack.c.l.b16 %v8264
          %v8528 = vunpack.c.l.b16 %v8265
          %v8529 = vunpack.c.l.b16 %v8266
          %v8530 = vunpack.c.l.b16 %v8267
          %v8531 = vunpack.c.l.b16 %v8268
          %v8532 = vunpack.c.l.b16 %v8269
          %v8533 = vunpack.c.l.b16 %v8270
          %v8534 = vunpack.c.l.b16 %v8271
          %v8535 = vunpack.c.l.b16 %v8272
          %v8536 = vunpack.c.l.b16 %v8273
          %v8537 = vunpack.c.l.b16 %v8274
          %v8538 = vunpack.c.l.b16 %v8275
          %v8539 = vunpack.c.l.b16 %v8276
          %v8540 = vunpack.c.l.b16 %v8277
          %v8541 = vunpack.c.l.b16 %v8278
          %v8542 = vunpack.c.l.b16 %v8279
          %v8543 = vunpack.c.l.b16 %v8280
          %v8544 = vunpack.c.l.b16 %v8281
          %v8545 = vunpack.c.l.b16 %v8282
          %v8546 = vunpack.c.l.b16 %v8283
          %v8547 = vunpack.c.l.b16 %v8284
          %v8548 = vunpack.c.l.b16 %v8285
          %v8549 = vunpack.c.l.b16 %v8286
          %v8550 = vunpack.c.l.b16 %v8287
          %v8551 = vunpack.c.l.b16 %v8288
          %v8552 = vunpack.c.l.b16 %v8289
          %v8553 = vunpack.c.l.b16 %v8290
          %v8554 = vunpack.c.l.b16 %v8291
          %v8555 = vunpack.c.l.b16 %v8292
          %v8556 = vunpack.c.l.b16 %v8293
          %v8557 = vunpack.c.l.b16 %v8294
          %v8558 = vunpack.c.l.b16 %v8295
          %v8559 = vunpack.c.l.b16 %v8296
          %v8560 = vunpack.c.l.b16 %v8297
          %v8561 = vunpack.c.l.b16 %v8298
          %v8562 = vunpack.c.l.b16 %v8299
          %v8563 = vunpack.c.l.b16 %v8300
          %v8564 = vunpack.c.l.b16 %v8301
          %v8565 = vunpack.c.l.b16 %v8302
          %v8566 = vunpack.c.l.b16 %v8303
          %v8567 = vunpack.c.l.b16 %v8304
          %v8568 = vunpack.c.l.b16 %v8305
          %v8569 = vunpack.c.l.b16 %v8306
          %v8570 = vunpack.c.l.b16 %v8307
          %v8571 = vunpack.c.l.b16 %v8308
          %v8572 = vunpack.c.l.b16 %v8309
          %v8573 = vunpack.c.l.b16 %v8310
          %v8574 = vunpack.c.l.b16 %v8311
          %v8575 = vunpack.c.l.b16 %v8312
          %v8576 = vunpack.c.l.b16 %v8313
          %v8577 = vunpack.c.l.b16 %v8314
          %v8578 = vunpack.c.l.b16 %v8315
          %v8579 = vunpack.c.l.b16 %v8316
          %v8580 = vunpack.c.l.b16 %v8317
          %v8581 = vunpack.c.l.b16 %v8318
          %v8582 = vunpack.c.l.b16 %v8319
          %v8583 = vunpack.c.l.b16 %v8320
          %v8584 = vunpack.c.l.b16 %v8321
          %v8585 = vunpack.c.l.b16 %v8322
          %v8586 = vunpack.c.l.b16 %v8323
          %v8587 = vunpack.c.l.b16 %v8324
          %v8588 = vunpack.c.l.b16 %v8325
          %v8589 = vunpack.c.l.b16 %v8326
          %v8590 = vunpack.c.l.b16 %v8327
          %v8591 = vunpack.c.l.b16 %v8328
          %v8592 = vunpack.c.l.b16 %v8329
          %v8593 = vunpack.c.l.b16 %v8330
          %v8594 = vunpack.c.l.b16 %v8331
          %v8595 = vunpack.c.l.b16 %v8332
          %v8596 = vunpack.c.l.b16 %v8333
          %v8597 = vunpack.c.l.b16 %v8334
          %v8598 = vunpack.c.l.b16 %v8335
          %v8599 = vunpack.c.l.b16 %v8336
          %v8600 = vunpack.c.l.b16 %v8337
          %v8601 = vunpack.c.l.b16 %v8338
          %v8602 = vunpack.c.l.b16 %v8339
          %v8603 = vunpack.c.l.b16 %v8340
          %v8604 = vunpack.c.l.b16 %v8341
          %v8605 = vunpack.c.l.b16 %v8342
          %v8606 = vunpack.c.l.b16 %v8343
          %v8607 = vunpack.c.l.b16 %v8344
          %v8608 = vunpack.c.l.b16 %v8345
          %v8609 = vunpack.c.l.b16 %v8346
          %v8610 = vunpack.c.l.b16 %v8347
          %v8611 = vunpack.c.l.b16 %v8348
          %v8612 = vunpack.c.l.b16 %v8349
          %v8613 = vunpack.c.l.b16 %v8350
          %v8614 = vunpack.c.l.b16 %v8351
          %v8615 = vunpack.c.l.b16 %v8352
          %v8616 = vunpack.c.l.b16 %v8353
          %v8617 = vunpack.c.l.b16 %v8354
          %v8618 = vunpack.c.l.b16 %v8355
          %v8619 = vunpack.c.l.b16 %v8356
          %v8620 = vunpack.c.l.b16 %v8357
          %v8621 = vpack.c.b16 %v8494, %v8493
          %v8622 = vpack.c.b16 %v8496, %v8495
          %v8623 = vpack.c.b16 %v8498, %v8497
          %v8624 = vpack.c.b16 %v8500, %v8499
          %v8625 = vpack.c.b16 %v8502, %v8501
          %v8626 = vpack.c.b16 %v8504, %v8503
          %v8627 = vpack.c.b16 %v8506, %v8505
          %v8628 = vpack.c.b16 %v8508, %v8507
          %v8629 = vpack.c.b16 %v8510, %v8509
          %v8630 = vpack.c.b16 %v8512, %v8511
          %v8631 = vpack.c.b16 %v8514, %v8513
          %v8632 = vpack.c.b16 %v8516, %v8515
          %v8633 = vpack.c.b16 %v8518, %v8517
          %v8634 = vpack.c.b16 %v8520, %v8519
          %v8635 = vpack.c.b16 %v8522, %v8521
          %v8636 = vpack.c.b16 %v8524, %v8523
          %v8637 = vpack.c.b16 %v8526, %v8525
          %v8638 = vpack.c.b16 %v8528, %v8527
          %v8639 = vpack.c.b16 %v8530, %v8529
          %v8640 = vpack.c.b16 %v8532, %v8531
          %v8641 = vpack.c.b16 %v8534, %v8533
          %v8642 = vpack.c.b16 %v8536, %v8535
          %v8643 = vpack.c.b16 %v8538, %v8537
          %v8644 = vpack.c.b16 %v8540, %v8539
          %v8645 = vpack.c.b16 %v8542, %v8541
          %v8646 = vpack.c.b16 %v8544, %v8543
          %v8647 = vpack.c.b16 %v8546, %v8545
          %v8648 = vpack.c.b16 %v8548, %v8547
          %v8649 = vpack.c.b16 %v8550, %v8549
          %v8650 = vpack.c.b16 %v8552, %v8551
          %v8651 = vpack.c.b16 %v8554, %v8553
          %v8652 = vpack.c.b16 %v8556, %v8555
          %v8653 = vpack.c.b16 %v8558, %v8557
          %v8654 = vpack.c.b16 %v8560, %v8559
          %v8655 = vpack.c.b16 %v8562, %v8561
          %v8656 = vpack.c.b16 %v8564, %v8563
          %v8657 = vpack.c.b16 %v8566, %v8565
          %v8658 = vpack.c.b16 %v8568, %v8567
          %v8659 = vpack.c.b16 %v8570, %v8569
          %v8660 = vpack.c.b16 %v8572, %v8571
          %v8661 = vpack.c.b16 %v8574, %v8573
          %v8662 = vpack.c.b16 %v8576, %v8575
          %v8663 = vpack.c.b16 %v8578, %v8577
          %v8664 = vpack.c.b16 %v8580, %v8579
          %v8665 = vpack.c.b16 %v8582, %v8581
          %v8666 = vpack.c.b16 %v8584, %v8583
          %v8667 = vpack.c.b16 %v8586, %v8585
          %v8668 = vpack.c.b16 %v8588, %v8587
          %v8669 = vpack.c.b16 %v8590, %v8589
          %v8670 = vpack.c.b16 %v8592, %v8591
          %v8671 = vpack.c.b16 %v8594, %v8593
          %v8672 = vpack.c.b16 %v8596, %v8595
          %v8673 = vpack.c.b16 %v8598, %v8597
          %v8674 = vpack.c.b16 %v8600, %v8599
          %v8675 = vpack.c.b16 %v8602, %v8601
          %v8676 = vpack.c.b16 %v8604, %v8603
          %v8677 = vpack.c.b16 %v8606, %v8605
          %v8678 = vpack.c.b16 %v8608, %v8607
          %v8679 = vpack.c.b16 %v8610, %v8609
          %v8680 = vpack.c.b16 %v8612, %v8611
          %v8681 = vpack.c.b16 %v8614, %v8613
          %v8682 = vpack.c.b16 %v8616, %v8615
          %v8683 = vpack.c.b16 %v8618, %v8617
          %v8684 = vpack.c.b16 %v8620, %v8619
          %8749 = vmatprep.subr.bf16.mxu0 0
          %8750 = vmatpush1.bf16.msra.mxu0 %v8621
          %8751 = vmatprep.subr.bf16.mxu0 0
          %8752 = vmatpush1.bf16.msra.mxu0 %v8622
          %8753 = vmatprep.subr.bf16.mxu0 0
          %8754 = vmatpush1.bf16.msra.mxu0 %v8623
          %8755 = vmatprep.subr.bf16.mxu0 0
          %8756 = vmatpush1.bf16.msra.mxu0 %v8624
          %8757 = vmatprep.subr.bf16.mxu0 0
          %8758 = vmatpush1.bf16.msra.mxu0 %v8625
          %8759 = vmatprep.subr.bf16.mxu0 0
          %8760 = vmatpush1.bf16.msra.mxu0 %v8626
          %8761 = vmatprep.subr.bf16.mxu0 0
          %8762 = vmatpush1.bf16.msra.mxu0 %v8627
          %8763 = vmatprep.subr.bf16.mxu0 0
          %8764 = vmatpush1.bf16.msra.mxu0 %v8628
          %8765 = vmatprep.subr.bf16.mxu0 0
          %8766 = vmatpush1.bf16.msra.mxu0 %v8629
          %8767 = vmatprep.subr.bf16.mxu0 0
          %8768 = vmatpush1.bf16.msra.mxu0 %v8630
          %8769 = vmatprep.subr.bf16.mxu0 0
          %8770 = vmatpush1.bf16.msra.mxu0 %v8631
          %8771 = vmatprep.subr.bf16.mxu0 0
          %8772 = vmatpush1.bf16.msra.mxu0 %v8632
          %8773 = vmatprep.subr.bf16.mxu0 0
          %8774 = vmatpush1.bf16.msra.mxu0 %v8633
          %8775 = vmatprep.subr.bf16.mxu0 0
          %8776 = vmatpush1.bf16.msra.mxu0 %v8634
          %8777 = vmatprep.subr.bf16.mxu0 0
          %8778 = vmatpush1.bf16.msra.mxu0 %v8635
          %8779 = vmatprep.subr.bf16.mxu0 0
          %8780 = vmatpush1.bf16.msra.mxu0 %v8636
          %8781 = vmatprep.mubr.bf16.mxu0 %v8223
          %8782 = vmatmul.mubr.bf16.gmra.mrb[0].mxu0 %v8222
          %v8783 = vpop.f32.mrb[0].mxu0
          %v8784 = vadd.f32 %v8363, %v8783
          %v8785 = vpop.f32.mrb[0].mxu0
          %v8786 = vpop.f32.mrb[0].mxu0
          %v8787 = vadd.f32 %v8363, %v8786
          %v8788 = vpop.f32.mrb[0].mxu0
          %8789 = vdwg.mxu0
          %8790 = vmatprep.subr.bf16.mxu0 0
          %8791 = vmatpush1.bf16.msra.mxu0 %v8637
          %8792 = vmatprep.subr.bf16.mxu0 0
          %8793 = vmatpush1.bf16.msra.mxu0 %v8638
          %8794 = vmatprep.subr.bf16.mxu0 0
          %8795 = vmatpush1.bf16.msra.mxu0 %v8639
          %8796 = vmatprep.subr.bf16.mxu0 0
          %8797 = vmatpush1.bf16.msra.mxu0 %v8640
          %8798 = vmatprep.subr.bf16.mxu0 0
          %8799 = vmatpush1.bf16.msra.mxu0 %v8641
          %8800 = vmatprep.subr.bf16.mxu0 0
          %8801 = vmatpush1.bf16.msra.mxu0 %v8642
          %8802 = vmatprep.subr.bf16.mxu0 0
          %8803 = vmatpush1.bf16.msra.mxu0 %v8643
          %8804 = vmatprep.subr.bf16.mxu0 0
          %8805 = vmatpush1.bf16.msra.mxu0 %v8644
          %8806 = vmatprep.subr.bf16.mxu0 0
          %8807 = vmatpush1.bf16.msra.mxu0 %v8645
          %8808 = vmatprep.subr.bf16.mxu0 0
          %8809 = vmatpush1.bf16.msra.mxu0 %v8646
          %8810 = vmatprep.subr.bf16.mxu0 0
          %8811 = vmatpush1.bf16.msra.mxu0 %v8647
          %8812 = vmatprep.subr.bf16.mxu0 0
          %8813 = vmatpush1.bf16.msra.mxu0 %v8648
          %8814 = vmatprep.subr.bf16.mxu0 0
          %8815 = vmatpush1.bf16.msra.mxu0 %v8649
          %8816 = vmatprep.subr.bf16.mxu0 0
          %8817 = vmatpush1.bf16.msra.mxu0 %v8650
          %8818 = vmatprep.subr.bf16.mxu0 0
          %8819 = vmatpush1.bf16.msra.mxu0 %v8651
          %8820 = vmatprep.subr.bf16.mxu0 0
          %8821 = vmatpush1.bf16.msra.mxu0 %v8652
          %8822 = vmatprep.mubr.bf16.mxu0 %v8225
          %8823 = vmatmul.mubr.bf16.gmra.mrb[0].mxu0 %v8224
          %v8824 = vpop.f32.mrb[0].mxu0
          %v8825 = vadd.f32 %v8784, %v8824
          %v8826 = vpop.f32.mrb[0].mxu0
          %v8827 = vpop.f32.mrb[0].mxu0
          %v8828 = vadd.f32 %v8787, %v8827
          %v8829 = vpop.f32.mrb[0].mxu0
          %8830 = vdwg.mxu0
          %8831 = vmatprep.subr.bf16.mxu0 0
          %8832 = vmatpush1.bf16.msra.mxu0 %v8653
          %8833 = vmatprep.subr.bf16.mxu0 0
          %8834 = vmatpush1.bf16.msra.mxu0 %v8654
          %8835 = vmatprep.subr.bf16.mxu0 0
          %8836 = vmatpush1.bf16.msra.mxu0 %v8655
          %8837 = vmatprep.subr.bf16.mxu0 0
          %8838 = vmatpush1.bf16.msra.mxu0 %v8656
          %8839 = vmatprep.subr.bf16.mxu0 0
          %8840 = vmatpush1.bf16.msra.mxu0 %v8657
          %8841 = vmatprep.subr.bf16.mxu0 0
          %8842 = vmatpush1.bf16.msra.mxu0 %v8658
          %8843 = vmatprep.subr.bf16.mxu0 0
          %8844 = vmatpush1.bf16.msra.mxu0 %v8659
          %8845 = vmatprep.subr.bf16.mxu0 0
          %8846 = vmatpush1.bf16.msra.mxu0 %v8660
          %8847 = vmatprep.subr.bf16.mxu0 0
          %8848 = vmatpush1.bf16.msra.mxu0 %v8661
          %8849 = vmatprep.subr.bf16.mxu0 0
          %8850 = vmatpush1.bf16.msra.mxu0 %v8662
          %8851 = vmatprep.subr.bf16.mxu0 0
          %8852 = vmatpush1.bf16.msra.mxu0 %v8663
          %8853 = vmatprep.subr.bf16.mxu0 0
          %8854 = vmatpush1.bf16.msra.mxu0 %v8664
          %8855 = vmatprep.subr.bf16.mxu0 0
          %8856 = vmatpush1.bf16.msra.mxu0 %v8665
          %8857 = vmatprep.subr.bf16.mxu0 0
          %8858 = vmatpush1.bf16.msra.mxu0 %v8666
          %8859 = vmatprep.subr.bf16.mxu0 0
          %8860 = vmatpush1.bf16.msra.mxu0 %v8667
          %8861 = vmatprep.subr.bf16.mxu0 0
          %8862 = vmatpush1.bf16.msra.mxu0 %v8668
          %8863 = vmatprep.mubr.bf16.mxu0 %v8227
          %8864 = vmatmul.mubr.bf16.gmra.mrb[0].mxu0 %v8226
          %v8865 = vpop.f32.mrb[0].mxu0
          %v8866 = vadd.f32 %v8825, %v8865
          %v8867 = vpop.f32.mrb[0].mxu0
          %v8868 = vpop.f32.mrb[0].mxu0
          %v8869 = vadd.f32 %v8828, %v8868
          %v8870 = vpop.f32.mrb[0].mxu0
          %8871 = vdwg.mxu0
          %8872 = vmatprep.subr.bf16.mxu0 0
          %8873 = vmatpush1.bf16.msra.mxu0 %v8669
          %8874 = vmatprep.subr.bf16.mxu0 0
          %8875 = vmatpush1.bf16.msra.mxu0 %v8670
          %8876 = vmatprep.subr.bf16.mxu0 0
          %8877 = vmatpush1.bf16.msra.mxu0 %v8671
          %8878 = vmatprep.subr.bf16.mxu0 0
          %8879 = vmatpush1.bf16.msra.mxu0 %v8672
          %8880 = vmatprep.subr.bf16.mxu0 0
          %8881 = vmatpush1.bf16.msra.mxu0 %v8673
          %8882 = vmatprep.subr.bf16.mxu0 0
          %8883 = vmatpush1.bf16.msra.mxu0 %v8674
          %8884 = vmatprep.subr.bf16.mxu0 0
          %8885 = vmatpush1.bf16.msra.mxu0 %v8675
          %8886 = vmatprep.subr.bf16.mxu0 0
          %8887 = vmatpush1.bf16.msra.mxu0 %v8676
          %8888 = vmatprep.subr.bf16.mxu0 0
          %8889 = vmatpush1.bf16.msra.mxu0 %v8677
          %8890 = vmatprep.subr.bf16.mxu0 0
          %8891 = vmatpush1.bf16.msra.mxu0 %v8678
          %8892 = vmatprep.subr.bf16.mxu0 0
          %8893 = vmatpush1.bf16.msra.mxu0 %v8679
          %8894 = vmatprep.subr.bf16.mxu0 0
          %8895 = vmatpush1.bf16.msra.mxu0 %v8680
          %8896 = vmatprep.subr.bf16.mxu0 0
          %8897 = vmatpush1.bf16.msra.mxu0 %v8681
          %8898 = vmatprep.subr.bf16.mxu0 0
          %8899 = vmatpush1.bf16.msra.mxu0 %v8682
          %8900 = vmatprep.subr.bf16.mxu0 0
          %8901 = vmatpush1.bf16.msra.mxu0 %v8683
          %8902 = vmatprep.subr.bf16.mxu0 0
          %8903 = vmatpush1.bf16.msra.mxu0 %v8684
          %8904 = vmatprep.mubr.bf16.mxu0 %v8229
          %8905 = vmatmul.mubr.bf16.gmra.mrb[0].mxu0 %v8228
          %v8906 = vpop.f32.mrb[0].mxu0
          %v8907 = vadd.f32 %v8866, %v8906
          %v8908 = vpop.f32.mrb[0].mxu0
          %v8909 = vpop.f32.mrb[0].mxu0
          %v8910 = vadd.f32 %v8869, %v8909
          %v8911 = vpop.f32.mrb[0].mxu0
          %8912 = vdwg.mxu0
          %v8913 = vtanh.pop %v8907
          %v8914 = vtanh.pop %v8910
          %v8915 = vld [vmem:[#allocation9] sm:$0xff]
          %v8916 = vld [vmem:[#allocation9 + $0x8] sm:$0xff]
          %v8917 = vld [vmem:[#allocation9 + $0x10] sm:$0xff]
          %v8918 = vld [vmem:[#allocation9 + $0x18] sm:$0xff]
          %v8919 = vld [vmem:[#allocation9 + $0x20] sm:$0xff]
          %v8920 = vld [vmem:[#allocation9 + $0x28] sm:$0xff]
          %v8921 = vld [vmem:[#allocation9 + $0x30] sm:$0xff]
          %v8922 = vld [vmem:[#allocation9 + $0x38] sm:$0xff]
          %v8923 = vld [vmem:[#allocation11] sm:$0x1]
          %v8925 = vlaneseq
          %v8926 = vshrl.u32 %v8925, 7
          %v8927 = vsub.s32 0, %v8926
          %v8928 = vrot.slane %v8923, %v8927
          %vm8930 = vcmask 523264
          %v8932 = vsel %vm8930, %v8913, 0
          %v8935 = vsel %vm8930, %v8914, 0
          %8937 = vmatprep.subr.mxu0 0.0
          %8938 = vmatpush1.msra.mxu0 %v8915
          %8939 = vmatprep.subr.mxu0 0.0
          %8940 = vmatpush1.msra.mxu0 %v8916
          %8941 = vmatprep.subr.mxu0 0.0
          %8942 = vmatpush1.msra.mxu0 %v8917
          %8943 = vmatprep.subr.mxu0 0.0
          %8944 = vmatpush1.msra.mxu0 %v8918
          %8945 = vmatprep.subr.mxu0 0.0
          %8946 = vmatpush1.msra.mxu0 %v8919
          %8947 = vmatprep.subr.mxu0 0.0
          %8948 = vmatpush1.msra.mxu0 %v8920
          %8949 = vmatprep.subr.mxu0 0.0
          %8950 = vmatpush1.msra.mxu0 %v8921
          %8951 = vmatprep.subr.mxu0 0.0
          %8952 = vmatpush1.msra.mxu0 %v8922
          %8953 = vmatprep.subr.mxu0 0.0
          %8954 = vmatpush1.msra.mxu0 0.0
          %8955 = vmatprep.subr.mxu0 0.0
          %8956 = vmatpush1.msra.mxu0 0.0
          %8957 = vmatprep.subr.mxu0 0.0
          %8958 = vmatpush1.msra.mxu0 0.0
          %8959 = vmatprep.subr.mxu0 0.0
          %8960 = vmatpush1.msra.mxu0 0.0
          %8961 = vmatprep.subr.mxu0 0.0
          %8962 = vmatpush1.msra.mxu0 0.0
          %8963 = vmatprep.subr.mxu0 0.0
          %8964 = vmatpush1.msra.mxu0 0.0
          %8965 = vmatprep.subr.mxu0 0.0
          %8966 = vmatpush1.msra.mxu0 0.0
          %8967 = vmatprep.subr.mxu0 0.0
          %8968 = vmatpush1.msra.mxu0 0.0
          %8969 = vmatprep.subr.mxu0 0.0
          %8970 = vmatpush1.msra.mxu0 0.0
          %8971 = vmatprep.subr.mxu0 0.0
          %8972 = vmatpush1.msra.mxu0 0.0
          %8973 = vmatprep.subr.mxu0 0.0
          %8974 = vmatpush1.msra.mxu0 0.0
          %8975 = vmatprep.subr.mxu0 0.0
          %8976 = vmatpush1.msra.mxu0 0.0
          %8977 = vmatprep.subr.mxu0 0.0
          %8978 = vmatpush1.msra.mxu0 0.0
          %8979 = vmatprep.subr.mxu0 0.0
          %8980 = vmatpush1.msra.mxu0 0.0
          %8981 = vmatprep.subr.mxu0 0.0
          %8982 = vmatpush1.msra.mxu0 0.0
          %8983 = vmatprep.subr.mxu0 0.0
          %8984 = vmatpush1.msra.mxu0 0.0
          %8985 = vmatprep.subr.mxu0 0.0
          %8986 = vmatpush1.msra.mxu0 0.0
          %8987 = vmatprep.subr.mxu0 0.0
          %8988 = vmatpush1.msra.mxu0 0.0
          %8989 = vmatprep.subr.mxu0 0.0
          %8990 = vmatpush1.msra.mxu0 0.0
          %8991 = vmatprep.subr.mxu0 0.0
          %8992 = vmatpush1.msra.mxu0 0.0
          %8993 = vmatprep.subr.mxu0 0.0
          %8994 = vmatpush1.msra.mxu0 0.0
          %8995 = vmatprep.subr.mxu0 0.0
          %8996 = vmatpush1.msra.mxu0 0.0
          %8997 = vmatprep.subr.mxu0 0.0
          %8998 = vmatpush1.msra.mxu0 0.0
          %8999 = vmatprep.subr.mxu0 0.0
          %9000 = vmatpush1.msra.mxu0 0.0
          %9001 = vmatprep.mubr.f32.mxu0 0.0
          %9002 = vmatmul.mubr.f32.gmra.mrb[0].mxu0 %v8932
          %v9003 = vpop.f32.mrb[0].mxu0
          %v9004 = vadd.f32 %v8928, %v9003
          %v9005 = vpop.f32.mrb[0].mxu0
          %9006 = vmatprep.mubr.f32.mxu0 0.0
          %9007 = vmatmul.mubr.f32.gmra.mrb[0].mxu0 %v8935
          %v9008 = vpop.f32.mrb[0].mxu0
          %v9009 = vadd.f32 %v8928, %v9008
          %v9010 = vpop.f32.mrb[0].mxu0
          %9011 = vdwg.mxu0
          %v9012 = vxor.u32 %v9004, 2147483648
          %v9013 = vxor.u32 %v9009, 2147483648
          %v9014 = vmul.f32 %v9012, 1.442695
          %v9015 = vpow.pop %v9014
          %v9016 = vmul.f32 %v9013, 1.442695
          %v9017 = vpow.pop %v9016
          %v9018 = vadd.f32 %v9015, 1.0
          %v9019 = vadd.f32 %v9017, 1.0
          %v9020 = vrcp.pop %v9018
          %v9021 = vmul.f32 1.0, %v9020
          %v9022 = vrcp.pop %v9019
          %v9023 = vmul.f32 1.0, %v9022
          %9026 = vrot.lane.b32.xlu0 %v9021, 64
          %v9027 = vpop.permute.xlu0 %9026
          %9028 = vrot.lane.b32.xlu0 %v9023, 64
          %v9029 = vpop.permute.xlu0 %9028
          %v9032 = vsel %vm8930, %v8913, %v9027
          %v9033 = vsel %vm8930, %v8914, %v9029
          %9034 = vst [vmem:[%s441] sm:$0xff] %v9032
          %9035 = vst [vmem:[%s441 + $0x8] sm:$0xff] %v9033
        $region99: #{decoder_forward.1} parent=66 // pred_fallthru
          _
        %s9036 = smul.u32 2, %s27
        %p9037 = scmp.lt.s32.totalorder %s9036, 1
        %s9038 = scalar_select %p9037, %s9036, 1
        %s9039 = smul.addr %s9038, 8
        %s9040 = scalar_lea.vmem %s7, %s9039
        // Predicated region
        $region100: #{decoder_forward.1} parent=66 // pred_check
          %p9041 = pneg %p212
        $region101: #{decoder_forward.1} parent=66 // pred_check_branch
          %9043 = sbr.rel (%p9041) target = $region103
        $region102: #{decoder_forward.1} parent=66 // pred_region
          %s9044 = smul.u32 2, %s27
        $region103: #{decoder_forward.1} parent=66 // pred_fallthru
          _
        // Predicated region
        $region104: #{decoder_forward.1} parent=66 // pred_check
          %p9045 = pneg %p212
        $region105: #{decoder_forward.1} parent=66 // pred_check_branch
          %9047 = sbr.rel (%p9045) target = $region107
        $region106: #{decoder_forward.1} parent=66 // pred_region
          %s9048 = smul.u32 2, %s27
          %p9049 = scmp.lt.s32.totalorder %s9048, 1
          %s9050 = scalar_select %p9049, %s9048, 1
          %s9051 = smul.addr %s9050, 8
          %s9052 = scalar_lea.vmem %s7, %s9051
        $region107: #{decoder_forward.1} parent=66 // pred_fallthru
          _
      $region67: #{decoder_forward.1} parent=5 // pred_fallthru
        _
      %p9053 = scmp.le.s32.totalorder 2, %s18
      // Predicated region
      $region108: #{decoder_forward.1} parent=5 // pred_check
        %p9054 = pneg %p9053
      $region109: #{decoder_forward.1} parent=5 // pred_check_branch
        %9056 = sbr.rel (%p9054) target = $region111
      $region110: #{decoder_forward.1} parent=5 // pred_region
        %s9057 = ssub.s32 %s18, 2
      $region111: #{decoder_forward.1} parent=5 // pred_fallthru
        _
    $region6: #{decoder_forward.1} parent=1 // loop_footer
      %s22 = sadd.s32 1, %s18
    $region7: #{decoder_forward.1} parent=1 // loop_footer_branch
      %17 = sbr.rel target = $region3
    $region8: #{decoder_forward.1} parent=1 // loop_exit
      _
    %9058 = vsyncpa [#allocation5], 1
    %s9059 = scalar_lea.sflag [#allocation5], 1
    %9060 = vsyncpa %s9059, 1
    %9061 = vsyncpa [#allocation7], 1
    %9062 = vsyncpa [#allocation10], 1

</llo_original>
